<compile_context>
chip_gen: v5e
topology: v5e:2x2
jax: 0.10.0
libtpu: 0.0.40
codegen_flags: <defaults>
</compile_context>

<pallas_src>
import functools
import math

import jax
import jax.numpy as jnp
from jax import lax
from jax.experimental import pallas as pl
from jax.experimental.pallas import tpu as pltpu

# ESCAPE_NET config: cfg = [64,'A',64,'A',64], default_threshold=1.0, leak=1.0,
# kernel sizes 8 -> 4 -> 2 (module halves kernel_size after each conv), bias=False.
THRESHOLD = 1.0
LEAK = 1.0
CH = 64
HIDDEN = 256
LABELS = 3


# ----------------------------- Pallas kernels ------------------------------

def _conv_lif_pool_kernel(x_ref, w_ref, out_ref, mem_ref, sp_ref, *,
                          k, H, W, Cin, Cout, prebuilt, pool, pad_lo, thr, leak):
    """Spiking conv layer with the time loop on the grid (grid = (B, T)).

    x_ref  : prebuilt patches (H*W, k*k*Cin) bf16            (prebuilt=True)
             or padded spike map (H+k-1, W+k-1, Cin) bf16    (prebuilt=False)
    w_ref  : (k*k*Cin, Cout) bf16
    out_ref: pooled spike map, zero-padded for the next conv (pool=True)
             or raw spike map (H*W, Cout)                    (pool=False)
    mem_ref: VMEM (H*W, Cout) f32 membrane, resident across the T axis
    sp_ref : VMEM (H*W, Cout) f32 spike scratch (pooling via strided loads)
    """
    t = pl.program_id(1)

    @pl.when(t == 0)
    def _init():
        mem_ref[...] = jnp.zeros_like(mem_ref)

    inv_thr = 1.0 / thr
    mem_old = mem_ref[...]
    spike = (mem_old * inv_thr - 1.0 > 0.0).astype(jnp.float32)   # LinearSpike.forward

    # Drive: conv lowered to matmul; patches assembled in VMEM (no HBM inflation).
    if prebuilt:
        z = jnp.dot(x_ref[...], w_ref[...], preferred_element_type=jnp.float32)
    else:
        s = x_ref[...].astype(jnp.float32)      # (H+k-1, W+k-1, Cin); f32 layout ops
        w = w_ref[...]                          # (k*k*Cin, Cout) bf16
        z = None
        for kh in range(k):                     # unrolled; K = k*Cin per MXU dot
            cols = [s[kh:kh + H, kw:kw + W, :] for kw in range(k)]
            pk = cols[0] if k == 1 else jnp.concatenate(cols, axis=-1)
            pk = pk.reshape(H * W, k * Cin).astype(w.dtype)
            part = jnp.dot(pk, w[kh * k * Cin:(kh + 1) * k * Cin, :],
                           preferred_element_type=jnp.float32)
            z = part if z is None else z + part

    # LIF update:  rst = thr * (mem/thr - 1 > 0)
    mem_ref[...] = leak * mem_old + z - thr * spike

    if pool:
        # Fused AvgPool2d(2): W-pairs are adjacent rows of the (H*W, C) spike, then
        # H-pairs are the two W//2 halves of each group of W pooled rows.
        sp_ref[...] = spike
        hw = H * W
        wsum = (sp_ref[pl.ds(0, hw // 2, stride=2), :] +
                sp_ref[pl.ds(1, hw // 2, stride=2), :])            # (H*W/2, C)
        wsum = wsum.reshape(H // 2, W, Cout)
        pooled = (wsum[:, :W // 2, :] + wsum[:, W // 2:, :]) * 0.25
        out_ref[...] = jnp.zeros_like(out_ref)                     # zero pad halo
        out_ref[pad_lo:pad_lo + H // 2, pad_lo:pad_lo + W // 2, :] = (
            pooled.astype(out_ref.dtype))
    else:
        out_ref[...] = spike.astype(out_ref.dtype)


def _fc_head_kernel(s_ref, w1_ref, w2_ref, out_ref, drive_ref, *,
                    timesteps, hidden, labels, thr, leak):
    """Fused classifier: fc1 LIF + fc2 LIF + Softmax residual, full time loop.

    s_ref  : (T, F) bf16 spike train of conv3 (NHWC-flattened)
    w1_ref : (F, hidden) bf16 (columns pre-permuted to NHWC order)
    w2_ref : (hidden, labels) bf16
    out_ref: (1, labels) f32 final membrane of the output layer
    """
    # One batched matmul for all timesteps (avoids T matmuls with M = 1).
    drive_ref[...] = jnp.dot(s_ref[...], w1_ref[...],
                             preferred_element_type=jnp.float32)
    w2 = w2_ref[...]
    inv_thr = 1.0 / thr

    def step(t, carry):
        mem8, mem10 = carry
        sp8 = (mem8 * inv_thr - 1.0 > 0.0).astype(jnp.float32)
        mem8 = leak * mem8 + drive_ref[pl.ds(t, 1), :] - thr * sp8
        sp10 = (mem10 * inv_thr - 1.0 > 0.0).astype(jnp.float32)
        e = jnp.exp(sp10 - jnp.max(sp10, axis=-1, keepdims=True))
        sm = e / jnp.sum(e, axis=-1, keepdims=True)                 # nn.Softmax(dim=1)
        z2 = jnp.dot(sp8.astype(w2.dtype), w2, preferred_element_type=jnp.float32)
        mem10 = leak * mem10 + z2 - thr * sp10 + sm
        return (mem8, mem10)

    mem8 = jnp.zeros((1, hidden), jnp.float32)
    mem10 = jnp.zeros((1, labels), jnp.float32)
    _, mem10 = lax.fori_loop(0, timesteps, step, (mem8, mem10))
    out_ref[...] = mem10


# ----------------------------- pallas_call wrappers -------------------------

def _spiking_conv(x_train, w_mat, *, k, H, W, Cin, Cout, prebuilt, pool,
                  pad_lo_out, pad_hi_out, thr=THRESHOLD, leak=LEAK):
    """One spiking conv layer over the full time axis.  Grid = (B, T)."""
    T, B = x_train.shape[:2]
    if prebuilt:
        x_spec = pl.BlockSpec((None, None, H * W, k * k * Cin),
                              lambda b, t: (t, b, 0, 0))
    else:
        Hp, Wp = H + k - 1, W + k - 1
        x_spec = pl.BlockSpec((None, None, Hp, Wp, Cin),
                              lambda b, t: (t, b, 0, 0, 0))
    w_spec = pl.BlockSpec(w_mat.shape, lambda b, t: (0, 0))   # resident, DMA'd once

    if pool:
        Ho = H // 2 + pad_lo_out + pad_hi_out
        Wo = W // 2 + pad_lo_out + pad_hi_out
        out_shape = jax.ShapeDtypeStruct((T, B, Ho, Wo, Cout), jnp.bfloat16)
        out_spec = pl.BlockSpec((None, None, Ho, Wo, Cout),
                                lambda b, t: (t, b, 0, 0, 0))
    else:
        out_shape = jax.ShapeDtypeStruct((B, T, H * W, Cout), jnp.bfloat16)
        out_spec = pl.BlockSpec((None, None, H * W, Cout),
                                lambda b, t: (b, t, 0, 0))

    kernel = functools.partial(
        _conv_lif_pool_kernel, k=k, H=H, W=W, Cin=Cin, Cout=Cout,
        prebuilt=prebuilt, pool=pool, pad_lo=pad_lo_out, thr=thr, leak=leak)

    return pl.pallas_call(
        kernel,
        out_shape=out_shape,
        grid=(B, T),
        in_specs=[x_spec, w_spec],
        out_specs=out_spec,
        scratch_shapes=[pltpu.VMEM((H * W, Cout), jnp.float32),   # membrane
                        pltpu.VMEM((H * W, Cout), jnp.float32)],  # spike (pool)
        compiler_params=pltpu.CompilerParams(
            dimension_semantics=("parallel", "arbitrary")),
    )(x_train, w_mat)


def fc_head(s3_flat, w1_mat, w2_mat, *, thr=THRESHOLD, leak=LEAK):
    """s3_flat: (B, T, F) bf16 -> final classifier membrane (B, LABELS) f32."""
    B, T, F = s3_flat.shape
    hidden = w1_mat.shape[1]
    labels = w2_mat.shape[1]
    kernel = functools.partial(_fc_head_kernel, timesteps=T, hidden=hidden,
                               labels=labels, thr=thr, leak=leak)
    out = pl.pallas_call(
        kernel,
        out_shape=jax.ShapeDtypeStruct((B, 1, labels), jnp.float32),
        grid=(B,),
        in_specs=[pl.BlockSpec((None, T, F), lambda b: (b, 0, 0)),
                  pl.BlockSpec((F, hidden), lambda b: (0, 0)),
                  pl.BlockSpec((hidden, labels), lambda b: (0, 0))],
        out_specs=pl.BlockSpec((None, 1, labels), lambda b: (b, 0, 0)),
        scratch_shapes=[pltpu.VMEM((T, hidden), jnp.float32)],
        compiler_params=pltpu.CompilerParams(dimension_semantics=("parallel",)),
    )(s3_flat, w1_mat, w2_mat)
    return out[:, 0, :]


# ------------------------------- glue (JAX) --------------------------------

def poisson_spikes(x, key):
    """PoissonGenerator: (rand <= |x|*0.9).float() * sign(x)."""
    u = jax.random.uniform(key, x.shape, dtype=x.dtype)
    return (u <= jnp.abs(x) * 0.9).astype(x.dtype) * jnp.sign(x)


def _same_pad(k):
    """PyTorch Conv2d(padding='same') for even kernels: begin=(k-1)//2, end=k-1-begin."""
    lo = (k - 1) // 2
    return lo, (k - 1) - lo


def _conv_w_to_mat(w_oihw):
    """(Cout, Cin, KH, KW) torch layout -> (KH*KW*Cin, Cout) matmul layout."""
    Cout, Cin, KH, KW = w_oihw.shape
    return jnp.transpose(w_oihw, (2, 3, 1, 0)).reshape(KH * KW * Cin, Cout)


def _im2col(x, k):
    """(..., Hp, Wp, C) padded -> (..., H*W, k*k*C) with (kh, kw, c) column order."""
    *lead, Hp, Wp, C = x.shape
    H, W = Hp - k + 1, Wp - k + 1
    cols = [x[..., kh:kh + H, kw:kw + W, :] for kh in range(k) for kw in range(k)]
    patches = jnp.stack(cols, axis=-2)                 # (..., H, W, k*k, C)
    return patches.reshape(*lead, H * W, k * k * C)


@jax.jit
def escape_net_snn_forward(x_nchw, w1, w2, w3, wfc1, wfc2, keys):
    """Pallas forward of ESCAPE_NET_SNN_STDB.forward (find_max_mem=False)."""
    B, _, H, W = x_nchw.shape
    T = keys.shape[0]
    H2, W2, H4, W4 = H // 2, W // 2, H // 4, W // 4
    bf = jnp.bfloat16

    # Weights -> matmul layouts, bf16 (halves HBM traffic, bf16 MXU).
    w1m = _conv_w_to_mat(w1).astype(bf)                       # (64, 64)
    w2m = _conv_w_to_mat(w2).astype(bf)                       # (k2*k2*64, 64)
    w3m = _conv_w_to_mat(w3).astype(bf)                       # (k3*k3*64, 64)
    # fc1 columns permuted once from torch CHW-flatten to NHWC-flatten order.
    wfc1m = jnp.transpose(wfc1.reshape(HIDDEN, CH, H4, W4),
                          (2, 3, 1, 0)).reshape(H4 * W4 * CH, HIDDEN).astype(bf)
    wfc2m = wfc2.T.astype(bf)                                 # (256, 3)

    # Input layer: Poisson spike train for all timesteps, bf16 (spikes are exact).
    x_nhwc = jnp.transpose(x_nchw, (0, 2, 3, 1)).astype(jnp.float32)
    spikes_in = jax.vmap(lambda kk: poisson_spikes(x_nhwc, kk))(keys).astype(bf)

    # conv1 (k=8, Cin=1): patches prebuilt in XLA once for the whole train.
    lo1, hi1 = _same_pad(8)
    xp = jnp.pad(spikes_in, ((0, 0), (0, 0), (lo1, hi1), (lo1, hi1), (0, 0)))
    x_cols = _im2col(xp, 8)                                   # (T, B, H*W, 64) bf16
    lo2, hi2 = _same_pad(4)
    s1p = _spiking_conv(x_cols, w1m, k=8, H=H, W=W, Cin=1, Cout=CH,
                        prebuilt=True, pool=True,
                        pad_lo_out=lo2, pad_hi_out=hi2)       # (T,B,H2+3,W2+3,64)

    # conv2 (k=4): in-kernel patches from the padded pooled spike map.
    lo3, hi3 = _same_pad(2)
    s2p = _spiking_conv(s1p, w2m, k=4, H=H2, W=W2, Cin=CH, Cout=CH,
                        prebuilt=False, pool=True,
                        pad_lo_out=lo3, pad_hi_out=hi3)       # (T,B,H4+1,W4+1,64)

    # conv3 (k=2): no pooling; emits the (position-major, channel-minor) spike map.
    s3 = _spiking_conv(s2p, w3m, k=2, H=H4, W=W4, Cin=CH, Cout=CH,
                       prebuilt=False, pool=False,
                       pad_lo_out=0, pad_hi_out=0)            # (B,T,H4*W4,64)

    s3_flat = s3.reshape(B, T, H4 * W4 * CH)                  # contiguous -> free
    return fc_head(s3_flat, wfc1m, wfc2m)                     # (B, LABELS)


# ------------------------- pure-JAX reference check -------------------------

@jax.jit
def reference_forward(x_nchw, w1, w2, w3, wfc1, wfc2, keys):
    B, _, H, W = x_nchw.shape
    T = keys.shape[0]
    thr, leak = THRESHOLD, LEAK
    bf = jnp.bfloat16
    x_nhwc = jnp.transpose(x_nchw, (0, 2, 3, 1)).astype(jnp.float32)

    def conv(o_nchw, w, k):
        lo, hi = _same_pad(k)
        return lax.conv_general_dilated(
            o_nchw.astype(bf), w.astype(bf), (1, 1), [(lo, hi), (lo, hi)],
            dimension_numbers=("NCHW", "OIHW", "NCHW"),
            preferred_element_type=jnp.float32)

    def pool(o):
        b, c, h, ww = o.shape
        return o.reshape(b, c, h // 2, 2, ww // 2, 2).mean(axis=(3, 5))

    mem0 = jnp.zeros((B, CH, H, W), jnp.float32)
    mem3 = jnp.zeros((B, CH, H // 2, W // 2), jnp.float32)
    mem6 = jnp.zeros((B, CH, H // 4, W // 4), jnp.float32)
    mem8 = jnp.zeros((B, HIDDEN), jnp.float32)
    mem10 = jnp.zeros((B, LABELS), jnp.float32)

    for t in range(T):
        inp = jnp.transpose(poisson_spikes(x_nhwc, keys[t]), (0, 3, 1, 2))
        s0 = (mem0 / thr - 1.0 > 0).astype(jnp.float32)
        mem0 = leak * mem0 + conv(inp, w1, 8) - thr * s0
        o = pool(s0)
        s3 = (mem3 / thr - 1.0 > 0).astype(jnp.float32)
        mem3 = leak * mem3 + conv(o, w2, 4) - thr * s3
        o = pool(s3)
        s6 = (mem6 / thr - 1.0 > 0).astype(jnp.float32)
        mem6 = leak * mem6 + conv(o, w3, 2) - thr * s6
        flat = s6.reshape(B, -1)                               # torch CHW flatten
        s8 = (mem8 / thr - 1.0 > 0).astype(jnp.float32)
        mem8 = (leak * mem8 +
                jnp.dot(flat.astype(bf), wfc1.T.astype(bf),
                        preferred_element_type=jnp.float32) - thr * s8)
        s10 = (mem10 / thr - 1.0 > 0).astype(jnp.float32)
        sm = jax.nn.softmax(s10, axis=1)
        mem10 = (leak * mem10 +
                 jnp.dot(s8.astype(bf), wfc2.T.astype(bf),
                         preferred_element_type=jnp.float32) - thr * s10 + sm)
    return mem10


# ----------------------------------- main -----------------------------------

if __name__ == "__main__":
    B, H, W = 2, 32, 32          # small spatial; module's real input is 1 x 56 x 100
    T = 6                        # timesteps (module default 100)
    key = jax.random.PRNGKey(0)
    kx, k1, k2, k3, k4, k5, kt = jax.random.split(key, 7)

    def q(w, gain):
        # Quantize test weights to multiples of 1/512 (exact in bf16 and exactly
        # accumulable in f32) so kernel and reference agree bit-for-bit and no
        # spike threshold can flip from rounding noise; gain makes T=6 spike.
        w = jnp.round(w * gain * 512.0) / 512.0
        return jnp.clip(w, -255.0 / 512.0, 255.0 / 512.0)

    x = jax.random.uniform(kx, (B, 1, H, W), dtype=jnp.float32)

    # _initialize_weights2: conv ~ N(0, sqrt(2/(kh*kw*out_ch))), linear ~ N(0, 0.01).
    w1 = q(jax.random.normal(k1, (CH, 1, 8, 8), jnp.float32) * math.sqrt(2.0 / (8 * 8 * CH)), 8.0)
    w2 = q(jax.random.normal(k2, (CH, CH, 4, 4), jnp.float32) * math.sqrt(2.0 / (4 * 4 * CH)), 4.0)
    w3 = q(jax.random.normal(k3, (CH, CH, 2, 2), jnp.float32) * math.sqrt(2.0 / (2 * 2 * CH)), 4.0)
    fin = CH * (H // 4) * (W // 4)
    wfc1 = q(jax.random.normal(k4, (HIDDEN, fin), jnp.float32) * 0.01, 4.0)
    wfc2 = q(jax.random.normal(k5, (LABELS, HIDDEN), jnp.float32) * 0.01, 4.0)

    keys = jax.random.split(kt, T)

    out = jax.block_until_ready(escape_net_snn_forward(x, w1, w2, w3, wfc1, wfc2, keys))
    ref = jax.block_until_ready(reference_forward(x, w1, w2, w3, wfc1, wfc2, keys))

    assert out.shape == (B, LABELS) and out.dtype == jnp.float32
    assert bool(jnp.allclose(out, ref, rtol=1e-4, atol=1e-4)), (out, ref)
    print("KERNEL_OK")
</pallas_src>

<mosaic_0001>
module attributes {stable_mosaic.version = 11 : i64} {
  func.func @_conv_lif_pool_kernel(%arg0: i32, %arg1: i32, %arg2: memref<1x1x1024x64xbf16, #tpu.memory_space<vmem>>, %arg3: memref<64x64xbf16, #tpu.memory_space<vmem>>, %arg4: memref<1x1x19x19x64xbf16, #tpu.memory_space<vmem>>, %arg5: memref<1024x64xf32, #tpu.memory_space<vmem>>, %arg6: memref<1024x64xf32, #tpu.memory_space<vmem>>) attributes {dimension_semantics = [#tpu.dimension_semantics<parallel>, #tpu.dimension_semantics<arbitrary>], iteration_bounds = array<i64: 2, 6>, scalar_prefetch = 0 : i64, scratch_operands = 2 : i64, tpu.core_type = #tpu.core_type<tc>, window_params = [{transform_indices = @transform_0, window_bounds = array<i64: 1, 1, 1024, 64>}, {pipeline_mode = #tpu.pipeline_mode<synchronous>, transform_indices = @transform_1, window_bounds = array<i64: 64, 64>}, {transform_indices = @transform_2, window_bounds = array<i64: 1, 1, 19, 19, 64>}]} {
    %c0_i32 = arith.constant 0 : i32
    %0 = arith.cmpi eq, %arg1, %c0_i32 : i32
    %1 = arith.extui %0 : i1 to i32
    %c0_i32_0 = arith.constant 0 : i32
    %2 = arith.cmpi ne, %1, %c0_i32_0 : i32
    scf.if %2 {
      %cst_32 = arith.constant 0.000000e+00 : f32
      %41 = vector.broadcast %cst_32 : f32 to vector<1024x64xf32>
      %c0_33 = arith.constant 0 : index
      %c0_34 = arith.constant 0 : index
      %42 = vector.load %arg5[%c0_33, %c0_34] : memref<1024x64xf32, #tpu.memory_space<vmem>>, vector<1024x64xf32>
      tpu.vector_store %arg5[%c0_33, %c0_34], %41 {strides = array<i32>} : memref<1024x64xf32, #tpu.memory_space<vmem>>, vector<1024x64xf32>,
    } else {
    }
    %c0 = arith.constant 0 : index
    %c0_1 = arith.constant 0 : index
    %3 = vector.load %arg5[%c0, %c0_1] : memref<1024x64xf32, #tpu.memory_space<vmem>>, vector<1024x64xf32>
    %cst = arith.constant 1.000000e+00 : f32
    %4 = vector.broadcast %cst : f32 to vector<1024x64xf32>
    %5 = arith.mulf %3, %4 : vector<1024x64xf32>
    %cst_2 = arith.constant 1.000000e+00 : f32
    %6 = vector.broadcast %cst_2 : f32 to vector<1024x64xf32>
    %7 = arith.subf %5, %6 : vector<1024x64xf32>
    %cst_3 = arith.constant 0.000000e+00 : f32
    %8 = vector.broadcast %cst_3 : f32 to vector<1024x64xf32>
    %9 = arith.cmpf ogt, %7, %8 : vector<1024x64xf32>
    %10 = arith.extui %9 : vector<1024x64xi1> to vector<1024x64xi32>
    %11 = arith.sitofp %10 : vector<1024x64xi32> to vector<1024x64xf32>
    %c0_4 = arith.constant 0 : index
    %c0_5 = arith.constant 0 : index
    %c0_6 = arith.constant 0 : index
    %c0_7 = arith.constant 0 : index
    %12 = vector.load %arg2[%c0_4, %c0_5, %c0_6, %c0_7] : memref<1x1x1024x64xbf16, #tpu.memory_space<vmem>>, vector<1x1x1024x64xbf16>
    %13 = vector.shape_cast %12 : vector<1x1x1024x64xbf16> to vector<1024x64xbf16>
    %c0_8 = arith.constant 0 : index
    %c0_9 = arith.constant 0 : index
    %14 = vector.load %arg3[%c0_8, %c0_9] : memref<64x64xbf16, #tpu.memory_space<vmem>>, vector<64x64xbf16>
    %cst_10 = arith.constant dense<0.000000e+00> : vector<1024x64xf32>
    %15 = tpu.matmul %13, %14, %cst_10 {dimension_numbers = #tpu.dot_dimension_numbers<[1], [0], [0], [1], [0, 0, 1, 1], [], []>} : vector<1024x64xbf16>, vector<64x64xbf16>, vector<1024x64xf32> -> vector<1024x64xf32>
    %cst_11 = arith.constant 1.000000e+00 : f32
    %16 = vector.broadcast %cst_11 : f32 to vector<1024x64xf32>
    %17 = arith.mulf %16, %3 : vector<1024x64xf32>
    %18 = arith.addf %17, %15 : vector<1024x64xf32>
    %cst_12 = arith.constant 1.000000e+00 : f32
    %19 = vector.broadcast %cst_12 : f32 to vector<1024x64xf32>
    %20 = arith.mulf %19, %11 : vector<1024x64xf32>
    %21 = arith.subf %18, %20 : vector<1024x64xf32>
    %c0_13 = arith.constant 0 : index
    %c0_14 = arith.constant 0 : index
    %22 = vector.load %arg5[%c0_13, %c0_14] : memref<1024x64xf32, #tpu.memory_space<vmem>>, vector<1024x64xf32>
    tpu.vector_store %arg5[%c0_13, %c0_14], %21 {strides = array<i32>} : memref<1024x64xf32, #tpu.memory_space<vmem>>, vector<1024x64xf32>,
    %c0_15 = arith.constant 0 : index
    %c0_16 = arith.constant 0 : index
    %23 = vector.load %arg6[%c0_15, %c0_16] : memref<1024x64xf32, #tpu.memory_space<vmem>>, vector<1024x64xf32>
    tpu.vector_store %arg6[%c0_15, %c0_16], %11 {strides = array<i32>} : memref<1024x64xf32, #tpu.memory_space<vmem>>, vector<1024x64xf32>,
    %c0_17 = arith.constant 0 : index
    %c0_18 = arith.constant 0 : index
    %24 = tpu.strided_load %arg6[%c0_17, %c0_18] {strides = array<i32: 2, 1>} : memref<1024x64xf32, #tpu.memory_space<vmem>>, vector<512x64xf32>
    %c1 = arith.constant 1 : index
    %c0_19 = arith.constant 0 : index
    %25 = tpu.strided_load %arg6[%c1, %c0_19] {strides = array<i32: 2, 1>} : memref<1024x64xf32, #tpu.memory_space<vmem>>, vector<512x64xf32>
    %26 = arith.addf %24, %25 : vector<512x64xf32>
    %27 = vector.shape_cast %26 : vector<512x64xf32> to vector<16x32x64xf32>
    %28 = vector.extract_strided_slice %27 {offsets = [0, 0, 0], sizes = [16, 16, 64], strides = [1, 1, 1]} : vector<16x32x64xf32> to vector<16x16x64xf32>
    %29 = vector.extract_strided_slice %27 {offsets = [0, 16, 0], sizes = [16, 16, 64], strides = [1, 1, 1]} : vector<16x32x64xf32> to vector<16x16x64xf32>
    %30 = arith.addf %28, %29 : vector<16x16x64xf32>
    %cst_20 = arith.constant 2.500000e-01 : f32
    %31 = vector.broadcast %cst_20 : f32 to vector<16x16x64xf32>
    %32 = arith.mulf %30, %31 : vector<16x16x64xf32>
    %cst_21 = arith.constant 0.000000e+00 : bf16
    %33 = vector.broadcast %cst_21 : bf16 to vector<19x19x64xbf16>
    %c0_22 = arith.constant 0 : index
    %c0_23 = arith.constant 0 : index
    %c0_24 = arith.constant 0 : index
    %c0_25 = arith.constant 0 : index
    %c0_26 = arith.constant 0 : index
    %34 = vector.load %arg4[%c0_22, %c0_23, %c0_24, %c0_25, %c0_26] : memref<1x1x19x19x64xbf16, #tpu.memory_space<vmem>>, vector<1x1x19x19x64xbf16>
    %35 = vector.shape_cast %34 : vector<1x1x19x19x64xbf16> to vector<19x19x64xbf16>
    %36 = vector.shape_cast %33 : vector<19x19x64xbf16> to vector<1x1x19x19x64xbf16>
    tpu.vector_store %arg4[%c0_22, %c0_23, %c0_24, %c0_25, %c0_26], %36 {strides = array<i32>} : memref<1x1x19x19x64xbf16, #tpu.memory_space<vmem>>, vector<1x1x19x19x64xbf16>,
    %37 = arith.truncf %32 : vector<16x16x64xf32> to vector<16x16x64xbf16>
    %c0_27 = arith.constant 0 : index
    %c0_28 = arith.constant 0 : index
    %c1_29 = arith.constant 1 : index
    %c1_30 = arith.constant 1 : index
    %c0_31 = arith.constant 0 : index
    %38 = vector.load %arg4[%c0_27, %c0_28, %c1_29, %c1_30, %c0_31] : memref<1x1x19x19x64xbf16, #tpu.memory_space<vmem>>, vector<1x1x16x16x64xbf16>
    %39 = vector.shape_cast %38 : vector<1x1x16x16x64xbf16> to vector<16x16x64xbf16>
    %40 = vector.shape_cast %37 : vector<16x16x64xbf16> to vector<1x1x16x16x64xbf16>
    tpu.vector_store %arg4[%c0_27, %c0_28, %c1_29, %c1_30, %c0_31], %40 {strides = array<i32>} : memref<1x1x19x19x64xbf16, #tpu.memory_space<vmem>>, vector<1x1x16x16x64xbf16>,
    return
  }
  func.func @transform_0(%arg0: i32, %arg1: i32) -> (i32, i32, i32, i32) {
    %c0_i32 = arith.constant 0 : i32
    %c0_i32_0 = arith.constant 0 : i32
    %c0_i32_1 = arith.constant 0 : i32
    return %arg1, %arg0, %c0_i32, %c0_i32_0 : i32, i32, i32, i32
  }
  func.func @transform_1(%arg0: i32, %arg1: i32) -> (i32, i32) {
    %c0_i32 = arith.constant 0 : i32
    %c0_i32_0 = arith.constant 0 : i32
    %c0_i32_1 = arith.constant 0 : i32
    return %c0_i32, %c0_i32_0 : i32, i32
  }
  func.func @transform_2(%arg0: i32, %arg1: i32) -> (i32, i32, i32, i32, i32) {
    %c0_i32 = arith.constant 0 : i32
    %c0_i32_0 = arith.constant 0 : i32
    %c0_i32_1 = arith.constant 0 : i32
    %c0_i32_2 = arith.constant 0 : i32
    return %arg1, %arg0, %c0_i32, %c0_i32_0, %c0_i32_1 : i32, i32, i32, i32, i32
  }
}

module attributes {stable_mosaic.version = 11 : i64} {
  func.func @_conv_lif_pool_kernel(%arg0: i32, %arg1: i32, %arg2: memref<1x1x19x19x64xbf16, #tpu.memory_space<vmem>>, %arg3: memref<1024x64xbf16, #tpu.memory_space<vmem>>, %arg4: memref<1x1x9x9x64xbf16, #tpu.memory_space<vmem>>, %arg5: memref<256x64xf32, #tpu.memory_space<vmem>>, %arg6: memref<256x64xf32, #tpu.memory_space<vmem>>) attributes {dimension_semantics = [#tpu.dimension_semantics<parallel>, #tpu.dimension_semantics<arbitrary>], iteration_bounds = array<i64: 2, 6>, scalar_prefetch = 0 : i64, scratch_operands = 2 : i64, tpu.core_type = #tpu.core_type<tc>, window_params = [{transform_indices = @transform_0, window_bounds = array<i64: 1, 1, 19, 19, 64>}, {pipeline_mode = #tpu.pipeline_mode<synchronous>, transform_indices = @transform_1, window_bounds = array<i64: 1024, 64>}, {transform_indices = @transform_2, window_bounds = array<i64: 1, 1, 9, 9, 64>}]} {
    %c0_i32 = arith.constant 0 : i32
    %0 = arith.cmpi eq, %arg1, %c0_i32 : i32
    %1 = arith.extui %0 : i1 to i32
    %c0_i32_0 = arith.constant 0 : i32
    %2 = arith.cmpi ne, %1, %c0_i32_0 : i32
    scf.if %2 {
      %cst_36 = arith.constant 0.000000e+00 : f32
      %80 = vector.broadcast %cst_36 : f32 to vector<256x64xf32>
      %c0_37 = arith.constant 0 : index
      %c0_38 = arith.constant 0 : index
      %81 = vector.load %arg5[%c0_37, %c0_38] : memref<256x64xf32, #tpu.memory_space<vmem>>, vector<256x64xf32>
      tpu.vector_store %arg5[%c0_37, %c0_38], %80 {strides = array<i32>} : memref<256x64xf32, #tpu.memory_space<vmem>>, vector<256x64xf32>,
    } else {
    }
    %c0 = arith.constant 0 : index
    %c0_1 = arith.constant 0 : index
    %3 = vector.load %arg5[%c0, %c0_1] : memref<256x64xf32, #tpu.memory_space<vmem>>, vector<256x64xf32>
    %cst = arith.constant 1.000000e+00 : f32
    %4 = vector.broadcast %cst : f32 to vector<256x64xf32>
    %5 = arith.mulf %3, %4 : vector<256x64xf32>
    %cst_2 = arith.constant 1.000000e+00 : f32
    %6 = vector.broadcast %cst_2 : f32 to vector<256x64xf32>
    %7 = arith.subf %5, %6 : vector<256x64xf32>
    %cst_3 = arith.constant 0.000000e+00 : f32
    %8 = vector.broadcast %cst_3 : f32 to vector<256x64xf32>
    %9 = arith.cmpf ogt, %7, %8 : vector<256x64xf32>
    %10 = arith.extui %9 : vector<256x64xi1> to vector<256x64xi32>
    %11 = arith.sitofp %10 : vector<256x64xi32> to vector<256x64xf32>
    %c0_4 = arith.constant 0 : index
    %c0_5 = arith.constant 0 : index
    %c0_6 = arith.constant 0 : index
    %c0_7 = arith.constant 0 : index
    %c0_8 = arith.constant 0 : index
    %12 = vector.load %arg2[%c0_4, %c0_5, %c0_6, %c0_7, %c0_8] : memref<1x1x19x19x64xbf16, #tpu.memory_space<vmem>>, vector<1x1x19x19x64xbf16>
    %13 = vector.shape_cast %12 : vector<1x1x19x19x64xbf16> to vector<19x19x64xbf16>
    %14 = arith.extf %13 : vector<19x19x64xbf16> to vector<19x19x64xf32>
    %c0_9 = arith.constant 0 : index
    %c0_10 = arith.constant 0 : index
    %15 = vector.load %arg3[%c0_9, %c0_10] : memref<1024x64xbf16, #tpu.memory_space<vmem>>, vector<1024x64xbf16>
    %16 = vector.extract_strided_slice %14 {offsets = [0, 0, 0], sizes = [16, 16, 64], strides = [1, 1, 1]} : vector<19x19x64xf32> to vector<16x16x64xf32>
    %17 = vector.extract_strided_slice %14 {offsets = [0, 1, 0], sizes = [16, 16, 64], strides = [1, 1, 1]} : vector<19x19x64xf32> to vector<16x16x64xf32>
    %18 = vector.extract_strided_slice %14 {offsets = [0, 2, 0], sizes = [16, 16, 64], strides = [1, 1, 1]} : vector<19x19x64xf32> to vector<16x16x64xf32>
    %19 = vector.extract_strided_slice %14 {offsets = [0, 3, 0], sizes = [16, 16, 64], strides = [1, 1, 1]} : vector<19x19x64xf32> to vector<16x16x64xf32>
    %20 = tpu.concatenate %16, %17, %18, %19 in 2 : vector<16x16x64xf32>, vector<16x16x64xf32>, vector<16x16x64xf32>, vector<16x16x64xf32> -> vector<16x16x256xf32>
    %21 = vector.shape_cast %20 : vector<16x16x256xf32> to vector<256x256xf32>
    %22 = arith.truncf %21 : vector<256x256xf32> to vector<256x256xbf16>
    %23 = vector.extract_strided_slice %15 {offsets = [0, 0], sizes = [256, 64], strides = [1, 1]} : vector<1024x64xbf16> to vector<256x64xbf16>
    %cst_11 = arith.constant dense<0.000000e+00> : vector<256x64xf32>
    %24 = tpu.matmul %22, %23, %cst_11 {dimension_numbers = #tpu.dot_dimension_numbers<[1], [0], [0], [1], [0, 0, 1, 1], [], []>} : vector<256x256xbf16>, vector<256x64xbf16>, vector<256x64xf32> -> vector<256x64xf32>
    %25 = vector.extract_strided_slice %14 {offsets = [1, 0, 0], sizes = [16, 16, 64], strides = [1, 1, 1]} : vector<19x19x64xf32> to vector<16x16x64xf32>
    %26 = vector.extract_strided_slice %14 {offsets = [1, 1, 0], sizes = [16, 16, 64], strides = [1, 1, 1]} : vector<19x19x64xf32> to vector<16x16x64xf32>
    %27 = vector.extract_strided_slice %14 {offsets = [1, 2, 0], sizes = [16, 16, 64], strides = [1, 1, 1]} : vector<19x19x64xf32> to vector<16x16x64xf32>
    %28 = vector.extract_strided_slice %14 {offsets = [1, 3, 0], sizes = [16, 16, 64], strides = [1, 1, 1]} : vector<19x19x64xf32> to vector<16x16x64xf32>
    %29 = tpu.concatenate %25, %26, %27, %28 in 2 : vector<16x16x64xf32>, vector<16x16x64xf32>, vector<16x16x64xf32>, vector<16x16x64xf32> -> vector<16x16x256xf32>
    %30 = vector.shape_cast %29 : vector<16x16x256xf32> to vector<256x256xf32>
    %31 = arith.truncf %30 : vector<256x256xf32> to vector<256x256xbf16>
    %32 = vector.extract_strided_slice %15 {offsets = [256, 0], sizes = [256, 64], strides = [1, 1]} : vector<1024x64xbf16> to vector<256x64xbf16>
    %cst_12 = arith.constant dense<0.000000e+00> : vector<256x64xf32>
    %33 = tpu.matmul %31, %32, %cst_12 {dimension_numbers = #tpu.dot_dimension_numbers<[1], [0], [0], [1], [0, 0, 1, 1], [], []>} : vector<256x256xbf16>, vector<256x64xbf16>, vector<256x64xf32> -> vector<256x64xf32>
    %34 = arith.addf %24, %33 : vector<256x64xf32>
    %35 = vector.extract_strided_slice %14 {offsets = [2, 0, 0], sizes = [16, 16, 64], strides = [1, 1, 1]} : vector<19x19x64xf32> to vector<16x16x64xf32>
    %36 = vector.extract_strided_slice %14 {offsets = [2, 1, 0], sizes = [16, 16, 64], strides = [1, 1, 1]} : vector<19x19x64xf32> to vector<16x16x64xf32>
    %37 = vector.extract_strided_slice %14 {offsets = [2, 2, 0], sizes = [16, 16, 64], strides = [1, 1, 1]} : vector<19x19x64xf32> to vector<16x16x64xf32>
    %38 = vector.extract_strided_slice %14 {offsets = [2, 3, 0], sizes = [16, 16, 64], strides = [1, 1, 1]} : vector<19x19x64xf32> to vector<16x16x64xf32>
    %39 = tpu.concatenate %35, %36, %37, %38 in 2 : vector<16x16x64xf32>, vector<16x16x64xf32>, vector<16x16x64xf32>, vector<16x16x64xf32> -> vector<16x16x256xf32>
    %40 = vector.shape_cast %39 : vector<16x16x256xf32> to vector<256x256xf32>
    %41 = arith.truncf %40 : vector<256x256xf32> to vector<256x256xbf16>
    %42 = vector.extract_strided_slice %15 {offsets = [512, 0], sizes = [256, 64], strides = [1, 1]} : vector<1024x64xbf16> to vector<256x64xbf16>
    %cst_13 = arith.constant dense<0.000000e+00> : vector<256x64xf32>
    %43 = tpu.matmul %41, %42, %cst_13 {dimension_numbers = #tpu.dot_dimension_numbers<[1], [0], [0], [1], [0, 0, 1, 1], [], []>} : vector<256x256xbf16>, vector<256x64xbf16>, vector<256x64xf32> -> vector<256x64xf32>
    %44 = arith.addf %34, %43 : vector<256x64xf32>
    %45 = vector.extract_strided_slice %14 {offsets = [3, 0, 0], sizes = [16, 16, 64], strides = [1, 1, 1]} : vector<19x19x64xf32> to vector<16x16x64xf32>
    %46 = vector.extract_strided_slice %14 {offsets = [3, 1, 0], sizes = [16, 16, 64], strides = [1, 1, 1]} : vector<19x19x64xf32> to vector<16x16x64xf32>
    %47 = vector.extract_strided_slice %14 {offsets = [3, 2, 0], sizes = [16, 16, 64], strides = [1, 1, 1]} : vector<19x19x64xf32> to vector<16x16x64xf32>
    %48 = vector.extract_strided_slice %14 {offsets = [3, 3, 0], sizes = [16, 16, 64], strides = [1, 1, 1]} : vector<19x19x64xf32> to vector<16x16x64xf32>
    %49 = tpu.concatenate %45, %46, %47, %48 in 2 : vector<16x16x64xf32>, vector<16x16x64xf32>, vector<16x16x64xf32>, vector<16x16x64xf32> -> vector<16x16x256xf32>
    %50 = vector.shape_cast %49 : vector<16x16x256xf32> to vector<256x256xf32>
    %51 = arith.truncf %50 : vector<256x256xf32> to vector<256x256xbf16>
    %52 = vector.extract_strided_slice %15 {offsets = [768, 0], sizes = [256, 64], strides = [1, 1]} : vector<1024x64xbf16> to vector<256x64xbf16>
    %cst_14 = arith.constant dense<0.000000e+00> : vector<256x64xf32>
    %53 = tpu.matmul %51, %52, %cst_14 {dimension_numbers = #tpu.dot_dimension_numbers<[1], [0], [0], [1], [0, 0, 1, 1], [], []>} : vector<256x256xbf16>, vector<256x64xbf16>, vector<256x64xf32> -> vector<256x64xf32>
    %54 = arith.addf %44, %53 : vector<256x64xf32>
    %cst_15 = arith.constant 1.000000e+00 : f32
    %55 = vector.broadcast %cst_15 : f32 to vector<256x64xf32>
    %56 = arith.mulf %55, %3 : vector<256x64xf32>
    %57 = arith.addf %56, %54 : vector<256x64xf32>
    %cst_16 = arith.constant 1.000000e+00 : f32
    %58 = vector.broadcast %cst_16 : f32 to vector<256x64xf32>
    %59 = arith.mulf %58, %11 : vector<256x64xf32>
    %60 = arith.subf %57, %59 : vector<256x64xf32>
    %c0_17 = arith.constant 0 : index
    %c0_18 = arith.constant 0 : index
    %61 = vector.load %arg5[%c0_17, %c0_18] : memref<256x64xf32, #tpu.memory_space<vmem>>, vector<256x64xf32>
    tpu.vector_store %arg5[%c0_17, %c0_18], %60 {strides = array<i32>} : memref<256x64xf32, #tpu.memory_space<vmem>>, vector<256x64xf32>,
    %c0_19 = arith.constant 0 : index
    %c0_20 = arith.constant 0 : index
    %62 = vector.load %arg6[%c0_19, %c0_20] : memref<256x64xf32, #tpu.memory_space<vmem>>, vector<256x64xf32>
    tpu.vector_store %arg6[%c0_19, %c0_20], %11 {strides = array<i32>} : memref<256x64xf32, #tpu.memory_space<vmem>>, vector<256x64xf32>,
    %c0_21 = arith.constant 0 : index
    %c0_22 = arith.constant 0 : index
    %63 = tpu.strided_load %arg6[%c0_21, %c0_22] {strides = array<i32: 2, 1>} : memref<256x64xf32, #tpu.memory_space<vmem>>, vector<128x64xf32>
    %c1 = arith.constant 1 : index
    %c0_23 = arith.constant 0 : index
    %64 = tpu.strided_load %arg6[%c1, %c0_23] {strides = array<i32: 2, 1>} : memref<256x64xf32, #tpu.memory_space<vmem>>, vector<128x64xf32>
    %65 = arith.addf %63, %64 : vector<128x64xf32>
    %66 = vector.shape_cast %65 : vector<128x64xf32> to vector<8x16x64xf32>
    %67 = vector.extract_strided_slice %66 {offsets = [0, 0, 0], sizes = [8, 8, 64], strides = [1, 1, 1]} : vector<8x16x64xf32> to vector<8x8x64xf32>
    %68 = vector.extract_strided_slice %66 {offsets = [0, 8, 0], sizes = [8, 8, 64], strides = [1, 1, 1]} : vector<8x16x64xf32> to vector<8x8x64xf32>
    %69 = arith.addf %67, %68 : vector<8x8x64xf32>
    %cst_24 = arith.constant 2.500000e-01 : f32
    %70 = vector.broadcast %cst_24 : f32 to vector<8x8x64xf32>
    %71 = arith.mulf %69, %70 : vector<8x8x64xf32>
    %cst_25 = arith.constant 0.000000e+00 : bf16
    %72 = vector.broadcast %cst_25 : bf16 to vector<9x9x64xbf16>
    %c0_26 = arith.constant 0 : index
    %c0_27 = arith.constant 0 : index
    %c0_28 = arith.constant 0 : index
    %c0_29 = arith.constant 0 : index
    %c0_30 = arith.constant 0 : index
    %73 = vector.load %arg4[%c0_26, %c0_27, %c0_28, %c0_29, %c0_30] : memref<1x1x9x9x64xbf16, #tpu.memory_space<vmem>>, vector<1x1x9x9x64xbf16>
    %74 = vector.shape_cast %73 : vector<1x1x9x9x64xbf16> to vector<9x9x64xbf16>
    %75 = vector.shape_cast %72 : vector<9x9x64xbf16> to vector<1x1x9x9x64xbf16>
    tpu.vector_store %arg4[%c0_26, %c0_27, %c0_28, %c0_29, %c0_30], %75 {strides = array<i32>} : memref<1x1x9x9x64xbf16, #tpu.memory_space<vmem>>, vector<1x1x9x9x64xbf16>,
    %76 = arith.truncf %71 : vector<8x8x64xf32> to vector<8x8x64xbf16>
    %c0_31 = arith.constant 0 : index
    %c0_32 = arith.constant 0 : index
    %c0_33 = arith.constant 0 : index
    %c0_34 = arith.constant 0 : index
    %c0_35 = arith.constant 0 : index
    %77 = vector.load %arg4[%c0_31, %c0_32, %c0_33, %c0_34, %c0_35] : memref<1x1x9x9x64xbf16, #tpu.memory_space<vmem>>, vector<1x1x8x8x64xbf16>
    %78 = vector.shape_cast %77 : vector<1x1x8x8x64xbf16> to vector<8x8x64xbf16>
    %79 = vector.shape_cast %76 : vector<8x8x64xbf16> to vector<1x1x8x8x64xbf16>
    tpu.vector_store %arg4[%c0_31, %c0_32, %c0_33, %c0_34, %c0_35], %79 {strides = array<i32>} : memref<1x1x9x9x64xbf16, #tpu.memory_space<vmem>>, vector<1x1x8x8x64xbf16>,
    return
  }
  func.func @transform_0(%arg0: i32, %arg1: i32) -> (i32, i32, i32, i32, i32) {
    %c0_i32 = arith.constant 0 : i32
    %c0_i32_0 = arith.constant 0 : i32
    %c0_i32_1 = arith.constant 0 : i32
    %c0_i32_2 = arith.constant 0 : i32
    return %arg1, %arg0, %c0_i32, %c0_i32_0, %c0_i32_1 : i32, i32, i32, i32, i32
  }
  func.func @transform_1(%arg0: i32, %arg1: i32) -> (i32, i32) {
    %c0_i32 = arith.constant 0 : i32
    %c0_i32_0 = arith.constant 0 : i32
    %c0_i32_1 = arith.constant 0 : i32
    return %c0_i32, %c0_i32_0 : i32, i32
  }
  func.func @transform_2(%arg0: i32, %arg1: i32) -> (i32, i32, i32, i32, i32) {
    %c0_i32 = arith.constant 0 : i32
    %c0_i32_0 = arith.constant 0 : i32
    %c0_i32_1 = arith.constant 0 : i32
    %c0_i32_2 = arith.constant 0 : i32
    return %arg1, %arg0, %c0_i32, %c0_i32_0, %c0_i32_1 : i32, i32, i32, i32, i32
  }
}

module attributes {stable_mosaic.version = 11 : i64} {
  func.func @_conv_lif_pool_kernel(%arg0: i32, %arg1: i32, %arg2: memref<1x1x9x9x64xbf16, #tpu.memory_space<vmem>>, %arg3: memref<256x64xbf16, #tpu.memory_space<vmem>>, %arg4: memref<1x1x64x64xbf16, #tpu.memory_space<vmem>>, %arg5: memref<64x64xf32, #tpu.memory_space<vmem>>, %arg6: memref<64x64xf32, #tpu.memory_space<vmem>>) attributes {dimension_semantics = [#tpu.dimension_semantics<parallel>, #tpu.dimension_semantics<arbitrary>], iteration_bounds = array<i64: 2, 6>, scalar_prefetch = 0 : i64, scratch_operands = 2 : i64, tpu.core_type = #tpu.core_type<tc>, window_params = [{transform_indices = @transform_0, window_bounds = array<i64: 1, 1, 9, 9, 64>}, {pipeline_mode = #tpu.pipeline_mode<synchronous>, transform_indices = @transform_1, window_bounds = array<i64: 256, 64>}, {transform_indices = @transform_2, window_bounds = array<i64: 1, 1, 64, 64>}]} {
    %c0_i32 = arith.constant 0 : i32
    %0 = arith.cmpi eq, %arg1, %c0_i32 : i32
    %1 = arith.extui %0 : i1 to i32
    %c0_i32_0 = arith.constant 0 : i32
    %2 = arith.cmpi ne, %1, %c0_i32_0 : i32
    scf.if %2 {
      %cst_21 = arith.constant 0.000000e+00 : f32
      %42 = vector.broadcast %cst_21 : f32 to vector<64x64xf32>
      %c0_22 = arith.constant 0 : index
      %c0_23 = arith.constant 0 : index
      %43 = vector.load %arg5[%c0_22, %c0_23] : memref<64x64xf32, #tpu.memory_space<vmem>>, vector<64x64xf32>
      tpu.vector_store %arg5[%c0_22, %c0_23], %42 {strides = array<i32>} : memref<64x64xf32, #tpu.memory_space<vmem>>, vector<64x64xf32>,
    } else {
    }
    %c0 = arith.constant 0 : index
    %c0_1 = arith.constant 0 : index
    %3 = vector.load %arg5[%c0, %c0_1] : memref<64x64xf32, #tpu.memory_space<vmem>>, vector<64x64xf32>
    %cst = arith.constant 1.000000e+00 : f32
    %4 = vector.broadcast %cst : f32 to vector<64x64xf32>
    %5 = arith.mulf %3, %4 : vector<64x64xf32>
    %cst_2 = arith.constant 1.000000e+00 : f32
    %6 = vector.broadcast %cst_2 : f32 to vector<64x64xf32>
    %7 = arith.subf %5, %6 : vector<64x64xf32>
    %cst_3 = arith.constant 0.000000e+00 : f32
    %8 = vector.broadcast %cst_3 : f32 to vector<64x64xf32>
    %9 = arith.cmpf ogt, %7, %8 : vector<64x64xf32>
    %10 = arith.extui %9 : vector<64x64xi1> to vector<64x64xi32>
    %11 = arith.sitofp %10 : vector<64x64xi32> to vector<64x64xf32>
    %c0_4 = arith.constant 0 : index
    %c0_5 = arith.constant 0 : index
    %c0_6 = arith.constant 0 : index
    %c0_7 = arith.constant 0 : index
    %c0_8 = arith.constant 0 : index
    %12 = vector.load %arg2[%c0_4, %c0_5, %c0_6, %c0_7, %c0_8] : memref<1x1x9x9x64xbf16, #tpu.memory_space<vmem>>, vector<1x1x9x9x64xbf16>
    %13 = vector.shape_cast %12 : vector<1x1x9x9x64xbf16> to vector<9x9x64xbf16>
    %14 = arith.extf %13 : vector<9x9x64xbf16> to vector<9x9x64xf32>
    %c0_9 = arith.constant 0 : index
    %c0_10 = arith.constant 0 : index
    %15 = vector.load %arg3[%c0_9, %c0_10] : memref<256x64xbf16, #tpu.memory_space<vmem>>, vector<256x64xbf16>
    %16 = vector.extract_strided_slice %14 {offsets = [0, 0, 0], sizes = [8, 8, 64], strides = [1, 1, 1]} : vector<9x9x64xf32> to vector<8x8x64xf32>
    %17 = vector.extract_strided_slice %14 {offsets = [0, 1, 0], sizes = [8, 8, 64], strides = [1, 1, 1]} : vector<9x9x64xf32> to vector<8x8x64xf32>
    %18 = tpu.concatenate %16, %17 in 2 : vector<8x8x64xf32>, vector<8x8x64xf32> -> vector<8x8x128xf32>
    %19 = vector.shape_cast %18 : vector<8x8x128xf32> to vector<64x128xf32>
    %20 = arith.truncf %19 : vector<64x128xf32> to vector<64x128xbf16>
    %21 = vector.extract_strided_slice %15 {offsets = [0, 0], sizes = [128, 64], strides = [1, 1]} : vector<256x64xbf16> to vector<128x64xbf16>
    %cst_11 = arith.constant dense<0.000000e+00> : vector<64x64xf32>
    %22 = tpu.matmul %20, %21, %cst_11 {dimension_numbers = #tpu.dot_dimension_numbers<[1], [0], [0], [1], [0, 0, 1, 1], [], []>} : vector<64x128xbf16>, vector<128x64xbf16>, vector<64x64xf32> -> vector<64x64xf32>
    %23 = vector.extract_strided_slice %14 {offsets = [1, 0, 0], sizes = [8, 8, 64], strides = [1, 1, 1]} : vector<9x9x64xf32> to vector<8x8x64xf32>
    %24 = vector.extract_strided_slice %14 {offsets = [1, 1, 0], sizes = [8, 8, 64], strides = [1, 1, 1]} : vector<9x9x64xf32> to vector<8x8x64xf32>
    %25 = tpu.concatenate %23, %24 in 2 : vector<8x8x64xf32>, vector<8x8x64xf32> -> vector<8x8x128xf32>
    %26 = vector.shape_cast %25 : vector<8x8x128xf32> to vector<64x128xf32>
    %27 = arith.truncf %26 : vector<64x128xf32> to vector<64x128xbf16>
    %28 = vector.extract_strided_slice %15 {offsets = [128, 0], sizes = [128, 64], strides = [1, 1]} : vector<256x64xbf16> to vector<128x64xbf16>
    %cst_12 = arith.constant dense<0.000000e+00> : vector<64x64xf32>
    %29 = tpu.matmul %27, %28, %cst_12 {dimension_numbers = #tpu.dot_dimension_numbers<[1], [0], [0], [1], [0, 0, 1, 1], [], []>} : vector<64x128xbf16>, vector<128x64xbf16>, vector<64x64xf32> -> vector<64x64xf32>
    %30 = arith.addf %22, %29 : vector<64x64xf32>
    %cst_13 = arith.constant 1.000000e+00 : f32
    %31 = vector.broadcast %cst_13 : f32 to vector<64x64xf32>
    %32 = arith.mulf %31, %3 : vector<64x64xf32>
    %33 = arith.addf %32, %30 : vector<64x64xf32>
    %cst_14 = arith.constant 1.000000e+00 : f32
    %34 = vector.broadcast %cst_14 : f32 to vector<64x64xf32>
    %35 = arith.mulf %34, %11 : vector<64x64xf32>
    %36 = arith.subf %33, %35 : vector<64x64xf32>
    %c0_15 = arith.constant 0 : index
    %c0_16 = arith.constant 0 : index
    %37 = vector.load %arg5[%c0_15, %c0_16] : memref<64x64xf32, #tpu.memory_space<vmem>>, vector<64x64xf32>
    tpu.vector_store %arg5[%c0_15, %c0_16], %36 {strides = array<i32>} : memref<64x64xf32, #tpu.memory_space<vmem>>, vector<64x64xf32>,
    %38 = arith.truncf %11 : vector<64x64xf32> to vector<64x64xbf16>
    %c0_17 = arith.constant 0 : index
    %c0_18 = arith.constant 0 : index
    %c0_19 = arith.constant 0 : index
    %c0_20 = arith.constant 0 : index
    %39 = vector.load %arg4[%c0_17, %c0_18, %c0_19, %c0_20] : memref<1x1x64x64xbf16, #tpu.memory_space<vmem>>, vector<1x1x64x64xbf16>
    %40 = vector.shape_cast %39 : vector<1x1x64x64xbf16> to vector<64x64xbf16>
    %41 = vector.shape_cast %38 : vector<64x64xbf16> to vector<1x1x64x64xbf16>
    tpu.vector_store %arg4[%c0_17, %c0_18, %c0_19, %c0_20], %41 {strides = array<i32>} : memref<1x1x64x64xbf16, #tpu.memory_space<vmem>>, vector<1x1x64x64xbf16>,
    return
  }
  func.func @transform_0(%arg0: i32, %arg1: i32) -> (i32, i32, i32, i32, i32) {
    %c0_i32 = arith.constant 0 : i32
    %c0_i32_0 = arith.constant 0 : i32
    %c0_i32_1 = arith.constant 0 : i32
    %c0_i32_2 = arith.constant 0 : i32
    return %arg1, %arg0, %c0_i32, %c0_i32_0, %c0_i32_1 : i32, i32, i32, i32, i32
  }
  func.func @transform_1(%arg0: i32, %arg1: i32) -> (i32, i32) {
    %c0_i32 = arith.constant 0 : i32
    %c0_i32_0 = arith.constant 0 : i32
    %c0_i32_1 = arith.constant 0 : i32
    return %c0_i32, %c0_i32_0 : i32, i32
  }
  func.func @transform_2(%arg0: i32, %arg1: i32) -> (i32, i32, i32, i32) {
    %c0_i32 = arith.constant 0 : i32
    %c0_i32_0 = arith.constant 0 : i32
    %c0_i32_1 = arith.constant 0 : i32
    return %arg0, %arg1, %c0_i32, %c0_i32_0 : i32, i32, i32, i32
  }
}

module attributes {stable_mosaic.version = 11 : i64} {
  func.func @_fc_head_kernel(%arg0: i32, %arg1: memref<1x6x4096xbf16, #tpu.memory_space<vmem>>, %arg2: memref<4096x256xbf16, #tpu.memory_space<vmem>>, %arg3: memref<256x3xbf16, #tpu.memory_space<vmem>>, %arg4: memref<1x1x3xf32, #tpu.memory_space<vmem>>, %arg5: memref<6x256xf32, #tpu.memory_space<vmem>>) attributes {dimension_semantics = [#tpu.dimension_semantics<parallel>], iteration_bounds = array<i64: 2>, scalar_prefetch = 0 : i64, scratch_operands = 1 : i64, tpu.core_type = #tpu.core_type<tc>, window_params = [{transform_indices = @transform_0, window_bounds = array<i64: 1, 6, 4096>}, {pipeline_mode = #tpu.pipeline_mode<synchronous>, transform_indices = @transform_1, window_bounds = array<i64: 4096, 256>}, {pipeline_mode = #tpu.pipeline_mode<synchronous>, transform_indices = @transform_2, window_bounds = array<i64: 256, 3>}, {transform_indices = @transform_3, window_bounds = array<i64: 1, 1, 3>}]} {
    %c0 = arith.constant 0 : index
    %c0_0 = arith.constant 0 : index
    %c0_1 = arith.constant 0 : index
    %0 = vector.load %arg1[%c0, %c0_0, %c0_1] : memref<1x6x4096xbf16, #tpu.memory_space<vmem>>, vector<1x6x4096xbf16>
    %1 = vector.shape_cast %0 : vector<1x6x4096xbf16> to vector<6x4096xbf16>
    %c0_2 = arith.constant 0 : index
    %c0_3 = arith.constant 0 : index
    %2 = vector.load %arg2[%c0_2, %c0_3] : memref<4096x256xbf16, #tpu.memory_space<vmem>>, vector<4096x256xbf16>
    %cst = arith.constant dense<0.000000e+00> : vector<6x256xf32>
    %3 = tpu.matmul %1, %2, %cst {dimension_numbers = #tpu.dot_dimension_numbers<[1], [0], [0], [1], [0, 0, 1, 1], [], []>} : vector<6x4096xbf16>, vector<4096x256xbf16>, vector<6x256xf32> -> vector<6x256xf32>
    %c0_4 = arith.constant 0 : index
    %c0_5 = arith.constant 0 : index
    %4 = vector.load %arg5[%c0_4, %c0_5] : memref<6x256xf32, #tpu.memory_space<vmem>>, vector<6x256xf32>
    tpu.vector_store %arg5[%c0_4, %c0_5], %3 {strides = array<i32>} : memref<6x256xf32, #tpu.memory_space<vmem>>, vector<6x256xf32>,
    %c0_6 = arith.constant 0 : index
    %c0_7 = arith.constant 0 : index
    %5 = vector.load %arg3[%c0_6, %c0_7] : memref<256x3xbf16, #tpu.memory_space<vmem>>, vector<256x3xbf16>
    %cst_8 = arith.constant 0.000000e+00 : f32
    %6 = vector.broadcast %cst_8 : f32 to vector<1x256xf32>
    %cst_9 = arith.constant 0.000000e+00 : f32
    %7 = vector.broadcast %cst_9 : f32 to vector<1x3xf32>
    %c0_i32 = arith.constant 0 : i32
    %c6_i32 = arith.constant 6 : i32
    %8 = arith.addi %c0_i32, %c6_i32 : i32
    %c1_i32 = arith.constant 1 : i32
    %9:2 = scf.for %arg6 = %c0_i32 to %8 step %c1_i32 iter_args(%arg7 = %6, %arg8 = %7) -> (vector<1x256xf32>, vector<1x3xf32>)  : i32 {
      %cst_14 = arith.constant 1.000000e+00 : f32
      %13 = vector.broadcast %cst_14 : f32 to vector<1x256xf32>
      %14 = arith.mulf %arg7, %13 : vector<1x256xf32>
      %cst_15 = arith.constant 1.000000e+00 : f32
      %15 = vector.broadcast %cst_15 : f32 to vector<1x256xf32>
      %16 = arith.subf %14, %15 : vector<1x256xf32>
      %cst_16 = arith.constant 0.000000e+00 : f32
      %17 = vector.broadcast %cst_16 : f32 to vector<1x256xf32>
      %18 = arith.cmpf ogt, %16, %17 : vector<1x256xf32>
      %19 = arith.extui %18 : vector<1x256xi1> to vector<1x256xi32>
      %20 = arith.sitofp %19 : vector<1x256xi32> to vector<1x256xf32>
      %cst_17 = arith.constant 1.000000e+00 : f32
      %21 = vector.broadcast %cst_17 : f32 to vector<1x256xf32>
      %22 = arith.mulf %21, %arg7 : vector<1x256xf32>
      %23 = arith.index_cast %arg6 : i32 to index
      %c0_18 = arith.constant 0 : index
      %24 = vector.load %arg5[%23, %c0_18] : memref<6x256xf32, #tpu.memory_space<vmem>>, vector<1x256xf32>
      %25 = arith.addf %22, %24 : vector<1x256xf32>
      %cst_19 = arith.constant 1.000000e+00 : f32
      %26 = vector.broadcast %cst_19 : f32 to vector<1x256xf32>
      %27 = arith.mulf %26, %20 : vector<1x256xf32>
      %28 = arith.subf %25, %27 : vector<1x256xf32>
      %cst_20 = arith.constant 1.000000e+00 : f32
      %29 = vector.broadcast %cst_20 : f32 to vector<1x3xf32>
      %30 = arith.mulf %arg8, %29 : vector<1x3xf32>
      %cst_21 = arith.constant 1.000000e+00 : f32
      %31 = vector.broadcast %cst_21 : f32 to vector<1x3xf32>
      %32 = arith.subf %30, %31 : vector<1x3xf32>
      %cst_22 = arith.constant 0.000000e+00 : f32
      %33 = vector.broadcast %cst_22 : f32 to vector<1x3xf32>
      %34 = arith.cmpf ogt, %32, %33 : vector<1x3xf32>
      %35 = arith.extui %34 : vector<1x3xi1> to vector<1x3xi32>
      %36 = arith.sitofp %35 : vector<1x3xi32> to vector<1x3xf32>
      %cst_23 = arith.constant dense<0xFF800000> : vector<1xf32>
      %37 = vector.multi_reduction <maximumf>, %36, %cst_23 [1] : vector<1x3xf32> to vector<1xf32>
      %38 = vector.shape_cast %37 : vector<1xf32> to vector<1x1xf32>
      %39 = vector.broadcast %38 : vector<1x1xf32> to vector<1x3xf32>
      %40 = arith.subf %36, %39 : vector<1x3xf32>
      %41 = math.exp %40 : vector<1x3xf32>
      %cst_24 = arith.constant dense<0.000000e+00> : vector<1xf32>
      %42 = vector.multi_reduction <add>, %41, %cst_24 [1] : vector<1x3xf32> to vector<1xf32>
      %43 = vector.shape_cast %42 : vector<1xf32> to vector<1x1xf32>
      %44 = vector.broadcast %43 : vector<1x1xf32> to vector<1x3xf32>
      %45 = arith.divf %41, %44 : vector<1x3xf32>
      %46 = arith.truncf %20 : vector<1x256xf32> to vector<1x256xbf16>
      %cst_25 = arith.constant dense<0.000000e+00> : vector<1x3xf32>
      %47 = tpu.matmul %46, %5, %cst_25 {dimension_numbers = #tpu.dot_dimension_numbers<[1], [0], [0], [1], [0, 0, 1, 1], [], []>} : vector<1x256xbf16>, vector<256x3xbf16>, vector<1x3xf32> -> vector<1x3xf32>
      %cst_26 = arith.constant 1.000000e+00 : f32
      %48 = vector.broadcast %cst_26 : f32 to vector<1x3xf32>
      %49 = arith.mulf %48, %arg8 : vector<1x3xf32>
      %50 = arith.addf %49, %47 : vector<1x3xf32>
      %cst_27 = arith.constant 1.000000e+00 : f32
      %51 = vector.broadcast %cst_27 : f32 to vector<1x3xf32>
      %52 = arith.mulf %51, %36 : vector<1x3xf32>
      %53 = arith.subf %50, %52 : vector<1x3xf32>
      %54 = arith.addf %53, %45 : vector<1x3xf32>
      scf.yield %28, %54 : vector<1x256xf32>, vector<1x3xf32>
    }
    %c6_i32_10 = arith.constant 6 : i32
    %c0_11 = arith.constant 0 : index
    %c0_12 = arith.constant 0 : index
    %c0_13 = arith.constant 0 : index
    %10 = vector.load %arg4[%c0_11, %c0_12, %c0_13] : memref<1x1x3xf32, #tpu.memory_space<vmem>>, vector<1x1x3xf32>
    %11 = vector.shape_cast %10 : vector<1x1x3xf32> to vector<1x3xf32>
    %12 = vector.shape_cast %9#1 : vector<1x3xf32> to vector<1x1x3xf32>
    tpu.vector_store %arg4[%c0_11, %c0_12, %c0_13], %12 {strides = array<i32>} : memref<1x1x3xf32, #tpu.memory_space<vmem>>, vector<1x1x3xf32>,
    return
  }
  func.func @transform_0(%arg0: i32) -> (i32, i32, i32) {
    %c0_i32 = arith.constant 0 : i32
    %c0_i32_0 = arith.constant 0 : i32
    %c0_i32_1 = arith.constant 0 : i32
    return %arg0, %c0_i32, %c0_i32_0 : i32, i32, i32
  }
  func.func @transform_1(%arg0: i32) -> (i32, i32) {
    %c0_i32 = arith.constant 0 : i32
    %c0_i32_0 = arith.constant 0 : i32
    %c0_i32_1 = arith.constant 0 : i32
    return %c0_i32, %c0_i32_0 : i32, i32
  }
  func.func @transform_2(%arg0: i32) -> (i32, i32) {
    %c0_i32 = arith.constant 0 : i32
    %c0_i32_0 = arith.constant 0 : i32
    %c0_i32_1 = arith.constant 0 : i32
    return %c0_i32, %c0_i32_0 : i32, i32
  }
  func.func @transform_3(%arg0: i32) -> (i32, i32, i32) {
    %c0_i32 = arith.constant 0 : i32
    %c0_i32_0 = arith.constant 0 : i32
    %c0_i32_1 = arith.constant 0 : i32
    return %arg0, %c0_i32, %c0_i32_0 : i32, i32, i32
  }
}

</mosaic_0001>

<llo_original>
// kernel: escape_net_snn_forward.4
$region0: #{escape_net_snn_forward.4}
  #allocation0 [shape = 'u32[]', space=smem, size = 0x4, offset = 0x4, fixed_abs, tag = 'smem constant byte address 0x4 - core index']
  #allocation1 [shape = 'u32[72,128]{1,0:T(1,128)}', space=vmem, size = 0x9000, scoped, tag = 'internal scratch']
  #allocation2 [shape = 'f32[1024,64]{1,0:T(8,128)}', space=vmem, size = 0x80000, scoped, tag = 'scratch operand']
  #allocation3 [shape = 'f32[1024,64]{1,0:T(8,128)}', space=vmem, size = 0x80000, scoped, tag = 'scratch operand']
  %s0 = inlined_call_operand.hbm [shape: bf16[6,2,1024,64], index: 0, kind: input, shape index: {}]
  %s1 = inlined_call_operand.vmem [shape: bf16[64,64], index: 1, kind: input, shape index: {}]
  %s2 = inlined_call_operand.vmem [shape: bf16[6,2,19,19,64], index: 2, kind: output, shape index: {}]
  %s3 = sld [smem:[#allocation0]]
  $region49: #{escape_net_snn_forward.4} parent=0
    _
  %s5 = ssub.s32 1, %s3
  %s6 = scalar_select 0, %s5, %s3
  $region1: #{escape_net_snn_forward.4} parent=0
    #allocation4 [shape = 'u8[524288]{0}', space=vmem, size = 0x80000, scoped, tag = 'input window, operand 0']
    #allocation5 [shape = 's32[2]{0}', space=sflag, size = 0x8, scoped, tag = 'scoped memory for escape_net_snn_forward.4']
    %7 = vsyncpa [#allocation5], 0
    %s8 = scalar_lea.sflag [#allocation5], 1
    %9 = vsyncpa %s8, 0
    loop: start=0, step=1, limit=14
    $region2: #{escape_net_snn_forward.4} parent=1 // loop_pre_header
      _
    $region3: #{escape_net_snn_forward.4} parent=1 // loop_header
      %s11 = sphi 0, %s15
      %p12 = scmp.ge.s32.totalorder %s11, 14
      %s18 = sphi 0, %s30
      %s19 = sphi 0, %s26
      %s20 = sphi 0, %s18
      %s21 = sphi 0, %s19
      %s22 = sphi 0, %s20
      %s23 = sphi 0, %s21
      %s35 = sphi 0, %s37
      %s38 = sphi 0, %s35
      %s39 = sphi 0, %s38
      %s55 = sphi 0, %s39
      %s59 = sphi 0, %s59
      %s61 = sphi 0, %s59
      %s62 = sphi 0, %s61
      %s76 = sphi 0, %s62
      %s84 = sphi 0, %s86
      %s87 = sphi 0, %s84
      %s88 = sphi 0, %s87
      %s104 = sphi 0, %s88
    $region4: #{escape_net_snn_forward.4} parent=1 // loop_header_branch
      %14 = sbr.rel (%p12) target = $region8
    $region5: #{escape_net_snn_forward.4} parent=1 // loop_body
      %s16 = ssub.s32 %s11, 1
      %s17 = ssub.s32 %s11, 2
      %s24 = sadd.s32 1, %s19
      %p25 = scmp.ge.s32.totalorder %s24, 6
      %s26 = scalar_select %p25, 0, %s24
      %s27 = sadd.s32 1, %s18
      %s28 = scalar_select %p25, %s27, %s18
      %p29 = scmp.ge.s32.totalorder %s28, 2
      %s30 = scalar_select %p29, 0, %s28
      %s31 = ssub.s32 %s19, %s26
      %s32 = ssub.s32 %s18, %s30
      %s33 = sor.u32 %s31, %s32
      %p34 = scmp.eq.s32.totalorder %s33, 0
      %s36 = sadd.s32 %s35, 1
      %s37 = scalar_select %p34, %s35, %s36
      %p40 = pneg %p34
      %p41 = scmp.eq.s32.totalorder %s11, 11
      %p42 = por %p40, %p41
      %p43 = scmp.ne.s32.totalorder %s35, %s38
      %p44 = scmp.eq.s32.totalorder %s11, 0
      %p45 = por %p43, %p44
      %p46 = scmp.ne.s32.totalorder %s35, %s38
      %p47 = scmp.eq.s32.totalorder %s16, 11
      %p48 = por %p46, %p47
      %p49 = scmp.ne.s32.totalorder %s38, %s39
      %p50 = scmp.eq.s32.totalorder %s16, 0
      %p51 = por %p49, %p50
      %p52 = scmp.ne.s32.totalorder %s38, %s39
      %p53 = scmp.eq.s32.totalorder %s17, 11
      %p54 = por %p52, %p53
      %p56 = scmp.ne.s32.totalorder %s39, %s55
      %p57 = scmp.eq.s32.totalorder %s17, 0
      %p58 = por %p56, %p57
      %s60 = sadd.s32 %s59, 1
      %p63 = scmp.eq.s32.totalorder %s11, 11
      %p64 = scmp.ne.s32.totalorder %s59, %s61
      %p65 = scmp.eq.s32.totalorder %s11, 0
      %p66 = por %p64, %p65
      %p67 = scmp.ne.s32.totalorder %s59, %s61
      %p68 = scmp.eq.s32.totalorder %s16, 11
      %p69 = por %p67, %p68
      %p70 = scmp.ne.s32.totalorder %s61, %s62
      %p71 = scmp.eq.s32.totalorder %s16, 0
      %p72 = por %p70, %p71
      %p73 = scmp.ne.s32.totalorder %s61, %s62
      %p74 = scmp.eq.s32.totalorder %s17, 11
      %p75 = por %p73, %p74
      %p77 = scmp.ne.s32.totalorder %s62, %s76
      %p78 = scmp.eq.s32.totalorder %s17, 0
      %p79 = por %p77, %p78
      %s80 = ssub.s32 %s19, %s26
      %s81 = ssub.s32 %s18, %s30
      %s82 = sor.u32 %s80, %s81
      %p83 = scmp.eq.s32.totalorder %s82, 0
      %s85 = sadd.s32 %s84, 1
      %s86 = scalar_select %p83, %s84, %s85
      %p89 = pneg %p83
      %p90 = scmp.eq.s32.totalorder %s11, 11
      %p91 = por %p89, %p90
      %p92 = scmp.ne.s32.totalorder %s84, %s87
      %p93 = scmp.eq.s32.totalorder %s11, 0
      %p94 = por %p92, %p93
      %p95 = scmp.ne.s32.totalorder %s84, %s87
      %p96 = scmp.eq.s32.totalorder %s16, 11
      %p97 = por %p95, %p96
      %p98 = scmp.ne.s32.totalorder %s87, %s88
      %p99 = scmp.eq.s32.totalorder %s16, 0
      %p100 = por %p98, %p99
      %p101 = scmp.ne.s32.totalorder %s87, %s88
      %p102 = scmp.eq.s32.totalorder %s17, 11
      %p103 = por %p101, %p102
      %p105 = scmp.ne.s32.totalorder %s88, %s104
      %p106 = scmp.eq.s32.totalorder %s17, 0
      %p107 = por %p105, %p106
      %p108 = scmp.le.s32.totalorder 1, %s11
      %p109 = scmp.lt.s32.totalorder %s11, 13
      %p110 = pnand %p108, %p109
      %p111 = pneg %p110
      // Predicated region
      $region9: #{escape_net_snn_forward.4} parent=5 // pred_check
        _
      $region10: #{escape_net_snn_forward.4} parent=5 // pred_check_branch
        %113 = sbr.rel (%p110) target = $region12
      $region11: #{escape_net_snn_forward.4} parent=5 // pred_region
        %s114 = ssub.s32 %s11, 1
        // Predicated region
        $region13: #{escape_net_snn_forward.4} parent=11 // pred_check
          %p115 = pneg %p72
        $region14: #{escape_net_snn_forward.4} parent=11 // pred_check_branch
          %117 = sbr.rel (%p115) target = $region16
        $region15: #{escape_net_snn_forward.4} parent=11 // pred_region
          _
        $region16: #{escape_net_snn_forward.4} parent=11 // pred_fallthru
          _
      $region12: #{escape_net_snn_forward.4} parent=5 // pred_fallthru
        _
      %p118 = scmp.lt.s32.totalorder %s11, 12
      // Predicated region
      $region17: #{escape_net_snn_forward.4} parent=5 // pred_check
        %p119 = pneg %p118
      $region18: #{escape_net_snn_forward.4} parent=5 // pred_check_branch
        %121 = sbr.rel (%p119) target = $region20
      $region19: #{escape_net_snn_forward.4} parent=5 // pred_region
        // Predicated region
        $region21: #{escape_net_snn_forward.4} parent=19 // pred_check
          %p122 = pneg %p45
        $region22: #{escape_net_snn_forward.4} parent=19 // pred_check_branch
          %124 = sbr.rel (%p122) target = $region24
        $region23: #{escape_net_snn_forward.4} parent=19 // pred_region
          %s125 = sand.u32 %s35, 1
          %s126 = scalar_lea.sflag [#allocation5], %s125
          %s127 = sand.u32 %s35, 1
          %s128 = smul.addr %s127, 512
          %s129 = scalar_lea.vmem [#allocation4], %s128
          %131 = vsyncadd %s126, 0
          %s132 = smul.addr %s18, 128
          %s133 = smul.addr %s19, 256
          %s134 = sadd.s32 %s132, %s133
          %s135 = smul.addr %s134, 4
          %s136 = scalar_lea.hbm %s0, %s135
          %s137 = sshll.u32 %s136, 4
          %s138 = int_to_ptr.hbm [resolvable:$true] %s137
          %s139 = sshll.u32 %s129, 4
          %s140 = int_to_ptr.vmem [resolvable:$true] %s139
          %145 = dma.hbm_to_vmem [thread:$0]  %s138, 8192, %s140, %s126, 64, 64, 4
        $region24: #{escape_net_snn_forward.4} parent=19 // pred_fallthru
          _
      $region20: #{escape_net_snn_forward.4} parent=5 // pred_fallthru
        _
      %p146 = scmp.le.s32.totalorder 1, %s11
      %p147 = scmp.lt.s32.totalorder %s11, 13
      %p148 = pnand %p146, %p147
      %p149 = pneg %p148
      // Predicated region
      $region25: #{escape_net_snn_forward.4} parent=5 // pred_check
        _
      $region26: #{escape_net_snn_forward.4} parent=5 // pred_check_branch
        %151 = sbr.rel (%p148) target = $region28
      $region27: #{escape_net_snn_forward.4} parent=5 // pred_region
        %s152 = ssub.s32 %s11, 1
        %s153 = sand.u32 %s38, 1
        %s154 = scalar_lea.sflag [#allocation5], %s153
        %s155 = sand.u32 %s38, 1
        %s156 = smul.addr %s155, 512
        %s157 = scalar_lea.vmem [#allocation4], %s156
        // Predicated region
        $region29: #{escape_net_snn_forward.4} parent=27 // pred_check
          %p158 = pneg %p51
        $region30: #{escape_net_snn_forward.4} parent=27 // pred_check_branch
          %160 = sbr.rel (%p158) target = $region32
        $region31: #{escape_net_snn_forward.4} parent=27 // pred_region
          %162 = dma.done %s154, 8192
        $region32: #{escape_net_snn_forward.4} parent=27 // pred_fallthru
          _
        %s163 = sand.u32 %s38, 1
        %s164 = scalar_lea.sflag [#allocation5], %s163
        %s165 = sand.u32 %s38, 1
        %s166 = smul.addr %s165, 512
        %s167 = scalar_lea.vmem [#allocation4], %s166
        %p168 = pneg %p51
        %p169 = pneg %p48
        %p170 = pneg %p72
        %p171 = pneg %p69
        %p172 = pneg %p100
        %p173 = pneg %p97
        %p174 = scmp.lt.s32.totalorder %s21, 5
        %s175 = scalar_select %p174, %s21, 5
        %p176 = scmp.lt.s32.totalorder %s20, 1
        %s177 = scalar_select %p176, %s20, 1
        %s178 = smul.addr %s177, 57
        %s179 = smul.addr %s175, 114
        %s180 = sadd.s32 %s178, %s179
        %s181 = smul.addr %s180, 4
        %s182 = scalar_lea.vmem %s2, %s181
        %p183 = scmp.lt.s32.totalorder %s21, 5
        %s184 = scalar_select %p183, %s21, 5
        %p185 = scmp.lt.s32.totalorder %s20, 1
        %s186 = scalar_select %p185, %s20, 1
        %s187 = smul.addr %s186, 57
        %s188 = smul.addr %s184, 114
        %s189 = sadd.s32 %s187, %s188
        %s190 = smul.addr %s189, 4
        %s191 = scalar_lea.vmem %s2, %s190
        %p193 = scmp.eq.s32.totalorder %s21, 0
        // Predicated region
        $region33: #{escape_net_snn_forward.4} parent=27 // pred_check
          %p194 = pneg %p193
        $region34: #{escape_net_snn_forward.4} parent=27 // pred_check_branch
          %196 = sbr.rel (%p194) target = $region36
        $region35: #{escape_net_snn_forward.4} parent=27 // pred_region
          %vm197 = vcmask 523264
          %198 = vst.msk [vmem:[#allocation2] sm:$0xff] %vm197, 0.0
          %199 = vst.msk [vmem:[#allocation2 + $0x8] sm:$0xff] %vm197, 0.0
          %200 = vst.msk [vmem:[#allocation2 + $0x10] sm:$0xff] %vm197, 0.0
          %201 = vst.msk [vmem:[#allocation2 + $0x18] sm:$0xff] %vm197, 0.0
          %202 = vst.msk [vmem:[#allocation2 + $0x20] sm:$0xff] %vm197, 0.0
          %203 = vst.msk [vmem:[#allocation2 + $0x28] sm:$0xff] %vm197, 0.0
          %204 = vst.msk [vmem:[#allocation2 + $0x30] sm:$0xff] %vm197, 0.0
          %205 = vst.msk [vmem:[#allocation2 + $0x38] sm:$0xff] %vm197, 0.0
          %206 = vst.msk [vmem:[#allocation2 + $0x40] sm:$0xff] %vm197, 0.0
          %207 = vst.msk [vmem:[#allocation2 + $0x48] sm:$0xff] %vm197, 0.0
          %208 = vst.msk [vmem:[#allocation2 + $0x50] sm:$0xff] %vm197, 0.0
          %209 = vst.msk [vmem:[#allocation2 + $0x58] sm:$0xff] %vm197, 0.0
          %210 = vst.msk [vmem:[#allocation2 + $0x60] sm:$0xff] %vm197, 0.0
          %211 = vst.msk [vmem:[#allocation2 + $0x68] sm:$0xff] %vm197, 0.0
          %212 = vst.msk [vmem:[#allocation2 + $0x70] sm:$0xff] %vm197, 0.0
          %213 = vst.msk [vmem:[#allocation2 + $0x78] sm:$0xff] %vm197, 0.0
          %214 = vst.msk [vmem:[#allocation2 + $0x80] sm:$0xff] %vm197, 0.0
          %215 = vst.msk [vmem:[#allocation2 + $0x88] sm:$0xff] %vm197, 0.0
          %216 = vst.msk [vmem:[#allocation2 + $0x90] sm:$0xff] %vm197, 0.0
          %217 = vst.msk [vmem:[#allocation2 + $0x98] sm:$0xff] %vm197, 0.0
          %218 = vst.msk [vmem:[#allocation2 + $0xa0] sm:$0xff] %vm197, 0.0
          %219 = vst.msk [vmem:[#allocation2 + $0xa8] sm:$0xff] %vm197, 0.0
          %220 = vst.msk [vmem:[#allocation2 + $0xb0] sm:$0xff] %vm197, 0.0
          %221 = vst.msk [vmem:[#allocation2 + $0xb8] sm:$0xff] %vm197, 0.0
          %222 = vst.msk [vmem:[#allocation2 + $0xc0] sm:$0xff] %vm197, 0.0
          %223 = vst.msk [vmem:[#allocation2 + $0xc8] sm:$0xff] %vm197, 0.0
          %224 = vst.msk [vmem:[#allocation2 + $0xd0] sm:$0xff] %vm197, 0.0
          %225 = vst.msk [vmem:[#allocation2 + $0xd8] sm:$0xff] %vm197, 0.0
          %226 = vst.msk [vmem:[#allocation2 + $0xe0] sm:$0xff] %vm197, 0.0
          %227 = vst.msk [vmem:[#allocation2 + $0xe8] sm:$0xff] %vm197, 0.0
          %228 = vst.msk [vmem:[#allocation2 + $0xf0] sm:$0xff] %vm197, 0.0
          %229 = vst.msk [vmem:[#allocation2 + $0xf8] sm:$0xff] %vm197, 0.0
          %230 = vst.msk [vmem:[#allocation2 + $0x100] sm:$0xff] %vm197, 0.0
          %231 = vst.msk [vmem:[#allocation2 + $0x108] sm:$0xff] %vm197, 0.0
          %232 = vst.msk [vmem:[#allocation2 + $0x110] sm:$0xff] %vm197, 0.0
          %233 = vst.msk [vmem:[#allocation2 + $0x118] sm:$0xff] %vm197, 0.0
          %234 = vst.msk [vmem:[#allocation2 + $0x120] sm:$0xff] %vm197, 0.0
          %235 = vst.msk [vmem:[#allocation2 + $0x128] sm:$0xff] %vm197, 0.0
          %236 = vst.msk [vmem:[#allocation2 + $0x130] sm:$0xff] %vm197, 0.0
          %237 = vst.msk [vmem:[#allocation2 + $0x138] sm:$0xff] %vm197, 0.0
          %238 = vst.msk [vmem:[#allocation2 + $0x140] sm:$0xff] %vm197, 0.0
          %239 = vst.msk [vmem:[#allocation2 + $0x148] sm:$0xff] %vm197, 0.0
          %240 = vst.msk [vmem:[#allocation2 + $0x150] sm:$0xff] %vm197, 0.0
          %241 = vst.msk [vmem:[#allocation2 + $0x158] sm:$0xff] %vm197, 0.0
          %242 = vst.msk [vmem:[#allocation2 + $0x160] sm:$0xff] %vm197, 0.0
          %243 = vst.msk [vmem:[#allocation2 + $0x168] sm:$0xff] %vm197, 0.0
          %244 = vst.msk [vmem:[#allocation2 + $0x170] sm:$0xff] %vm197, 0.0
          %245 = vst.msk [vmem:[#allocation2 + $0x178] sm:$0xff] %vm197, 0.0
          %246 = vst.msk [vmem:[#allocation2 + $0x180] sm:$0xff] %vm197, 0.0
          %247 = vst.msk [vmem:[#allocation2 + $0x188] sm:$0xff] %vm197, 0.0
          %248 = vst.msk [vmem:[#allocation2 + $0x190] sm:$0xff] %vm197, 0.0
          %249 = vst.msk [vmem:[#allocation2 + $0x198] sm:$0xff] %vm197, 0.0
          %250 = vst.msk [vmem:[#allocation2 + $0x1a0] sm:$0xff] %vm197, 0.0
          %251 = vst.msk [vmem:[#allocation2 + $0x1a8] sm:$0xff] %vm197, 0.0
          %252 = vst.msk [vmem:[#allocation2 + $0x1b0] sm:$0xff] %vm197, 0.0
          %253 = vst.msk [vmem:[#allocation2 + $0x1b8] sm:$0xff] %vm197, 0.0
          %254 = vst.msk [vmem:[#allocation2 + $0x1c0] sm:$0xff] %vm197, 0.0
          %255 = vst.msk [vmem:[#allocation2 + $0x1c8] sm:$0xff] %vm197, 0.0
          %256 = vst.msk [vmem:[#allocation2 + $0x1d0] sm:$0xff] %vm197, 0.0
          %257 = vst.msk [vmem:[#allocation2 + $0x1d8] sm:$0xff] %vm197, 0.0
          %258 = vst.msk [vmem:[#allocation2 + $0x1e0] sm:$0xff] %vm197, 0.0
          %259 = vst.msk [vmem:[#allocation2 + $0x1e8] sm:$0xff] %vm197, 0.0
          %260 = vst.msk [vmem:[#allocation2 + $0x1f0] sm:$0xff] %vm197, 0.0
          %261 = vst.msk [vmem:[#allocation2 + $0x1f8] sm:$0xff] %vm197, 0.0
          %262 = vst.msk [vmem:[#allocation2 + $0x200] sm:$0xff] %vm197, 0.0
          %263 = vst.msk [vmem:[#allocation2 + $0x208] sm:$0xff] %vm197, 0.0
          %264 = vst.msk [vmem:[#allocation2 + $0x210] sm:$0xff] %vm197, 0.0
          %265 = vst.msk [vmem:[#allocation2 + $0x218] sm:$0xff] %vm197, 0.0
          %266 = vst.msk [vmem:[#allocation2 + $0x220] sm:$0xff] %vm197, 0.0
          %267 = vst.msk [vmem:[#allocation2 + $0x228] sm:$0xff] %vm197, 0.0
          %268 = vst.msk [vmem:[#allocation2 + $0x230] sm:$0xff] %vm197, 0.0
          %269 = vst.msk [vmem:[#allocation2 + $0x238] sm:$0xff] %vm197, 0.0
          %270 = vst.msk [vmem:[#allocation2 + $0x240] sm:$0xff] %vm197, 0.0
          %271 = vst.msk [vmem:[#allocation2 + $0x248] sm:$0xff] %vm197, 0.0
          %272 = vst.msk [vmem:[#allocation2 + $0x250] sm:$0xff] %vm197, 0.0
          %273 = vst.msk [vmem:[#allocation2 + $0x258] sm:$0xff] %vm197, 0.0
          %274 = vst.msk [vmem:[#allocation2 + $0x260] sm:$0xff] %vm197, 0.0
          %275 = vst.msk [vmem:[#allocation2 + $0x268] sm:$0xff] %vm197, 0.0
          %276 = vst.msk [vmem:[#allocation2 + $0x270] sm:$0xff] %vm197, 0.0
          %277 = vst.msk [vmem:[#allocation2 + $0x278] sm:$0xff] %vm197, 0.0
          %278 = vst.msk [vmem:[#allocation2 + $0x280] sm:$0xff] %vm197, 0.0
          %279 = vst.msk [vmem:[#allocation2 + $0x288] sm:$0xff] %vm197, 0.0
          %280 = vst.msk [vmem:[#allocation2 + $0x290] sm:$0xff] %vm197, 0.0
          %281 = vst.msk [vmem:[#allocation2 + $0x298] sm:$0xff] %vm197, 0.0
          %282 = vst.msk [vmem:[#allocation2 + $0x2a0] sm:$0xff] %vm197, 0.0
          %283 = vst.msk [vmem:[#allocation2 + $0x2a8] sm:$0xff] %vm197, 0.0
          %284 = vst.msk [vmem:[#allocation2 + $0x2b0] sm:$0xff] %vm197, 0.0
          %285 = vst.msk [vmem:[#allocation2 + $0x2b8] sm:$0xff] %vm197, 0.0
          %286 = vst.msk [vmem:[#allocation2 + $0x2c0] sm:$0xff] %vm197, 0.0
          %287 = vst.msk [vmem:[#allocation2 + $0x2c8] sm:$0xff] %vm197, 0.0
          %288 = vst.msk [vmem:[#allocation2 + $0x2d0] sm:$0xff] %vm197, 0.0
          %289 = vst.msk [vmem:[#allocation2 + $0x2d8] sm:$0xff] %vm197, 0.0
          %290 = vst.msk [vmem:[#allocation2 + $0x2e0] sm:$0xff] %vm197, 0.0
          %291 = vst.msk [vmem:[#allocation2 + $0x2e8] sm:$0xff] %vm197, 0.0
          %292 = vst.msk [vmem:[#allocation2 + $0x2f0] sm:$0xff] %vm197, 0.0
          %293 = vst.msk [vmem:[#allocation2 + $0x2f8] sm:$0xff] %vm197, 0.0
          %294 = vst.msk [vmem:[#allocation2 + $0x300] sm:$0xff] %vm197, 0.0
          %295 = vst.msk [vmem:[#allocation2 + $0x308] sm:$0xff] %vm197, 0.0
          %296 = vst.msk [vmem:[#allocation2 + $0x310] sm:$0xff] %vm197, 0.0
          %297 = vst.msk [vmem:[#allocation2 + $0x318] sm:$0xff] %vm197, 0.0
          %298 = vst.msk [vmem:[#allocation2 + $0x320] sm:$0xff] %vm197, 0.0
          %299 = vst.msk [vmem:[#allocation2 + $0x328] sm:$0xff] %vm197, 0.0
          %300 = vst.msk [vmem:[#allocation2 + $0x330] sm:$0xff] %vm197, 0.0
          %301 = vst.msk [vmem:[#allocation2 + $0x338] sm:$0xff] %vm197, 0.0
          %302 = vst.msk [vmem:[#allocation2 + $0x340] sm:$0xff] %vm197, 0.0
          %303 = vst.msk [vmem:[#allocation2 + $0x348] sm:$0xff] %vm197, 0.0
          %304 = vst.msk [vmem:[#allocation2 + $0x350] sm:$0xff] %vm197, 0.0
          %305 = vst.msk [vmem:[#allocation2 + $0x358] sm:$0xff] %vm197, 0.0
          %306 = vst.msk [vmem:[#allocation2 + $0x360] sm:$0xff] %vm197, 0.0
          %307 = vst.msk [vmem:[#allocation2 + $0x368] sm:$0xff] %vm197, 0.0
          %308 = vst.msk [vmem:[#allocation2 + $0x370] sm:$0xff] %vm197, 0.0
          %309 = vst.msk [vmem:[#allocation2 + $0x378] sm:$0xff] %vm197, 0.0
          %310 = vst.msk [vmem:[#allocation2 + $0x380] sm:$0xff] %vm197, 0.0
          %311 = vst.msk [vmem:[#allocation2 + $0x388] sm:$0xff] %vm197, 0.0
          %312 = vst.msk [vmem:[#allocation2 + $0x390] sm:$0xff] %vm197, 0.0
          %313 = vst.msk [vmem:[#allocation2 + $0x398] sm:$0xff] %vm197, 0.0
          %314 = vst.msk [vmem:[#allocation2 + $0x3a0] sm:$0xff] %vm197, 0.0
          %315 = vst.msk [vmem:[#allocation2 + $0x3a8] sm:$0xff] %vm197, 0.0
          %316 = vst.msk [vmem:[#allocation2 + $0x3b0] sm:$0xff] %vm197, 0.0
          %317 = vst.msk [vmem:[#allocation2 + $0x3b8] sm:$0xff] %vm197, 0.0
          %318 = vst.msk [vmem:[#allocation2 + $0x3c0] sm:$0xff] %vm197, 0.0
          %319 = vst.msk [vmem:[#allocation2 + $0x3c8] sm:$0xff] %vm197, 0.0
          %320 = vst.msk [vmem:[#allocation2 + $0x3d0] sm:$0xff] %vm197, 0.0
          %321 = vst.msk [vmem:[#allocation2 + $0x3d8] sm:$0xff] %vm197, 0.0
          %322 = vst.msk [vmem:[#allocation2 + $0x3e0] sm:$0xff] %vm197, 0.0
          %323 = vst.msk [vmem:[#allocation2 + $0x3e8] sm:$0xff] %vm197, 0.0
          %324 = vst.msk [vmem:[#allocation2 + $0x3f0] sm:$0xff] %vm197, 0.0
          %325 = vst.msk [vmem:[#allocation2 + $0x3f8] sm:$0xff] %vm197, 0.0
        $region36: #{escape_net_snn_forward.4} parent=27 // pred_fallthru
          _
        %v326 = vld [vmem:[#allocation2] sm:$0xff]
        %v327 = vld [vmem:[#allocation2 + $0x8] sm:$0xff]
        %v328 = vld [vmem:[#allocation2 + $0x10] sm:$0xff]
        %v329 = vld [vmem:[#allocation2 + $0x18] sm:$0xff]
        %v330 = vld [vmem:[#allocation2 + $0x20] sm:$0xff]
        %v331 = vld [vmem:[#allocation2 + $0x28] sm:$0xff]
        %v332 = vld [vmem:[#allocation2 + $0x30] sm:$0xff]
        %v333 = vld [vmem:[#allocation2 + $0x38] sm:$0xff]
        %v334 = vld [vmem:[#allocation2 + $0x40] sm:$0xff]
        %v335 = vld [vmem:[#allocation2 + $0x48] sm:$0xff]
        %v336 = vld [vmem:[#allocation2 + $0x50] sm:$0xff]
        %v337 = vld [vmem:[#allocation2 + $0x58] sm:$0xff]
        %v338 = vld [vmem:[#allocation2 + $0x60] sm:$0xff]
        %v339 = vld [vmem:[#allocation2 + $0x68] sm:$0xff]
        %v340 = vld [vmem:[#allocation2 + $0x70] sm:$0xff]
        %v341 = vld [vmem:[#allocation2 + $0x78] sm:$0xff]
        %v342 = vld [vmem:[#allocation2 + $0x80] sm:$0xff]
        %v343 = vld [vmem:[#allocation2 + $0x88] sm:$0xff]
        %v344 = vld [vmem:[#allocation2 + $0x90] sm:$0xff]
        %v345 = vld [vmem:[#allocation2 + $0x98] sm:$0xff]
        %v346 = vld [vmem:[#allocation2 + $0xa0] sm:$0xff]
        %v347 = vld [vmem:[#allocation2 + $0xa8] sm:$0xff]
        %v348 = vld [vmem:[#allocation2 + $0xb0] sm:$0xff]
        %v349 = vld [vmem:[#allocation2 + $0xb8] sm:$0xff]
        %v350 = vld [vmem:[#allocation2 + $0xc0] sm:$0xff]
        %v351 = vld [vmem:[#allocation2 + $0xc8] sm:$0xff]
        %v352 = vld [vmem:[#allocation2 + $0xd0] sm:$0xff]
        %v353 = vld [vmem:[#allocation2 + $0xd8] sm:$0xff]
        %v354 = vld [vmem:[#allocation2 + $0xe0] sm:$0xff]
        %v355 = vld [vmem:[#allocation2 + $0xe8] sm:$0xff]
        %v356 = vld [vmem:[#allocation2 + $0xf0] sm:$0xff]
        %v357 = vld [vmem:[#allocation2 + $0xf8] sm:$0xff]
        %v358 = vld [vmem:[#allocation2 + $0x100] sm:$0xff]
        %v359 = vld [vmem:[#allocation2 + $0x108] sm:$0xff]
        %v360 = vld [vmem:[#allocation2 + $0x110] sm:$0xff]
        %v361 = vld [vmem:[#allocation2 + $0x118] sm:$0xff]
        %v362 = vld [vmem:[#allocation2 + $0x120] sm:$0xff]
        %v363 = vld [vmem:[#allocation2 + $0x128] sm:$0xff]
        %v364 = vld [vmem:[#allocation2 + $0x130] sm:$0xff]
        %v365 = vld [vmem:[#allocation2 + $0x138] sm:$0xff]
        %v366 = vld [vmem:[#allocation2 + $0x140] sm:$0xff]
        %v367 = vld [vmem:[#allocation2 + $0x148] sm:$0xff]
        %v368 = vld [vmem:[#allocation2 + $0x150] sm:$0xff]
        %v369 = vld [vmem:[#allocation2 + $0x158] sm:$0xff]
        %v370 = vld [vmem:[#allocation2 + $0x160] sm:$0xff]
        %v371 = vld [vmem:[#allocation2 + $0x168] sm:$0xff]
        %v372 = vld [vmem:[#allocation2 + $0x170] sm:$0xff]
        %v373 = vld [vmem:[#allocation2 + $0x178] sm:$0xff]
        %v374 = vld [vmem:[#allocation2 + $0x180] sm:$0xff]
        %v375 = vld [vmem:[#allocation2 + $0x188] sm:$0xff]
        %v376 = vld [vmem:[#allocation2 + $0x190] sm:$0xff]
        %v377 = vld [vmem:[#allocation2 + $0x198] sm:$0xff]
        %v378 = vld [vmem:[#allocation2 + $0x1a0] sm:$0xff]
        %v379 = vld [vmem:[#allocation2 + $0x1a8] sm:$0xff]
        %v380 = vld [vmem:[#allocation2 + $0x1b0] sm:$0xff]
        %v381 = vld [vmem:[#allocation2 + $0x1b8] sm:$0xff]
        %v382 = vld [vmem:[#allocation2 + $0x1c0] sm:$0xff]
        %v383 = vld [vmem:[#allocation2 + $0x1c8] sm:$0xff]
        %v384 = vld [vmem:[#allocation2 + $0x1d0] sm:$0xff]
        %v385 = vld [vmem:[#allocation2 + $0x1d8] sm:$0xff]
        %v386 = vld [vmem:[#allocation2 + $0x1e0] sm:$0xff]
        %v387 = vld [vmem:[#allocation2 + $0x1e8] sm:$0xff]
        %v388 = vld [vmem:[#allocation2 + $0x1f0] sm:$0xff]
        %v389 = vld [vmem:[#allocation2 + $0x1f8] sm:$0xff]
        %v390 = vld [vmem:[#allocation2 + $0x200] sm:$0xff]
        %v391 = vld [vmem:[#allocation2 + $0x208] sm:$0xff]
        %v392 = vld [vmem:[#allocation2 + $0x210] sm:$0xff]
        %v393 = vld [vmem:[#allocation2 + $0x218] sm:$0xff]
        %v394 = vld [vmem:[#allocation2 + $0x220] sm:$0xff]
        %v395 = vld [vmem:[#allocation2 + $0x228] sm:$0xff]
        %v396 = vld [vmem:[#allocation2 + $0x230] sm:$0xff]
        %v397 = vld [vmem:[#allocation2 + $0x238] sm:$0xff]
        %v398 = vld [vmem:[#allocation2 + $0x240] sm:$0xff]
        %v399 = vld [vmem:[#allocation2 + $0x248] sm:$0xff]
        %v400 = vld [vmem:[#allocation2 + $0x250] sm:$0xff]
        %v401 = vld [vmem:[#allocation2 + $0x258] sm:$0xff]
        %v402 = vld [vmem:[#allocation2 + $0x260] sm:$0xff]
        %v403 = vld [vmem:[#allocation2 + $0x268] sm:$0xff]
        %v404 = vld [vmem:[#allocation2 + $0x270] sm:$0xff]
        %v405 = vld [vmem:[#allocation2 + $0x278] sm:$0xff]
        %v406 = vld [vmem:[#allocation2 + $0x280] sm:$0xff]
        %v407 = vld [vmem:[#allocation2 + $0x288] sm:$0xff]
        %v408 = vld [vmem:[#allocation2 + $0x290] sm:$0xff]
        %v409 = vld [vmem:[#allocation2 + $0x298] sm:$0xff]
        %v410 = vld [vmem:[#allocation2 + $0x2a0] sm:$0xff]
        %v411 = vld [vmem:[#allocation2 + $0x2a8] sm:$0xff]
        %v412 = vld [vmem:[#allocation2 + $0x2b0] sm:$0xff]
        %v413 = vld [vmem:[#allocation2 + $0x2b8] sm:$0xff]
        %v414 = vld [vmem:[#allocation2 + $0x2c0] sm:$0xff]
        %v415 = vld [vmem:[#allocation2 + $0x2c8] sm:$0xff]
        %v416 = vld [vmem:[#allocation2 + $0x2d0] sm:$0xff]
        %v417 = vld [vmem:[#allocation2 + $0x2d8] sm:$0xff]
        %v418 = vld [vmem:[#allocation2 + $0x2e0] sm:$0xff]
        %v419 = vld [vmem:[#allocation2 + $0x2e8] sm:$0xff]
        %v420 = vld [vmem:[#allocation2 + $0x2f0] sm:$0xff]
        %v421 = vld [vmem:[#allocation2 + $0x2f8] sm:$0xff]
        %v422 = vld [vmem:[#allocation2 + $0x300] sm:$0xff]
        %v423 = vld [vmem:[#allocation2 + $0x308] sm:$0xff]
        %v424 = vld [vmem:[#allocation2 + $0x310] sm:$0xff]
        %v425 = vld [vmem:[#allocation2 + $0x318] sm:$0xff]
        %v426 = vld [vmem:[#allocation2 + $0x320] sm:$0xff]
        %v427 = vld [vmem:[#allocation2 + $0x328] sm:$0xff]
        %v428 = vld [vmem:[#allocation2 + $0x330] sm:$0xff]
        %v429 = vld [vmem:[#allocation2 + $0x338] sm:$0xff]
        %v430 = vld [vmem:[#allocation2 + $0x340] sm:$0xff]
        %v431 = vld [vmem:[#allocation2 + $0x348] sm:$0xff]
        %v432 = vld [vmem:[#allocation2 + $0x350] sm:$0xff]
        %v433 = vld [vmem:[#allocation2 + $0x358] sm:$0xff]
        %v434 = vld [vmem:[#allocation2 + $0x360] sm:$0xff]
        %v435 = vld [vmem:[#allocation2 + $0x368] sm:$0xff]
        %v436 = vld [vmem:[#allocation2 + $0x370] sm:$0xff]
        %v437 = vld [vmem:[#allocation2 + $0x378] sm:$0xff]
        %v438 = vld [vmem:[#allocation2 + $0x380] sm:$0xff]
        %v439 = vld [vmem:[#allocation2 + $0x388] sm:$0xff]
        %v440 = vld [vmem:[#allocation2 + $0x390] sm:$0xff]
        %v441 = vld [vmem:[#allocation2 + $0x398] sm:$0xff]
        %v442 = vld [vmem:[#allocation2 + $0x3a0] sm:$0xff]
        %v443 = vld [vmem:[#allocation2 + $0x3a8] sm:$0xff]
        %v444 = vld [vmem:[#allocation2 + $0x3b0] sm:$0xff]
        %v445 = vld [vmem:[#allocation2 + $0x3b8] sm:$0xff]
        %v446 = vld [vmem:[#allocation2 + $0x3c0] sm:$0xff]
        %v447 = vld [vmem:[#allocation2 + $0x3c8] sm:$0xff]
        %v448 = vld [vmem:[#allocation2 + $0x3d0] sm:$0xff]
        %v449 = vld [vmem:[#allocation2 + $0x3d8] sm:$0xff]
        %v450 = vld [vmem:[#allocation2 + $0x3e0] sm:$0xff]
        %v451 = vld [vmem:[#allocation2 + $0x3e8] sm:$0xff]
        %v452 = vld [vmem:[#allocation2 + $0x3f0] sm:$0xff]
        %v453 = vld [vmem:[#allocation2 + $0x3f8] sm:$0xff]
        %v454 = vsub.f32 %v326, 1.0
        %v455 = vsub.f32 %v327, 1.0
        %v456 = vsub.f32 %v328, 1.0
        %v457 = vsub.f32 %v329, 1.0
        %v458 = vsub.f32 %v330, 1.0
        %v459 = vsub.f32 %v331, 1.0
        %v460 = vsub.f32 %v332, 1.0
        %v461 = vsub.f32 %v333, 1.0
        %v462 = vsub.f32 %v334, 1.0
        %v463 = vsub.f32 %v335, 1.0
        %v464 = vsub.f32 %v336, 1.0
        %v465 = vsub.f32 %v337, 1.0
        %v466 = vsub.f32 %v338, 1.0
        %v467 = vsub.f32 %v339, 1.0
        %v468 = vsub.f32 %v340, 1.0
        %v469 = vsub.f32 %v341, 1.0
        %v470 = vsub.f32 %v342, 1.0
        %v471 = vsub.f32 %v343, 1.0
        %v472 = vsub.f32 %v344, 1.0
        %v473 = vsub.f32 %v345, 1.0
        %v474 = vsub.f32 %v346, 1.0
        %v475 = vsub.f32 %v347, 1.0
        %v476 = vsub.f32 %v348, 1.0
        %v477 = vsub.f32 %v349, 1.0
        %v478 = vsub.f32 %v350, 1.0
        %v479 = vsub.f32 %v351, 1.0
        %v480 = vsub.f32 %v352, 1.0
        %v481 = vsub.f32 %v353, 1.0
        %v482 = vsub.f32 %v354, 1.0
        %v483 = vsub.f32 %v355, 1.0
        %v484 = vsub.f32 %v356, 1.0
        %v485 = vsub.f32 %v357, 1.0
        %v486 = vsub.f32 %v358, 1.0
        %v487 = vsub.f32 %v359, 1.0
        %v488 = vsub.f32 %v360, 1.0
        %v489 = vsub.f32 %v361, 1.0
        %v490 = vsub.f32 %v362, 1.0
        %v491 = vsub.f32 %v363, 1.0
        %v492 = vsub.f32 %v364, 1.0
        %v493 = vsub.f32 %v365, 1.0
        %v494 = vsub.f32 %v366, 1.0
        %v495 = vsub.f32 %v367, 1.0
        %v496 = vsub.f32 %v368, 1.0
        %v497 = vsub.f32 %v369, 1.0
        %v498 = vsub.f32 %v370, 1.0
        %v499 = vsub.f32 %v371, 1.0
        %v500 = vsub.f32 %v372, 1.0
        %v501 = vsub.f32 %v373, 1.0
        %v502 = vsub.f32 %v374, 1.0
        %v503 = vsub.f32 %v375, 1.0
        %v504 = vsub.f32 %v376, 1.0
        %v505 = vsub.f32 %v377, 1.0
        %v506 = vsub.f32 %v378, 1.0
        %v507 = vsub.f32 %v379, 1.0
        %v508 = vsub.f32 %v380, 1.0
        %v509 = vsub.f32 %v381, 1.0
        %v510 = vsub.f32 %v382, 1.0
        %v511 = vsub.f32 %v383, 1.0
        %v512 = vsub.f32 %v384, 1.0
        %v513 = vsub.f32 %v385, 1.0
        %v514 = vsub.f32 %v386, 1.0
        %v515 = vsub.f32 %v387, 1.0
        %v516 = vsub.f32 %v388, 1.0
        %v517 = vsub.f32 %v389, 1.0
        %v518 = vsub.f32 %v390, 1.0
        %v519 = vsub.f32 %v391, 1.0
        %v520 = vsub.f32 %v392, 1.0
        %v521 = vsub.f32 %v393, 1.0
        %v522 = vsub.f32 %v394, 1.0
        %v523 = vsub.f32 %v395, 1.0
        %v524 = vsub.f32 %v396, 1.0
        %v525 = vsub.f32 %v397, 1.0
        %v526 = vsub.f32 %v398, 1.0
        %v527 = vsub.f32 %v399, 1.0
        %v528 = vsub.f32 %v400, 1.0
        %v529 = vsub.f32 %v401, 1.0
        %v530 = vsub.f32 %v402, 1.0
        %v531 = vsub.f32 %v403, 1.0
        %v532 = vsub.f32 %v404, 1.0
        %v533 = vsub.f32 %v405, 1.0
        %v534 = vsub.f32 %v406, 1.0
        %v535 = vsub.f32 %v407, 1.0
        %v536 = vsub.f32 %v408, 1.0
        %v537 = vsub.f32 %v409, 1.0
        %v538 = vsub.f32 %v410, 1.0
        %v539 = vsub.f32 %v411, 1.0
        %v540 = vsub.f32 %v412, 1.0
        %v541 = vsub.f32 %v413, 1.0
        %v542 = vsub.f32 %v414, 1.0
        %v543 = vsub.f32 %v415, 1.0
        %v544 = vsub.f32 %v416, 1.0
        %v545 = vsub.f32 %v417, 1.0
        %v546 = vsub.f32 %v418, 1.0
        %v547 = vsub.f32 %v419, 1.0
        %v548 = vsub.f32 %v420, 1.0
        %v549 = vsub.f32 %v421, 1.0
        %v550 = vsub.f32 %v422, 1.0
        %v551 = vsub.f32 %v423, 1.0
        %v552 = vsub.f32 %v424, 1.0
        %v553 = vsub.f32 %v425, 1.0
        %v554 = vsub.f32 %v426, 1.0
        %v555 = vsub.f32 %v427, 1.0
        %v556 = vsub.f32 %v428, 1.0
        %v557 = vsub.f32 %v429, 1.0
        %v558 = vsub.f32 %v430, 1.0
        %v559 = vsub.f32 %v431, 1.0
        %v560 = vsub.f32 %v432, 1.0
        %v561 = vsub.f32 %v433, 1.0
        %v562 = vsub.f32 %v434, 1.0
        %v563 = vsub.f32 %v435, 1.0
        %v564 = vsub.f32 %v436, 1.0
        %v565 = vsub.f32 %v437, 1.0
        %v566 = vsub.f32 %v438, 1.0
        %v567 = vsub.f32 %v439, 1.0
        %v568 = vsub.f32 %v440, 1.0
        %v569 = vsub.f32 %v441, 1.0
        %v570 = vsub.f32 %v442, 1.0
        %v571 = vsub.f32 %v443, 1.0
        %v572 = vsub.f32 %v444, 1.0
        %v573 = vsub.f32 %v445, 1.0
        %v574 = vsub.f32 %v446, 1.0
        %v575 = vsub.f32 %v447, 1.0
        %v576 = vsub.f32 %v448, 1.0
        %v577 = vsub.f32 %v449, 1.0
        %v578 = vsub.f32 %v450, 1.0
        %v579 = vsub.f32 %v451, 1.0
        %v580 = vsub.f32 %v452, 1.0
        %v581 = vsub.f32 %v453, 1.0
        %vm582 = vcmp.gt.f32.partialorder %v454, 0.0
        %vm583 = vcmp.gt.f32.partialorder %v455, 0.0
        %vm584 = vcmp.gt.f32.partialorder %v456, 0.0
        %vm585 = vcmp.gt.f32.partialorder %v457, 0.0
        %vm586 = vcmp.gt.f32.partialorder %v458, 0.0
        %vm587 = vcmp.gt.f32.partialorder %v459, 0.0
        %vm588 = vcmp.gt.f32.partialorder %v460, 0.0
        %vm589 = vcmp.gt.f32.partialorder %v461, 0.0
        %vm590 = vcmp.gt.f32.partialorder %v462, 0.0
        %vm591 = vcmp.gt.f32.partialorder %v463, 0.0
        %vm592 = vcmp.gt.f32.partialorder %v464, 0.0
        %vm593 = vcmp.gt.f32.partialorder %v465, 0.0
        %vm594 = vcmp.gt.f32.partialorder %v466, 0.0
        %vm595 = vcmp.gt.f32.partialorder %v467, 0.0
        %vm596 = vcmp.gt.f32.partialorder %v468, 0.0
        %vm597 = vcmp.gt.f32.partialorder %v469, 0.0
        %vm598 = vcmp.gt.f32.partialorder %v470, 0.0
        %vm599 = vcmp.gt.f32.partialorder %v471, 0.0
        %vm600 = vcmp.gt.f32.partialorder %v472, 0.0
        %vm601 = vcmp.gt.f32.partialorder %v473, 0.0
        %vm602 = vcmp.gt.f32.partialorder %v474, 0.0
        %vm603 = vcmp.gt.f32.partialorder %v475, 0.0
        %vm604 = vcmp.gt.f32.partialorder %v476, 0.0
        %vm605 = vcmp.gt.f32.partialorder %v477, 0.0
        %vm606 = vcmp.gt.f32.partialorder %v478, 0.0
        %vm607 = vcmp.gt.f32.partialorder %v479, 0.0
        %vm608 = vcmp.gt.f32.partialorder %v480, 0.0
        %vm609 = vcmp.gt.f32.partialorder %v481, 0.0
        %vm610 = vcmp.gt.f32.partialorder %v482, 0.0
        %vm611 = vcmp.gt.f32.partialorder %v483, 0.0
        %vm612 = vcmp.gt.f32.partialorder %v484, 0.0
        %vm613 = vcmp.gt.f32.partialorder %v485, 0.0
        %vm614 = vcmp.gt.f32.partialorder %v486, 0.0
        %vm615 = vcmp.gt.f32.partialorder %v487, 0.0
        %vm616 = vcmp.gt.f32.partialorder %v488, 0.0
        %vm617 = vcmp.gt.f32.partialorder %v489, 0.0
        %vm618 = vcmp.gt.f32.partialorder %v490, 0.0
        %vm619 = vcmp.gt.f32.partialorder %v491, 0.0
        %vm620 = vcmp.gt.f32.partialorder %v492, 0.0
        %vm621 = vcmp.gt.f32.partialorder %v493, 0.0
        %vm622 = vcmp.gt.f32.partialorder %v494, 0.0
        %vm623 = vcmp.gt.f32.partialorder %v495, 0.0
        %vm624 = vcmp.gt.f32.partialorder %v496, 0.0
        %vm625 = vcmp.gt.f32.partialorder %v497, 0.0
        %vm626 = vcmp.gt.f32.partialorder %v498, 0.0
        %vm627 = vcmp.gt.f32.partialorder %v499, 0.0
        %vm628 = vcmp.gt.f32.partialorder %v500, 0.0
        %vm629 = vcmp.gt.f32.partialorder %v501, 0.0
        %vm630 = vcmp.gt.f32.partialorder %v502, 0.0
        %vm631 = vcmp.gt.f32.partialorder %v503, 0.0
        %vm632 = vcmp.gt.f32.partialorder %v504, 0.0
        %vm633 = vcmp.gt.f32.partialorder %v505, 0.0
        %vm634 = vcmp.gt.f32.partialorder %v506, 0.0
        %vm635 = vcmp.gt.f32.partialorder %v507, 0.0
        %vm636 = vcmp.gt.f32.partialorder %v508, 0.0
        %vm637 = vcmp.gt.f32.partialorder %v509, 0.0
        %vm638 = vcmp.gt.f32.partialorder %v510, 0.0
        %vm639 = vcmp.gt.f32.partialorder %v511, 0.0
        %vm640 = vcmp.gt.f32.partialorder %v512, 0.0
        %vm641 = vcmp.gt.f32.partialorder %v513, 0.0
        %vm642 = vcmp.gt.f32.partialorder %v514, 0.0
        %vm643 = vcmp.gt.f32.partialorder %v515, 0.0
        %vm644 = vcmp.gt.f32.partialorder %v516, 0.0
        %vm645 = vcmp.gt.f32.partialorder %v517, 0.0
        %vm646 = vcmp.gt.f32.partialorder %v518, 0.0
        %vm647 = vcmp.gt.f32.partialorder %v519, 0.0
        %vm648 = vcmp.gt.f32.partialorder %v520, 0.0
        %vm649 = vcmp.gt.f32.partialorder %v521, 0.0
        %vm650 = vcmp.gt.f32.partialorder %v522, 0.0
        %vm651 = vcmp.gt.f32.partialorder %v523, 0.0
        %vm652 = vcmp.gt.f32.partialorder %v524, 0.0
        %vm653 = vcmp.gt.f32.partialorder %v525, 0.0
        %vm654 = vcmp.gt.f32.partialorder %v526, 0.0
        %vm655 = vcmp.gt.f32.partialorder %v527, 0.0
        %vm656 = vcmp.gt.f32.partialorder %v528, 0.0
        %vm657 = vcmp.gt.f32.partialorder %v529, 0.0
        %vm658 = vcmp.gt.f32.partialorder %v530, 0.0
        %vm659 = vcmp.gt.f32.partialorder %v531, 0.0
        %vm660 = vcmp.gt.f32.partialorder %v532, 0.0
        %vm661 = vcmp.gt.f32.partialorder %v533, 0.0
        %vm662 = vcmp.gt.f32.partialorder %v534, 0.0
        %vm663 = vcmp.gt.f32.partialorder %v535, 0.0
        %vm664 = vcmp.gt.f32.partialorder %v536, 0.0
        %vm665 = vcmp.gt.f32.partialorder %v537, 0.0
        %vm666 = vcmp.gt.f32.partialorder %v538, 0.0
        %vm667 = vcmp.gt.f32.partialorder %v539, 0.0
        %vm668 = vcmp.gt.f32.partialorder %v540, 0.0
        %vm669 = vcmp.gt.f32.partialorder %v541, 0.0
        %vm670 = vcmp.gt.f32.partialorder %v542, 0.0
        %vm671 = vcmp.gt.f32.partialorder %v543, 0.0
        %vm672 = vcmp.gt.f32.partialorder %v544, 0.0
        %vm673 = vcmp.gt.f32.partialorder %v545, 0.0
        %vm674 = vcmp.gt.f32.partialorder %v546, 0.0
        %vm675 = vcmp.gt.f32.partialorder %v547, 0.0
        %vm676 = vcmp.gt.f32.partialorder %v548, 0.0
        %vm677 = vcmp.gt.f32.partialorder %v549, 0.0
        %vm678 = vcmp.gt.f32.partialorder %v550, 0.0
        %vm679 = vcmp.gt.f32.partialorder %v551, 0.0
        %vm680 = vcmp.gt.f32.partialorder %v552, 0.0
        %vm681 = vcmp.gt.f32.partialorder %v553, 0.0
        %vm682 = vcmp.gt.f32.partialorder %v554, 0.0
        %vm683 = vcmp.gt.f32.partialorder %v555, 0.0
        %vm684 = vcmp.gt.f32.partialorder %v556, 0.0
        %vm685 = vcmp.gt.f32.partialorder %v557, 0.0
        %vm686 = vcmp.gt.f32.partialorder %v558, 0.0
        %vm687 = vcmp.gt.f32.partialorder %v559, 0.0
        %vm688 = vcmp.gt.f32.partialorder %v560, 0.0
        %vm689 = vcmp.gt.f32.partialorder %v561, 0.0
        %vm690 = vcmp.gt.f32.partialorder %v562, 0.0
        %vm691 = vcmp.gt.f32.partialorder %v563, 0.0
        %vm692 = vcmp.gt.f32.partialorder %v564, 0.0
        %vm693 = vcmp.gt.f32.partialorder %v565, 0.0
        %vm694 = vcmp.gt.f32.partialorder %v566, 0.0
        %vm695 = vcmp.gt.f32.partialorder %v567, 0.0
        %vm696 = vcmp.gt.f32.partialorder %v568, 0.0
        %vm697 = vcmp.gt.f32.partialorder %v569, 0.0
        %vm698 = vcmp.gt.f32.partialorder %v570, 0.0
        %vm699 = vcmp.gt.f32.partialorder %v571, 0.0
        %vm700 = vcmp.gt.f32.partialorder %v572, 0.0
        %vm701 = vcmp.gt.f32.partialorder %v573, 0.0
        %vm702 = vcmp.gt.f32.partialorder %v574, 0.0
        %vm703 = vcmp.gt.f32.partialorder %v575, 0.0
        %vm704 = vcmp.gt.f32.partialorder %v576, 0.0
        %vm705 = vcmp.gt.f32.partialorder %v577, 0.0
        %vm706 = vcmp.gt.f32.partialorder %v578, 0.0
        %vm707 = vcmp.gt.f32.partialorder %v579, 0.0
        %vm708 = vcmp.gt.f32.partialorder %v580, 0.0
        %vm709 = vcmp.gt.f32.partialorder %v581, 0.0
        %v710 = vsel %vm582, 1, 0
        %v711 = vsel %vm583, 1, 0
        %v712 = vsel %vm584, 1, 0
        %v713 = vsel %vm585, 1, 0
        %v714 = vsel %vm586, 1, 0
        %v715 = vsel %vm587, 1, 0
        %v716 = vsel %vm588, 1, 0
        %v717 = vsel %vm589, 1, 0
        %v718 = vsel %vm590, 1, 0
        %v719 = vsel %vm591, 1, 0
        %v720 = vsel %vm592, 1, 0
        %v721 = vsel %vm593, 1, 0
        %v722 = vsel %vm594, 1, 0
        %v723 = vsel %vm595, 1, 0
        %v724 = vsel %vm596, 1, 0
        %v725 = vsel %vm597, 1, 0
        %v726 = vsel %vm598, 1, 0
        %v727 = vsel %vm599, 1, 0
        %v728 = vsel %vm600, 1, 0
        %v729 = vsel %vm601, 1, 0
        %v730 = vsel %vm602, 1, 0
        %v731 = vsel %vm603, 1, 0
        %v732 = vsel %vm604, 1, 0
        %v733 = vsel %vm605, 1, 0
        %v734 = vsel %vm606, 1, 0
        %v735 = vsel %vm607, 1, 0
        %v736 = vsel %vm608, 1, 0
        %v737 = vsel %vm609, 1, 0
        %v738 = vsel %vm610, 1, 0
        %v739 = vsel %vm611, 1, 0
        %v740 = vsel %vm612, 1, 0
        %v741 = vsel %vm613, 1, 0
        %v742 = vsel %vm614, 1, 0
        %v743 = vsel %vm615, 1, 0
        %v744 = vsel %vm616, 1, 0
        %v745 = vsel %vm617, 1, 0
        %v746 = vsel %vm618, 1, 0
        %v747 = vsel %vm619, 1, 0
        %v748 = vsel %vm620, 1, 0
        %v749 = vsel %vm621, 1, 0
        %v750 = vsel %vm622, 1, 0
        %v751 = vsel %vm623, 1, 0
        %v752 = vsel %vm624, 1, 0
        %v753 = vsel %vm625, 1, 0
        %v754 = vsel %vm626, 1, 0
        %v755 = vsel %vm627, 1, 0
        %v756 = vsel %vm628, 1, 0
        %v757 = vsel %vm629, 1, 0
        %v758 = vsel %vm630, 1, 0
        %v759 = vsel %vm631, 1, 0
        %v760 = vsel %vm632, 1, 0
        %v761 = vsel %vm633, 1, 0
        %v762 = vsel %vm634, 1, 0
        %v763 = vsel %vm635, 1, 0
        %v764 = vsel %vm636, 1, 0
        %v765 = vsel %vm637, 1, 0
        %v766 = vsel %vm638, 1, 0
        %v767 = vsel %vm639, 1, 0
        %v768 = vsel %vm640, 1, 0
        %v769 = vsel %vm641, 1, 0
        %v770 = vsel %vm642, 1, 0
        %v771 = vsel %vm643, 1, 0
        %v772 = vsel %vm644, 1, 0
        %v773 = vsel %vm645, 1, 0
        %v774 = vsel %vm646, 1, 0
        %v775 = vsel %vm647, 1, 0
        %v776 = vsel %vm648, 1, 0
        %v777 = vsel %vm649, 1, 0
        %v778 = vsel %vm650, 1, 0
        %v779 = vsel %vm651, 1, 0
        %v780 = vsel %vm652, 1, 0
        %v781 = vsel %vm653, 1, 0
        %v782 = vsel %vm654, 1, 0
        %v783 = vsel %vm655, 1, 0
        %v784 = vsel %vm656, 1, 0
        %v785 = vsel %vm657, 1, 0
        %v786 = vsel %vm658, 1, 0
        %v787 = vsel %vm659, 1, 0
        %v788 = vsel %vm660, 1, 0
        %v789 = vsel %vm661, 1, 0
        %v790 = vsel %vm662, 1, 0
        %v791 = vsel %vm663, 1, 0
        %v792 = vsel %vm664, 1, 0
        %v793 = vsel %vm665, 1, 0
        %v794 = vsel %vm666, 1, 0
        %v795 = vsel %vm667, 1, 0
        %v796 = vsel %vm668, 1, 0
        %v797 = vsel %vm669, 1, 0
        %v798 = vsel %vm670, 1, 0
        %v799 = vsel %vm671, 1, 0
        %v800 = vsel %vm672, 1, 0
        %v801 = vsel %vm673, 1, 0
        %v802 = vsel %vm674, 1, 0
        %v803 = vsel %vm675, 1, 0
        %v804 = vsel %vm676, 1, 0
        %v805 = vsel %vm677, 1, 0
        %v806 = vsel %vm678, 1, 0
        %v807 = vsel %vm679, 1, 0
        %v808 = vsel %vm680, 1, 0
        %v809 = vsel %vm681, 1, 0
        %v810 = vsel %vm682, 1, 0
        %v811 = vsel %vm683, 1, 0
        %v812 = vsel %vm684, 1, 0
        %v813 = vsel %vm685, 1, 0
        %v814 = vsel %vm686, 1, 0
        %v815 = vsel %vm687, 1, 0
        %v816 = vsel %vm688, 1, 0
        %v817 = vsel %vm689, 1, 0
        %v818 = vsel %vm690, 1, 0
        %v819 = vsel %vm691, 1, 0
        %v820 = vsel %vm692, 1, 0
        %v821 = vsel %vm693, 1, 0
        %v822 = vsel %vm694, 1, 0
        %v823 = vsel %vm695, 1, 0
        %v824 = vsel %vm696, 1, 0
        %v825 = vsel %vm697, 1, 0
        %v826 = vsel %vm698, 1, 0
        %v827 = vsel %vm699, 1, 0
        %v828 = vsel %vm700, 1, 0
        %v829 = vsel %vm701, 1, 0
        %v830 = vsel %vm702, 1, 0
        %v831 = vsel %vm703, 1, 0
        %v832 = vsel %vm704, 1, 0
        %v833 = vsel %vm705, 1, 0
        %v834 = vsel %vm706, 1, 0
        %v835 = vsel %vm707, 1, 0
        %v836 = vsel %vm708, 1, 0
        %v837 = vsel %vm709, 1, 0
        %v838 = vcvt.s32.f32 %v710
        %v839 = vcvt.s32.f32 %v711
        %v840 = vcvt.s32.f32 %v712
        %v841 = vcvt.s32.f32 %v713
        %v842 = vcvt.s32.f32 %v714
        %v843 = vcvt.s32.f32 %v715
        %v844 = vcvt.s32.f32 %v716
        %v845 = vcvt.s32.f32 %v717
        %v846 = vcvt.s32.f32 %v718
        %v847 = vcvt.s32.f32 %v719
        %v848 = vcvt.s32.f32 %v720
        %v849 = vcvt.s32.f32 %v721
        %v850 = vcvt.s32.f32 %v722
        %v851 = vcvt.s32.f32 %v723
        %v852 = vcvt.s32.f32 %v724
        %v853 = vcvt.s32.f32 %v725
        %v854 = vcvt.s32.f32 %v726
        %v855 = vcvt.s32.f32 %v727
        %v856 = vcvt.s32.f32 %v728
        %v857 = vcvt.s32.f32 %v729
        %v858 = vcvt.s32.f32 %v730
        %v859 = vcvt.s32.f32 %v731
        %v860 = vcvt.s32.f32 %v732
        %v861 = vcvt.s32.f32 %v733
        %v862 = vcvt.s32.f32 %v734
        %v863 = vcvt.s32.f32 %v735
        %v864 = vcvt.s32.f32 %v736
        %v865 = vcvt.s32.f32 %v737
        %v866 = vcvt.s32.f32 %v738
        %v867 = vcvt.s32.f32 %v739
        %v868 = vcvt.s32.f32 %v740
        %v869 = vcvt.s32.f32 %v741
        %v870 = vcvt.s32.f32 %v742
        %v871 = vcvt.s32.f32 %v743
        %v872 = vcvt.s32.f32 %v744
        %v873 = vcvt.s32.f32 %v745
        %v874 = vcvt.s32.f32 %v746
        %v875 = vcvt.s32.f32 %v747
        %v876 = vcvt.s32.f32 %v748
        %v877 = vcvt.s32.f32 %v749
        %v878 = vcvt.s32.f32 %v750
        %v879 = vcvt.s32.f32 %v751
        %v880 = vcvt.s32.f32 %v752
        %v881 = vcvt.s32.f32 %v753
        %v882 = vcvt.s32.f32 %v754
        %v883 = vcvt.s32.f32 %v755
        %v884 = vcvt.s32.f32 %v756
        %v885 = vcvt.s32.f32 %v757
        %v886 = vcvt.s32.f32 %v758
        %v887 = vcvt.s32.f32 %v759
        %v888 = vcvt.s32.f32 %v760
        %v889 = vcvt.s32.f32 %v761
        %v890 = vcvt.s32.f32 %v762
        %v891 = vcvt.s32.f32 %v763
        %v892 = vcvt.s32.f32 %v764
        %v893 = vcvt.s32.f32 %v765
        %v894 = vcvt.s32.f32 %v766
        %v895 = vcvt.s32.f32 %v767
        %v896 = vcvt.s32.f32 %v768
        %v897 = vcvt.s32.f32 %v769
        %v898 = vcvt.s32.f32 %v770
        %v899 = vcvt.s32.f32 %v771
        %v900 = vcvt.s32.f32 %v772
        %v901 = vcvt.s32.f32 %v773
        %v902 = vcvt.s32.f32 %v774
        %v903 = vcvt.s32.f32 %v775
        %v904 = vcvt.s32.f32 %v776
        %v905 = vcvt.s32.f32 %v777
        %v906 = vcvt.s32.f32 %v778
        %v907 = vcvt.s32.f32 %v779
        %v908 = vcvt.s32.f32 %v780
        %v909 = vcvt.s32.f32 %v781
        %v910 = vcvt.s32.f32 %v782
        %v911 = vcvt.s32.f32 %v783
        %v912 = vcvt.s32.f32 %v784
        %v913 = vcvt.s32.f32 %v785
        %v914 = vcvt.s32.f32 %v786
        %v915 = vcvt.s32.f32 %v787
        %v916 = vcvt.s32.f32 %v788
        %v917 = vcvt.s32.f32 %v789
        %v918 = vcvt.s32.f32 %v790
        %v919 = vcvt.s32.f32 %v791
        %v920 = vcvt.s32.f32 %v792
        %v921 = vcvt.s32.f32 %v793
        %v922 = vcvt.s32.f32 %v794
        %v923 = vcvt.s32.f32 %v795
        %v924 = vcvt.s32.f32 %v796
        %v925 = vcvt.s32.f32 %v797
        %v926 = vcvt.s32.f32 %v798
        %v927 = vcvt.s32.f32 %v799
        %v928 = vcvt.s32.f32 %v800
        %v929 = vcvt.s32.f32 %v801
        %v930 = vcvt.s32.f32 %v802
        %v931 = vcvt.s32.f32 %v803
        %v932 = vcvt.s32.f32 %v804
        %v933 = vcvt.s32.f32 %v805
        %v934 = vcvt.s32.f32 %v806
        %v935 = vcvt.s32.f32 %v807
        %v936 = vcvt.s32.f32 %v808
        %v937 = vcvt.s32.f32 %v809
        %v938 = vcvt.s32.f32 %v810
        %v939 = vcvt.s32.f32 %v811
        %v940 = vcvt.s32.f32 %v812
        %v941 = vcvt.s32.f32 %v813
        %v942 = vcvt.s32.f32 %v814
        %v943 = vcvt.s32.f32 %v815
        %v944 = vcvt.s32.f32 %v816
        %v945 = vcvt.s32.f32 %v817
        %v946 = vcvt.s32.f32 %v818
        %v947 = vcvt.s32.f32 %v819
        %v948 = vcvt.s32.f32 %v820
        %v949 = vcvt.s32.f32 %v821
        %v950 = vcvt.s32.f32 %v822
        %v951 = vcvt.s32.f32 %v823
        %v952 = vcvt.s32.f32 %v824
        %v953 = vcvt.s32.f32 %v825
        %v954 = vcvt.s32.f32 %v826
        %v955 = vcvt.s32.f32 %v827
        %v956 = vcvt.s32.f32 %v828
        %v957 = vcvt.s32.f32 %v829
        %v958 = vcvt.s32.f32 %v830
        %v959 = vcvt.s32.f32 %v831
        %v960 = vcvt.s32.f32 %v832
        %v961 = vcvt.s32.f32 %v833
        %v962 = vcvt.s32.f32 %v834
        %v963 = vcvt.s32.f32 %v835
        %v964 = vcvt.s32.f32 %v836
        %v965 = vcvt.s32.f32 %v837
        %v966 = vld [vmem:[%s157] sm:$0xf]
        %v967 = vld [vmem:[%s157 + $0x4] sm:$0xf]
        %v968 = vld [vmem:[%s157 + $0x8] sm:$0xf]
        %v969 = vld [vmem:[%s157 + $0xc] sm:$0xf]
        %v970 = vld [vmem:[%s157 + $0x10] sm:$0xf]
        %v971 = vld [vmem:[%s157 + $0x14] sm:$0xf]
        %v972 = vld [vmem:[%s157 + $0x18] sm:$0xf]
        %v973 = vld [vmem:[%s157 + $0x1c] sm:$0xf]
        %v974 = vld [vmem:[%s157 + $0x20] sm:$0xf]
        %v975 = vld [vmem:[%s157 + $0x24] sm:$0xf]
        %v976 = vld [vmem:[%s157 + $0x28] sm:$0xf]
        %v977 = vld [vmem:[%s157 + $0x2c] sm:$0xf]
        %v978 = vld [vmem:[%s157 + $0x30] sm:$0xf]
        %v979 = vld [vmem:[%s157 + $0x34] sm:$0xf]
        %v980 = vld [vmem:[%s157 + $0x38] sm:$0xf]
        %v981 = vld [vmem:[%s157 + $0x3c] sm:$0xf]
        %v982 = vld [vmem:[%s157 + $0x40] sm:$0xf]
        %v983 = vld [vmem:[%s157 + $0x44] sm:$0xf]
        %v984 = vld [vmem:[%s157 + $0x48] sm:$0xf]
        %v985 = vld [vmem:[%s157 + $0x4c] sm:$0xf]
        %v986 = vld [vmem:[%s157 + $0x50] sm:$0xf]
        %v987 = vld [vmem:[%s157 + $0x54] sm:$0xf]
        %v988 = vld [vmem:[%s157 + $0x58] sm:$0xf]
        %v989 = vld [vmem:[%s157 + $0x5c] sm:$0xf]
        %v990 = vld [vmem:[%s157 + $0x60] sm:$0xf]
        %v991 = vld [vmem:[%s157 + $0x64] sm:$0xf]
        %v992 = vld [vmem:[%s157 + $0x68] sm:$0xf]
        %v993 = vld [vmem:[%s157 + $0x6c] sm:$0xf]
        %v994 = vld [vmem:[%s157 + $0x70] sm:$0xf]
        %v995 = vld [vmem:[%s157 + $0x74] sm:$0xf]
        %v996 = vld [vmem:[%s157 + $0x78] sm:$0xf]
        %v997 = vld [vmem:[%s157 + $0x7c] sm:$0xf]
        %v998 = vld [vmem:[%s157 + $0x80] sm:$0xf]
        %v999 = vld [vmem:[%s157 + $0x84] sm:$0xf]
        %v1000 = vld [vmem:[%s157 + $0x88] sm:$0xf]
        %v1001 = vld [vmem:[%s157 + $0x8c] sm:$0xf]
        %v1002 = vld [vmem:[%s157 + $0x90] sm:$0xf]
        %v1003 = vld [vmem:[%s157 + $0x94] sm:$0xf]
        %v1004 = vld [vmem:[%s157 + $0x98] sm:$0xf]
        %v1005 = vld [vmem:[%s157 + $0x9c] sm:$0xf]
        %v1006 = vld [vmem:[%s157 + $0xa0] sm:$0xf]
        %v1007 = vld [vmem:[%s157 + $0xa4] sm:$0xf]
        %v1008 = vld [vmem:[%s157 + $0xa8] sm:$0xf]
        %v1009 = vld [vmem:[%s157 + $0xac] sm:$0xf]
        %v1010 = vld [vmem:[%s157 + $0xb0] sm:$0xf]
        %v1011 = vld [vmem:[%s157 + $0xb4] sm:$0xf]
        %v1012 = vld [vmem:[%s157 + $0xb8] sm:$0xf]
        %v1013 = vld [vmem:[%s157 + $0xbc] sm:$0xf]
        %v1014 = vld [vmem:[%s157 + $0xc0] sm:$0xf]
        %v1015 = vld [vmem:[%s157 + $0xc4] sm:$0xf]
        %v1016 = vld [vmem:[%s157 + $0xc8] sm:$0xf]
        %v1017 = vld [vmem:[%s157 + $0xcc] sm:$0xf]
        %v1018 = vld [vmem:[%s157 + $0xd0] sm:$0xf]
        %v1019 = vld [vmem:[%s157 + $0xd4] sm:$0xf]
        %v1020 = vld [vmem:[%s157 + $0xd8] sm:$0xf]
        %v1021 = vld [vmem:[%s157 + $0xdc] sm:$0xf]
        %v1022 = vld [vmem:[%s157 + $0xe0] sm:$0xf]
        %v1023 = vld [vmem:[%s157 + $0xe4] sm:$0xf]
        %v1024 = vld [vmem:[%s157 + $0xe8] sm:$0xf]
        %v1025 = vld [vmem:[%s157 + $0xec] sm:$0xf]
        %v1026 = vld [vmem:[%s157 + $0xf0] sm:$0xf]
        %v1027 = vld [vmem:[%s157 + $0xf4] sm:$0xf]
        %v1028 = vld [vmem:[%s157 + $0xf8] sm:$0xf]
        %v1029 = vld [vmem:[%s157 + $0xfc] sm:$0xf]
        %v1030 = vld [vmem:[%s157 + $0x100] sm:$0xf]
        %v1031 = vld [vmem:[%s157 + $0x104] sm:$0xf]
        %v1032 = vld [vmem:[%s157 + $0x108] sm:$0xf]
        %v1033 = vld [vmem:[%s157 + $0x10c] sm:$0xf]
        %v1034 = vld [vmem:[%s157 + $0x110] sm:$0xf]
        %v1035 = vld [vmem:[%s157 + $0x114] sm:$0xf]
        %v1036 = vld [vmem:[%s157 + $0x118] sm:$0xf]
        %v1037 = vld [vmem:[%s157 + $0x11c] sm:$0xf]
        %v1038 = vld [vmem:[%s157 + $0x120] sm:$0xf]
        %v1039 = vld [vmem:[%s157 + $0x124] sm:$0xf]
        %v1040 = vld [vmem:[%s157 + $0x128] sm:$0xf]
        %v1041 = vld [vmem:[%s157 + $0x12c] sm:$0xf]
        %v1042 = vld [vmem:[%s157 + $0x130] sm:$0xf]
        %v1043 = vld [vmem:[%s157 + $0x134] sm:$0xf]
        %v1044 = vld [vmem:[%s157 + $0x138] sm:$0xf]
        %v1045 = vld [vmem:[%s157 + $0x13c] sm:$0xf]
        %v1046 = vld [vmem:[%s157 + $0x140] sm:$0xf]
        %v1047 = vld [vmem:[%s157 + $0x144] sm:$0xf]
        %v1048 = vld [vmem:[%s157 + $0x148] sm:$0xf]
        %v1049 = vld [vmem:[%s157 + $0x14c] sm:$0xf]
        %v1050 = vld [vmem:[%s157 + $0x150] sm:$0xf]
        %v1051 = vld [vmem:[%s157 + $0x154] sm:$0xf]
        %v1052 = vld [vmem:[%s157 + $0x158] sm:$0xf]
        %v1053 = vld [vmem:[%s157 + $0x15c] sm:$0xf]
        %v1054 = vld [vmem:[%s157 + $0x160] sm:$0xf]
        %v1055 = vld [vmem:[%s157 + $0x164] sm:$0xf]
        %v1056 = vld [vmem:[%s157 + $0x168] sm:$0xf]
        %v1057 = vld [vmem:[%s157 + $0x16c] sm:$0xf]
        %v1058 = vld [vmem:[%s157 + $0x170] sm:$0xf]
        %v1059 = vld [vmem:[%s157 + $0x174] sm:$0xf]
        %v1060 = vld [vmem:[%s157 + $0x178] sm:$0xf]
        %v1061 = vld [vmem:[%s157 + $0x17c] sm:$0xf]
        %v1062 = vld [vmem:[%s157 + $0x180] sm:$0xf]
        %v1063 = vld [vmem:[%s157 + $0x184] sm:$0xf]
        %v1064 = vld [vmem:[%s157 + $0x188] sm:$0xf]
        %v1065 = vld [vmem:[%s157 + $0x18c] sm:$0xf]
        %v1066 = vld [vmem:[%s157 + $0x190] sm:$0xf]
        %v1067 = vld [vmem:[%s157 + $0x194] sm:$0xf]
        %v1068 = vld [vmem:[%s157 + $0x198] sm:$0xf]
        %v1069 = vld [vmem:[%s157 + $0x19c] sm:$0xf]
        %v1070 = vld [vmem:[%s157 + $0x1a0] sm:$0xf]
        %v1071 = vld [vmem:[%s157 + $0x1a4] sm:$0xf]
        %v1072 = vld [vmem:[%s157 + $0x1a8] sm:$0xf]
        %v1073 = vld [vmem:[%s157 + $0x1ac] sm:$0xf]
        %v1074 = vld [vmem:[%s157 + $0x1b0] sm:$0xf]
        %v1075 = vld [vmem:[%s157 + $0x1b4] sm:$0xf]
        %v1076 = vld [vmem:[%s157 + $0x1b8] sm:$0xf]
        %v1077 = vld [vmem:[%s157 + $0x1bc] sm:$0xf]
        %v1078 = vld [vmem:[%s157 + $0x1c0] sm:$0xf]
        %v1079 = vld [vmem:[%s157 + $0x1c4] sm:$0xf]
        %v1080 = vld [vmem:[%s157 + $0x1c8] sm:$0xf]
        %v1081 = vld [vmem:[%s157 + $0x1cc] sm:$0xf]
        %v1082 = vld [vmem:[%s157 + $0x1d0] sm:$0xf]
        %v1083 = vld [vmem:[%s157 + $0x1d4] sm:$0xf]
        %v1084 = vld [vmem:[%s157 + $0x1d8] sm:$0xf]
        %v1085 = vld [vmem:[%s157 + $0x1dc] sm:$0xf]
        %v1086 = vld [vmem:[%s157 + $0x1e0] sm:$0xf]
        %v1087 = vld [vmem:[%s157 + $0x1e4] sm:$0xf]
        %v1088 = vld [vmem:[%s157 + $0x1e8] sm:$0xf]
        %v1089 = vld [vmem:[%s157 + $0x1ec] sm:$0xf]
        %v1090 = vld [vmem:[%s157 + $0x1f0] sm:$0xf]
        %v1091 = vld [vmem:[%s157 + $0x1f4] sm:$0xf]
        %v1092 = vld [vmem:[%s157 + $0x1f8] sm:$0xf]
        %v1093 = vld [vmem:[%s157 + $0x1fc] sm:$0xf]
        %v1094 = vld [vmem:[%s1] sm:$0xf]
        %v1095 = vld [vmem:[%s1 + $0x4] sm:$0xf]
        %v1096 = vld [vmem:[%s1 + $0x8] sm:$0xf]
        %v1097 = vld [vmem:[%s1 + $0xc] sm:$0xf]
        %v1098 = vld [vmem:[%s1 + $0x10] sm:$0xf]
        %v1099 = vld [vmem:[%s1 + $0x14] sm:$0xf]
        %v1100 = vld [vmem:[%s1 + $0x18] sm:$0xf]
        %v1101 = vld [vmem:[%s1 + $0x1c] sm:$0xf]
        %v1230 = vunpack.c.l.b16 %v966
        %v1231 = vunpack.c.l.b16 %v967
        %v1232 = vunpack.c.l.b16 %v968
        %v1233 = vunpack.c.l.b16 %v969
        %v1234 = vunpack.c.l.b16 %v970
        %v1235 = vunpack.c.l.b16 %v971
        %v1236 = vunpack.c.l.b16 %v972
        %v1237 = vunpack.c.l.b16 %v973
        %v1238 = vunpack.c.l.b16 %v974
        %v1239 = vunpack.c.l.b16 %v975
        %v1240 = vunpack.c.l.b16 %v976
        %v1241 = vunpack.c.l.b16 %v977
        %v1242 = vunpack.c.l.b16 %v978
        %v1243 = vunpack.c.l.b16 %v979
        %v1244 = vunpack.c.l.b16 %v980
        %v1245 = vunpack.c.l.b16 %v981
        %v1246 = vunpack.c.l.b16 %v982
        %v1247 = vunpack.c.l.b16 %v983
        %v1248 = vunpack.c.l.b16 %v984
        %v1249 = vunpack.c.l.b16 %v985
        %v1250 = vunpack.c.l.b16 %v986
        %v1251 = vunpack.c.l.b16 %v987
        %v1252 = vunpack.c.l.b16 %v988
        %v1253 = vunpack.c.l.b16 %v989
        %v1254 = vunpack.c.l.b16 %v990
        %v1255 = vunpack.c.l.b16 %v991
        %v1256 = vunpack.c.l.b16 %v992
        %v1257 = vunpack.c.l.b16 %v993
        %v1258 = vunpack.c.l.b16 %v994
        %v1259 = vunpack.c.l.b16 %v995
        %v1260 = vunpack.c.l.b16 %v996
        %v1261 = vunpack.c.l.b16 %v997
        %v1262 = vunpack.c.l.b16 %v998
        %v1263 = vunpack.c.l.b16 %v999
        %v1264 = vunpack.c.l.b16 %v1000
        %v1265 = vunpack.c.l.b16 %v1001
        %v1266 = vunpack.c.l.b16 %v1002
        %v1267 = vunpack.c.l.b16 %v1003
        %v1268 = vunpack.c.l.b16 %v1004
        %v1269 = vunpack.c.l.b16 %v1005
        %v1270 = vunpack.c.l.b16 %v1006
        %v1271 = vunpack.c.l.b16 %v1007
        %v1272 = vunpack.c.l.b16 %v1008
        %v1273 = vunpack.c.l.b16 %v1009
        %v1274 = vunpack.c.l.b16 %v1010
        %v1275 = vunpack.c.l.b16 %v1011
        %v1276 = vunpack.c.l.b16 %v1012
        %v1277 = vunpack.c.l.b16 %v1013
        %v1278 = vunpack.c.l.b16 %v1014
        %v1279 = vunpack.c.l.b16 %v1015
        %v1280 = vunpack.c.l.b16 %v1016
        %v1281 = vunpack.c.l.b16 %v1017
        %v1282 = vunpack.c.l.b16 %v1018
        %v1283 = vunpack.c.l.b16 %v1019
        %v1284 = vunpack.c.l.b16 %v1020
        %v1285 = vunpack.c.l.b16 %v1021
        %v1286 = vunpack.c.l.b16 %v1022
        %v1287 = vunpack.c.l.b16 %v1023
        %v1288 = vunpack.c.l.b16 %v1024
        %v1289 = vunpack.c.l.b16 %v1025
        %v1290 = vunpack.c.l.b16 %v1026
        %v1291 = vunpack.c.l.b16 %v1027
        %v1292 = vunpack.c.l.b16 %v1028
        %v1293 = vunpack.c.l.b16 %v1029
        %v1294 = vunpack.c.l.b16 %v1030
        %v1295 = vunpack.c.l.b16 %v1031
        %v1296 = vunpack.c.l.b16 %v1032
        %v1297 = vunpack.c.l.b16 %v1033
        %v1298 = vunpack.c.l.b16 %v1034
        %v1299 = vunpack.c.l.b16 %v1035
        %v1300 = vunpack.c.l.b16 %v1036
        %v1301 = vunpack.c.l.b16 %v1037
        %v1302 = vunpack.c.l.b16 %v1038
        %v1303 = vunpack.c.l.b16 %v1039
        %v1304 = vunpack.c.l.b16 %v1040
        %v1305 = vunpack.c.l.b16 %v1041
        %v1306 = vunpack.c.l.b16 %v1042
        %v1307 = vunpack.c.l.b16 %v1043
        %v1308 = vunpack.c.l.b16 %v1044
        %v1309 = vunpack.c.l.b16 %v1045
        %v1310 = vunpack.c.l.b16 %v1046
        %v1311 = vunpack.c.l.b16 %v1047
        %v1312 = vunpack.c.l.b16 %v1048
        %v1313 = vunpack.c.l.b16 %v1049
        %v1314 = vunpack.c.l.b16 %v1050
        %v1315 = vunpack.c.l.b16 %v1051
        %v1316 = vunpack.c.l.b16 %v1052
        %v1317 = vunpack.c.l.b16 %v1053
        %v1318 = vunpack.c.l.b16 %v1054
        %v1319 = vunpack.c.l.b16 %v1055
        %v1320 = vunpack.c.l.b16 %v1056
        %v1321 = vunpack.c.l.b16 %v1057
        %v1322 = vunpack.c.l.b16 %v1058
        %v1323 = vunpack.c.l.b16 %v1059
        %v1324 = vunpack.c.l.b16 %v1060
        %v1325 = vunpack.c.l.b16 %v1061
        %v1326 = vunpack.c.l.b16 %v1062
        %v1327 = vunpack.c.l.b16 %v1063
        %v1328 = vunpack.c.l.b16 %v1064
        %v1329 = vunpack.c.l.b16 %v1065
        %v1330 = vunpack.c.l.b16 %v1066
        %v1331 = vunpack.c.l.b16 %v1067
        %v1332 = vunpack.c.l.b16 %v1068
        %v1333 = vunpack.c.l.b16 %v1069
        %v1334 = vunpack.c.l.b16 %v1070
        %v1335 = vunpack.c.l.b16 %v1071
        %v1336 = vunpack.c.l.b16 %v1072
        %v1337 = vunpack.c.l.b16 %v1073
        %v1338 = vunpack.c.l.b16 %v1074
        %v1339 = vunpack.c.l.b16 %v1075
        %v1340 = vunpack.c.l.b16 %v1076
        %v1341 = vunpack.c.l.b16 %v1077
        %v1342 = vunpack.c.l.b16 %v1078
        %v1343 = vunpack.c.l.b16 %v1079
        %v1344 = vunpack.c.l.b16 %v1080
        %v1345 = vunpack.c.l.b16 %v1081
        %v1346 = vunpack.c.l.b16 %v1082
        %v1347 = vunpack.c.l.b16 %v1083
        %v1348 = vunpack.c.l.b16 %v1084
        %v1349 = vunpack.c.l.b16 %v1085
        %v1350 = vunpack.c.l.b16 %v1086
        %v1351 = vunpack.c.l.b16 %v1087
        %v1352 = vunpack.c.l.b16 %v1088
        %v1353 = vunpack.c.l.b16 %v1089
        %v1354 = vunpack.c.l.b16 %v1090
        %v1355 = vunpack.c.l.b16 %v1091
        %v1356 = vunpack.c.l.b16 %v1092
        %v1357 = vunpack.c.l.b16 %v1093
        %v1358 = vpack.c.b16 %v1231, %v1230
        %v1359 = vpack.c.b16 %v1233, %v1232
        %v1360 = vpack.c.b16 %v1235, %v1234
        %v1361 = vpack.c.b16 %v1237, %v1236
        %v1362 = vpack.c.b16 %v1239, %v1238
        %v1363 = vpack.c.b16 %v1241, %v1240
        %v1364 = vpack.c.b16 %v1243, %v1242
        %v1365 = vpack.c.b16 %v1245, %v1244
        %v1366 = vpack.c.b16 %v1247, %v1246
        %v1367 = vpack.c.b16 %v1249, %v1248
        %v1368 = vpack.c.b16 %v1251, %v1250
        %v1369 = vpack.c.b16 %v1253, %v1252
        %v1370 = vpack.c.b16 %v1255, %v1254
        %v1371 = vpack.c.b16 %v1257, %v1256
        %v1372 = vpack.c.b16 %v1259, %v1258
        %v1373 = vpack.c.b16 %v1261, %v1260
        %v1374 = vpack.c.b16 %v1263, %v1262
        %v1375 = vpack.c.b16 %v1265, %v1264
        %v1376 = vpack.c.b16 %v1267, %v1266
        %v1377 = vpack.c.b16 %v1269, %v1268
        %v1378 = vpack.c.b16 %v1271, %v1270
        %v1379 = vpack.c.b16 %v1273, %v1272
        %v1380 = vpack.c.b16 %v1275, %v1274
        %v1381 = vpack.c.b16 %v1277, %v1276
        %v1382 = vpack.c.b16 %v1279, %v1278
        %v1383 = vpack.c.b16 %v1281, %v1280
        %v1384 = vpack.c.b16 %v1283, %v1282
        %v1385 = vpack.c.b16 %v1285, %v1284
        %v1386 = vpack.c.b16 %v1287, %v1286
        %v1387 = vpack.c.b16 %v1289, %v1288
        %v1388 = vpack.c.b16 %v1291, %v1290
        %v1389 = vpack.c.b16 %v1293, %v1292
        %v1390 = vpack.c.b16 %v1295, %v1294
        %v1391 = vpack.c.b16 %v1297, %v1296
        %v1392 = vpack.c.b16 %v1299, %v1298
        %v1393 = vpack.c.b16 %v1301, %v1300
        %v1394 = vpack.c.b16 %v1303, %v1302
        %v1395 = vpack.c.b16 %v1305, %v1304
        %v1396 = vpack.c.b16 %v1307, %v1306
        %v1397 = vpack.c.b16 %v1309, %v1308
        %v1398 = vpack.c.b16 %v1311, %v1310
        %v1399 = vpack.c.b16 %v1313, %v1312
        %v1400 = vpack.c.b16 %v1315, %v1314
        %v1401 = vpack.c.b16 %v1317, %v1316
        %v1402 = vpack.c.b16 %v1319, %v1318
        %v1403 = vpack.c.b16 %v1321, %v1320
        %v1404 = vpack.c.b16 %v1323, %v1322
        %v1405 = vpack.c.b16 %v1325, %v1324
        %v1406 = vpack.c.b16 %v1327, %v1326
        %v1407 = vpack.c.b16 %v1329, %v1328
        %v1408 = vpack.c.b16 %v1331, %v1330
        %v1409 = vpack.c.b16 %v1333, %v1332
        %v1410 = vpack.c.b16 %v1335, %v1334
        %v1411 = vpack.c.b16 %v1337, %v1336
        %v1412 = vpack.c.b16 %v1339, %v1338
        %v1413 = vpack.c.b16 %v1341, %v1340
        %v1414 = vpack.c.b16 %v1343, %v1342
        %v1415 = vpack.c.b16 %v1345, %v1344
        %v1416 = vpack.c.b16 %v1347, %v1346
        %v1417 = vpack.c.b16 %v1349, %v1348
        %v1418 = vpack.c.b16 %v1351, %v1350
        %v1419 = vpack.c.b16 %v1353, %v1352
        %v1420 = vpack.c.b16 %v1355, %v1354
        %v1421 = vpack.c.b16 %v1357, %v1356
        %v1430 = vunpack.c.l.b16 %v1094
        %v1431 = vunpack.c.l.b16 %v1095
        %v1432 = vunpack.c.l.b16 %v1096
        %v1433 = vunpack.c.l.b16 %v1097
        %v1434 = vunpack.c.l.b16 %v1098
        %v1435 = vunpack.c.l.b16 %v1099
        %v1436 = vunpack.c.l.b16 %v1100
        %v1437 = vunpack.c.l.b16 %v1101
        %v1438 = vpack.c.b16 %v1431, %v1430
        %v1439 = vpack.c.b16 %v1433, %v1432
        %v1440 = vpack.c.b16 %v1435, %v1434
        %v1441 = vpack.c.b16 %v1437, %v1436
        %vm1446 = vcmask 523264
        %v1448 = vsel %vm1446, %v1358, 0
        %v1451 = vsel %vm1446, %v1359, 0
        %v1454 = vsel %vm1446, %v1360, 0
        %v1457 = vsel %vm1446, %v1361, 0
        %v1460 = vsel %vm1446, %v1362, 0
        %v1463 = vsel %vm1446, %v1363, 0
        %v1466 = vsel %vm1446, %v1364, 0
        %v1469 = vsel %vm1446, %v1365, 0
        %v1472 = vsel %vm1446, %v1366, 0
        %v1475 = vsel %vm1446, %v1367, 0
        %v1478 = vsel %vm1446, %v1368, 0
        %v1481 = vsel %vm1446, %v1369, 0
        %v1484 = vsel %vm1446, %v1370, 0
        %v1487 = vsel %vm1446, %v1371, 0
        %v1490 = vsel %vm1446, %v1372, 0
        %v1493 = vsel %vm1446, %v1373, 0
        %v1496 = vsel %vm1446, %v1374, 0
        %v1499 = vsel %vm1446, %v1375, 0
        %v1502 = vsel %vm1446, %v1376, 0
        %v1505 = vsel %vm1446, %v1377, 0
        %v1508 = vsel %vm1446, %v1378, 0
        %v1511 = vsel %vm1446, %v1379, 0
        %v1514 = vsel %vm1446, %v1380, 0
        %v1517 = vsel %vm1446, %v1381, 0
        %v1520 = vsel %vm1446, %v1382, 0
        %v1523 = vsel %vm1446, %v1383, 0
        %v1526 = vsel %vm1446, %v1384, 0
        %v1529 = vsel %vm1446, %v1385, 0
        %v1532 = vsel %vm1446, %v1386, 0
        %v1535 = vsel %vm1446, %v1387, 0
        %v1538 = vsel %vm1446, %v1388, 0
        %v1541 = vsel %vm1446, %v1389, 0
        %v1544 = vsel %vm1446, %v1390, 0
        %v1547 = vsel %vm1446, %v1391, 0
        %v1550 = vsel %vm1446, %v1392, 0
        %v1553 = vsel %vm1446, %v1393, 0
        %v1556 = vsel %vm1446, %v1394, 0
        %v1559 = vsel %vm1446, %v1395, 0
        %v1562 = vsel %vm1446, %v1396, 0
        %v1565 = vsel %vm1446, %v1397, 0
        %v1568 = vsel %vm1446, %v1398, 0
        %v1571 = vsel %vm1446, %v1399, 0
        %v1574 = vsel %vm1446, %v1400, 0
        %v1577 = vsel %vm1446, %v1401, 0
        %v1580 = vsel %vm1446, %v1402, 0
        %v1583 = vsel %vm1446, %v1403, 0
        %v1586 = vsel %vm1446, %v1404, 0
        %v1589 = vsel %vm1446, %v1405, 0
        %v1592 = vsel %vm1446, %v1406, 0
        %v1595 = vsel %vm1446, %v1407, 0
        %v1598 = vsel %vm1446, %v1408, 0
        %v1601 = vsel %vm1446, %v1409, 0
        %v1604 = vsel %vm1446, %v1410, 0
        %v1607 = vsel %vm1446, %v1411, 0
        %v1610 = vsel %vm1446, %v1412, 0
        %v1613 = vsel %vm1446, %v1413, 0
        %v1616 = vsel %vm1446, %v1414, 0
        %v1619 = vsel %vm1446, %v1415, 0
        %v1622 = vsel %vm1446, %v1416, 0
        %v1625 = vsel %vm1446, %v1417, 0
        %v1628 = vsel %vm1446, %v1418, 0
        %v1631 = vsel %vm1446, %v1419, 0
        %v1634 = vsel %vm1446, %v1420, 0
        %v1637 = vsel %vm1446, %v1421, 0
        %1639 = vmatpush.bf16.msra.mxu0 0
        %1640 = vmatpush.bf16.msra.mxu0 0
        %1641 = vmatpush.bf16.msra.mxu0 0
        %1642 = vmatpush.bf16.msra.mxu0 0
        %1643 = vmatpush.bf16.msra.mxu0 %v1441
        %1644 = vmatpush.bf16.msra.mxu0 %v1440
        %1645 = vmatpush.bf16.msra.mxu0 %v1439
        %1646 = vmatpush.bf16.msra.mxu0 %v1438
        %1647 = vmatmul.bf16.gmra.mxu0 %v1448
        %v1648 = vpop.f32.mrf.mxu0
        %v1649 = vadd.f32 0.0, %v1648
        %v1650 = vpop.f32.mrf.mxu0
        %v1651 = vadd.f32 0.0, %v1650
        %1652 = vmatmul.bf16.gmra.mxu0 %v1451
        %v1653 = vpop.f32.mrf.mxu0
        %v1654 = vadd.f32 0.0, %v1653
        %v1655 = vpop.f32.mrf.mxu0
        %v1656 = vadd.f32 0.0, %v1655
        %1657 = vmatmul.bf16.gmra.mxu0 %v1454
        %v1658 = vpop.f32.mrf.mxu0
        %v1659 = vadd.f32 0.0, %v1658
        %v1660 = vpop.f32.mrf.mxu0
        %v1661 = vadd.f32 0.0, %v1660
        %1662 = vmatmul.bf16.gmra.mxu0 %v1457
        %v1663 = vpop.f32.mrf.mxu0
        %v1664 = vadd.f32 0.0, %v1663
        %v1665 = vpop.f32.mrf.mxu0
        %v1666 = vadd.f32 0.0, %v1665
        %1667 = vmatmul.bf16.gmra.mxu0 %v1460
        %v1668 = vpop.f32.mrf.mxu0
        %v1669 = vadd.f32 0.0, %v1668
        %v1670 = vpop.f32.mrf.mxu0
        %v1671 = vadd.f32 0.0, %v1670
        %1672 = vmatmul.bf16.gmra.mxu0 %v1463
        %v1673 = vpop.f32.mrf.mxu0
        %v1674 = vadd.f32 0.0, %v1673
        %v1675 = vpop.f32.mrf.mxu0
        %v1676 = vadd.f32 0.0, %v1675
        %1677 = vmatmul.bf16.gmra.mxu0 %v1466
        %v1678 = vpop.f32.mrf.mxu0
        %v1679 = vadd.f32 0.0, %v1678
        %v1680 = vpop.f32.mrf.mxu0
        %v1681 = vadd.f32 0.0, %v1680
        %1682 = vmatmul.bf16.gmra.mxu0 %v1469
        %v1683 = vpop.f32.mrf.mxu0
        %v1684 = vadd.f32 0.0, %v1683
        %v1685 = vpop.f32.mrf.mxu0
        %v1686 = vadd.f32 0.0, %v1685
        %1687 = vmatmul.bf16.gmra.mxu0 %v1472
        %v1688 = vpop.f32.mrf.mxu0
        %v1689 = vadd.f32 0.0, %v1688
        %v1690 = vpop.f32.mrf.mxu0
        %v1691 = vadd.f32 0.0, %v1690
        %1692 = vmatmul.bf16.gmra.mxu0 %v1475
        %v1693 = vpop.f32.mrf.mxu0
        %v1694 = vadd.f32 0.0, %v1693
        %v1695 = vpop.f32.mrf.mxu0
        %v1696 = vadd.f32 0.0, %v1695
        %1697 = vmatmul.bf16.gmra.mxu0 %v1478
        %v1698 = vpop.f32.mrf.mxu0
        %v1699 = vadd.f32 0.0, %v1698
        %v1700 = vpop.f32.mrf.mxu0
        %v1701 = vadd.f32 0.0, %v1700
        %1702 = vmatmul.bf16.gmra.mxu0 %v1481
        %v1703 = vpop.f32.mrf.mxu0
        %v1704 = vadd.f32 0.0, %v1703
        %v1705 = vpop.f32.mrf.mxu0
        %v1706 = vadd.f32 0.0, %v1705
        %1707 = vmatmul.bf16.gmra.mxu0 %v1484
        %v1708 = vpop.f32.mrf.mxu0
        %v1709 = vadd.f32 0.0, %v1708
        %v1710 = vpop.f32.mrf.mxu0
        %v1711 = vadd.f32 0.0, %v1710
        %1712 = vmatmul.bf16.gmra.mxu0 %v1487
        %v1713 = vpop.f32.mrf.mxu0
        %v1714 = vadd.f32 0.0, %v1713
        %v1715 = vpop.f32.mrf.mxu0
        %v1716 = vadd.f32 0.0, %v1715
        %1717 = vmatmul.bf16.gmra.mxu0 %v1490
        %v1718 = vpop.f32.mrf.mxu0
        %v1719 = vadd.f32 0.0, %v1718
        %v1720 = vpop.f32.mrf.mxu0
        %v1721 = vadd.f32 0.0, %v1720
        %1722 = vmatmul.bf16.gmra.mxu0 %v1493
        %v1723 = vpop.f32.mrf.mxu0
        %v1724 = vadd.f32 0.0, %v1723
        %v1725 = vpop.f32.mrf.mxu0
        %v1726 = vadd.f32 0.0, %v1725
        %1727 = vmatmul.bf16.gmra.mxu0 %v1496
        %v1728 = vpop.f32.mrf.mxu0
        %v1729 = vadd.f32 0.0, %v1728
        %v1730 = vpop.f32.mrf.mxu0
        %v1731 = vadd.f32 0.0, %v1730
        %1732 = vmatmul.bf16.gmra.mxu0 %v1499
        %v1733 = vpop.f32.mrf.mxu0
        %v1734 = vadd.f32 0.0, %v1733
        %v1735 = vpop.f32.mrf.mxu0
        %v1736 = vadd.f32 0.0, %v1735
        %1737 = vmatmul.bf16.gmra.mxu0 %v1502
        %v1738 = vpop.f32.mrf.mxu0
        %v1739 = vadd.f32 0.0, %v1738
        %v1740 = vpop.f32.mrf.mxu0
        %v1741 = vadd.f32 0.0, %v1740
        %1742 = vmatmul.bf16.gmra.mxu0 %v1505
        %v1743 = vpop.f32.mrf.mxu0
        %v1744 = vadd.f32 0.0, %v1743
        %v1745 = vpop.f32.mrf.mxu0
        %v1746 = vadd.f32 0.0, %v1745
        %1747 = vmatmul.bf16.gmra.mxu0 %v1508
        %v1748 = vpop.f32.mrf.mxu0
        %v1749 = vadd.f32 0.0, %v1748
        %v1750 = vpop.f32.mrf.mxu0
        %v1751 = vadd.f32 0.0, %v1750
        %1752 = vmatmul.bf16.gmra.mxu0 %v1511
        %v1753 = vpop.f32.mrf.mxu0
        %v1754 = vadd.f32 0.0, %v1753
        %v1755 = vpop.f32.mrf.mxu0
        %v1756 = vadd.f32 0.0, %v1755
        %1757 = vmatmul.bf16.gmra.mxu0 %v1514
        %v1758 = vpop.f32.mrf.mxu0
        %v1759 = vadd.f32 0.0, %v1758
        %v1760 = vpop.f32.mrf.mxu0
        %v1761 = vadd.f32 0.0, %v1760
        %1762 = vmatmul.bf16.gmra.mxu0 %v1517
        %v1763 = vpop.f32.mrf.mxu0
        %v1764 = vadd.f32 0.0, %v1763
        %v1765 = vpop.f32.mrf.mxu0
        %v1766 = vadd.f32 0.0, %v1765
        %1767 = vmatmul.bf16.gmra.mxu0 %v1520
        %v1768 = vpop.f32.mrf.mxu0
        %v1769 = vadd.f32 0.0, %v1768
        %v1770 = vpop.f32.mrf.mxu0
        %v1771 = vadd.f32 0.0, %v1770
        %1772 = vmatmul.bf16.gmra.mxu0 %v1523
        %v1773 = vpop.f32.mrf.mxu0
        %v1774 = vadd.f32 0.0, %v1773
        %v1775 = vpop.f32.mrf.mxu0
        %v1776 = vadd.f32 0.0, %v1775
        %1777 = vmatmul.bf16.gmra.mxu0 %v1526
        %v1778 = vpop.f32.mrf.mxu0
        %v1779 = vadd.f32 0.0, %v1778
        %v1780 = vpop.f32.mrf.mxu0
        %v1781 = vadd.f32 0.0, %v1780
        %1782 = vmatmul.bf16.gmra.mxu0 %v1529
        %v1783 = vpop.f32.mrf.mxu0
        %v1784 = vadd.f32 0.0, %v1783
        %v1785 = vpop.f32.mrf.mxu0
        %v1786 = vadd.f32 0.0, %v1785
        %1787 = vmatmul.bf16.gmra.mxu0 %v1532
        %v1788 = vpop.f32.mrf.mxu0
        %v1789 = vadd.f32 0.0, %v1788
        %v1790 = vpop.f32.mrf.mxu0
        %v1791 = vadd.f32 0.0, %v1790
        %1792 = vmatmul.bf16.gmra.mxu0 %v1535
        %v1793 = vpop.f32.mrf.mxu0
        %v1794 = vadd.f32 0.0, %v1793
        %v1795 = vpop.f32.mrf.mxu0
        %v1796 = vadd.f32 0.0, %v1795
        %1797 = vmatmul.bf16.gmra.mxu0 %v1538
        %v1798 = vpop.f32.mrf.mxu0
        %v1799 = vadd.f32 0.0, %v1798
        %v1800 = vpop.f32.mrf.mxu0
        %v1801 = vadd.f32 0.0, %v1800
        %1802 = vmatmul.bf16.gmra.mxu0 %v1541
        %v1803 = vpop.f32.mrf.mxu0
        %v1804 = vadd.f32 0.0, %v1803
        %v1805 = vpop.f32.mrf.mxu0
        %v1806 = vadd.f32 0.0, %v1805
        %1807 = vmatmul.bf16.gmra.mxu0 %v1544
        %v1808 = vpop.f32.mrf.mxu0
        %v1809 = vadd.f32 0.0, %v1808
        %v1810 = vpop.f32.mrf.mxu0
        %v1811 = vadd.f32 0.0, %v1810
        %1812 = vmatmul.bf16.gmra.mxu0 %v1547
        %v1813 = vpop.f32.mrf.mxu0
        %v1814 = vadd.f32 0.0, %v1813
        %v1815 = vpop.f32.mrf.mxu0
        %v1816 = vadd.f32 0.0, %v1815
        %1817 = vmatmul.bf16.gmra.mxu0 %v1550
        %v1818 = vpop.f32.mrf.mxu0
        %v1819 = vadd.f32 0.0, %v1818
        %v1820 = vpop.f32.mrf.mxu0
        %v1821 = vadd.f32 0.0, %v1820
        %1822 = vmatmul.bf16.gmra.mxu0 %v1553
        %v1823 = vpop.f32.mrf.mxu0
        %v1824 = vadd.f32 0.0, %v1823
        %v1825 = vpop.f32.mrf.mxu0
        %v1826 = vadd.f32 0.0, %v1825
        %1827 = vmatmul.bf16.gmra.mxu0 %v1556
        %v1828 = vpop.f32.mrf.mxu0
        %v1829 = vadd.f32 0.0, %v1828
        %v1830 = vpop.f32.mrf.mxu0
        %v1831 = vadd.f32 0.0, %v1830
        %1832 = vmatmul.bf16.gmra.mxu0 %v1559
        %v1833 = vpop.f32.mrf.mxu0
        %v1834 = vadd.f32 0.0, %v1833
        %v1835 = vpop.f32.mrf.mxu0
        %v1836 = vadd.f32 0.0, %v1835
        %1837 = vmatmul.bf16.gmra.mxu0 %v1562
        %v1838 = vpop.f32.mrf.mxu0
        %v1839 = vadd.f32 0.0, %v1838
        %v1840 = vpop.f32.mrf.mxu0
        %v1841 = vadd.f32 0.0, %v1840
        %1842 = vmatmul.bf16.gmra.mxu0 %v1565
        %v1843 = vpop.f32.mrf.mxu0
        %v1844 = vadd.f32 0.0, %v1843
        %v1845 = vpop.f32.mrf.mxu0
        %v1846 = vadd.f32 0.0, %v1845
        %1847 = vmatmul.bf16.gmra.mxu0 %v1568
        %v1848 = vpop.f32.mrf.mxu0
        %v1849 = vadd.f32 0.0, %v1848
        %v1850 = vpop.f32.mrf.mxu0
        %v1851 = vadd.f32 0.0, %v1850
        %1852 = vmatmul.bf16.gmra.mxu0 %v1571
        %v1853 = vpop.f32.mrf.mxu0
        %v1854 = vadd.f32 0.0, %v1853
        %v1855 = vpop.f32.mrf.mxu0
        %v1856 = vadd.f32 0.0, %v1855
        %1857 = vmatmul.bf16.gmra.mxu0 %v1574
        %v1858 = vpop.f32.mrf.mxu0
        %v1859 = vadd.f32 0.0, %v1858
        %v1860 = vpop.f32.mrf.mxu0
        %v1861 = vadd.f32 0.0, %v1860
        %1862 = vmatmul.bf16.gmra.mxu0 %v1577
        %v1863 = vpop.f32.mrf.mxu0
        %v1864 = vadd.f32 0.0, %v1863
        %v1865 = vpop.f32.mrf.mxu0
        %v1866 = vadd.f32 0.0, %v1865
        %1867 = vmatmul.bf16.gmra.mxu0 %v1580
        %v1868 = vpop.f32.mrf.mxu0
        %v1869 = vadd.f32 0.0, %v1868
        %v1870 = vpop.f32.mrf.mxu0
        %v1871 = vadd.f32 0.0, %v1870
        %1872 = vmatmul.bf16.gmra.mxu0 %v1583
        %v1873 = vpop.f32.mrf.mxu0
        %v1874 = vadd.f32 0.0, %v1873
        %v1875 = vpop.f32.mrf.mxu0
        %v1876 = vadd.f32 0.0, %v1875
        %1877 = vmatmul.bf16.gmra.mxu0 %v1586
        %v1878 = vpop.f32.mrf.mxu0
        %v1879 = vadd.f32 0.0, %v1878
        %v1880 = vpop.f32.mrf.mxu0
        %v1881 = vadd.f32 0.0, %v1880
        %1882 = vmatmul.bf16.gmra.mxu0 %v1589
        %v1883 = vpop.f32.mrf.mxu0
        %v1884 = vadd.f32 0.0, %v1883
        %v1885 = vpop.f32.mrf.mxu0
        %v1886 = vadd.f32 0.0, %v1885
        %1887 = vmatmul.bf16.gmra.mxu0 %v1592
        %v1888 = vpop.f32.mrf.mxu0
        %v1889 = vadd.f32 0.0, %v1888
        %v1890 = vpop.f32.mrf.mxu0
        %v1891 = vadd.f32 0.0, %v1890
        %1892 = vmatmul.bf16.gmra.mxu0 %v1595
        %v1893 = vpop.f32.mrf.mxu0
        %v1894 = vadd.f32 0.0, %v1893
        %v1895 = vpop.f32.mrf.mxu0
        %v1896 = vadd.f32 0.0, %v1895
        %1897 = vmatmul.bf16.gmra.mxu0 %v1598
        %v1898 = vpop.f32.mrf.mxu0
        %v1899 = vadd.f32 0.0, %v1898
        %v1900 = vpop.f32.mrf.mxu0
        %v1901 = vadd.f32 0.0, %v1900
        %1902 = vmatmul.bf16.gmra.mxu0 %v1601
        %v1903 = vpop.f32.mrf.mxu0
        %v1904 = vadd.f32 0.0, %v1903
        %v1905 = vpop.f32.mrf.mxu0
        %v1906 = vadd.f32 0.0, %v1905
        %1907 = vmatmul.bf16.gmra.mxu0 %v1604
        %v1908 = vpop.f32.mrf.mxu0
        %v1909 = vadd.f32 0.0, %v1908
        %v1910 = vpop.f32.mrf.mxu0
        %v1911 = vadd.f32 0.0, %v1910
        %1912 = vmatmul.bf16.gmra.mxu0 %v1607
        %v1913 = vpop.f32.mrf.mxu0
        %v1914 = vadd.f32 0.0, %v1913
        %v1915 = vpop.f32.mrf.mxu0
        %v1916 = vadd.f32 0.0, %v1915
        %1917 = vmatmul.bf16.gmra.mxu0 %v1610
        %v1918 = vpop.f32.mrf.mxu0
        %v1919 = vadd.f32 0.0, %v1918
        %v1920 = vpop.f32.mrf.mxu0
        %v1921 = vadd.f32 0.0, %v1920
        %1922 = vmatmul.bf16.gmra.mxu0 %v1613
        %v1923 = vpop.f32.mrf.mxu0
        %v1924 = vadd.f32 0.0, %v1923
        %v1925 = vpop.f32.mrf.mxu0
        %v1926 = vadd.f32 0.0, %v1925
        %1927 = vmatmul.bf16.gmra.mxu0 %v1616
        %v1928 = vpop.f32.mrf.mxu0
        %v1929 = vadd.f32 0.0, %v1928
        %v1930 = vpop.f32.mrf.mxu0
        %v1931 = vadd.f32 0.0, %v1930
        %1932 = vmatmul.bf16.gmra.mxu0 %v1619
        %v1933 = vpop.f32.mrf.mxu0
        %v1934 = vadd.f32 0.0, %v1933
        %v1935 = vpop.f32.mrf.mxu0
        %v1936 = vadd.f32 0.0, %v1935
        %1937 = vmatmul.bf16.gmra.mxu0 %v1622
        %v1938 = vpop.f32.mrf.mxu0
        %v1939 = vadd.f32 0.0, %v1938
        %v1940 = vpop.f32.mrf.mxu0
        %v1941 = vadd.f32 0.0, %v1940
        %1942 = vmatmul.bf16.gmra.mxu0 %v1625
        %v1943 = vpop.f32.mrf.mxu0
        %v1944 = vadd.f32 0.0, %v1943
        %v1945 = vpop.f32.mrf.mxu0
        %v1946 = vadd.f32 0.0, %v1945
        %1947 = vmatmul.bf16.gmra.mxu0 %v1628
        %v1948 = vpop.f32.mrf.mxu0
        %v1949 = vadd.f32 0.0, %v1948
        %v1950 = vpop.f32.mrf.mxu0
        %v1951 = vadd.f32 0.0, %v1950
        %1952 = vmatmul.bf16.gmra.mxu0 %v1631
        %v1953 = vpop.f32.mrf.mxu0
        %v1954 = vadd.f32 0.0, %v1953
        %v1955 = vpop.f32.mrf.mxu0
        %v1956 = vadd.f32 0.0, %v1955
        %1957 = vmatmul.bf16.gmra.mxu0 %v1634
        %v1958 = vpop.f32.mrf.mxu0
        %v1959 = vadd.f32 0.0, %v1958
        %v1960 = vpop.f32.mrf.mxu0
        %v1961 = vadd.f32 0.0, %v1960
        %1962 = vmatmul.bf16.gmra.mxu0 %v1637
        %v1963 = vpop.f32.mrf.mxu0
        %v1964 = vadd.f32 0.0, %v1963
        %v1965 = vpop.f32.mrf.mxu0
        %v1966 = vadd.f32 0.0, %v1965
        %1967 = vdwg.mxu0
        %v1968 = vadd.f32 %v326, %v1649
        %v1969 = vadd.f32 %v327, %v1651
        %v1970 = vadd.f32 %v328, %v1654
        %v1971 = vadd.f32 %v329, %v1656
        %v1972 = vadd.f32 %v330, %v1659
        %v1973 = vadd.f32 %v331, %v1661
        %v1974 = vadd.f32 %v332, %v1664
        %v1975 = vadd.f32 %v333, %v1666
        %v1976 = vadd.f32 %v334, %v1669
        %v1977 = vadd.f32 %v335, %v1671
        %v1978 = vadd.f32 %v336, %v1674
        %v1979 = vadd.f32 %v337, %v1676
        %v1980 = vadd.f32 %v338, %v1679
        %v1981 = vadd.f32 %v339, %v1681
        %v1982 = vadd.f32 %v340, %v1684
        %v1983 = vadd.f32 %v341, %v1686
        %v1984 = vadd.f32 %v342, %v1689
        %v1985 = vadd.f32 %v343, %v1691
        %v1986 = vadd.f32 %v344, %v1694
        %v1987 = vadd.f32 %v345, %v1696
        %v1988 = vadd.f32 %v346, %v1699
        %v1989 = vadd.f32 %v347, %v1701
        %v1990 = vadd.f32 %v348, %v1704
        %v1991 = vadd.f32 %v349, %v1706
        %v1992 = vadd.f32 %v350, %v1709
        %v1993 = vadd.f32 %v351, %v1711
        %v1994 = vadd.f32 %v352, %v1714
        %v1995 = vadd.f32 %v353, %v1716
        %v1996 = vadd.f32 %v354, %v1719
        %v1997 = vadd.f32 %v355, %v1721
        %v1998 = vadd.f32 %v356, %v1724
        %v1999 = vadd.f32 %v357, %v1726
        %v2000 = vadd.f32 %v358, %v1729
        %v2001 = vadd.f32 %v359, %v1731
        %v2002 = vadd.f32 %v360, %v1734
        %v2003 = vadd.f32 %v361, %v1736
        %v2004 = vadd.f32 %v362, %v1739
        %v2005 = vadd.f32 %v363, %v1741
        %v2006 = vadd.f32 %v364, %v1744
        %v2007 = vadd.f32 %v365, %v1746
        %v2008 = vadd.f32 %v366, %v1749
        %v2009 = vadd.f32 %v367, %v1751
        %v2010 = vadd.f32 %v368, %v1754
        %v2011 = vadd.f32 %v369, %v1756
        %v2012 = vadd.f32 %v370, %v1759
        %v2013 = vadd.f32 %v371, %v1761
        %v2014 = vadd.f32 %v372, %v1764
        %v2015 = vadd.f32 %v373, %v1766
        %v2016 = vadd.f32 %v374, %v1769
        %v2017 = vadd.f32 %v375, %v1771
        %v2018 = vadd.f32 %v376, %v1774
        %v2019 = vadd.f32 %v377, %v1776
        %v2020 = vadd.f32 %v378, %v1779
        %v2021 = vadd.f32 %v379, %v1781
        %v2022 = vadd.f32 %v380, %v1784
        %v2023 = vadd.f32 %v381, %v1786
        %v2024 = vadd.f32 %v382, %v1789
        %v2025 = vadd.f32 %v383, %v1791
        %v2026 = vadd.f32 %v384, %v1794
        %v2027 = vadd.f32 %v385, %v1796
        %v2028 = vadd.f32 %v386, %v1799
        %v2029 = vadd.f32 %v387, %v1801
        %v2030 = vadd.f32 %v388, %v1804
        %v2031 = vadd.f32 %v389, %v1806
        %v2032 = vadd.f32 %v390, %v1809
        %v2033 = vadd.f32 %v391, %v1811
        %v2034 = vadd.f32 %v392, %v1814
        %v2035 = vadd.f32 %v393, %v1816
        %v2036 = vadd.f32 %v394, %v1819
        %v2037 = vadd.f32 %v395, %v1821
        %v2038 = vadd.f32 %v396, %v1824
        %v2039 = vadd.f32 %v397, %v1826
        %v2040 = vadd.f32 %v398, %v1829
        %v2041 = vadd.f32 %v399, %v1831
        %v2042 = vadd.f32 %v400, %v1834
        %v2043 = vadd.f32 %v401, %v1836
        %v2044 = vadd.f32 %v402, %v1839
        %v2045 = vadd.f32 %v403, %v1841
        %v2046 = vadd.f32 %v404, %v1844
        %v2047 = vadd.f32 %v405, %v1846
        %v2048 = vadd.f32 %v406, %v1849
        %v2049 = vadd.f32 %v407, %v1851
        %v2050 = vadd.f32 %v408, %v1854
        %v2051 = vadd.f32 %v409, %v1856
        %v2052 = vadd.f32 %v410, %v1859
        %v2053 = vadd.f32 %v411, %v1861
        %v2054 = vadd.f32 %v412, %v1864
        %v2055 = vadd.f32 %v413, %v1866
        %v2056 = vadd.f32 %v414, %v1869
        %v2057 = vadd.f32 %v415, %v1871
        %v2058 = vadd.f32 %v416, %v1874
        %v2059 = vadd.f32 %v417, %v1876
        %v2060 = vadd.f32 %v418, %v1879
        %v2061 = vadd.f32 %v419, %v1881
        %v2062 = vadd.f32 %v420, %v1884
        %v2063 = vadd.f32 %v421, %v1886
        %v2064 = vadd.f32 %v422, %v1889
        %v2065 = vadd.f32 %v423, %v1891
        %v2066 = vadd.f32 %v424, %v1894
        %v2067 = vadd.f32 %v425, %v1896
        %v2068 = vadd.f32 %v426, %v1899
        %v2069 = vadd.f32 %v427, %v1901
        %v2070 = vadd.f32 %v428, %v1904
        %v2071 = vadd.f32 %v429, %v1906
        %v2072 = vadd.f32 %v430, %v1909
        %v2073 = vadd.f32 %v431, %v1911
        %v2074 = vadd.f32 %v432, %v1914
        %v2075 = vadd.f32 %v433, %v1916
        %v2076 = vadd.f32 %v434, %v1919
        %v2077 = vadd.f32 %v435, %v1921
        %v2078 = vadd.f32 %v436, %v1924
        %v2079 = vadd.f32 %v437, %v1926
        %v2080 = vadd.f32 %v438, %v1929
        %v2081 = vadd.f32 %v439, %v1931
        %v2082 = vadd.f32 %v440, %v1934
        %v2083 = vadd.f32 %v441, %v1936
        %v2084 = vadd.f32 %v442, %v1939
        %v2085 = vadd.f32 %v443, %v1941
        %v2086 = vadd.f32 %v444, %v1944
        %v2087 = vadd.f32 %v445, %v1946
        %v2088 = vadd.f32 %v446, %v1949
        %v2089 = vadd.f32 %v447, %v1951
        %v2090 = vadd.f32 %v448, %v1954
        %v2091 = vadd.f32 %v449, %v1956
        %v2092 = vadd.f32 %v450, %v1959
        %v2093 = vadd.f32 %v451, %v1961
        %v2094 = vadd.f32 %v452, %v1964
        %v2095 = vadd.f32 %v453, %v1966
        %v2096 = vsub.f32 %v1968, %v838
        %v2097 = vsub.f32 %v1969, %v839
        %v2098 = vsub.f32 %v1970, %v840
        %v2099 = vsub.f32 %v1971, %v841
        %v2100 = vsub.f32 %v1972, %v842
        %v2101 = vsub.f32 %v1973, %v843
        %v2102 = vsub.f32 %v1974, %v844
        %v2103 = vsub.f32 %v1975, %v845
        %v2104 = vsub.f32 %v1976, %v846
        %v2105 = vsub.f32 %v1977, %v847
        %v2106 = vsub.f32 %v1978, %v848
        %v2107 = vsub.f32 %v1979, %v849
        %v2108 = vsub.f32 %v1980, %v850
        %v2109 = vsub.f32 %v1981, %v851
        %v2110 = vsub.f32 %v1982, %v852
        %v2111 = vsub.f32 %v1983, %v853
        %v2112 = vsub.f32 %v1984, %v854
        %v2113 = vsub.f32 %v1985, %v855
        %v2114 = vsub.f32 %v1986, %v856
        %v2115 = vsub.f32 %v1987, %v857
        %v2116 = vsub.f32 %v1988, %v858
        %v2117 = vsub.f32 %v1989, %v859
        %v2118 = vsub.f32 %v1990, %v860
        %v2119 = vsub.f32 %v1991, %v861
        %v2120 = vsub.f32 %v1992, %v862
        %v2121 = vsub.f32 %v1993, %v863
        %v2122 = vsub.f32 %v1994, %v864
        %v2123 = vsub.f32 %v1995, %v865
        %v2124 = vsub.f32 %v1996, %v866
        %v2125 = vsub.f32 %v1997, %v867
        %v2126 = vsub.f32 %v1998, %v868
        %v2127 = vsub.f32 %v1999, %v869
        %v2128 = vsub.f32 %v2000, %v870
        %v2129 = vsub.f32 %v2001, %v871
        %v2130 = vsub.f32 %v2002, %v872
        %v2131 = vsub.f32 %v2003, %v873
        %v2132 = vsub.f32 %v2004, %v874
        %v2133 = vsub.f32 %v2005, %v875
        %v2134 = vsub.f32 %v2006, %v876
        %v2135 = vsub.f32 %v2007, %v877
        %v2136 = vsub.f32 %v2008, %v878
        %v2137 = vsub.f32 %v2009, %v879
        %v2138 = vsub.f32 %v2010, %v880
        %v2139 = vsub.f32 %v2011, %v881
        %v2140 = vsub.f32 %v2012, %v882
        %v2141 = vsub.f32 %v2013, %v883
        %v2142 = vsub.f32 %v2014, %v884
        %v2143 = vsub.f32 %v2015, %v885
        %v2144 = vsub.f32 %v2016, %v886
        %v2145 = vsub.f32 %v2017, %v887
        %v2146 = vsub.f32 %v2018, %v888
        %v2147 = vsub.f32 %v2019, %v889
        %v2148 = vsub.f32 %v2020, %v890
        %v2149 = vsub.f32 %v2021, %v891
        %v2150 = vsub.f32 %v2022, %v892
        %v2151 = vsub.f32 %v2023, %v893
        %v2152 = vsub.f32 %v2024, %v894
        %v2153 = vsub.f32 %v2025, %v895
        %v2154 = vsub.f32 %v2026, %v896
        %v2155 = vsub.f32 %v2027, %v897
        %v2156 = vsub.f32 %v2028, %v898
        %v2157 = vsub.f32 %v2029, %v899
        %v2158 = vsub.f32 %v2030, %v900
        %v2159 = vsub.f32 %v2031, %v901
        %v2160 = vsub.f32 %v2032, %v902
        %v2161 = vsub.f32 %v2033, %v903
        %v2162 = vsub.f32 %v2034, %v904
        %v2163 = vsub.f32 %v2035, %v905
        %v2164 = vsub.f32 %v2036, %v906
        %v2165 = vsub.f32 %v2037, %v907
        %v2166 = vsub.f32 %v2038, %v908
        %v2167 = vsub.f32 %v2039, %v909
        %v2168 = vsub.f32 %v2040, %v910
        %v2169 = vsub.f32 %v2041, %v911
        %v2170 = vsub.f32 %v2042, %v912
        %v2171 = vsub.f32 %v2043, %v913
        %v2172 = vsub.f32 %v2044, %v914
        %v2173 = vsub.f32 %v2045, %v915
        %v2174 = vsub.f32 %v2046, %v916
        %v2175 = vsub.f32 %v2047, %v917
        %v2176 = vsub.f32 %v2048, %v918
        %v2177 = vsub.f32 %v2049, %v919
        %v2178 = vsub.f32 %v2050, %v920
        %v2179 = vsub.f32 %v2051, %v921
        %v2180 = vsub.f32 %v2052, %v922
        %v2181 = vsub.f32 %v2053, %v923
        %v2182 = vsub.f32 %v2054, %v924
        %v2183 = vsub.f32 %v2055, %v925
        %v2184 = vsub.f32 %v2056, %v926
        %v2185 = vsub.f32 %v2057, %v927
        %v2186 = vsub.f32 %v2058, %v928
        %v2187 = vsub.f32 %v2059, %v929
        %v2188 = vsub.f32 %v2060, %v930
        %v2189 = vsub.f32 %v2061, %v931
        %v2190 = vsub.f32 %v2062, %v932
        %v2191 = vsub.f32 %v2063, %v933
        %v2192 = vsub.f32 %v2064, %v934
        %v2193 = vsub.f32 %v2065, %v935
        %v2194 = vsub.f32 %v2066, %v936
        %v2195 = vsub.f32 %v2067, %v937
        %v2196 = vsub.f32 %v2068, %v938
        %v2197 = vsub.f32 %v2069, %v939
        %v2198 = vsub.f32 %v2070, %v940
        %v2199 = vsub.f32 %v2071, %v941
        %v2200 = vsub.f32 %v2072, %v942
        %v2201 = vsub.f32 %v2073, %v943
        %v2202 = vsub.f32 %v2074, %v944
        %v2203 = vsub.f32 %v2075, %v945
        %v2204 = vsub.f32 %v2076, %v946
        %v2205 = vsub.f32 %v2077, %v947
        %v2206 = vsub.f32 %v2078, %v948
        %v2207 = vsub.f32 %v2079, %v949
        %v2208 = vsub.f32 %v2080, %v950
        %v2209 = vsub.f32 %v2081, %v951
        %v2210 = vsub.f32 %v2082, %v952
        %v2211 = vsub.f32 %v2083, %v953
        %v2212 = vsub.f32 %v2084, %v954
        %v2213 = vsub.f32 %v2085, %v955
        %v2214 = vsub.f32 %v2086, %v956
        %v2215 = vsub.f32 %v2087, %v957
        %v2216 = vsub.f32 %v2088, %v958
        %v2217 = vsub.f32 %v2089, %v959
        %v2218 = vsub.f32 %v2090, %v960
        %v2219 = vsub.f32 %v2091, %v961
        %v2220 = vsub.f32 %v2092, %v962
        %v2221 = vsub.f32 %v2093, %v963
        %v2222 = vsub.f32 %v2094, %v964
        %v2223 = vsub.f32 %v2095, %v965
        %2224 = vst.msk [vmem:[#allocation2] sm:$0xff] %vm1446, %v2096
        %2225 = vst.msk [vmem:[#allocation2 + $0x8] sm:$0xff] %vm1446, %v2097
        %2226 = vst.msk [vmem:[#allocation2 + $0x10] sm:$0xff] %vm1446, %v2098
        %2227 = vst.msk [vmem:[#allocation2 + $0x18] sm:$0xff] %vm1446, %v2099
        %2228 = vst.msk [vmem:[#allocation2 + $0x20] sm:$0xff] %vm1446, %v2100
        %2229 = vst.msk [vmem:[#allocation2 + $0x28] sm:$0xff] %vm1446, %v2101
        %2230 = vst.msk [vmem:[#allocation2 + $0x30] sm:$0xff] %vm1446, %v2102
        %2231 = vst.msk [vmem:[#allocation2 + $0x38] sm:$0xff] %vm1446, %v2103
        %2232 = vst.msk [vmem:[#allocation2 + $0x40] sm:$0xff] %vm1446, %v2104
        %2233 = vst.msk [vmem:[#allocation2 + $0x48] sm:$0xff] %vm1446, %v2105
        %2234 = vst.msk [vmem:[#allocation2 + $0x50] sm:$0xff] %vm1446, %v2106
        %2235 = vst.msk [vmem:[#allocation2 + $0x58] sm:$0xff] %vm1446, %v2107
        %2236 = vst.msk [vmem:[#allocation2 + $0x60] sm:$0xff] %vm1446, %v2108
        %2237 = vst.msk [vmem:[#allocation2 + $0x68] sm:$0xff] %vm1446, %v2109
        %2238 = vst.msk [vmem:[#allocation2 + $0x70] sm:$0xff] %vm1446, %v2110
        %2239 = vst.msk [vmem:[#allocation2 + $0x78] sm:$0xff] %vm1446, %v2111
        %2240 = vst.msk [vmem:[#allocation2 + $0x80] sm:$0xff] %vm1446, %v2112
        %2241 = vst.msk [vmem:[#allocation2 + $0x88] sm:$0xff] %vm1446, %v2113
        %2242 = vst.msk [vmem:[#allocation2 + $0x90] sm:$0xff] %vm1446, %v2114
        %2243 = vst.msk [vmem:[#allocation2 + $0x98] sm:$0xff] %vm1446, %v2115
        %2244 = vst.msk [vmem:[#allocation2 + $0xa0] sm:$0xff] %vm1446, %v2116
        %2245 = vst.msk [vmem:[#allocation2 + $0xa8] sm:$0xff] %vm1446, %v2117
        %2246 = vst.msk [vmem:[#allocation2 + $0xb0] sm:$0xff] %vm1446, %v2118
        %2247 = vst.msk [vmem:[#allocation2 + $0xb8] sm:$0xff] %vm1446, %v2119
        %2248 = vst.msk [vmem:[#allocation2 + $0xc0] sm:$0xff] %vm1446, %v2120
        %2249 = vst.msk [vmem:[#allocation2 + $0xc8] sm:$0xff] %vm1446, %v2121
        %2250 = vst.msk [vmem:[#allocation2 + $0xd0] sm:$0xff] %vm1446, %v2122
        %2251 = vst.msk [vmem:[#allocation2 + $0xd8] sm:$0xff] %vm1446, %v2123
        %2252 = vst.msk [vmem:[#allocation2 + $0xe0] sm:$0xff] %vm1446, %v2124
        %2253 = vst.msk [vmem:[#allocation2 + $0xe8] sm:$0xff] %vm1446, %v2125
        %2254 = vst.msk [vmem:[#allocation2 + $0xf0] sm:$0xff] %vm1446, %v2126
        %2255 = vst.msk [vmem:[#allocation2 + $0xf8] sm:$0xff] %vm1446, %v2127
        %2256 = vst.msk [vmem:[#allocation2 + $0x100] sm:$0xff] %vm1446, %v2128
        %2257 = vst.msk [vmem:[#allocation2 + $0x108] sm:$0xff] %vm1446, %v2129
        %2258 = vst.msk [vmem:[#allocation2 + $0x110] sm:$0xff] %vm1446, %v2130
        %2259 = vst.msk [vmem:[#allocation2 + $0x118] sm:$0xff] %vm1446, %v2131
        %2260 = vst.msk [vmem:[#allocation2 + $0x120] sm:$0xff] %vm1446, %v2132
        %2261 = vst.msk [vmem:[#allocation2 + $0x128] sm:$0xff] %vm1446, %v2133
        %2262 = vst.msk [vmem:[#allocation2 + $0x130] sm:$0xff] %vm1446, %v2134
        %2263 = vst.msk [vmem:[#allocation2 + $0x138] sm:$0xff] %vm1446, %v2135
        %2264 = vst.msk [vmem:[#allocation2 + $0x140] sm:$0xff] %vm1446, %v2136
        %2265 = vst.msk [vmem:[#allocation2 + $0x148] sm:$0xff] %vm1446, %v2137
        %2266 = vst.msk [vmem:[#allocation2 + $0x150] sm:$0xff] %vm1446, %v2138
        %2267 = vst.msk [vmem:[#allocation2 + $0x158] sm:$0xff] %vm1446, %v2139
        %2268 = vst.msk [vmem:[#allocation2 + $0x160] sm:$0xff] %vm1446, %v2140
        %2269 = vst.msk [vmem:[#allocation2 + $0x168] sm:$0xff] %vm1446, %v2141
        %2270 = vst.msk [vmem:[#allocation2 + $0x170] sm:$0xff] %vm1446, %v2142
        %2271 = vst.msk [vmem:[#allocation2 + $0x178] sm:$0xff] %vm1446, %v2143
        %2272 = vst.msk [vmem:[#allocation2 + $0x180] sm:$0xff] %vm1446, %v2144
        %2273 = vst.msk [vmem:[#allocation2 + $0x188] sm:$0xff] %vm1446, %v2145
        %2274 = vst.msk [vmem:[#allocation2 + $0x190] sm:$0xff] %vm1446, %v2146
        %2275 = vst.msk [vmem:[#allocation2 + $0x198] sm:$0xff] %vm1446, %v2147
        %2276 = vst.msk [vmem:[#allocation2 + $0x1a0] sm:$0xff] %vm1446, %v2148
        %2277 = vst.msk [vmem:[#allocation2 + $0x1a8] sm:$0xff] %vm1446, %v2149
        %2278 = vst.msk [vmem:[#allocation2 + $0x1b0] sm:$0xff] %vm1446, %v2150
        %2279 = vst.msk [vmem:[#allocation2 + $0x1b8] sm:$0xff] %vm1446, %v2151
        %2280 = vst.msk [vmem:[#allocation2 + $0x1c0] sm:$0xff] %vm1446, %v2152
        %2281 = vst.msk [vmem:[#allocation2 + $0x1c8] sm:$0xff] %vm1446, %v2153
        %2282 = vst.msk [vmem:[#allocation2 + $0x1d0] sm:$0xff] %vm1446, %v2154
        %2283 = vst.msk [vmem:[#allocation2 + $0x1d8] sm:$0xff] %vm1446, %v2155
        %2284 = vst.msk [vmem:[#allocation2 + $0x1e0] sm:$0xff] %vm1446, %v2156
        %2285 = vst.msk [vmem:[#allocation2 + $0x1e8] sm:$0xff] %vm1446, %v2157
        %2286 = vst.msk [vmem:[#allocation2 + $0x1f0] sm:$0xff] %vm1446, %v2158
        %2287 = vst.msk [vmem:[#allocation2 + $0x1f8] sm:$0xff] %vm1446, %v2159
        %2288 = vst.msk [vmem:[#allocation2 + $0x200] sm:$0xff] %vm1446, %v2160
        %2289 = vst.msk [vmem:[#allocation2 + $0x208] sm:$0xff] %vm1446, %v2161
        %2290 = vst.msk [vmem:[#allocation2 + $0x210] sm:$0xff] %vm1446, %v2162
        %2291 = vst.msk [vmem:[#allocation2 + $0x218] sm:$0xff] %vm1446, %v2163
        %2292 = vst.msk [vmem:[#allocation2 + $0x220] sm:$0xff] %vm1446, %v2164
        %2293 = vst.msk [vmem:[#allocation2 + $0x228] sm:$0xff] %vm1446, %v2165
        %2294 = vst.msk [vmem:[#allocation2 + $0x230] sm:$0xff] %vm1446, %v2166
        %2295 = vst.msk [vmem:[#allocation2 + $0x238] sm:$0xff] %vm1446, %v2167
        %2296 = vst.msk [vmem:[#allocation2 + $0x240] sm:$0xff] %vm1446, %v2168
        %2297 = vst.msk [vmem:[#allocation2 + $0x248] sm:$0xff] %vm1446, %v2169
        %2298 = vst.msk [vmem:[#allocation2 + $0x250] sm:$0xff] %vm1446, %v2170
        %2299 = vst.msk [vmem:[#allocation2 + $0x258] sm:$0xff] %vm1446, %v2171
        %2300 = vst.msk [vmem:[#allocation2 + $0x260] sm:$0xff] %vm1446, %v2172
        %2301 = vst.msk [vmem:[#allocation2 + $0x268] sm:$0xff] %vm1446, %v2173
        %2302 = vst.msk [vmem:[#allocation2 + $0x270] sm:$0xff] %vm1446, %v2174
        %2303 = vst.msk [vmem:[#allocation2 + $0x278] sm:$0xff] %vm1446, %v2175
        %2304 = vst.msk [vmem:[#allocation2 + $0x280] sm:$0xff] %vm1446, %v2176
        %2305 = vst.msk [vmem:[#allocation2 + $0x288] sm:$0xff] %vm1446, %v2177
        %2306 = vst.msk [vmem:[#allocation2 + $0x290] sm:$0xff] %vm1446, %v2178
        %2307 = vst.msk [vmem:[#allocation2 + $0x298] sm:$0xff] %vm1446, %v2179
        %2308 = vst.msk [vmem:[#allocation2 + $0x2a0] sm:$0xff] %vm1446, %v2180
        %2309 = vst.msk [vmem:[#allocation2 + $0x2a8] sm:$0xff] %vm1446, %v2181
        %2310 = vst.msk [vmem:[#allocation2 + $0x2b0] sm:$0xff] %vm1446, %v2182
        %2311 = vst.msk [vmem:[#allocation2 + $0x2b8] sm:$0xff] %vm1446, %v2183
        %2312 = vst.msk [vmem:[#allocation2 + $0x2c0] sm:$0xff] %vm1446, %v2184
        %2313 = vst.msk [vmem:[#allocation2 + $0x2c8] sm:$0xff] %vm1446, %v2185
        %2314 = vst.msk [vmem:[#allocation2 + $0x2d0] sm:$0xff] %vm1446, %v2186
        %2315 = vst.msk [vmem:[#allocation2 + $0x2d8] sm:$0xff] %vm1446, %v2187
        %2316 = vst.msk [vmem:[#allocation2 + $0x2e0] sm:$0xff] %vm1446, %v2188
        %2317 = vst.msk [vmem:[#allocation2 + $0x2e8] sm:$0xff] %vm1446, %v2189
        %2318 = vst.msk [vmem:[#allocation2 + $0x2f0] sm:$0xff] %vm1446, %v2190
        %2319 = vst.msk [vmem:[#allocation2 + $0x2f8] sm:$0xff] %vm1446, %v2191
        %2320 = vst.msk [vmem:[#allocation2 + $0x300] sm:$0xff] %vm1446, %v2192
        %2321 = vst.msk [vmem:[#allocation2 + $0x308] sm:$0xff] %vm1446, %v2193
        %2322 = vst.msk [vmem:[#allocation2 + $0x310] sm:$0xff] %vm1446, %v2194
        %2323 = vst.msk [vmem:[#allocation2 + $0x318] sm:$0xff] %vm1446, %v2195
        %2324 = vst.msk [vmem:[#allocation2 + $0x320] sm:$0xff] %vm1446, %v2196
        %2325 = vst.msk [vmem:[#allocation2 + $0x328] sm:$0xff] %vm1446, %v2197
        %2326 = vst.msk [vmem:[#allocation2 + $0x330] sm:$0xff] %vm1446, %v2198
        %2327 = vst.msk [vmem:[#allocation2 + $0x338] sm:$0xff] %vm1446, %v2199
        %2328 = vst.msk [vmem:[#allocation2 + $0x340] sm:$0xff] %vm1446, %v2200
        %2329 = vst.msk [vmem:[#allocation2 + $0x348] sm:$0xff] %vm1446, %v2201
        %2330 = vst.msk [vmem:[#allocation2 + $0x350] sm:$0xff] %vm1446, %v2202
        %2331 = vst.msk [vmem:[#allocation2 + $0x358] sm:$0xff] %vm1446, %v2203
        %2332 = vst.msk [vmem:[#allocation2 + $0x360] sm:$0xff] %vm1446, %v2204
        %2333 = vst.msk [vmem:[#allocation2 + $0x368] sm:$0xff] %vm1446, %v2205
        %2334 = vst.msk [vmem:[#allocation2 + $0x370] sm:$0xff] %vm1446, %v2206
        %2335 = vst.msk [vmem:[#allocation2 + $0x378] sm:$0xff] %vm1446, %v2207
        %2336 = vst.msk [vmem:[#allocation2 + $0x380] sm:$0xff] %vm1446, %v2208
        %2337 = vst.msk [vmem:[#allocation2 + $0x388] sm:$0xff] %vm1446, %v2209
        %2338 = vst.msk [vmem:[#allocation2 + $0x390] sm:$0xff] %vm1446, %v2210
        %2339 = vst.msk [vmem:[#allocation2 + $0x398] sm:$0xff] %vm1446, %v2211
        %2340 = vst.msk [vmem:[#allocation2 + $0x3a0] sm:$0xff] %vm1446, %v2212
        %2341 = vst.msk [vmem:[#allocation2 + $0x3a8] sm:$0xff] %vm1446, %v2213
        %2342 = vst.msk [vmem:[#allocation2 + $0x3b0] sm:$0xff] %vm1446, %v2214
        %2343 = vst.msk [vmem:[#allocation2 + $0x3b8] sm:$0xff] %vm1446, %v2215
        %2344 = vst.msk [vmem:[#allocation2 + $0x3c0] sm:$0xff] %vm1446, %v2216
        %2345 = vst.msk [vmem:[#allocation2 + $0x3c8] sm:$0xff] %vm1446, %v2217
        %2346 = vst.msk [vmem:[#allocation2 + $0x3d0] sm:$0xff] %vm1446, %v2218
        %2347 = vst.msk [vmem:[#allocation2 + $0x3d8] sm:$0xff] %vm1446, %v2219
        %2348 = vst.msk [vmem:[#allocation2 + $0x3e0] sm:$0xff] %vm1446, %v2220
        %2349 = vst.msk [vmem:[#allocation2 + $0x3e8] sm:$0xff] %vm1446, %v2221
        %2350 = vst.msk [vmem:[#allocation2 + $0x3f0] sm:$0xff] %vm1446, %v2222
        %2351 = vst.msk [vmem:[#allocation2 + $0x3f8] sm:$0xff] %vm1446, %v2223
        %2352 = vst.msk [vmem:[#allocation3] sm:$0xff] %vm1446, %v838
        %2353 = vst.msk [vmem:[#allocation3 + $0x8] sm:$0xff] %vm1446, %v839
        %2354 = vst.msk [vmem:[#allocation3 + $0x10] sm:$0xff] %vm1446, %v840
        %2355 = vst.msk [vmem:[#allocation3 + $0x18] sm:$0xff] %vm1446, %v841
        %2356 = vst.msk [vmem:[#allocation3 + $0x20] sm:$0xff] %vm1446, %v842
        %2357 = vst.msk [vmem:[#allocation3 + $0x28] sm:$0xff] %vm1446, %v843
        %2358 = vst.msk [vmem:[#allocation3 + $0x30] sm:$0xff] %vm1446, %v844
        %2359 = vst.msk [vmem:[#allocation3 + $0x38] sm:$0xff] %vm1446, %v845
        %2360 = vst.msk [vmem:[#allocation3 + $0x40] sm:$0xff] %vm1446, %v846
        %2361 = vst.msk [vmem:[#allocation3 + $0x48] sm:$0xff] %vm1446, %v847
        %2362 = vst.msk [vmem:[#allocation3 + $0x50] sm:$0xff] %vm1446, %v848
        %2363 = vst.msk [vmem:[#allocation3 + $0x58] sm:$0xff] %vm1446, %v849
        %2364 = vst.msk [vmem:[#allocation3 + $0x60] sm:$0xff] %vm1446, %v850
        %2365 = vst.msk [vmem:[#allocation3 + $0x68] sm:$0xff] %vm1446, %v851
        %2366 = vst.msk [vmem:[#allocation3 + $0x70] sm:$0xff] %vm1446, %v852
        %2367 = vst.msk [vmem:[#allocation3 + $0x78] sm:$0xff] %vm1446, %v853
        %2368 = vst.msk [vmem:[#allocation3 + $0x80] sm:$0xff] %vm1446, %v854
        %2369 = vst.msk [vmem:[#allocation3 + $0x88] sm:$0xff] %vm1446, %v855
        %2370 = vst.msk [vmem:[#allocation3 + $0x90] sm:$0xff] %vm1446, %v856
        %2371 = vst.msk [vmem:[#allocation3 + $0x98] sm:$0xff] %vm1446, %v857
        %2372 = vst.msk [vmem:[#allocation3 + $0xa0] sm:$0xff] %vm1446, %v858
        %2373 = vst.msk [vmem:[#allocation3 + $0xa8] sm:$0xff] %vm1446, %v859
        %2374 = vst.msk [vmem:[#allocation3 + $0xb0] sm:$0xff] %vm1446, %v860
        %2375 = vst.msk [vmem:[#allocation3 + $0xb8] sm:$0xff] %vm1446, %v861
        %2376 = vst.msk [vmem:[#allocation3 + $0xc0] sm:$0xff] %vm1446, %v862
        %2377 = vst.msk [vmem:[#allocation3 + $0xc8] sm:$0xff] %vm1446, %v863
        %2378 = vst.msk [vmem:[#allocation3 + $0xd0] sm:$0xff] %vm1446, %v864
        %2379 = vst.msk [vmem:[#allocation3 + $0xd8] sm:$0xff] %vm1446, %v865
        %2380 = vst.msk [vmem:[#allocation3 + $0xe0] sm:$0xff] %vm1446, %v866
        %2381 = vst.msk [vmem:[#allocation3 + $0xe8] sm:$0xff] %vm1446, %v867
        %2382 = vst.msk [vmem:[#allocation3 + $0xf0] sm:$0xff] %vm1446, %v868
        %2383 = vst.msk [vmem:[#allocation3 + $0xf8] sm:$0xff] %vm1446, %v869
        %2384 = vst.msk [vmem:[#allocation3 + $0x100] sm:$0xff] %vm1446, %v870
        %2385 = vst.msk [vmem:[#allocation3 + $0x108] sm:$0xff] %vm1446, %v871
        %2386 = vst.msk [vmem:[#allocation3 + $0x110] sm:$0xff] %vm1446, %v872
        %2387 = vst.msk [vmem:[#allocation3 + $0x118] sm:$0xff] %vm1446, %v873
        %2388 = vst.msk [vmem:[#allocation3 + $0x120] sm:$0xff] %vm1446, %v874
        %2389 = vst.msk [vmem:[#allocation3 + $0x128] sm:$0xff] %vm1446, %v875
        %2390 = vst.msk [vmem:[#allocation3 + $0x130] sm:$0xff] %vm1446, %v876
        %2391 = vst.msk [vmem:[#allocation3 + $0x138] sm:$0xff] %vm1446, %v877
        %2392 = vst.msk [vmem:[#allocation3 + $0x140] sm:$0xff] %vm1446, %v878
        %2393 = vst.msk [vmem:[#allocation3 + $0x148] sm:$0xff] %vm1446, %v879
        %2394 = vst.msk [vmem:[#allocation3 + $0x150] sm:$0xff] %vm1446, %v880
        %2395 = vst.msk [vmem:[#allocation3 + $0x158] sm:$0xff] %vm1446, %v881
        %2396 = vst.msk [vmem:[#allocation3 + $0x160] sm:$0xff] %vm1446, %v882
        %2397 = vst.msk [vmem:[#allocation3 + $0x168] sm:$0xff] %vm1446, %v883
        %2398 = vst.msk [vmem:[#allocation3 + $0x170] sm:$0xff] %vm1446, %v884
        %2399 = vst.msk [vmem:[#allocation3 + $0x178] sm:$0xff] %vm1446, %v885
        %2400 = vst.msk [vmem:[#allocation3 + $0x180] sm:$0xff] %vm1446, %v886
        %2401 = vst.msk [vmem:[#allocation3 + $0x188] sm:$0xff] %vm1446, %v887
        %2402 = vst.msk [vmem:[#allocation3 + $0x190] sm:$0xff] %vm1446, %v888
        %2403 = vst.msk [vmem:[#allocation3 + $0x198] sm:$0xff] %vm1446, %v889
        %2404 = vst.msk [vmem:[#allocation3 + $0x1a0] sm:$0xff] %vm1446, %v890
        %2405 = vst.msk [vmem:[#allocation3 + $0x1a8] sm:$0xff] %vm1446, %v891
        %2406 = vst.msk [vmem:[#allocation3 + $0x1b0] sm:$0xff] %vm1446, %v892
        %2407 = vst.msk [vmem:[#allocation3 + $0x1b8] sm:$0xff] %vm1446, %v893
        %2408 = vst.msk [vmem:[#allocation3 + $0x1c0] sm:$0xff] %vm1446, %v894
        %2409 = vst.msk [vmem:[#allocation3 + $0x1c8] sm:$0xff] %vm1446, %v895
        %2410 = vst.msk [vmem:[#allocation3 + $0x1d0] sm:$0xff] %vm1446, %v896
        %2411 = vst.msk [vmem:[#allocation3 + $0x1d8] sm:$0xff] %vm1446, %v897
        %2412 = vst.msk [vmem:[#allocation3 + $0x1e0] sm:$0xff] %vm1446, %v898
        %2413 = vst.msk [vmem:[#allocation3 + $0x1e8] sm:$0xff] %vm1446, %v899
        %2414 = vst.msk [vmem:[#allocation3 + $0x1f0] sm:$0xff] %vm1446, %v900
        %2415 = vst.msk [vmem:[#allocation3 + $0x1f8] sm:$0xff] %vm1446, %v901
        %2416 = vst.msk [vmem:[#allocation3 + $0x200] sm:$0xff] %vm1446, %v902
        %2417 = vst.msk [vmem:[#allocation3 + $0x208] sm:$0xff] %vm1446, %v903
        %2418 = vst.msk [vmem:[#allocation3 + $0x210] sm:$0xff] %vm1446, %v904
        %2419 = vst.msk [vmem:[#allocation3 + $0x218] sm:$0xff] %vm1446, %v905
        %2420 = vst.msk [vmem:[#allocation3 + $0x220] sm:$0xff] %vm1446, %v906
        %2421 = vst.msk [vmem:[#allocation3 + $0x228] sm:$0xff] %vm1446, %v907
        %2422 = vst.msk [vmem:[#allocation3 + $0x230] sm:$0xff] %vm1446, %v908
        %2423 = vst.msk [vmem:[#allocation3 + $0x238] sm:$0xff] %vm1446, %v909
        %2424 = vst.msk [vmem:[#allocation3 + $0x240] sm:$0xff] %vm1446, %v910
        %2425 = vst.msk [vmem:[#allocation3 + $0x248] sm:$0xff] %vm1446, %v911
        %2426 = vst.msk [vmem:[#allocation3 + $0x250] sm:$0xff] %vm1446, %v912
        %2427 = vst.msk [vmem:[#allocation3 + $0x258] sm:$0xff] %vm1446, %v913
        %2428 = vst.msk [vmem:[#allocation3 + $0x260] sm:$0xff] %vm1446, %v914
        %2429 = vst.msk [vmem:[#allocation3 + $0x268] sm:$0xff] %vm1446, %v915
        %2430 = vst.msk [vmem:[#allocation3 + $0x270] sm:$0xff] %vm1446, %v916
        %2431 = vst.msk [vmem:[#allocation3 + $0x278] sm:$0xff] %vm1446, %v917
        %2432 = vst.msk [vmem:[#allocation3 + $0x280] sm:$0xff] %vm1446, %v918
        %2433 = vst.msk [vmem:[#allocation3 + $0x288] sm:$0xff] %vm1446, %v919
        %2434 = vst.msk [vmem:[#allocation3 + $0x290] sm:$0xff] %vm1446, %v920
        %2435 = vst.msk [vmem:[#allocation3 + $0x298] sm:$0xff] %vm1446, %v921
        %2436 = vst.msk [vmem:[#allocation3 + $0x2a0] sm:$0xff] %vm1446, %v922
        %2437 = vst.msk [vmem:[#allocation3 + $0x2a8] sm:$0xff] %vm1446, %v923
        %2438 = vst.msk [vmem:[#allocation3 + $0x2b0] sm:$0xff] %vm1446, %v924
        %2439 = vst.msk [vmem:[#allocation3 + $0x2b8] sm:$0xff] %vm1446, %v925
        %2440 = vst.msk [vmem:[#allocation3 + $0x2c0] sm:$0xff] %vm1446, %v926
        %2441 = vst.msk [vmem:[#allocation3 + $0x2c8] sm:$0xff] %vm1446, %v927
        %2442 = vst.msk [vmem:[#allocation3 + $0x2d0] sm:$0xff] %vm1446, %v928
        %2443 = vst.msk [vmem:[#allocation3 + $0x2d8] sm:$0xff] %vm1446, %v929
        %2444 = vst.msk [vmem:[#allocation3 + $0x2e0] sm:$0xff] %vm1446, %v930
        %2445 = vst.msk [vmem:[#allocation3 + $0x2e8] sm:$0xff] %vm1446, %v931
        %2446 = vst.msk [vmem:[#allocation3 + $0x2f0] sm:$0xff] %vm1446, %v932
        %2447 = vst.msk [vmem:[#allocation3 + $0x2f8] sm:$0xff] %vm1446, %v933
        %2448 = vst.msk [vmem:[#allocation3 + $0x300] sm:$0xff] %vm1446, %v934
        %2449 = vst.msk [vmem:[#allocation3 + $0x308] sm:$0xff] %vm1446, %v935
        %2450 = vst.msk [vmem:[#allocation3 + $0x310] sm:$0xff] %vm1446, %v936
        %2451 = vst.msk [vmem:[#allocation3 + $0x318] sm:$0xff] %vm1446, %v937
        %2452 = vst.msk [vmem:[#allocation3 + $0x320] sm:$0xff] %vm1446, %v938
        %2453 = vst.msk [vmem:[#allocation3 + $0x328] sm:$0xff] %vm1446, %v939
        %2454 = vst.msk [vmem:[#allocation3 + $0x330] sm:$0xff] %vm1446, %v940
        %2455 = vst.msk [vmem:[#allocation3 + $0x338] sm:$0xff] %vm1446, %v941
        %2456 = vst.msk [vmem:[#allocation3 + $0x340] sm:$0xff] %vm1446, %v942
        %2457 = vst.msk [vmem:[#allocation3 + $0x348] sm:$0xff] %vm1446, %v943
        %2458 = vst.msk [vmem:[#allocation3 + $0x350] sm:$0xff] %vm1446, %v944
        %2459 = vst.msk [vmem:[#allocation3 + $0x358] sm:$0xff] %vm1446, %v945
        %2460 = vst.msk [vmem:[#allocation3 + $0x360] sm:$0xff] %vm1446, %v946
        %2461 = vst.msk [vmem:[#allocation3 + $0x368] sm:$0xff] %vm1446, %v947
        %2462 = vst.msk [vmem:[#allocation3 + $0x370] sm:$0xff] %vm1446, %v948
        %2463 = vst.msk [vmem:[#allocation3 + $0x378] sm:$0xff] %vm1446, %v949
        %2464 = vst.msk [vmem:[#allocation3 + $0x380] sm:$0xff] %vm1446, %v950
        %2465 = vst.msk [vmem:[#allocation3 + $0x388] sm:$0xff] %vm1446, %v951
        %2466 = vst.msk [vmem:[#allocation3 + $0x390] sm:$0xff] %vm1446, %v952
        %2467 = vst.msk [vmem:[#allocation3 + $0x398] sm:$0xff] %vm1446, %v953
        %2468 = vst.msk [vmem:[#allocation3 + $0x3a0] sm:$0xff] %vm1446, %v954
        %2469 = vst.msk [vmem:[#allocation3 + $0x3a8] sm:$0xff] %vm1446, %v955
        %2470 = vst.msk [vmem:[#allocation3 + $0x3b0] sm:$0xff] %vm1446, %v956
        %2471 = vst.msk [vmem:[#allocation3 + $0x3b8] sm:$0xff] %vm1446, %v957
        %2472 = vst.msk [vmem:[#allocation3 + $0x3c0] sm:$0xff] %vm1446, %v958
        %2473 = vst.msk [vmem:[#allocation3 + $0x3c8] sm:$0xff] %vm1446, %v959
        %2474 = vst.msk [vmem:[#allocation3 + $0x3d0] sm:$0xff] %vm1446, %v960
        %2475 = vst.msk [vmem:[#allocation3 + $0x3d8] sm:$0xff] %vm1446, %v961
        %2476 = vst.msk [vmem:[#allocation3 + $0x3e0] sm:$0xff] %vm1446, %v962
        %2477 = vst.msk [vmem:[#allocation3 + $0x3e8] sm:$0xff] %vm1446, %v963
        %2478 = vst.msk [vmem:[#allocation3 + $0x3f0] sm:$0xff] %vm1446, %v964
        %2479 = vst.msk [vmem:[#allocation3 + $0x3f8] sm:$0xff] %vm1446, %v965
        %v2480 = vld [vmem:[#allocation3] ss:$2 sm:$0xff]
        %s2481 = scalar_lea.vmem [#allocation3], 16
        %v2482 = vld [vmem:[%s2481] ss:$2 sm:$0xff]
        %s2483 = scalar_lea.vmem [#allocation3], 32
        %v2484 = vld [vmem:[%s2483] ss:$2 sm:$0xff]
        %s2485 = scalar_lea.vmem [#allocation3], 48
        %v2486 = vld [vmem:[%s2485] ss:$2 sm:$0xff]
        %s2487 = scalar_lea.vmem [#allocation3], 64
        %v2488 = vld [vmem:[%s2487] ss:$2 sm:$0xff]
        %s2489 = scalar_lea.vmem [#allocation3], 80
        %v2490 = vld [vmem:[%s2489] ss:$2 sm:$0xff]
        %s2491 = scalar_lea.vmem [#allocation3], 96
        %v2492 = vld [vmem:[%s2491] ss:$2 sm:$0xff]
        %s2493 = scalar_lea.vmem [#allocation3], 112
        %v2494 = vld [vmem:[%s2493] ss:$2 sm:$0xff]
        %s2495 = scalar_lea.vmem [#allocation3], 128
        %v2496 = vld [vmem:[%s2495] ss:$2 sm:$0xff]
        %s2497 = scalar_lea.vmem [#allocation3], 144
        %v2498 = vld [vmem:[%s2497] ss:$2 sm:$0xff]
        %s2499 = scalar_lea.vmem [#allocation3], 160
        %v2500 = vld [vmem:[%s2499] ss:$2 sm:$0xff]
        %s2501 = scalar_lea.vmem [#allocation3], 176
        %v2502 = vld [vmem:[%s2501] ss:$2 sm:$0xff]
        %s2503 = scalar_lea.vmem [#allocation3], 192
        %v2504 = vld [vmem:[%s2503] ss:$2 sm:$0xff]
        %s2505 = scalar_lea.vmem [#allocation3], 208
        %v2506 = vld [vmem:[%s2505] ss:$2 sm:$0xff]
        %s2507 = scalar_lea.vmem [#allocation3], 224
        %v2508 = vld [vmem:[%s2507] ss:$2 sm:$0xff]
        %s2509 = scalar_lea.vmem [#allocation3], 240
        %v2510 = vld [vmem:[%s2509] ss:$2 sm:$0xff]
        %s2511 = scalar_lea.vmem [#allocation3], 256
        %v2512 = vld [vmem:[%s2511] ss:$2 sm:$0xff]
        %s2513 = scalar_lea.vmem [#allocation3], 272
        %v2514 = vld [vmem:[%s2513] ss:$2 sm:$0xff]
        %s2515 = scalar_lea.vmem [#allocation3], 288
        %v2516 = vld [vmem:[%s2515] ss:$2 sm:$0xff]
        %s2517 = scalar_lea.vmem [#allocation3], 304
        %v2518 = vld [vmem:[%s2517] ss:$2 sm:$0xff]
        %s2519 = scalar_lea.vmem [#allocation3], 320
        %v2520 = vld [vmem:[%s2519] ss:$2 sm:$0xff]
        %s2521 = scalar_lea.vmem [#allocation3], 336
        %v2522 = vld [vmem:[%s2521] ss:$2 sm:$0xff]
        %s2523 = scalar_lea.vmem [#allocation3], 352
        %v2524 = vld [vmem:[%s2523] ss:$2 sm:$0xff]
        %s2525 = scalar_lea.vmem [#allocation3], 368
        %v2526 = vld [vmem:[%s2525] ss:$2 sm:$0xff]
        %s2527 = scalar_lea.vmem [#allocation3], 384
        %v2528 = vld [vmem:[%s2527] ss:$2 sm:$0xff]
        %s2529 = scalar_lea.vmem [#allocation3], 400
        %v2530 = vld [vmem:[%s2529] ss:$2 sm:$0xff]
        %s2531 = scalar_lea.vmem [#allocation3], 416
        %v2532 = vld [vmem:[%s2531] ss:$2 sm:$0xff]
        %s2533 = scalar_lea.vmem [#allocation3], 432
        %v2534 = vld [vmem:[%s2533] ss:$2 sm:$0xff]
        %s2535 = scalar_lea.vmem [#allocation3], 448
        %v2536 = vld [vmem:[%s2535] ss:$2 sm:$0xff]
        %s2537 = scalar_lea.vmem [#allocation3], 464
        %v2538 = vld [vmem:[%s2537] ss:$2 sm:$0xff]
        %s2539 = scalar_lea.vmem [#allocation3], 480
        %v2540 = vld [vmem:[%s2539] ss:$2 sm:$0xff]
        %s2541 = scalar_lea.vmem [#allocation3], 496
        %v2542 = vld [vmem:[%s2541] ss:$2 sm:$0xff]
        %s2543 = scalar_lea.vmem [#allocation3], 512
        %v2544 = vld [vmem:[%s2543] ss:$2 sm:$0xff]
        %s2545 = scalar_lea.vmem [#allocation3], 528
        %v2546 = vld [vmem:[%s2545] ss:$2 sm:$0xff]
        %s2547 = scalar_lea.vmem [#allocation3], 544
        %v2548 = vld [vmem:[%s2547] ss:$2 sm:$0xff]
        %s2549 = scalar_lea.vmem [#allocation3], 560
        %v2550 = vld [vmem:[%s2549] ss:$2 sm:$0xff]
        %s2551 = scalar_lea.vmem [#allocation3], 576
        %v2552 = vld [vmem:[%s2551] ss:$2 sm:$0xff]
        %s2553 = scalar_lea.vmem [#allocation3], 592
        %v2554 = vld [vmem:[%s2553] ss:$2 sm:$0xff]
        %s2555 = scalar_lea.vmem [#allocation3], 608
        %v2556 = vld [vmem:[%s2555] ss:$2 sm:$0xff]
        %s2557 = scalar_lea.vmem [#allocation3], 624
        %v2558 = vld [vmem:[%s2557] ss:$2 sm:$0xff]
        %s2559 = scalar_lea.vmem [#allocation3], 640
        %v2560 = vld [vmem:[%s2559] ss:$2 sm:$0xff]
        %s2561 = scalar_lea.vmem [#allocation3], 656
        %v2562 = vld [vmem:[%s2561] ss:$2 sm:$0xff]
        %s2563 = scalar_lea.vmem [#allocation3], 672
        %v2564 = vld [vmem:[%s2563] ss:$2 sm:$0xff]
        %s2565 = scalar_lea.vmem [#allocation3], 688
        %v2566 = vld [vmem:[%s2565] ss:$2 sm:$0xff]
        %s2567 = scalar_lea.vmem [#allocation3], 704
        %v2568 = vld [vmem:[%s2567] ss:$2 sm:$0xff]
        %s2569 = scalar_lea.vmem [#allocation3], 720
        %v2570 = vld [vmem:[%s2569] ss:$2 sm:$0xff]
        %s2571 = scalar_lea.vmem [#allocation3], 736
        %v2572 = vld [vmem:[%s2571] ss:$2 sm:$0xff]
        %s2573 = scalar_lea.vmem [#allocation3], 752
        %v2574 = vld [vmem:[%s2573] ss:$2 sm:$0xff]
        %s2575 = scalar_lea.vmem [#allocation3], 768
        %v2576 = vld [vmem:[%s2575] ss:$2 sm:$0xff]
        %s2577 = scalar_lea.vmem [#allocation3], 784
        %v2578 = vld [vmem:[%s2577] ss:$2 sm:$0xff]
        %s2579 = scalar_lea.vmem [#allocation3], 800
        %v2580 = vld [vmem:[%s2579] ss:$2 sm:$0xff]
        %s2581 = scalar_lea.vmem [#allocation3], 816
        %v2582 = vld [vmem:[%s2581] ss:$2 sm:$0xff]
        %s2583 = scalar_lea.vmem [#allocation3], 832
        %v2584 = vld [vmem:[%s2583] ss:$2 sm:$0xff]
        %s2585 = scalar_lea.vmem [#allocation3], 848
        %v2586 = vld [vmem:[%s2585] ss:$2 sm:$0xff]
        %s2587 = scalar_lea.vmem [#allocation3], 864
        %v2588 = vld [vmem:[%s2587] ss:$2 sm:$0xff]
        %s2589 = scalar_lea.vmem [#allocation3], 880
        %v2590 = vld [vmem:[%s2589] ss:$2 sm:$0xff]
        %s2591 = scalar_lea.vmem [#allocation3], 896
        %v2592 = vld [vmem:[%s2591] ss:$2 sm:$0xff]
        %s2593 = scalar_lea.vmem [#allocation3], 912
        %v2594 = vld [vmem:[%s2593] ss:$2 sm:$0xff]
        %s2595 = scalar_lea.vmem [#allocation3], 928
        %v2596 = vld [vmem:[%s2595] ss:$2 sm:$0xff]
        %s2597 = scalar_lea.vmem [#allocation3], 944
        %v2598 = vld [vmem:[%s2597] ss:$2 sm:$0xff]
        %s2599 = scalar_lea.vmem [#allocation3], 960
        %v2600 = vld [vmem:[%s2599] ss:$2 sm:$0xff]
        %s2601 = scalar_lea.vmem [#allocation3], 976
        %v2602 = vld [vmem:[%s2601] ss:$2 sm:$0xff]
        %s2603 = scalar_lea.vmem [#allocation3], 992
        %v2604 = vld [vmem:[%s2603] ss:$2 sm:$0xff]
        %s2605 = scalar_lea.vmem [#allocation3], 1008
        %v2606 = vld [vmem:[%s2605] ss:$2 sm:$0xff]
        %s2607 = scalar_lea.vmem [#allocation3], 1
        %v2608 = vld [vmem:[%s2607] ss:$2 sm:$0xff]
        %s2609 = scalar_lea.vmem [#allocation3], 17
        %v2610 = vld [vmem:[%s2609] ss:$2 sm:$0xff]
        %s2611 = scalar_lea.vmem [#allocation3], 33
        %v2612 = vld [vmem:[%s2611] ss:$2 sm:$0xff]
        %s2613 = scalar_lea.vmem [#allocation3], 49
        %v2614 = vld [vmem:[%s2613] ss:$2 sm:$0xff]
        %s2615 = scalar_lea.vmem [#allocation3], 65
        %v2616 = vld [vmem:[%s2615] ss:$2 sm:$0xff]
        %s2617 = scalar_lea.vmem [#allocation3], 81
        %v2618 = vld [vmem:[%s2617] ss:$2 sm:$0xff]
        %s2619 = scalar_lea.vmem [#allocation3], 97
        %v2620 = vld [vmem:[%s2619] ss:$2 sm:$0xff]
        %s2621 = scalar_lea.vmem [#allocation3], 113
        %v2622 = vld [vmem:[%s2621] ss:$2 sm:$0xff]
        %s2623 = scalar_lea.vmem [#allocation3], 129
        %v2624 = vld [vmem:[%s2623] ss:$2 sm:$0xff]
        %s2625 = scalar_lea.vmem [#allocation3], 145
        %v2626 = vld [vmem:[%s2625] ss:$2 sm:$0xff]
        %s2627 = scalar_lea.vmem [#allocation3], 161
        %v2628 = vld [vmem:[%s2627] ss:$2 sm:$0xff]
        %s2629 = scalar_lea.vmem [#allocation3], 177
        %v2630 = vld [vmem:[%s2629] ss:$2 sm:$0xff]
        %s2631 = scalar_lea.vmem [#allocation3], 193
        %v2632 = vld [vmem:[%s2631] ss:$2 sm:$0xff]
        %s2633 = scalar_lea.vmem [#allocation3], 209
        %v2634 = vld [vmem:[%s2633] ss:$2 sm:$0xff]
        %s2635 = scalar_lea.vmem [#allocation3], 225
        %v2636 = vld [vmem:[%s2635] ss:$2 sm:$0xff]
        %s2637 = scalar_lea.vmem [#allocation3], 241
        %v2638 = vld [vmem:[%s2637] ss:$2 sm:$0xff]
        %s2639 = scalar_lea.vmem [#allocation3], 257
        %v2640 = vld [vmem:[%s2639] ss:$2 sm:$0xff]
        %s2641 = scalar_lea.vmem [#allocation3], 273
        %v2642 = vld [vmem:[%s2641] ss:$2 sm:$0xff]
        %s2643 = scalar_lea.vmem [#allocation3], 289
        %v2644 = vld [vmem:[%s2643] ss:$2 sm:$0xff]
        %s2645 = scalar_lea.vmem [#allocation3], 305
        %v2646 = vld [vmem:[%s2645] ss:$2 sm:$0xff]
        %s2647 = scalar_lea.vmem [#allocation3], 321
        %v2648 = vld [vmem:[%s2647] ss:$2 sm:$0xff]
        %s2649 = scalar_lea.vmem [#allocation3], 337
        %v2650 = vld [vmem:[%s2649] ss:$2 sm:$0xff]
        %s2651 = scalar_lea.vmem [#allocation3], 353
        %v2652 = vld [vmem:[%s2651] ss:$2 sm:$0xff]
        %s2653 = scalar_lea.vmem [#allocation3], 369
        %v2654 = vld [vmem:[%s2653] ss:$2 sm:$0xff]
        %s2655 = scalar_lea.vmem [#allocation3], 385
        %v2656 = vld [vmem:[%s2655] ss:$2 sm:$0xff]
        %s2657 = scalar_lea.vmem [#allocation3], 401
        %v2658 = vld [vmem:[%s2657] ss:$2 sm:$0xff]
        %s2659 = scalar_lea.vmem [#allocation3], 417
        %v2660 = vld [vmem:[%s2659] ss:$2 sm:$0xff]
        %s2661 = scalar_lea.vmem [#allocation3], 433
        %v2662 = vld [vmem:[%s2661] ss:$2 sm:$0xff]
        %s2663 = scalar_lea.vmem [#allocation3], 449
        %v2664 = vld [vmem:[%s2663] ss:$2 sm:$0xff]
        %s2665 = scalar_lea.vmem [#allocation3], 465
        %v2666 = vld [vmem:[%s2665] ss:$2 sm:$0xff]
        %s2667 = scalar_lea.vmem [#allocation3], 481
        %v2668 = vld [vmem:[%s2667] ss:$2 sm:$0xff]
        %s2669 = scalar_lea.vmem [#allocation3], 497
        %v2670 = vld [vmem:[%s2669] ss:$2 sm:$0xff]
        %s2671 = scalar_lea.vmem [#allocation3], 513
        %v2672 = vld [vmem:[%s2671] ss:$2 sm:$0xff]
        %s2673 = scalar_lea.vmem [#allocation3], 529
        %v2674 = vld [vmem:[%s2673] ss:$2 sm:$0xff]
        %s2675 = scalar_lea.vmem [#allocation3], 545
        %v2676 = vld [vmem:[%s2675] ss:$2 sm:$0xff]
        %s2677 = scalar_lea.vmem [#allocation3], 561
        %v2678 = vld [vmem:[%s2677] ss:$2 sm:$0xff]
        %s2679 = scalar_lea.vmem [#allocation3], 577
        %v2680 = vld [vmem:[%s2679] ss:$2 sm:$0xff]
        %s2681 = scalar_lea.vmem [#allocation3], 593
        %v2682 = vld [vmem:[%s2681] ss:$2 sm:$0xff]
        %s2683 = scalar_lea.vmem [#allocation3], 609
        %v2684 = vld [vmem:[%s2683] ss:$2 sm:$0xff]
        %s2685 = scalar_lea.vmem [#allocation3], 625
        %v2686 = vld [vmem:[%s2685] ss:$2 sm:$0xff]
        %s2687 = scalar_lea.vmem [#allocation3], 641
        %v2688 = vld [vmem:[%s2687] ss:$2 sm:$0xff]
        %s2689 = scalar_lea.vmem [#allocation3], 657
        %v2690 = vld [vmem:[%s2689] ss:$2 sm:$0xff]
        %s2691 = scalar_lea.vmem [#allocation3], 673
        %v2692 = vld [vmem:[%s2691] ss:$2 sm:$0xff]
        %s2693 = scalar_lea.vmem [#allocation3], 689
        %v2694 = vld [vmem:[%s2693] ss:$2 sm:$0xff]
        %s2695 = scalar_lea.vmem [#allocation3], 705
        %v2696 = vld [vmem:[%s2695] ss:$2 sm:$0xff]
        %s2697 = scalar_lea.vmem [#allocation3], 721
        %v2698 = vld [vmem:[%s2697] ss:$2 sm:$0xff]
        %s2699 = scalar_lea.vmem [#allocation3], 737
        %v2700 = vld [vmem:[%s2699] ss:$2 sm:$0xff]
        %s2701 = scalar_lea.vmem [#allocation3], 753
        %v2702 = vld [vmem:[%s2701] ss:$2 sm:$0xff]
        %s2703 = scalar_lea.vmem [#allocation3], 769
        %v2704 = vld [vmem:[%s2703] ss:$2 sm:$0xff]
        %s2705 = scalar_lea.vmem [#allocation3], 785
        %v2706 = vld [vmem:[%s2705] ss:$2 sm:$0xff]
        %s2707 = scalar_lea.vmem [#allocation3], 801
        %v2708 = vld [vmem:[%s2707] ss:$2 sm:$0xff]
        %s2709 = scalar_lea.vmem [#allocation3], 817
        %v2710 = vld [vmem:[%s2709] ss:$2 sm:$0xff]
        %s2711 = scalar_lea.vmem [#allocation3], 833
        %v2712 = vld [vmem:[%s2711] ss:$2 sm:$0xff]
        %s2713 = scalar_lea.vmem [#allocation3], 849
        %v2714 = vld [vmem:[%s2713] ss:$2 sm:$0xff]
        %s2715 = scalar_lea.vmem [#allocation3], 865
        %v2716 = vld [vmem:[%s2715] ss:$2 sm:$0xff]
        %s2717 = scalar_lea.vmem [#allocation3], 881
        %v2718 = vld [vmem:[%s2717] ss:$2 sm:$0xff]
        %s2719 = scalar_lea.vmem [#allocation3], 897
        %v2720 = vld [vmem:[%s2719] ss:$2 sm:$0xff]
        %s2721 = scalar_lea.vmem [#allocation3], 913
        %v2722 = vld [vmem:[%s2721] ss:$2 sm:$0xff]
        %s2723 = scalar_lea.vmem [#allocation3], 929
        %v2724 = vld [vmem:[%s2723] ss:$2 sm:$0xff]
        %s2725 = scalar_lea.vmem [#allocation3], 945
        %v2726 = vld [vmem:[%s2725] ss:$2 sm:$0xff]
        %s2727 = scalar_lea.vmem [#allocation3], 961
        %v2728 = vld [vmem:[%s2727] ss:$2 sm:$0xff]
        %s2729 = scalar_lea.vmem [#allocation3], 977
        %v2730 = vld [vmem:[%s2729] ss:$2 sm:$0xff]
        %s2731 = scalar_lea.vmem [#allocation3], 993
        %v2732 = vld [vmem:[%s2731] ss:$2 sm:$0xff]
        %s2733 = scalar_lea.vmem [#allocation3], 1009
        %v2734 = vld [vmem:[%s2733] ss:$2 sm:$0xff]
        %v2735 = vadd.f32 %v2480, %v2608
        %v2736 = vadd.f32 %v2482, %v2610
        %v2737 = vadd.f32 %v2484, %v2612
        %v2738 = vadd.f32 %v2486, %v2614
        %v2739 = vadd.f32 %v2488, %v2616
        %v2740 = vadd.f32 %v2490, %v2618
        %v2741 = vadd.f32 %v2492, %v2620
        %v2742 = vadd.f32 %v2494, %v2622
        %v2743 = vadd.f32 %v2496, %v2624
        %v2744 = vadd.f32 %v2498, %v2626
        %v2745 = vadd.f32 %v2500, %v2628
        %v2746 = vadd.f32 %v2502, %v2630
        %v2747 = vadd.f32 %v2504, %v2632
        %v2748 = vadd.f32 %v2506, %v2634
        %v2749 = vadd.f32 %v2508, %v2636
        %v2750 = vadd.f32 %v2510, %v2638
        %v2751 = vadd.f32 %v2512, %v2640
        %v2752 = vadd.f32 %v2514, %v2642
        %v2753 = vadd.f32 %v2516, %v2644
        %v2754 = vadd.f32 %v2518, %v2646
        %v2755 = vadd.f32 %v2520, %v2648
        %v2756 = vadd.f32 %v2522, %v2650
        %v2757 = vadd.f32 %v2524, %v2652
        %v2758 = vadd.f32 %v2526, %v2654
        %v2759 = vadd.f32 %v2528, %v2656
        %v2760 = vadd.f32 %v2530, %v2658
        %v2761 = vadd.f32 %v2532, %v2660
        %v2762 = vadd.f32 %v2534, %v2662
        %v2763 = vadd.f32 %v2536, %v2664
        %v2764 = vadd.f32 %v2538, %v2666
        %v2765 = vadd.f32 %v2540, %v2668
        %v2766 = vadd.f32 %v2542, %v2670
        %v2767 = vadd.f32 %v2544, %v2672
        %v2768 = vadd.f32 %v2546, %v2674
        %v2769 = vadd.f32 %v2548, %v2676
        %v2770 = vadd.f32 %v2550, %v2678
        %v2771 = vadd.f32 %v2552, %v2680
        %v2772 = vadd.f32 %v2554, %v2682
        %v2773 = vadd.f32 %v2556, %v2684
        %v2774 = vadd.f32 %v2558, %v2686
        %v2775 = vadd.f32 %v2560, %v2688
        %v2776 = vadd.f32 %v2562, %v2690
        %v2777 = vadd.f32 %v2564, %v2692
        %v2778 = vadd.f32 %v2566, %v2694
        %v2779 = vadd.f32 %v2568, %v2696
        %v2780 = vadd.f32 %v2570, %v2698
        %v2781 = vadd.f32 %v2572, %v2700
        %v2782 = vadd.f32 %v2574, %v2702
        %v2783 = vadd.f32 %v2576, %v2704
        %v2784 = vadd.f32 %v2578, %v2706
        %v2785 = vadd.f32 %v2580, %v2708
        %v2786 = vadd.f32 %v2582, %v2710
        %v2787 = vadd.f32 %v2584, %v2712
        %v2788 = vadd.f32 %v2586, %v2714
        %v2789 = vadd.f32 %v2588, %v2716
        %v2790 = vadd.f32 %v2590, %v2718
        %v2791 = vadd.f32 %v2592, %v2720
        %v2792 = vadd.f32 %v2594, %v2722
        %v2793 = vadd.f32 %v2596, %v2724
        %v2794 = vadd.f32 %v2598, %v2726
        %v2795 = vadd.f32 %v2600, %v2728
        %v2796 = vadd.f32 %v2602, %v2730
        %v2797 = vadd.f32 %v2604, %v2732
        %v2798 = vadd.f32 %v2606, %v2734
        %v2799 = vadd.f32 %v2735, %v2737
        %v2800 = vadd.f32 %v2736, %v2738
        %v2801 = vadd.f32 %v2739, %v2741
        %v2802 = vadd.f32 %v2740, %v2742
        %v2803 = vadd.f32 %v2743, %v2745
        %v2804 = vadd.f32 %v2744, %v2746
        %v2805 = vadd.f32 %v2747, %v2749
        %v2806 = vadd.f32 %v2748, %v2750
        %v2807 = vadd.f32 %v2751, %v2753
        %v2808 = vadd.f32 %v2752, %v2754
        %v2809 = vadd.f32 %v2755, %v2757
        %v2810 = vadd.f32 %v2756, %v2758
        %v2811 = vadd.f32 %v2759, %v2761
        %v2812 = vadd.f32 %v2760, %v2762
        %v2813 = vadd.f32 %v2763, %v2765
        %v2814 = vadd.f32 %v2764, %v2766
        %v2815 = vadd.f32 %v2767, %v2769
        %v2816 = vadd.f32 %v2768, %v2770
        %v2817 = vadd.f32 %v2771, %v2773
        %v2818 = vadd.f32 %v2772, %v2774
        %v2819 = vadd.f32 %v2775, %v2777
        %v2820 = vadd.f32 %v2776, %v2778
        %v2821 = vadd.f32 %v2779, %v2781
        %v2822 = vadd.f32 %v2780, %v2782
        %v2823 = vadd.f32 %v2783, %v2785
        %v2824 = vadd.f32 %v2784, %v2786
        %v2825 = vadd.f32 %v2787, %v2789
        %v2826 = vadd.f32 %v2788, %v2790
        %v2827 = vadd.f32 %v2791, %v2793
        %v2828 = vadd.f32 %v2792, %v2794
        %v2829 = vadd.f32 %v2795, %v2797
        %v2830 = vadd.f32 %v2796, %v2798
        %v2831 = vmul.f32 %v2799, 0.25
        %v2832 = vmul.f32 %v2800, 0.25
        %v2833 = vmul.f32 %v2801, 0.25
        %v2834 = vmul.f32 %v2802, 0.25
        %v2835 = vmul.f32 %v2803, 0.25
        %v2836 = vmul.f32 %v2804, 0.25
        %v2837 = vmul.f32 %v2805, 0.25
        %v2838 = vmul.f32 %v2806, 0.25
        %v2839 = vmul.f32 %v2807, 0.25
        %v2840 = vmul.f32 %v2808, 0.25
        %v2841 = vmul.f32 %v2809, 0.25
        %v2842 = vmul.f32 %v2810, 0.25
        %v2843 = vmul.f32 %v2811, 0.25
        %v2844 = vmul.f32 %v2812, 0.25
        %v2845 = vmul.f32 %v2813, 0.25
        %v2846 = vmul.f32 %v2814, 0.25
        %v2847 = vmul.f32 %v2815, 0.25
        %v2848 = vmul.f32 %v2816, 0.25
        %v2849 = vmul.f32 %v2817, 0.25
        %v2850 = vmul.f32 %v2818, 0.25
        %v2851 = vmul.f32 %v2819, 0.25
        %v2852 = vmul.f32 %v2820, 0.25
        %v2853 = vmul.f32 %v2821, 0.25
        %v2854 = vmul.f32 %v2822, 0.25
        %v2855 = vmul.f32 %v2823, 0.25
        %v2856 = vmul.f32 %v2824, 0.25
        %v2857 = vmul.f32 %v2825, 0.25
        %v2858 = vmul.f32 %v2826, 0.25
        %v2859 = vmul.f32 %v2827, 0.25
        %v2860 = vmul.f32 %v2828, 0.25
        %v2861 = vmul.f32 %v2829, 0.25
        %v2862 = vmul.f32 %v2830, 0.25
        %vm2863 = vcmask 519168
        %2864 = vst.msk [vmem:[%s191] sm:$0xf] %vm2863, 0
        %2865 = vst.msk [vmem:[%s191 + $0x4] sm:$0xf] %vm2863, 0
        %vm2866 = vcmask 517120
        %vm2867 = vsmask.f32 1280
        %vm2868 = vmand %vm2866, %vm2867
        %v2869 = vld [vmem:[%s191 + $0x8] sm:$0x3]
        %v2870 = vsel %vm2868, 0, %v2869
        %2871 = vst [vmem:[%s191 + $0x8] sm:$0x3] %v2870
        %2872 = vst.msk [vmem:[%s191 + $0xc] sm:$0xf] %vm2863, 0
        %2873 = vst.msk [vmem:[%s191 + $0x10] sm:$0xf] %vm2863, 0
        %v2874 = vld [vmem:[%s191 + $0x14] sm:$0x3]
        %v2875 = vsel %vm2868, 0, %v2874
        %2876 = vst [vmem:[%s191 + $0x14] sm:$0x3] %v2875
        %2877 = vst.msk [vmem:[%s191 + $0x18] sm:$0xf] %vm2863, 0
        %2878 = vst.msk [vmem:[%s191 + $0x1c] sm:$0xf] %vm2863, 0
        %v2879 = vld [vmem:[%s191 + $0x20] sm:$0x3]
        %v2880 = vsel %vm2868, 0, %v2879
        %2881 = vst [vmem:[%s191 + $0x20] sm:$0x3] %v2880
        %2882 = vst.msk [vmem:[%s191 + $0x24] sm:$0xf] %vm2863, 0
        %2883 = vst.msk [vmem:[%s191 + $0x28] sm:$0xf] %vm2863, 0
        %v2884 = vld [vmem:[%s191 + $0x2c] sm:$0x3]
        %v2885 = vsel %vm2868, 0, %v2884
        %2886 = vst [vmem:[%s191 + $0x2c] sm:$0x3] %v2885
        %2887 = vst.msk [vmem:[%s191 + $0x30] sm:$0xf] %vm2863, 0
        %2888 = vst.msk [vmem:[%s191 + $0x34] sm:$0xf] %vm2863, 0
        %v2889 = vld [vmem:[%s191 + $0x38] sm:$0x3]
        %v2890 = vsel %vm2868, 0, %v2889
        %2891 = vst [vmem:[%s191 + $0x38] sm:$0x3] %v2890
        %2892 = vst.msk [vmem:[%s191 + $0x3c] sm:$0xf] %vm2863, 0
        %2893 = vst.msk [vmem:[%s191 + $0x40] sm:$0xf] %vm2863, 0
        %v2894 = vld [vmem:[%s191 + $0x44] sm:$0x3]
        %v2895 = vsel %vm2868, 0, %v2894
        %2896 = vst [vmem:[%s191 + $0x44] sm:$0x3] %v2895
        %2897 = vst.msk [vmem:[%s191 + $0x48] sm:$0xf] %vm2863, 0
        %2898 = vst.msk [vmem:[%s191 + $0x4c] sm:$0xf] %vm2863, 0
        %v2899 = vld [vmem:[%s191 + $0x50] sm:$0x3]
        %v2900 = vsel %vm2868, 0, %v2899
        %2901 = vst [vmem:[%s191 + $0x50] sm:$0x3] %v2900
        %2902 = vst.msk [vmem:[%s191 + $0x54] sm:$0xf] %vm2863, 0
        %2903 = vst.msk [vmem:[%s191 + $0x58] sm:$0xf] %vm2863, 0
        %v2904 = vld [vmem:[%s191 + $0x5c] sm:$0x3]
        %v2905 = vsel %vm2868, 0, %v2904
        %2906 = vst [vmem:[%s191 + $0x5c] sm:$0x3] %v2905
        %2907 = vst.msk [vmem:[%s191 + $0x60] sm:$0xf] %vm2863, 0
        %2908 = vst.msk [vmem:[%s191 + $0x64] sm:$0xf] %vm2863, 0
        %v2909 = vld [vmem:[%s191 + $0x68] sm:$0x3]
        %v2910 = vsel %vm2868, 0, %v2909
        %2911 = vst [vmem:[%s191 + $0x68] sm:$0x3] %v2910
        %2912 = vst.msk [vmem:[%s191 + $0x6c] sm:$0xf] %vm2863, 0
        %2913 = vst.msk [vmem:[%s191 + $0x70] sm:$0xf] %vm2863, 0
        %v2914 = vld [vmem:[%s191 + $0x74] sm:$0x3]
        %v2915 = vsel %vm2868, 0, %v2914
        %2916 = vst [vmem:[%s191 + $0x74] sm:$0x3] %v2915
        %2917 = vst.msk [vmem:[%s191 + $0x78] sm:$0xf] %vm2863, 0
        %2918 = vst.msk [vmem:[%s191 + $0x7c] sm:$0xf] %vm2863, 0
        %v2919 = vld [vmem:[%s191 + $0x80] sm:$0x3]
        %v2920 = vsel %vm2868, 0, %v2919
        %2921 = vst [vmem:[%s191 + $0x80] sm:$0x3] %v2920
        %2922 = vst.msk [vmem:[%s191 + $0x84] sm:$0xf] %vm2863, 0
        %2923 = vst.msk [vmem:[%s191 + $0x88] sm:$0xf] %vm2863, 0
        %v2924 = vld [vmem:[%s191 + $0x8c] sm:$0x3]
        %v2925 = vsel %vm2868, 0, %v2924
        %2926 = vst [vmem:[%s191 + $0x8c] sm:$0x3] %v2925
        %2927 = vst.msk [vmem:[%s191 + $0x90] sm:$0xf] %vm2863, 0
        %2928 = vst.msk [vmem:[%s191 + $0x94] sm:$0xf] %vm2863, 0
        %v2929 = vld [vmem:[%s191 + $0x98] sm:$0x3]
        %v2930 = vsel %vm2868, 0, %v2929
        %2931 = vst [vmem:[%s191 + $0x98] sm:$0x3] %v2930
        %2932 = vst.msk [vmem:[%s191 + $0x9c] sm:$0xf] %vm2863, 0
        %2933 = vst.msk [vmem:[%s191 + $0xa0] sm:$0xf] %vm2863, 0
        %v2934 = vld [vmem:[%s191 + $0xa4] sm:$0x3]
        %v2935 = vsel %vm2868, 0, %v2934
        %2936 = vst [vmem:[%s191 + $0xa4] sm:$0x3] %v2935
        %2937 = vst.msk [vmem:[%s191 + $0xa8] sm:$0xf] %vm2863, 0
        %2938 = vst.msk [vmem:[%s191 + $0xac] sm:$0xf] %vm2863, 0
        %v2939 = vld [vmem:[%s191 + $0xb0] sm:$0x3]
        %v2940 = vsel %vm2868, 0, %v2939
        %2941 = vst [vmem:[%s191 + $0xb0] sm:$0x3] %v2940
        %2942 = vst.msk [vmem:[%s191 + $0xb4] sm:$0xf] %vm2863, 0
        %2943 = vst.msk [vmem:[%s191 + $0xb8] sm:$0xf] %vm2863, 0
        %v2944 = vld [vmem:[%s191 + $0xbc] sm:$0x3]
        %v2945 = vsel %vm2868, 0, %v2944
        %2946 = vst [vmem:[%s191 + $0xbc] sm:$0x3] %v2945
        %2947 = vst.msk [vmem:[%s191 + $0xc0] sm:$0xf] %vm2863, 0
        %2948 = vst.msk [vmem:[%s191 + $0xc4] sm:$0xf] %vm2863, 0
        %v2949 = vld [vmem:[%s191 + $0xc8] sm:$0x3]
        %v2950 = vsel %vm2868, 0, %v2949
        %2951 = vst [vmem:[%s191 + $0xc8] sm:$0x3] %v2950
        %2952 = vst.msk [vmem:[%s191 + $0xcc] sm:$0xf] %vm2863, 0
        %2953 = vst.msk [vmem:[%s191 + $0xd0] sm:$0xf] %vm2863, 0
        %v2954 = vld [vmem:[%s191 + $0xd4] sm:$0x3]
        %v2955 = vsel %vm2868, 0, %v2954
        %2956 = vst [vmem:[%s191 + $0xd4] sm:$0x3] %v2955
        %2957 = vst.msk [vmem:[%s191 + $0xd8] sm:$0xf] %vm2863, 0
        %2958 = vst.msk [vmem:[%s191 + $0xdc] sm:$0xf] %vm2863, 0
        %v2959 = vld [vmem:[%s191 + $0xe0] sm:$0x3]
        %v2960 = vsel %vm2868, 0, %v2959
        %2961 = vst [vmem:[%s191 + $0xe0] sm:$0x3] %v2960
        %v2962 = vpack.c.bf16 %v2831, %v2831
        %v2963 = vpack.c.bf16 %v2832, %v2832
        %v2964 = vpack.c.bf16 %v2833, %v2833
        %v2965 = vpack.c.bf16 %v2834, %v2834
        %v2966 = vpack.c.bf16 %v2835, %v2835
        %v2967 = vpack.c.bf16 %v2836, %v2836
        %v2968 = vpack.c.bf16 %v2837, %v2837
        %v2969 = vpack.c.bf16 %v2838, %v2838
        %v2970 = vpack.c.bf16 %v2839, %v2839
        %v2971 = vpack.c.bf16 %v2840, %v2840
        %v2972 = vpack.c.bf16 %v2841, %v2841
        %v2973 = vpack.c.bf16 %v2842, %v2842
        %v2974 = vpack.c.bf16 %v2843, %v2843
        %v2975 = vpack.c.bf16 %v2844, %v2844
        %v2976 = vpack.c.bf16 %v2845, %v2845
        %v2977 = vpack.c.bf16 %v2846, %v2846
        %v2978 = vpack.c.bf16 %v2847, %v2847
        %v2979 = vpack.c.bf16 %v2848, %v2848
        %v2980 = vpack.c.bf16 %v2849, %v2849
        %v2981 = vpack.c.bf16 %v2850, %v2850
        %v2982 = vpack.c.bf16 %v2851, %v2851
        %v2983 = vpack.c.bf16 %v2852, %v2852
        %v2984 = vpack.c.bf16 %v2853, %v2853
        %v2985 = vpack.c.bf16 %v2854, %v2854
        %v2986 = vpack.c.bf16 %v2855, %v2855
        %v2987 = vpack.c.bf16 %v2856, %v2856
        %v2988 = vpack.c.bf16 %v2857, %v2857
        %v2989 = vpack.c.bf16 %v2858, %v2858
        %v2990 = vpack.c.bf16 %v2859, %v2859
        %v2991 = vpack.c.bf16 %v2860, %v2860
        %v2992 = vpack.c.bf16 %v2861, %v2861
        %v2993 = vpack.c.bf16 %v2862, %v2862
        %vm2994 = vsmask.f32 256
        %vm2995 = vsmask.f32 4368
        %vm2996 = vmor %vm2994, %vm2995
        %v2998 = vshrl.u32 %v2962, 16
        %v3000 = vrot.slane %v2998, 7
        %v3001 = vshll.u32 %v2962, 16
        %v3003 = vor.u32 %v3000, %v3001
        %v3004 = vrot.slane %v3000, 4
        %v3006 = vshrl.u32 %v2963, 16
        %v3008 = vrot.slane %v3006, 7
        %v3009 = vshll.u32 %v2963, 16
        %v3011 = vor.u32 %v3008, %v3009
        %v3012 = vsel %vm2996, %v3004, %v3011
        %v3013 = vrot.slane %v3008, 4
        %v3015 = vshrl.u32 %v2964, 16
        %v3017 = vrot.slane %v3015, 7
        %v3018 = vshll.u32 %v2964, 16
        %v3020 = vor.u32 %v3017, %v3018
        %v3021 = vrot.slane %v3017, 4
        %v3023 = vshrl.u32 %v2965, 16
        %v3025 = vrot.slane %v3023, 7
        %v3026 = vshll.u32 %v2965, 16
        %v3028 = vor.u32 %v3025, %v3026
        %v3029 = vsel %vm2996, %v3021, %v3028
        %v3030 = vrot.slane %v3025, 4
        %v3032 = vshrl.u32 %v2966, 16
        %v3034 = vrot.slane %v3032, 7
        %v3035 = vshll.u32 %v2966, 16
        %v3037 = vor.u32 %v3034, %v3035
        %v3038 = vrot.slane %v3034, 4
        %v3040 = vshrl.u32 %v2967, 16
        %v3042 = vrot.slane %v3040, 7
        %v3043 = vshll.u32 %v2967, 16
        %v3045 = vor.u32 %v3042, %v3043
        %v3046 = vsel %vm2996, %v3038, %v3045
        %v3047 = vrot.slane %v3042, 4
        %v3049 = vshrl.u32 %v2968, 16
        %v3051 = vrot.slane %v3049, 7
        %v3052 = vshll.u32 %v2968, 16
        %v3054 = vor.u32 %v3051, %v3052
        %v3055 = vrot.slane %v3051, 4
        %v3057 = vshrl.u32 %v2969, 16
        %v3059 = vrot.slane %v3057, 7
        %v3060 = vshll.u32 %v2969, 16
        %v3062 = vor.u32 %v3059, %v3060
        %v3063 = vsel %vm2996, %v3055, %v3062
        %v3064 = vrot.slane %v3059, 4
        %v3066 = vshrl.u32 %v2970, 16
        %v3068 = vrot.slane %v3066, 7
        %v3069 = vshll.u32 %v2970, 16
        %v3071 = vor.u32 %v3068, %v3069
        %v3072 = vrot.slane %v3068, 4
        %v3074 = vshrl.u32 %v2971, 16
        %v3076 = vrot.slane %v3074, 7
        %v3077 = vshll.u32 %v2971, 16
        %v3079 = vor.u32 %v3076, %v3077
        %v3080 = vsel %vm2996, %v3072, %v3079
        %v3081 = vrot.slane %v3076, 4
        %v3083 = vshrl.u32 %v2972, 16
        %v3085 = vrot.slane %v3083, 7
        %v3086 = vshll.u32 %v2972, 16
        %v3088 = vor.u32 %v3085, %v3086
        %v3089 = vrot.slane %v3085, 4
        %v3091 = vshrl.u32 %v2973, 16
        %v3093 = vrot.slane %v3091, 7
        %v3094 = vshll.u32 %v2973, 16
        %v3096 = vor.u32 %v3093, %v3094
        %v3097 = vsel %vm2996, %v3089, %v3096
        %v3098 = vrot.slane %v3093, 4
        %v3100 = vshrl.u32 %v2974, 16
        %v3102 = vrot.slane %v3100, 7
        %v3103 = vshll.u32 %v2974, 16
        %v3105 = vor.u32 %v3102, %v3103
        %v3106 = vrot.slane %v3102, 4
        %v3108 = vshrl.u32 %v2975, 16
        %v3110 = vrot.slane %v3108, 7
        %v3111 = vshll.u32 %v2975, 16
        %v3113 = vor.u32 %v3110, %v3111
        %v3114 = vsel %vm2996, %v3106, %v3113
        %v3115 = vrot.slane %v3110, 4
        %v3117 = vshrl.u32 %v2976, 16
        %v3119 = vrot.slane %v3117, 7
        %v3120 = vshll.u32 %v2976, 16
        %v3122 = vor.u32 %v3119, %v3120
        %v3123 = vrot.slane %v3119, 4
        %v3125 = vshrl.u32 %v2977, 16
        %v3127 = vrot.slane %v3125, 7
        %v3128 = vshll.u32 %v2977, 16
        %v3130 = vor.u32 %v3127, %v3128
        %v3131 = vsel %vm2996, %v3123, %v3130
        %v3132 = vrot.slane %v3127, 4
        %v3134 = vshrl.u32 %v2978, 16
        %v3136 = vrot.slane %v3134, 7
        %v3137 = vshll.u32 %v2978, 16
        %v3139 = vor.u32 %v3136, %v3137
        %v3140 = vrot.slane %v3136, 4
        %v3142 = vshrl.u32 %v2979, 16
        %v3144 = vrot.slane %v3142, 7
        %v3145 = vshll.u32 %v2979, 16
        %v3147 = vor.u32 %v3144, %v3145
        %v3148 = vsel %vm2996, %v3140, %v3147
        %v3149 = vrot.slane %v3144, 4
        %v3151 = vshrl.u32 %v2980, 16
        %v3153 = vrot.slane %v3151, 7
        %v3154 = vshll.u32 %v2980, 16
        %v3156 = vor.u32 %v3153, %v3154
        %v3157 = vrot.slane %v3153, 4
        %v3159 = vshrl.u32 %v2981, 16
        %v3161 = vrot.slane %v3159, 7
        %v3162 = vshll.u32 %v2981, 16
        %v3164 = vor.u32 %v3161, %v3162
        %v3165 = vsel %vm2996, %v3157, %v3164
        %v3166 = vrot.slane %v3161, 4
        %v3168 = vshrl.u32 %v2982, 16
        %v3170 = vrot.slane %v3168, 7
        %v3171 = vshll.u32 %v2982, 16
        %v3173 = vor.u32 %v3170, %v3171
        %v3174 = vrot.slane %v3170, 4
        %v3176 = vshrl.u32 %v2983, 16
        %v3178 = vrot.slane %v3176, 7
        %v3179 = vshll.u32 %v2983, 16
        %v3181 = vor.u32 %v3178, %v3179
        %v3182 = vsel %vm2996, %v3174, %v3181
        %v3183 = vrot.slane %v3178, 4
        %v3185 = vshrl.u32 %v2984, 16
        %v3187 = vrot.slane %v3185, 7
        %v3188 = vshll.u32 %v2984, 16
        %v3190 = vor.u32 %v3187, %v3188
        %v3191 = vrot.slane %v3187, 4
        %v3193 = vshrl.u32 %v2985, 16
        %v3195 = vrot.slane %v3193, 7
        %v3196 = vshll.u32 %v2985, 16
        %v3198 = vor.u32 %v3195, %v3196
        %v3199 = vsel %vm2996, %v3191, %v3198
        %v3200 = vrot.slane %v3195, 4
        %v3202 = vshrl.u32 %v2986, 16
        %v3204 = vrot.slane %v3202, 7
        %v3205 = vshll.u32 %v2986, 16
        %v3207 = vor.u32 %v3204, %v3205
        %v3208 = vrot.slane %v3204, 4
        %v3210 = vshrl.u32 %v2987, 16
        %v3212 = vrot.slane %v3210, 7
        %v3213 = vshll.u32 %v2987, 16
        %v3215 = vor.u32 %v3212, %v3213
        %v3216 = vsel %vm2996, %v3208, %v3215
        %v3217 = vrot.slane %v3212, 4
        %v3219 = vshrl.u32 %v2988, 16
        %v3221 = vrot.slane %v3219, 7
        %v3222 = vshll.u32 %v2988, 16
        %v3224 = vor.u32 %v3221, %v3222
        %v3225 = vrot.slane %v3221, 4
        %v3227 = vshrl.u32 %v2989, 16
        %v3229 = vrot.slane %v3227, 7
        %v3230 = vshll.u32 %v2989, 16
        %v3232 = vor.u32 %v3229, %v3230
        %v3233 = vsel %vm2996, %v3225, %v3232
        %v3234 = vrot.slane %v3229, 4
        %v3236 = vshrl.u32 %v2990, 16
        %v3238 = vrot.slane %v3236, 7
        %v3239 = vshll.u32 %v2990, 16
        %v3241 = vor.u32 %v3238, %v3239
        %v3242 = vrot.slane %v3238, 4
        %v3244 = vshrl.u32 %v2991, 16
        %v3246 = vrot.slane %v3244, 7
        %v3247 = vshll.u32 %v2991, 16
        %v3249 = vor.u32 %v3246, %v3247
        %v3250 = vsel %vm2996, %v3242, %v3249
        %v3251 = vrot.slane %v3246, 4
        %v3253 = vshrl.u32 %v2992, 16
        %v3255 = vrot.slane %v3253, 7
        %v3256 = vshll.u32 %v2992, 16
        %v3258 = vor.u32 %v3255, %v3256
        %v3259 = vrot.slane %v3255, 4
        %v3261 = vshrl.u32 %v2993, 16
        %v3263 = vrot.slane %v3261, 7
        %v3264 = vshll.u32 %v2993, 16
        %v3266 = vor.u32 %v3263, %v3264
        %v3267 = vsel %vm2996, %v3259, %v3266
        %v3268 = vrot.slane %v3263, 4
        %s3317 = scalar_lea.vmem %s191, 12
        %vm3318 = vcmask 519168
        %vm3319 = vsmask.f32 7938
        %vm3320 = vmand %vm3318, %vm3319
        %v3321 = vld [vmem:[%s3317] sm:$0xf]
        %v3322 = vsel %vm3320, %v3003, %v3321
        %3323 = vst [vmem:[%s3317] sm:$0xf] %v3322
        %3324 = vst.msk [vmem:[%s3317 + $0x4] sm:$0xf] %vm2863, %v3012
        %vm3325 = vcmask 516096
        %vm3326 = vmand %vm3325, %vm2994
        %v3327 = vld [vmem:[%s3317 + $0x8] sm:$0x1]
        %v3328 = vsel %vm3326, %v3013, %v3327
        %3329 = vst [vmem:[%s3317 + $0x8] sm:$0x1] %v3328
        %v3330 = vld [vmem:[%s3317 + $0xc] sm:$0xf]
        %v3331 = vsel %vm3320, %v3020, %v3330
        %3332 = vst [vmem:[%s3317 + $0xc] sm:$0xf] %v3331
        %3333 = vst.msk [vmem:[%s3317 + $0x10] sm:$0xf] %vm2863, %v3029
        %v3334 = vld [vmem:[%s3317 + $0x14] sm:$0x1]
        %v3335 = vsel %vm3326, %v3030, %v3334
        %3336 = vst [vmem:[%s3317 + $0x14] sm:$0x1] %v3335
        %v3337 = vld [vmem:[%s3317 + $0x18] sm:$0xf]
        %v3338 = vsel %vm3320, %v3037, %v3337
        %3339 = vst [vmem:[%s3317 + $0x18] sm:$0xf] %v3338
        %3340 = vst.msk [vmem:[%s3317 + $0x1c] sm:$0xf] %vm2863, %v3046
        %v3341 = vld [vmem:[%s3317 + $0x20] sm:$0x1]
        %v3342 = vsel %vm3326, %v3047, %v3341
        %3343 = vst [vmem:[%s3317 + $0x20] sm:$0x1] %v3342
        %v3344 = vld [vmem:[%s3317 + $0x24] sm:$0xf]
        %v3345 = vsel %vm3320, %v3054, %v3344
        %3346 = vst [vmem:[%s3317 + $0x24] sm:$0xf] %v3345
        %3347 = vst.msk [vmem:[%s3317 + $0x28] sm:$0xf] %vm2863, %v3063
        %v3348 = vld [vmem:[%s3317 + $0x2c] sm:$0x1]
        %v3349 = vsel %vm3326, %v3064, %v3348
        %3350 = vst [vmem:[%s3317 + $0x2c] sm:$0x1] %v3349
        %v3351 = vld [vmem:[%s3317 + $0x30] sm:$0xf]
        %v3352 = vsel %vm3320, %v3071, %v3351
        %3353 = vst [vmem:[%s3317 + $0x30] sm:$0xf] %v3352
        %3354 = vst.msk [vmem:[%s3317 + $0x34] sm:$0xf] %vm2863, %v3080
        %v3355 = vld [vmem:[%s3317 + $0x38] sm:$0x1]
        %v3356 = vsel %vm3326, %v3081, %v3355
        %3357 = vst [vmem:[%s3317 + $0x38] sm:$0x1] %v3356
        %v3358 = vld [vmem:[%s3317 + $0x3c] sm:$0xf]
        %v3359 = vsel %vm3320, %v3088, %v3358
        %3360 = vst [vmem:[%s3317 + $0x3c] sm:$0xf] %v3359
        %3361 = vst.msk [vmem:[%s3317 + $0x40] sm:$0xf] %vm2863, %v3097
        %v3362 = vld [vmem:[%s3317 + $0x44] sm:$0x1]
        %v3363 = vsel %vm3326, %v3098, %v3362
        %3364 = vst [vmem:[%s3317 + $0x44] sm:$0x1] %v3363
        %v3365 = vld [vmem:[%s3317 + $0x48] sm:$0xf]
        %v3366 = vsel %vm3320, %v3105, %v3365
        %3367 = vst [vmem:[%s3317 + $0x48] sm:$0xf] %v3366
        %3368 = vst.msk [vmem:[%s3317 + $0x4c] sm:$0xf] %vm2863, %v3114
        %v3369 = vld [vmem:[%s3317 + $0x50] sm:$0x1]
        %v3370 = vsel %vm3326, %v3115, %v3369
        %3371 = vst [vmem:[%s3317 + $0x50] sm:$0x1] %v3370
        %v3372 = vld [vmem:[%s3317 + $0x54] sm:$0xf]
        %v3373 = vsel %vm3320, %v3122, %v3372
        %3374 = vst [vmem:[%s3317 + $0x54] sm:$0xf] %v3373
        %3375 = vst.msk [vmem:[%s3317 + $0x58] sm:$0xf] %vm2863, %v3131
        %v3376 = vld [vmem:[%s3317 + $0x5c] sm:$0x1]
        %v3377 = vsel %vm3326, %v3132, %v3376
        %3378 = vst [vmem:[%s3317 + $0x5c] sm:$0x1] %v3377
        %v3379 = vld [vmem:[%s3317 + $0x60] sm:$0xf]
        %v3380 = vsel %vm3320, %v3139, %v3379
        %3381 = vst [vmem:[%s3317 + $0x60] sm:$0xf] %v3380
        %3382 = vst.msk [vmem:[%s3317 + $0x64] sm:$0xf] %vm2863, %v3148
        %v3383 = vld [vmem:[%s3317 + $0x68] sm:$0x1]
        %v3384 = vsel %vm3326, %v3149, %v3383
        %3385 = vst [vmem:[%s3317 + $0x68] sm:$0x1] %v3384
        %v3386 = vld [vmem:[%s3317 + $0x6c] sm:$0xf]
        %v3387 = vsel %vm3320, %v3156, %v3386
        %3388 = vst [vmem:[%s3317 + $0x6c] sm:$0xf] %v3387
        %3389 = vst.msk [vmem:[%s3317 + $0x70] sm:$0xf] %vm2863, %v3165
        %v3390 = vld [vmem:[%s3317 + $0x74] sm:$0x1]
        %v3391 = vsel %vm3326, %v3166, %v3390
        %3392 = vst [vmem:[%s3317 + $0x74] sm:$0x1] %v3391
        %v3393 = vld [vmem:[%s3317 + $0x78] sm:$0xf]
        %v3394 = vsel %vm3320, %v3173, %v3393
        %3395 = vst [vmem:[%s3317 + $0x78] sm:$0xf] %v3394
        %3396 = vst.msk [vmem:[%s3317 + $0x7c] sm:$0xf] %vm2863, %v3182
        %v3397 = vld [vmem:[%s3317 + $0x80] sm:$0x1]
        %v3398 = vsel %vm3326, %v3183, %v3397
        %3399 = vst [vmem:[%s3317 + $0x80] sm:$0x1] %v3398
        %v3400 = vld [vmem:[%s3317 + $0x84] sm:$0xf]
        %v3401 = vsel %vm3320, %v3190, %v3400
        %3402 = vst [vmem:[%s3317 + $0x84] sm:$0xf] %v3401
        %3403 = vst.msk [vmem:[%s3317 + $0x88] sm:$0xf] %vm2863, %v3199
        %v3404 = vld [vmem:[%s3317 + $0x8c] sm:$0x1]
        %v3405 = vsel %vm3326, %v3200, %v3404
        %3406 = vst [vmem:[%s3317 + $0x8c] sm:$0x1] %v3405
        %v3407 = vld [vmem:[%s3317 + $0x90] sm:$0xf]
        %v3408 = vsel %vm3320, %v3207, %v3407
        %3409 = vst [vmem:[%s3317 + $0x90] sm:$0xf] %v3408
        %3410 = vst.msk [vmem:[%s3317 + $0x94] sm:$0xf] %vm2863, %v3216
        %v3411 = vld [vmem:[%s3317 + $0x98] sm:$0x1]
        %v3412 = vsel %vm3326, %v3217, %v3411
        %3413 = vst [vmem:[%s3317 + $0x98] sm:$0x1] %v3412
        %v3414 = vld [vmem:[%s3317 + $0x9c] sm:$0xf]
        %v3415 = vsel %vm3320, %v3224, %v3414
        %3416 = vst [vmem:[%s3317 + $0x9c] sm:$0xf] %v3415
        %3417 = vst.msk [vmem:[%s3317 + $0xa0] sm:$0xf] %vm2863, %v3233
        %v3418 = vld [vmem:[%s3317 + $0xa4] sm:$0x1]
        %v3419 = vsel %vm3326, %v3234, %v3418
        %3420 = vst [vmem:[%s3317 + $0xa4] sm:$0x1] %v3419
        %v3421 = vld [vmem:[%s3317 + $0xa8] sm:$0xf]
        %v3422 = vsel %vm3320, %v3241, %v3421
        %3423 = vst [vmem:[%s3317 + $0xa8] sm:$0xf] %v3422
        %3424 = vst.msk [vmem:[%s3317 + $0xac] sm:$0xf] %vm2863, %v3250
        %v3425 = vld [vmem:[%s3317 + $0xb0] sm:$0x1]
        %v3426 = vsel %vm3326, %v3251, %v3425
        %3427 = vst [vmem:[%s3317 + $0xb0] sm:$0x1] %v3426
        %v3428 = vld [vmem:[%s3317 + $0xb4] sm:$0xf]
        %v3429 = vsel %vm3320, %v3258, %v3428
        %3430 = vst [vmem:[%s3317 + $0xb4] sm:$0xf] %v3429
        %3431 = vst.msk [vmem:[%s3317 + $0xb8] sm:$0xf] %vm2863, %v3267
        %v3432 = vld [vmem:[%s3317 + $0xbc] sm:$0x1]
        %v3433 = vsel %vm3326, %v3268, %v3432
        %3434 = vst [vmem:[%s3317 + $0xbc] sm:$0x1] %v3433
        %p3435 = scmp.lt.s32.totalorder %s21, 5
        %s3436 = scalar_select %p3435, %s21, 5
        %p3437 = scmp.lt.s32.totalorder %s20, 1
        %s3438 = scalar_select %p3437, %s20, 1
        %s3439 = smul.addr %s3438, 57
        %s3440 = smul.addr %s3436, 114
        %s3441 = sadd.s32 %s3439, %s3440
        %s3442 = smul.addr %s3441, 4
        %s3443 = scalar_lea.vmem %s2, %s3442
        // Predicated region
        $region37: #{escape_net_snn_forward.4} parent=27 // pred_check
          %p3444 = pneg %p97
        $region38: #{escape_net_snn_forward.4} parent=27 // pred_check_branch
          %3446 = sbr.rel (%p3444) target = $region40
        $region39: #{escape_net_snn_forward.4} parent=27 // pred_region
          _
        $region40: #{escape_net_snn_forward.4} parent=27 // pred_fallthru
          _
      $region28: #{escape_net_snn_forward.4} parent=5 // pred_fallthru
        _
      %p3447 = scmp.le.s32.totalorder 2, %s11
      // Predicated region
      $region41: #{escape_net_snn_forward.4} parent=5 // pred_check
        %p3448 = pneg %p3447
      $region42: #{escape_net_snn_forward.4} parent=5 // pred_check_branch
        %3450 = sbr.rel (%p3448) target = $region44
      $region43: #{escape_net_snn_forward.4} parent=5 // pred_region
        %s3451 = ssub.s32 %s11, 2
        // Predicated region
        $region45: #{escape_net_snn_forward.4} parent=43 // pred_check
          %p3452 = pneg %p103
        $region46: #{escape_net_snn_forward.4} parent=43 // pred_check_branch
          %3454 = sbr.rel (%p3452) target = $region48
        $region47: #{escape_net_snn_forward.4} parent=43 // pred_region
          %p3455 = scmp.lt.s32.totalorder %s23, 5
          %s3456 = scalar_select %p3455, %s23, 5
          %p3457 = scmp.lt.s32.totalorder %s22, 1
          %s3458 = scalar_select %p3457, %s22, 1
          %s3459 = smul.addr %s3458, 57
          %s3460 = smul.addr %s3456, 114
          %s3461 = sadd.s32 %s3459, %s3460
          %s3462 = smul.addr %s3461, 4
          %s3463 = scalar_lea.vmem %s2, %s3462
        $region48: #{escape_net_snn_forward.4} parent=43 // pred_fallthru
          _
      $region44: #{escape_net_snn_forward.4} parent=5 // pred_fallthru
        _
    $region6: #{escape_net_snn_forward.4} parent=1 // loop_footer
      %s15 = sadd.s32 1, %s11
    $region7: #{escape_net_snn_forward.4} parent=1 // loop_footer_branch
      %10 = sbr.rel target = $region3
    $region8: #{escape_net_snn_forward.4} parent=1 // loop_exit
      _
    %3464 = vsyncpa [#allocation5], 1
    %s3465 = scalar_lea.sflag [#allocation5], 1
    %3466 = vsyncpa %s3465, 1

// kernel: escape_net_snn_forward.5
$region0: #{escape_net_snn_forward.5}
  #allocation0 [shape = 'u32[]', space=smem, size = 0x4, offset = 0x4, fixed_abs, tag = 'smem constant byte address 0x4 - core index']
  #allocation1 [shape = 'u32[72,128]{1,0:T(1,128)}', space=vmem, size = 0x9000, scoped, tag = 'internal scratch']
  #allocation2 [shape = 'f32[256,64]{1,0:T(8,128)}', space=vmem, size = 0x20000, scoped, tag = 'scratch operand']
  #allocation3 [shape = 'f32[256,64]{1,0:T(8,128)}', space=vmem, size = 0x20000, scoped, tag = 'scratch operand']
  %s0 = inlined_call_operand.vmem [shape: bf16[6,2,19,19,64], index: 0, kind: input, shape index: {}]
  %s1 = inlined_call_operand.vmem [shape: bf16[1024,64], index: 1, kind: input, shape index: {}]
  %s2 = inlined_call_operand.vmem [shape: bf16[6,2,9,9,64], index: 2, kind: output, shape index: {}]
  %s3 = sld [smem:[#allocation0]]
  $region45: #{escape_net_snn_forward.5} parent=0
    _
  %s5 = ssub.s32 1, %s3
  %s6 = scalar_select 0, %s5, %s3
  loop: start=0, step=1, limit=14
  $region2: #{escape_net_snn_forward.5} parent=0 // loop_pre_header
    _
  $region3: #{escape_net_snn_forward.5} parent=0 // loop_header
    %s8 = sphi 0, %s12
    %p9 = scmp.ge.s32.totalorder %s8, 14
    %s15 = sphi 0, %s27
    %s16 = sphi 0, %s23
    %s17 = sphi 0, %s15
    %s18 = sphi 0, %s16
    %s19 = sphi 0, %s17
    %s20 = sphi 0, %s18
    %s32 = sphi 0, %s34
    %s35 = sphi 0, %s32
    %s36 = sphi 0, %s35
    %s52 = sphi 0, %s36
    %s56 = sphi 0, %s56
    %s58 = sphi 0, %s56
    %s59 = sphi 0, %s58
    %s73 = sphi 0, %s59
    %s81 = sphi 0, %s83
    %s84 = sphi 0, %s81
    %s85 = sphi 0, %s84
    %s101 = sphi 0, %s85
  $region4: #{escape_net_snn_forward.5} parent=0 // loop_header_branch
    %11 = sbr.rel (%p9) target = $region8
  $region5: #{escape_net_snn_forward.5} parent=0 // loop_body
    %s13 = ssub.s32 %s8, 1
    %s14 = ssub.s32 %s8, 2
    %s21 = sadd.s32 1, %s16
    %p22 = scmp.ge.s32.totalorder %s21, 6
    %s23 = scalar_select %p22, 0, %s21
    %s24 = sadd.s32 1, %s15
    %s25 = scalar_select %p22, %s24, %s15
    %p26 = scmp.ge.s32.totalorder %s25, 2
    %s27 = scalar_select %p26, 0, %s25
    %s28 = ssub.s32 %s16, %s23
    %s29 = ssub.s32 %s15, %s27
    %s30 = sor.u32 %s28, %s29
    %p31 = scmp.eq.s32.totalorder %s30, 0
    %s33 = sadd.s32 %s32, 1
    %s34 = scalar_select %p31, %s32, %s33
    %p37 = pneg %p31
    %p38 = scmp.eq.s32.totalorder %s8, 11
    %p39 = por %p37, %p38
    %p40 = scmp.ne.s32.totalorder %s32, %s35
    %p41 = scmp.eq.s32.totalorder %s8, 0
    %p42 = por %p40, %p41
    %p43 = scmp.ne.s32.totalorder %s32, %s35
    %p44 = scmp.eq.s32.totalorder %s13, 11
    %p45 = por %p43, %p44
    %p46 = scmp.ne.s32.totalorder %s35, %s36
    %p47 = scmp.eq.s32.totalorder %s13, 0
    %p48 = por %p46, %p47
    %p49 = scmp.ne.s32.totalorder %s35, %s36
    %p50 = scmp.eq.s32.totalorder %s14, 11
    %p51 = por %p49, %p50
    %p53 = scmp.ne.s32.totalorder %s36, %s52
    %p54 = scmp.eq.s32.totalorder %s14, 0
    %p55 = por %p53, %p54
    %s57 = sadd.s32 %s56, 1
    %p60 = scmp.eq.s32.totalorder %s8, 11
    %p61 = scmp.ne.s32.totalorder %s56, %s58
    %p62 = scmp.eq.s32.totalorder %s8, 0
    %p63 = por %p61, %p62
    %p64 = scmp.ne.s32.totalorder %s56, %s58
    %p65 = scmp.eq.s32.totalorder %s13, 11
    %p66 = por %p64, %p65
    %p67 = scmp.ne.s32.totalorder %s58, %s59
    %p68 = scmp.eq.s32.totalorder %s13, 0
    %p69 = por %p67, %p68
    %p70 = scmp.ne.s32.totalorder %s58, %s59
    %p71 = scmp.eq.s32.totalorder %s14, 11
    %p72 = por %p70, %p71
    %p74 = scmp.ne.s32.totalorder %s59, %s73
    %p75 = scmp.eq.s32.totalorder %s14, 0
    %p76 = por %p74, %p75
    %s77 = ssub.s32 %s16, %s23
    %s78 = ssub.s32 %s15, %s27
    %s79 = sor.u32 %s77, %s78
    %p80 = scmp.eq.s32.totalorder %s79, 0
    %s82 = sadd.s32 %s81, 1
    %s83 = scalar_select %p80, %s81, %s82
    %p86 = pneg %p80
    %p87 = scmp.eq.s32.totalorder %s8, 11
    %p88 = por %p86, %p87
    %p89 = scmp.ne.s32.totalorder %s81, %s84
    %p90 = scmp.eq.s32.totalorder %s8, 0
    %p91 = por %p89, %p90
    %p92 = scmp.ne.s32.totalorder %s81, %s84
    %p93 = scmp.eq.s32.totalorder %s13, 11
    %p94 = por %p92, %p93
    %p95 = scmp.ne.s32.totalorder %s84, %s85
    %p96 = scmp.eq.s32.totalorder %s13, 0
    %p97 = por %p95, %p96
    %p98 = scmp.ne.s32.totalorder %s84, %s85
    %p99 = scmp.eq.s32.totalorder %s14, 11
    %p100 = por %p98, %p99
    %p102 = scmp.ne.s32.totalorder %s85, %s101
    %p103 = scmp.eq.s32.totalorder %s14, 0
    %p104 = por %p102, %p103
    %p105 = scmp.le.s32.totalorder 1, %s8
    %p106 = scmp.lt.s32.totalorder %s8, 13
    %p107 = pnand %p105, %p106
    %p108 = pneg %p107
    // Predicated region
    $region9: #{escape_net_snn_forward.5} parent=5 // pred_check
      _
    $region10: #{escape_net_snn_forward.5} parent=5 // pred_check_branch
      %110 = sbr.rel (%p107) target = $region12
    $region11: #{escape_net_snn_forward.5} parent=5 // pred_region
      %s111 = ssub.s32 %s8, 1
      // Predicated region
      $region13: #{escape_net_snn_forward.5} parent=11 // pred_check
        %p112 = pneg %p69
      $region14: #{escape_net_snn_forward.5} parent=11 // pred_check_branch
        %114 = sbr.rel (%p112) target = $region16
      $region15: #{escape_net_snn_forward.5} parent=11 // pred_region
        _
      $region16: #{escape_net_snn_forward.5} parent=11 // pred_fallthru
        _
    $region12: #{escape_net_snn_forward.5} parent=5 // pred_fallthru
      _
    %p115 = scmp.lt.s32.totalorder %s8, 12
    // Predicated region
    $region17: #{escape_net_snn_forward.5} parent=5 // pred_check
      %p116 = pneg %p115
    $region18: #{escape_net_snn_forward.5} parent=5 // pred_check_branch
      %118 = sbr.rel (%p116) target = $region20
    $region19: #{escape_net_snn_forward.5} parent=5 // pred_region
      // Predicated region
      $region21: #{escape_net_snn_forward.5} parent=19 // pred_check
        %p119 = pneg %p42
      $region22: #{escape_net_snn_forward.5} parent=19 // pred_check_branch
        %121 = sbr.rel (%p119) target = $region24
      $region23: #{escape_net_snn_forward.5} parent=19 // pred_region
        %p122 = scmp.lt.s32.totalorder %s16, 5
        %s123 = scalar_select %p122, %s16, 5
        %p124 = scmp.lt.s32.totalorder %s15, 1
        %s125 = scalar_select %p124, %s15, 1
        %s126 = smul.addr %s125, 57
        %s127 = smul.addr %s123, 114
        %s128 = sadd.s32 %s126, %s127
        %s129 = smul.addr %s128, 4
        %s130 = scalar_lea.vmem %s0, %s129
      $region24: #{escape_net_snn_forward.5} parent=19 // pred_fallthru
        _
    $region20: #{escape_net_snn_forward.5} parent=5 // pred_fallthru
      _
    %p131 = scmp.le.s32.totalorder 1, %s8
    %p132 = scmp.lt.s32.totalorder %s8, 13
    %p133 = pnand %p131, %p132
    %p134 = pneg %p133
    // Predicated region
    $region25: #{escape_net_snn_forward.5} parent=5 // pred_check
      _
    $region26: #{escape_net_snn_forward.5} parent=5 // pred_check_branch
      %136 = sbr.rel (%p133) target = $region28
    $region27: #{escape_net_snn_forward.5} parent=5 // pred_region
      %s137 = ssub.s32 %s8, 1
      %p138 = scmp.lt.s32.totalorder %s18, 5
      %s139 = scalar_select %p138, %s18, 5
      %p140 = scmp.lt.s32.totalorder %s17, 1
      %s141 = scalar_select %p140, %s17, 1
      %s142 = smul.addr %s141, 57
      %s143 = smul.addr %s139, 114
      %s144 = sadd.s32 %s142, %s143
      %s145 = smul.addr %s144, 4
      %s146 = scalar_lea.vmem %s0, %s145
      %p147 = pneg %p48
      %p148 = pneg %p45
      %p149 = pneg %p69
      %p150 = pneg %p66
      %p151 = pneg %p97
      %p152 = pneg %p94
      %p153 = scmp.lt.s32.totalorder %s18, 5
      %s154 = scalar_select %p153, %s18, 5
      %p155 = scmp.lt.s32.totalorder %s17, 1
      %s156 = scalar_select %p155, %s17, 1
      %s157 = smul.addr %s156, 18
      %s158 = smul.addr %s154, 36
      %s159 = sadd.s32 %s157, %s158
      %s160 = smul.addr %s159, 4
      %s161 = scalar_lea.vmem %s2, %s160
      %p162 = scmp.lt.s32.totalorder %s18, 5
      %s163 = scalar_select %p162, %s18, 5
      %p164 = scmp.lt.s32.totalorder %s17, 1
      %s165 = scalar_select %p164, %s17, 1
      %s166 = smul.addr %s165, 57
      %s167 = smul.addr %s163, 114
      %s168 = sadd.s32 %s166, %s167
      %s169 = smul.addr %s168, 4
      %s170 = scalar_lea.vmem %s0, %s169
      %p171 = scmp.lt.s32.totalorder %s18, 5
      %s172 = scalar_select %p171, %s18, 5
      %p173 = scmp.lt.s32.totalorder %s17, 1
      %s174 = scalar_select %p173, %s17, 1
      %s175 = smul.addr %s174, 18
      %s176 = smul.addr %s172, 36
      %s177 = sadd.s32 %s175, %s176
      %s178 = smul.addr %s177, 4
      %s179 = scalar_lea.vmem %s2, %s178
      %p181 = scmp.eq.s32.totalorder %s18, 0
      // Predicated region
      $region29: #{escape_net_snn_forward.5} parent=27 // pred_check
        %p182 = pneg %p181
      $region30: #{escape_net_snn_forward.5} parent=27 // pred_check_branch
        %184 = sbr.rel (%p182) target = $region32
      $region31: #{escape_net_snn_forward.5} parent=27 // pred_region
        %vm185 = vcmask 523264
        %186 = vst.msk [vmem:[#allocation2] sm:$0xff] %vm185, 0.0
        %187 = vst.msk [vmem:[#allocation2 + $0x8] sm:$0xff] %vm185, 0.0
        %188 = vst.msk [vmem:[#allocation2 + $0x10] sm:$0xff] %vm185, 0.0
        %189 = vst.msk [vmem:[#allocation2 + $0x18] sm:$0xff] %vm185, 0.0
        %190 = vst.msk [vmem:[#allocation2 + $0x20] sm:$0xff] %vm185, 0.0
        %191 = vst.msk [vmem:[#allocation2 + $0x28] sm:$0xff] %vm185, 0.0
        %192 = vst.msk [vmem:[#allocation2 + $0x30] sm:$0xff] %vm185, 0.0
        %193 = vst.msk [vmem:[#allocation2 + $0x38] sm:$0xff] %vm185, 0.0
        %194 = vst.msk [vmem:[#allocation2 + $0x40] sm:$0xff] %vm185, 0.0
        %195 = vst.msk [vmem:[#allocation2 + $0x48] sm:$0xff] %vm185, 0.0
        %196 = vst.msk [vmem:[#allocation2 + $0x50] sm:$0xff] %vm185, 0.0
        %197 = vst.msk [vmem:[#allocation2 + $0x58] sm:$0xff] %vm185, 0.0
        %198 = vst.msk [vmem:[#allocation2 + $0x60] sm:$0xff] %vm185, 0.0
        %199 = vst.msk [vmem:[#allocation2 + $0x68] sm:$0xff] %vm185, 0.0
        %200 = vst.msk [vmem:[#allocation2 + $0x70] sm:$0xff] %vm185, 0.0
        %201 = vst.msk [vmem:[#allocation2 + $0x78] sm:$0xff] %vm185, 0.0
        %202 = vst.msk [vmem:[#allocation2 + $0x80] sm:$0xff] %vm185, 0.0
        %203 = vst.msk [vmem:[#allocation2 + $0x88] sm:$0xff] %vm185, 0.0
        %204 = vst.msk [vmem:[#allocation2 + $0x90] sm:$0xff] %vm185, 0.0
        %205 = vst.msk [vmem:[#allocation2 + $0x98] sm:$0xff] %vm185, 0.0
        %206 = vst.msk [vmem:[#allocation2 + $0xa0] sm:$0xff] %vm185, 0.0
        %207 = vst.msk [vmem:[#allocation2 + $0xa8] sm:$0xff] %vm185, 0.0
        %208 = vst.msk [vmem:[#allocation2 + $0xb0] sm:$0xff] %vm185, 0.0
        %209 = vst.msk [vmem:[#allocation2 + $0xb8] sm:$0xff] %vm185, 0.0
        %210 = vst.msk [vmem:[#allocation2 + $0xc0] sm:$0xff] %vm185, 0.0
        %211 = vst.msk [vmem:[#allocation2 + $0xc8] sm:$0xff] %vm185, 0.0
        %212 = vst.msk [vmem:[#allocation2 + $0xd0] sm:$0xff] %vm185, 0.0
        %213 = vst.msk [vmem:[#allocation2 + $0xd8] sm:$0xff] %vm185, 0.0
        %214 = vst.msk [vmem:[#allocation2 + $0xe0] sm:$0xff] %vm185, 0.0
        %215 = vst.msk [vmem:[#allocation2 + $0xe8] sm:$0xff] %vm185, 0.0
        %216 = vst.msk [vmem:[#allocation2 + $0xf0] sm:$0xff] %vm185, 0.0
        %217 = vst.msk [vmem:[#allocation2 + $0xf8] sm:$0xff] %vm185, 0.0
      $region32: #{escape_net_snn_forward.5} parent=27 // pred_fallthru
        _
      %v218 = vld [vmem:[#allocation2] sm:$0xff]
      %v219 = vld [vmem:[#allocation2 + $0x8] sm:$0xff]
      %v220 = vld [vmem:[#allocation2 + $0x10] sm:$0xff]
      %v221 = vld [vmem:[#allocation2 + $0x18] sm:$0xff]
      %v222 = vld [vmem:[#allocation2 + $0x20] sm:$0xff]
      %v223 = vld [vmem:[#allocation2 + $0x28] sm:$0xff]
      %v224 = vld [vmem:[#allocation2 + $0x30] sm:$0xff]
      %v225 = vld [vmem:[#allocation2 + $0x38] sm:$0xff]
      %v226 = vld [vmem:[#allocation2 + $0x40] sm:$0xff]
      %v227 = vld [vmem:[#allocation2 + $0x48] sm:$0xff]
      %v228 = vld [vmem:[#allocation2 + $0x50] sm:$0xff]
      %v229 = vld [vmem:[#allocation2 + $0x58] sm:$0xff]
      %v230 = vld [vmem:[#allocation2 + $0x60] sm:$0xff]
      %v231 = vld [vmem:[#allocation2 + $0x68] sm:$0xff]
      %v232 = vld [vmem:[#allocation2 + $0x70] sm:$0xff]
      %v233 = vld [vmem:[#allocation2 + $0x78] sm:$0xff]
      %v234 = vld [vmem:[#allocation2 + $0x80] sm:$0xff]
      %v235 = vld [vmem:[#allocation2 + $0x88] sm:$0xff]
      %v236 = vld [vmem:[#allocation2 + $0x90] sm:$0xff]
      %v237 = vld [vmem:[#allocation2 + $0x98] sm:$0xff]
      %v238 = vld [vmem:[#allocation2 + $0xa0] sm:$0xff]
      %v239 = vld [vmem:[#allocation2 + $0xa8] sm:$0xff]
      %v240 = vld [vmem:[#allocation2 + $0xb0] sm:$0xff]
      %v241 = vld [vmem:[#allocation2 + $0xb8] sm:$0xff]
      %v242 = vld [vmem:[#allocation2 + $0xc0] sm:$0xff]
      %v243 = vld [vmem:[#allocation2 + $0xc8] sm:$0xff]
      %v244 = vld [vmem:[#allocation2 + $0xd0] sm:$0xff]
      %v245 = vld [vmem:[#allocation2 + $0xd8] sm:$0xff]
      %v246 = vld [vmem:[#allocation2 + $0xe0] sm:$0xff]
      %v247 = vld [vmem:[#allocation2 + $0xe8] sm:$0xff]
      %v248 = vld [vmem:[#allocation2 + $0xf0] sm:$0xff]
      %v249 = vld [vmem:[#allocation2 + $0xf8] sm:$0xff]
      %v250 = vsub.f32 %v218, 1.0
      %v251 = vsub.f32 %v219, 1.0
      %v252 = vsub.f32 %v220, 1.0
      %v253 = vsub.f32 %v221, 1.0
      %v254 = vsub.f32 %v222, 1.0
      %v255 = vsub.f32 %v223, 1.0
      %v256 = vsub.f32 %v224, 1.0
      %v257 = vsub.f32 %v225, 1.0
      %v258 = vsub.f32 %v226, 1.0
      %v259 = vsub.f32 %v227, 1.0
      %v260 = vsub.f32 %v228, 1.0
      %v261 = vsub.f32 %v229, 1.0
      %v262 = vsub.f32 %v230, 1.0
      %v263 = vsub.f32 %v231, 1.0
      %v264 = vsub.f32 %v232, 1.0
      %v265 = vsub.f32 %v233, 1.0
      %v266 = vsub.f32 %v234, 1.0
      %v267 = vsub.f32 %v235, 1.0
      %v268 = vsub.f32 %v236, 1.0
      %v269 = vsub.f32 %v237, 1.0
      %v270 = vsub.f32 %v238, 1.0
      %v271 = vsub.f32 %v239, 1.0
      %v272 = vsub.f32 %v240, 1.0
      %v273 = vsub.f32 %v241, 1.0
      %v274 = vsub.f32 %v242, 1.0
      %v275 = vsub.f32 %v243, 1.0
      %v276 = vsub.f32 %v244, 1.0
      %v277 = vsub.f32 %v245, 1.0
      %v278 = vsub.f32 %v246, 1.0
      %v279 = vsub.f32 %v247, 1.0
      %v280 = vsub.f32 %v248, 1.0
      %v281 = vsub.f32 %v249, 1.0
      %vm282 = vcmp.gt.f32.partialorder %v250, 0.0
      %vm283 = vcmp.gt.f32.partialorder %v251, 0.0
      %vm284 = vcmp.gt.f32.partialorder %v252, 0.0
      %vm285 = vcmp.gt.f32.partialorder %v253, 0.0
      %vm286 = vcmp.gt.f32.partialorder %v254, 0.0
      %vm287 = vcmp.gt.f32.partialorder %v255, 0.0
      %vm288 = vcmp.gt.f32.partialorder %v256, 0.0
      %vm289 = vcmp.gt.f32.partialorder %v257, 0.0
      %vm290 = vcmp.gt.f32.partialorder %v258, 0.0
      %vm291 = vcmp.gt.f32.partialorder %v259, 0.0
      %vm292 = vcmp.gt.f32.partialorder %v260, 0.0
      %vm293 = vcmp.gt.f32.partialorder %v261, 0.0
      %vm294 = vcmp.gt.f32.partialorder %v262, 0.0
      %vm295 = vcmp.gt.f32.partialorder %v263, 0.0
      %vm296 = vcmp.gt.f32.partialorder %v264, 0.0
      %vm297 = vcmp.gt.f32.partialorder %v265, 0.0
      %vm298 = vcmp.gt.f32.partialorder %v266, 0.0
      %vm299 = vcmp.gt.f32.partialorder %v267, 0.0
      %vm300 = vcmp.gt.f32.partialorder %v268, 0.0
      %vm301 = vcmp.gt.f32.partialorder %v269, 0.0
      %vm302 = vcmp.gt.f32.partialorder %v270, 0.0
      %vm303 = vcmp.gt.f32.partialorder %v271, 0.0
      %vm304 = vcmp.gt.f32.partialorder %v272, 0.0
      %vm305 = vcmp.gt.f32.partialorder %v273, 0.0
      %vm306 = vcmp.gt.f32.partialorder %v274, 0.0
      %vm307 = vcmp.gt.f32.partialorder %v275, 0.0
      %vm308 = vcmp.gt.f32.partialorder %v276, 0.0
      %vm309 = vcmp.gt.f32.partialorder %v277, 0.0
      %vm310 = vcmp.gt.f32.partialorder %v278, 0.0
      %vm311 = vcmp.gt.f32.partialorder %v279, 0.0
      %vm312 = vcmp.gt.f32.partialorder %v280, 0.0
      %vm313 = vcmp.gt.f32.partialorder %v281, 0.0
      %v314 = vsel %vm282, 1, 0
      %v315 = vsel %vm283, 1, 0
      %v316 = vsel %vm284, 1, 0
      %v317 = vsel %vm285, 1, 0
      %v318 = vsel %vm286, 1, 0
      %v319 = vsel %vm287, 1, 0
      %v320 = vsel %vm288, 1, 0
      %v321 = vsel %vm289, 1, 0
      %v322 = vsel %vm290, 1, 0
      %v323 = vsel %vm291, 1, 0
      %v324 = vsel %vm292, 1, 0
      %v325 = vsel %vm293, 1, 0
      %v326 = vsel %vm294, 1, 0
      %v327 = vsel %vm295, 1, 0
      %v328 = vsel %vm296, 1, 0
      %v329 = vsel %vm297, 1, 0
      %v330 = vsel %vm298, 1, 0
      %v331 = vsel %vm299, 1, 0
      %v332 = vsel %vm300, 1, 0
      %v333 = vsel %vm301, 1, 0
      %v334 = vsel %vm302, 1, 0
      %v335 = vsel %vm303, 1, 0
      %v336 = vsel %vm304, 1, 0
      %v337 = vsel %vm305, 1, 0
      %v338 = vsel %vm306, 1, 0
      %v339 = vsel %vm307, 1, 0
      %v340 = vsel %vm308, 1, 0
      %v341 = vsel %vm309, 1, 0
      %v342 = vsel %vm310, 1, 0
      %v343 = vsel %vm311, 1, 0
      %v344 = vsel %vm312, 1, 0
      %v345 = vsel %vm313, 1, 0
      %v346 = vcvt.s32.f32 %v314
      %v347 = vcvt.s32.f32 %v315
      %v348 = vcvt.s32.f32 %v316
      %v349 = vcvt.s32.f32 %v317
      %v350 = vcvt.s32.f32 %v318
      %v351 = vcvt.s32.f32 %v319
      %v352 = vcvt.s32.f32 %v320
      %v353 = vcvt.s32.f32 %v321
      %v354 = vcvt.s32.f32 %v322
      %v355 = vcvt.s32.f32 %v323
      %v356 = vcvt.s32.f32 %v324
      %v357 = vcvt.s32.f32 %v325
      %v358 = vcvt.s32.f32 %v326
      %v359 = vcvt.s32.f32 %v327
      %v360 = vcvt.s32.f32 %v328
      %v361 = vcvt.s32.f32 %v329
      %v362 = vcvt.s32.f32 %v330
      %v363 = vcvt.s32.f32 %v331
      %v364 = vcvt.s32.f32 %v332
      %v365 = vcvt.s32.f32 %v333
      %v366 = vcvt.s32.f32 %v334
      %v367 = vcvt.s32.f32 %v335
      %v368 = vcvt.s32.f32 %v336
      %v369 = vcvt.s32.f32 %v337
      %v370 = vcvt.s32.f32 %v338
      %v371 = vcvt.s32.f32 %v339
      %v372 = vcvt.s32.f32 %v340
      %v373 = vcvt.s32.f32 %v341
      %v374 = vcvt.s32.f32 %v342
      %v375 = vcvt.s32.f32 %v343
      %v376 = vcvt.s32.f32 %v344
      %v377 = vcvt.s32.f32 %v345
      %v378 = vld [vmem:[%s170] sm:$0xf]
      %v379 = vld [vmem:[%s170 + $0x4] sm:$0xf]
      %v380 = vld [vmem:[%s170 + $0x8] sm:$0x3]
      %v381 = vld [vmem:[%s170 + $0xc] sm:$0xf]
      %v382 = vld [vmem:[%s170 + $0x10] sm:$0xf]
      %v383 = vld [vmem:[%s170 + $0x14] sm:$0x3]
      %v384 = vld [vmem:[%s170 + $0x18] sm:$0xf]
      %v385 = vld [vmem:[%s170 + $0x1c] sm:$0xf]
      %v386 = vld [vmem:[%s170 + $0x20] sm:$0x3]
      %v387 = vld [vmem:[%s170 + $0x24] sm:$0xf]
      %v388 = vld [vmem:[%s170 + $0x28] sm:$0xf]
      %v389 = vld [vmem:[%s170 + $0x2c] sm:$0x3]
      %v390 = vld [vmem:[%s170 + $0x30] sm:$0xf]
      %v391 = vld [vmem:[%s170 + $0x34] sm:$0xf]
      %v392 = vld [vmem:[%s170 + $0x38] sm:$0x3]
      %v393 = vld [vmem:[%s170 + $0x3c] sm:$0xf]
      %v394 = vld [vmem:[%s170 + $0x40] sm:$0xf]
      %v395 = vld [vmem:[%s170 + $0x44] sm:$0x3]
      %v396 = vld [vmem:[%s170 + $0x48] sm:$0xf]
      %v397 = vld [vmem:[%s170 + $0x4c] sm:$0xf]
      %v398 = vld [vmem:[%s170 + $0x50] sm:$0x3]
      %v399 = vld [vmem:[%s170 + $0x54] sm:$0xf]
      %v400 = vld [vmem:[%s170 + $0x58] sm:$0xf]
      %v401 = vld [vmem:[%s170 + $0x5c] sm:$0x3]
      %v402 = vld [vmem:[%s170 + $0x60] sm:$0xf]
      %v403 = vld [vmem:[%s170 + $0x64] sm:$0xf]
      %v404 = vld [vmem:[%s170 + $0x68] sm:$0x3]
      %v405 = vld [vmem:[%s170 + $0x6c] sm:$0xf]
      %v406 = vld [vmem:[%s170 + $0x70] sm:$0xf]
      %v407 = vld [vmem:[%s170 + $0x74] sm:$0x3]
      %v408 = vld [vmem:[%s170 + $0x78] sm:$0xf]
      %v409 = vld [vmem:[%s170 + $0x7c] sm:$0xf]
      %v410 = vld [vmem:[%s170 + $0x80] sm:$0x3]
      %v411 = vld [vmem:[%s170 + $0x84] sm:$0xf]
      %v412 = vld [vmem:[%s170 + $0x88] sm:$0xf]
      %v413 = vld [vmem:[%s170 + $0x8c] sm:$0x3]
      %v414 = vld [vmem:[%s170 + $0x90] sm:$0xf]
      %v415 = vld [vmem:[%s170 + $0x94] sm:$0xf]
      %v416 = vld [vmem:[%s170 + $0x98] sm:$0x3]
      %v417 = vld [vmem:[%s170 + $0x9c] sm:$0xf]
      %v418 = vld [vmem:[%s170 + $0xa0] sm:$0xf]
      %v419 = vld [vmem:[%s170 + $0xa4] sm:$0x3]
      %v420 = vld [vmem:[%s170 + $0xa8] sm:$0xf]
      %v421 = vld [vmem:[%s170 + $0xac] sm:$0xf]
      %v422 = vld [vmem:[%s170 + $0xb0] sm:$0x3]
      %v423 = vld [vmem:[%s170 + $0xb4] sm:$0xf]
      %v424 = vld [vmem:[%s170 + $0xb8] sm:$0xf]
      %v425 = vld [vmem:[%s170 + $0xbc] sm:$0x3]
      %v426 = vld [vmem:[%s170 + $0xc0] sm:$0xf]
      %v427 = vld [vmem:[%s170 + $0xc4] sm:$0xf]
      %v428 = vld [vmem:[%s170 + $0xc8] sm:$0x3]
      %v429 = vld [vmem:[%s170 + $0xcc] sm:$0xf]
      %v430 = vld [vmem:[%s170 + $0xd0] sm:$0xf]
      %v431 = vld [vmem:[%s170 + $0xd4] sm:$0x3]
      %v432 = vld [vmem:[%s170 + $0xd8] sm:$0xf]
      %v433 = vld [vmem:[%s170 + $0xdc] sm:$0xf]
      %v434 = vld [vmem:[%s170 + $0xe0] sm:$0x3]
      %v435 = vunpack.c.l.bf16 %v378
      %v436 = vunpack.c.l.bf16 %v379
      %v437 = vunpack.c.l.bf16 %v380
      %v438 = vunpack.c.l.bf16 %v381
      %v439 = vunpack.c.l.bf16 %v382
      %v440 = vunpack.c.l.bf16 %v383
      %v441 = vunpack.c.l.bf16 %v384
      %v442 = vunpack.c.l.bf16 %v385
      %v443 = vunpack.c.l.bf16 %v386
      %v444 = vunpack.c.l.bf16 %v387
      %v445 = vunpack.c.l.bf16 %v388
      %v446 = vunpack.c.l.bf16 %v389
      %v447 = vunpack.c.l.bf16 %v390
      %v448 = vunpack.c.l.bf16 %v391
      %v449 = vunpack.c.l.bf16 %v392
      %v450 = vunpack.c.l.bf16 %v393
      %v451 = vunpack.c.l.bf16 %v394
      %v452 = vunpack.c.l.bf16 %v395
      %v453 = vunpack.c.l.bf16 %v396
      %v454 = vunpack.c.l.bf16 %v397
      %v455 = vunpack.c.l.bf16 %v398
      %v456 = vunpack.c.l.bf16 %v399
      %v457 = vunpack.c.l.bf16 %v400
      %v458 = vunpack.c.l.bf16 %v401
      %v459 = vunpack.c.l.bf16 %v402
      %v460 = vunpack.c.l.bf16 %v403
      %v461 = vunpack.c.l.bf16 %v404
      %v462 = vunpack.c.l.bf16 %v405
      %v463 = vunpack.c.l.bf16 %v406
      %v464 = vunpack.c.l.bf16 %v407
      %v465 = vunpack.c.l.bf16 %v408
      %v466 = vunpack.c.l.bf16 %v409
      %v467 = vunpack.c.l.bf16 %v410
      %v468 = vunpack.c.l.bf16 %v411
      %v469 = vunpack.c.l.bf16 %v412
      %v470 = vunpack.c.l.bf16 %v413
      %v471 = vunpack.c.l.bf16 %v414
      %v472 = vunpack.c.l.bf16 %v415
      %v473 = vunpack.c.l.bf16 %v416
      %v474 = vunpack.c.l.bf16 %v417
      %v475 = vunpack.c.l.bf16 %v418
      %v476 = vunpack.c.l.bf16 %v419
      %v477 = vunpack.c.l.bf16 %v420
      %v478 = vunpack.c.l.bf16 %v421
      %v479 = vunpack.c.l.bf16 %v422
      %v480 = vunpack.c.l.bf16 %v423
      %v481 = vunpack.c.l.bf16 %v424
      %v482 = vunpack.c.l.bf16 %v425
      %v483 = vunpack.c.l.bf16 %v426
      %v484 = vunpack.c.l.bf16 %v427
      %v485 = vunpack.c.l.bf16 %v428
      %v486 = vunpack.c.l.bf16 %v429
      %v487 = vunpack.c.l.bf16 %v430
      %v488 = vunpack.c.l.bf16 %v431
      %v489 = vunpack.c.l.bf16 %v432
      %v490 = vunpack.c.l.bf16 %v433
      %v491 = vunpack.c.l.bf16 %v434
      %v492 = vld [vmem:[%s1] sm:$0xf]
      %v493 = vld [vmem:[%s1 + $0x4] sm:$0xf]
      %v494 = vld [vmem:[%s1 + $0x8] sm:$0xf]
      %v495 = vld [vmem:[%s1 + $0xc] sm:$0xf]
      %v496 = vld [vmem:[%s1 + $0x10] sm:$0xf]
      %v497 = vld [vmem:[%s1 + $0x14] sm:$0xf]
      %v498 = vld [vmem:[%s1 + $0x18] sm:$0xf]
      %v499 = vld [vmem:[%s1 + $0x1c] sm:$0xf]
      %v500 = vld [vmem:[%s1 + $0x20] sm:$0xf]
      %v501 = vld [vmem:[%s1 + $0x24] sm:$0xf]
      %v502 = vld [vmem:[%s1 + $0x28] sm:$0xf]
      %v503 = vld [vmem:[%s1 + $0x2c] sm:$0xf]
      %v504 = vld [vmem:[%s1 + $0x30] sm:$0xf]
      %v505 = vld [vmem:[%s1 + $0x34] sm:$0xf]
      %v506 = vld [vmem:[%s1 + $0x38] sm:$0xf]
      %v507 = vld [vmem:[%s1 + $0x3c] sm:$0xf]
      %v508 = vld [vmem:[%s1 + $0x40] sm:$0xf]
      %v509 = vld [vmem:[%s1 + $0x44] sm:$0xf]
      %v510 = vld [vmem:[%s1 + $0x48] sm:$0xf]
      %v511 = vld [vmem:[%s1 + $0x4c] sm:$0xf]
      %v512 = vld [vmem:[%s1 + $0x50] sm:$0xf]
      %v513 = vld [vmem:[%s1 + $0x54] sm:$0xf]
      %v514 = vld [vmem:[%s1 + $0x58] sm:$0xf]
      %v515 = vld [vmem:[%s1 + $0x5c] sm:$0xf]
      %v516 = vld [vmem:[%s1 + $0x60] sm:$0xf]
      %v517 = vld [vmem:[%s1 + $0x64] sm:$0xf]
      %v518 = vld [vmem:[%s1 + $0x68] sm:$0xf]
      %v519 = vld [vmem:[%s1 + $0x6c] sm:$0xf]
      %v520 = vld [vmem:[%s1 + $0x70] sm:$0xf]
      %v521 = vld [vmem:[%s1 + $0x74] sm:$0xf]
      %v522 = vld [vmem:[%s1 + $0x78] sm:$0xf]
      %v523 = vld [vmem:[%s1 + $0x7c] sm:$0xf]
      %v524 = vld [vmem:[%s1 + $0x80] sm:$0xf]
      %v525 = vld [vmem:[%s1 + $0x84] sm:$0xf]
      %v526 = vld [vmem:[%s1 + $0x88] sm:$0xf]
      %v527 = vld [vmem:[%s1 + $0x8c] sm:$0xf]
      %v528 = vld [vmem:[%s1 + $0x90] sm:$0xf]
      %v529 = vld [vmem:[%s1 + $0x94] sm:$0xf]
      %v530 = vld [vmem:[%s1 + $0x98] sm:$0xf]
      %v531 = vld [vmem:[%s1 + $0x9c] sm:$0xf]
      %v532 = vld [vmem:[%s1 + $0xa0] sm:$0xf]
      %v533 = vld [vmem:[%s1 + $0xa4] sm:$0xf]
      %v534 = vld [vmem:[%s1 + $0xa8] sm:$0xf]
      %v535 = vld [vmem:[%s1 + $0xac] sm:$0xf]
      %v536 = vld [vmem:[%s1 + $0xb0] sm:$0xf]
      %v537 = vld [vmem:[%s1 + $0xb4] sm:$0xf]
      %v538 = vld [vmem:[%s1 + $0xb8] sm:$0xf]
      %v539 = vld [vmem:[%s1 + $0xbc] sm:$0xf]
      %v540 = vld [vmem:[%s1 + $0xc0] sm:$0xf]
      %v541 = vld [vmem:[%s1 + $0xc4] sm:$0xf]
      %v542 = vld [vmem:[%s1 + $0xc8] sm:$0xf]
      %v543 = vld [vmem:[%s1 + $0xcc] sm:$0xf]
      %v544 = vld [vmem:[%s1 + $0xd0] sm:$0xf]
      %v545 = vld [vmem:[%s1 + $0xd4] sm:$0xf]
      %v546 = vld [vmem:[%s1 + $0xd8] sm:$0xf]
      %v547 = vld [vmem:[%s1 + $0xdc] sm:$0xf]
      %v548 = vld [vmem:[%s1 + $0xe0] sm:$0xf]
      %v549 = vld [vmem:[%s1 + $0xe4] sm:$0xf]
      %v550 = vld [vmem:[%s1 + $0xe8] sm:$0xf]
      %v551 = vld [vmem:[%s1 + $0xec] sm:$0xf]
      %v552 = vld [vmem:[%s1 + $0xf0] sm:$0xf]
      %v553 = vld [vmem:[%s1 + $0xf4] sm:$0xf]
      %v554 = vld [vmem:[%s1 + $0xf8] sm:$0xf]
      %v555 = vld [vmem:[%s1 + $0xfc] sm:$0xf]
      %v556 = vld [vmem:[%s1 + $0x100] sm:$0xf]
      %v557 = vld [vmem:[%s1 + $0x104] sm:$0xf]
      %v558 = vld [vmem:[%s1 + $0x108] sm:$0xf]
      %v559 = vld [vmem:[%s1 + $0x10c] sm:$0xf]
      %v560 = vld [vmem:[%s1 + $0x110] sm:$0xf]
      %v561 = vld [vmem:[%s1 + $0x114] sm:$0xf]
      %v562 = vld [vmem:[%s1 + $0x118] sm:$0xf]
      %v563 = vld [vmem:[%s1 + $0x11c] sm:$0xf]
      %v564 = vld [vmem:[%s1 + $0x120] sm:$0xf]
      %v565 = vld [vmem:[%s1 + $0x124] sm:$0xf]
      %v566 = vld [vmem:[%s1 + $0x128] sm:$0xf]
      %v567 = vld [vmem:[%s1 + $0x12c] sm:$0xf]
      %v568 = vld [vmem:[%s1 + $0x130] sm:$0xf]
      %v569 = vld [vmem:[%s1 + $0x134] sm:$0xf]
      %v570 = vld [vmem:[%s1 + $0x138] sm:$0xf]
      %v571 = vld [vmem:[%s1 + $0x13c] sm:$0xf]
      %v572 = vld [vmem:[%s1 + $0x140] sm:$0xf]
      %v573 = vld [vmem:[%s1 + $0x144] sm:$0xf]
      %v574 = vld [vmem:[%s1 + $0x148] sm:$0xf]
      %v575 = vld [vmem:[%s1 + $0x14c] sm:$0xf]
      %v576 = vld [vmem:[%s1 + $0x150] sm:$0xf]
      %v577 = vld [vmem:[%s1 + $0x154] sm:$0xf]
      %v578 = vld [vmem:[%s1 + $0x158] sm:$0xf]
      %v579 = vld [vmem:[%s1 + $0x15c] sm:$0xf]
      %v580 = vld [vmem:[%s1 + $0x160] sm:$0xf]
      %v581 = vld [vmem:[%s1 + $0x164] sm:$0xf]
      %v582 = vld [vmem:[%s1 + $0x168] sm:$0xf]
      %v583 = vld [vmem:[%s1 + $0x16c] sm:$0xf]
      %v584 = vld [vmem:[%s1 + $0x170] sm:$0xf]
      %v585 = vld [vmem:[%s1 + $0x174] sm:$0xf]
      %v586 = vld [vmem:[%s1 + $0x178] sm:$0xf]
      %v587 = vld [vmem:[%s1 + $0x17c] sm:$0xf]
      %v588 = vld [vmem:[%s1 + $0x180] sm:$0xf]
      %v589 = vld [vmem:[%s1 + $0x184] sm:$0xf]
      %v590 = vld [vmem:[%s1 + $0x188] sm:$0xf]
      %v591 = vld [vmem:[%s1 + $0x18c] sm:$0xf]
      %v592 = vld [vmem:[%s1 + $0x190] sm:$0xf]
      %v593 = vld [vmem:[%s1 + $0x194] sm:$0xf]
      %v594 = vld [vmem:[%s1 + $0x198] sm:$0xf]
      %v595 = vld [vmem:[%s1 + $0x19c] sm:$0xf]
      %v596 = vld [vmem:[%s1 + $0x1a0] sm:$0xf]
      %v597 = vld [vmem:[%s1 + $0x1a4] sm:$0xf]
      %v598 = vld [vmem:[%s1 + $0x1a8] sm:$0xf]
      %v599 = vld [vmem:[%s1 + $0x1ac] sm:$0xf]
      %v600 = vld [vmem:[%s1 + $0x1b0] sm:$0xf]
      %v601 = vld [vmem:[%s1 + $0x1b4] sm:$0xf]
      %v602 = vld [vmem:[%s1 + $0x1b8] sm:$0xf]
      %v603 = vld [vmem:[%s1 + $0x1bc] sm:$0xf]
      %v604 = vld [vmem:[%s1 + $0x1c0] sm:$0xf]
      %v605 = vld [vmem:[%s1 + $0x1c4] sm:$0xf]
      %v606 = vld [vmem:[%s1 + $0x1c8] sm:$0xf]
      %v607 = vld [vmem:[%s1 + $0x1cc] sm:$0xf]
      %v608 = vld [vmem:[%s1 + $0x1d0] sm:$0xf]
      %v609 = vld [vmem:[%s1 + $0x1d4] sm:$0xf]
      %v610 = vld [vmem:[%s1 + $0x1d8] sm:$0xf]
      %v611 = vld [vmem:[%s1 + $0x1dc] sm:$0xf]
      %v612 = vld [vmem:[%s1 + $0x1e0] sm:$0xf]
      %v613 = vld [vmem:[%s1 + $0x1e4] sm:$0xf]
      %v614 = vld [vmem:[%s1 + $0x1e8] sm:$0xf]
      %v615 = vld [vmem:[%s1 + $0x1ec] sm:$0xf]
      %v616 = vld [vmem:[%s1 + $0x1f0] sm:$0xf]
      %v617 = vld [vmem:[%s1 + $0x1f4] sm:$0xf]
      %v618 = vld [vmem:[%s1 + $0x1f8] sm:$0xf]
      %v619 = vld [vmem:[%s1 + $0x1fc] sm:$0xf]
      %vm668 = vcmask 1046528
      %v669 = vrot.slane %v435, 1
      %v670 = vrot.slane %v436, 1
      %v671 = vsel %vm668, %v669, %v670
      %v672 = vrot.slane %v437, 1
      %v673 = vsel %vm668, %v670, %v672
      %v674 = vrot.slane %v438, 1
      %v675 = vrot.slane %v439, 1
      %v676 = vsel %vm668, %v674, %v675
      %v677 = vrot.slane %v440, 1
      %v678 = vsel %vm668, %v675, %v677
      %v679 = vrot.slane %v441, 1
      %v680 = vrot.slane %v442, 1
      %v681 = vsel %vm668, %v679, %v680
      %v682 = vrot.slane %v443, 1
      %v683 = vsel %vm668, %v680, %v682
      %v684 = vrot.slane %v444, 1
      %v685 = vrot.slane %v445, 1
      %v686 = vsel %vm668, %v684, %v685
      %v687 = vrot.slane %v446, 1
      %v688 = vsel %vm668, %v685, %v687
      %v689 = vrot.slane %v447, 1
      %v690 = vrot.slane %v448, 1
      %v691 = vsel %vm668, %v689, %v690
      %v692 = vrot.slane %v449, 1
      %v693 = vsel %vm668, %v690, %v692
      %v694 = vrot.slane %v450, 1
      %v695 = vrot.slane %v451, 1
      %v696 = vsel %vm668, %v694, %v695
      %v697 = vrot.slane %v452, 1
      %v698 = vsel %vm668, %v695, %v697
      %v699 = vrot.slane %v453, 1
      %v700 = vrot.slane %v454, 1
      %v701 = vsel %vm668, %v699, %v700
      %v702 = vrot.slane %v455, 1
      %v703 = vsel %vm668, %v700, %v702
      %v704 = vrot.slane %v456, 1
      %v705 = vrot.slane %v457, 1
      %v706 = vsel %vm668, %v704, %v705
      %v707 = vrot.slane %v458, 1
      %v708 = vsel %vm668, %v705, %v707
      %v709 = vrot.slane %v459, 1
      %v710 = vrot.slane %v460, 1
      %v711 = vsel %vm668, %v709, %v710
      %v712 = vrot.slane %v461, 1
      %v713 = vsel %vm668, %v710, %v712
      %v714 = vrot.slane %v462, 1
      %v715 = vrot.slane %v463, 1
      %v716 = vsel %vm668, %v714, %v715
      %v717 = vrot.slane %v464, 1
      %v718 = vsel %vm668, %v715, %v717
      %v719 = vrot.slane %v465, 1
      %v720 = vrot.slane %v466, 1
      %v721 = vsel %vm668, %v719, %v720
      %v722 = vrot.slane %v467, 1
      %v723 = vsel %vm668, %v720, %v722
      %v724 = vrot.slane %v468, 1
      %v725 = vrot.slane %v469, 1
      %v726 = vsel %vm668, %v724, %v725
      %v727 = vrot.slane %v470, 1
      %v728 = vsel %vm668, %v725, %v727
      %v729 = vrot.slane %v471, 1
      %v730 = vrot.slane %v472, 1
      %v731 = vsel %vm668, %v729, %v730
      %v732 = vrot.slane %v473, 1
      %v733 = vsel %vm668, %v730, %v732
      %v734 = vrot.slane %v474, 1
      %v735 = vrot.slane %v475, 1
      %v736 = vsel %vm668, %v734, %v735
      %v737 = vrot.slane %v476, 1
      %v738 = vsel %vm668, %v735, %v737
      %v739 = vrot.slane %v477, 1
      %v740 = vrot.slane %v478, 1
      %v741 = vsel %vm668, %v739, %v740
      %v742 = vrot.slane %v479, 1
      %v743 = vsel %vm668, %v740, %v742
      %v744 = vrot.slane %v480, 1
      %v745 = vrot.slane %v481, 1
      %v746 = vsel %vm668, %v744, %v745
      %v747 = vrot.slane %v482, 1
      %v748 = vsel %vm668, %v745, %v747
      %749 = vrot.lane.b32.xlu0 %v671, 64
      %v750 = vpop.permute.xlu0 %749
      %751 = vrot.lane.b32.xlu0 %v673, 64
      %v752 = vpop.permute.xlu0 %751
      %753 = vrot.lane.b32.xlu0 %v676, 64
      %v754 = vpop.permute.xlu0 %753
      %755 = vrot.lane.b32.xlu0 %v678, 64
      %v756 = vpop.permute.xlu0 %755
      %757 = vrot.lane.b32.xlu0 %v681, 64
      %v758 = vpop.permute.xlu0 %757
      %759 = vrot.lane.b32.xlu0 %v683, 64
      %v760 = vpop.permute.xlu0 %759
      %761 = vrot.lane.b32.xlu0 %v686, 64
      %v762 = vpop.permute.xlu0 %761
      %763 = vrot.lane.b32.xlu0 %v688, 64
      %v764 = vpop.permute.xlu0 %763
      %765 = vrot.lane.b32.xlu0 %v691, 64
      %v766 = vpop.permute.xlu0 %765
      %767 = vrot.lane.b32.xlu0 %v693, 64
      %v768 = vpop.permute.xlu0 %767
      %769 = vrot.lane.b32.xlu0 %v696, 64
      %v770 = vpop.permute.xlu0 %769
      %771 = vrot.lane.b32.xlu0 %v698, 64
      %v772 = vpop.permute.xlu0 %771
      %773 = vrot.lane.b32.xlu0 %v701, 64
      %v774 = vpop.permute.xlu0 %773
      %775 = vrot.lane.b32.xlu0 %v703, 64
      %v776 = vpop.permute.xlu0 %775
      %777 = vrot.lane.b32.xlu0 %v706, 64
      %v778 = vpop.permute.xlu0 %777
      %779 = vrot.lane.b32.xlu0 %v708, 64
      %v780 = vpop.permute.xlu0 %779
      %781 = vrot.lane.b32.xlu0 %v711, 64
      %v782 = vpop.permute.xlu0 %781
      %783 = vrot.lane.b32.xlu0 %v713, 64
      %v784 = vpop.permute.xlu0 %783
      %785 = vrot.lane.b32.xlu0 %v716, 64
      %v786 = vpop.permute.xlu0 %785
      %787 = vrot.lane.b32.xlu0 %v718, 64
      %v788 = vpop.permute.xlu0 %787
      %789 = vrot.lane.b32.xlu0 %v721, 64
      %v790 = vpop.permute.xlu0 %789
      %791 = vrot.lane.b32.xlu0 %v723, 64
      %v792 = vpop.permute.xlu0 %791
      %793 = vrot.lane.b32.xlu0 %v726, 64
      %v794 = vpop.permute.xlu0 %793
      %795 = vrot.lane.b32.xlu0 %v728, 64
      %v796 = vpop.permute.xlu0 %795
      %797 = vrot.lane.b32.xlu0 %v731, 64
      %v798 = vpop.permute.xlu0 %797
      %799 = vrot.lane.b32.xlu0 %v733, 64
      %v800 = vpop.permute.xlu0 %799
      %801 = vrot.lane.b32.xlu0 %v736, 64
      %v802 = vpop.permute.xlu0 %801
      %803 = vrot.lane.b32.xlu0 %v738, 64
      %v804 = vpop.permute.xlu0 %803
      %805 = vrot.lane.b32.xlu0 %v741, 64
      %v806 = vpop.permute.xlu0 %805
      %807 = vrot.lane.b32.xlu0 %v743, 64
      %v808 = vpop.permute.xlu0 %807
      %809 = vrot.lane.b32.xlu0 %v746, 64
      %v810 = vpop.permute.xlu0 %809
      %811 = vrot.lane.b32.xlu0 %v748, 64
      %v812 = vpop.permute.xlu0 %811
      %vm845 = vcmask 1045504
      %v846 = vrot.slane %v435, 2
      %v847 = vrot.slane %v436, 2
      %v848 = vsel %vm845, %v846, %v847
      %v849 = vrot.slane %v437, 2
      %v850 = vsel %vm845, %v847, %v849
      %v851 = vrot.slane %v438, 2
      %v852 = vrot.slane %v439, 2
      %v853 = vsel %vm845, %v851, %v852
      %v854 = vrot.slane %v440, 2
      %v855 = vsel %vm845, %v852, %v854
      %v856 = vrot.slane %v441, 2
      %v857 = vrot.slane %v442, 2
      %v858 = vsel %vm845, %v856, %v857
      %v859 = vrot.slane %v443, 2
      %v860 = vsel %vm845, %v857, %v859
      %v861 = vrot.slane %v444, 2
      %v862 = vrot.slane %v445, 2
      %v863 = vsel %vm845, %v861, %v862
      %v864 = vrot.slane %v446, 2
      %v865 = vsel %vm845, %v862, %v864
      %v866 = vrot.slane %v447, 2
      %v867 = vrot.slane %v448, 2
      %v868 = vsel %vm845, %v866, %v867
      %v869 = vrot.slane %v449, 2
      %v870 = vsel %vm845, %v867, %v869
      %v871 = vrot.slane %v450, 2
      %v872 = vrot.slane %v451, 2
      %v873 = vsel %vm845, %v871, %v872
      %v874 = vrot.slane %v452, 2
      %v875 = vsel %vm845, %v872, %v874
      %v876 = vrot.slane %v453, 2
      %v877 = vrot.slane %v454, 2
      %v878 = vsel %vm845, %v876, %v877
      %v879 = vrot.slane %v455, 2
      %v880 = vsel %vm845, %v877, %v879
      %v881 = vrot.slane %v456, 2
      %v882 = vrot.slane %v457, 2
      %v883 = vsel %vm845, %v881, %v882
      %v884 = vrot.slane %v458, 2
      %v885 = vsel %vm845, %v882, %v884
      %v886 = vrot.slane %v459, 2
      %v887 = vrot.slane %v460, 2
      %v888 = vsel %vm845, %v886, %v887
      %v889 = vrot.slane %v461, 2
      %v890 = vsel %vm845, %v887, %v889
      %v891 = vrot.slane %v462, 2
      %v892 = vrot.slane %v463, 2
      %v893 = vsel %vm845, %v891, %v892
      %v894 = vrot.slane %v464, 2
      %v895 = vsel %vm845, %v892, %v894
      %v896 = vrot.slane %v465, 2
      %v897 = vrot.slane %v466, 2
      %v898 = vsel %vm845, %v896, %v897
      %v899 = vrot.slane %v467, 2
      %v900 = vsel %vm845, %v897, %v899
      %v901 = vrot.slane %v468, 2
      %v902 = vrot.slane %v469, 2
      %v903 = vsel %vm845, %v901, %v902
      %v904 = vrot.slane %v470, 2
      %v905 = vsel %vm845, %v902, %v904
      %v906 = vrot.slane %v471, 2
      %v907 = vrot.slane %v472, 2
      %v908 = vsel %vm845, %v906, %v907
      %v909 = vrot.slane %v473, 2
      %v910 = vsel %vm845, %v907, %v909
      %v911 = vrot.slane %v474, 2
      %v912 = vrot.slane %v475, 2
      %v913 = vsel %vm845, %v911, %v912
      %v914 = vrot.slane %v476, 2
      %v915 = vsel %vm845, %v912, %v914
      %v916 = vrot.slane %v477, 2
      %v917 = vrot.slane %v478, 2
      %v918 = vsel %vm845, %v916, %v917
      %v919 = vrot.slane %v479, 2
      %v920 = vsel %vm845, %v917, %v919
      %v921 = vrot.slane %v480, 2
      %v922 = vrot.slane %v481, 2
      %v923 = vsel %vm845, %v921, %v922
      %v924 = vrot.slane %v482, 2
      %v925 = vsel %vm845, %v922, %v924
      %vm958 = vcmask 1044480
      %v959 = vrot.slane %v435, 3
      %v960 = vrot.slane %v436, 3
      %v961 = vsel %vm958, %v959, %v960
      %v962 = vrot.slane %v437, 3
      %v963 = vsel %vm958, %v960, %v962
      %v964 = vrot.slane %v438, 3
      %v965 = vrot.slane %v439, 3
      %v966 = vsel %vm958, %v964, %v965
      %v967 = vrot.slane %v440, 3
      %v968 = vsel %vm958, %v965, %v967
      %v969 = vrot.slane %v441, 3
      %v970 = vrot.slane %v442, 3
      %v971 = vsel %vm958, %v969, %v970
      %v972 = vrot.slane %v443, 3
      %v973 = vsel %vm958, %v970, %v972
      %v974 = vrot.slane %v444, 3
      %v975 = vrot.slane %v445, 3
      %v976 = vsel %vm958, %v974, %v975
      %v977 = vrot.slane %v446, 3
      %v978 = vsel %vm958, %v975, %v977
      %v979 = vrot.slane %v447, 3
      %v980 = vrot.slane %v448, 3
      %v981 = vsel %vm958, %v979, %v980
      %v982 = vrot.slane %v449, 3
      %v983 = vsel %vm958, %v980, %v982
      %v984 = vrot.slane %v450, 3
      %v985 = vrot.slane %v451, 3
      %v986 = vsel %vm958, %v984, %v985
      %v987 = vrot.slane %v452, 3
      %v988 = vsel %vm958, %v985, %v987
      %v989 = vrot.slane %v453, 3
      %v990 = vrot.slane %v454, 3
      %v991 = vsel %vm958, %v989, %v990
      %v992 = vrot.slane %v455, 3
      %v993 = vsel %vm958, %v990, %v992
      %v994 = vrot.slane %v456, 3
      %v995 = vrot.slane %v457, 3
      %v996 = vsel %vm958, %v994, %v995
      %v997 = vrot.slane %v458, 3
      %v998 = vsel %vm958, %v995, %v997
      %v999 = vrot.slane %v459, 3
      %v1000 = vrot.slane %v460, 3
      %v1001 = vsel %vm958, %v999, %v1000
      %v1002 = vrot.slane %v461, 3
      %v1003 = vsel %vm958, %v1000, %v1002
      %v1004 = vrot.slane %v462, 3
      %v1005 = vrot.slane %v463, 3
      %v1006 = vsel %vm958, %v1004, %v1005
      %v1007 = vrot.slane %v464, 3
      %v1008 = vsel %vm958, %v1005, %v1007
      %v1009 = vrot.slane %v465, 3
      %v1010 = vrot.slane %v466, 3
      %v1011 = vsel %vm958, %v1009, %v1010
      %v1012 = vrot.slane %v467, 3
      %v1013 = vsel %vm958, %v1010, %v1012
      %v1014 = vrot.slane %v468, 3
      %v1015 = vrot.slane %v469, 3
      %v1016 = vsel %vm958, %v1014, %v1015
      %v1017 = vrot.slane %v470, 3
      %v1018 = vsel %vm958, %v1015, %v1017
      %v1019 = vrot.slane %v471, 3
      %v1020 = vrot.slane %v472, 3
      %v1021 = vsel %vm958, %v1019, %v1020
      %v1022 = vrot.slane %v473, 3
      %v1023 = vsel %vm958, %v1020, %v1022
      %v1024 = vrot.slane %v474, 3
      %v1025 = vrot.slane %v475, 3
      %v1026 = vsel %vm958, %v1024, %v1025
      %v1027 = vrot.slane %v476, 3
      %v1028 = vsel %vm958, %v1025, %v1027
      %v1029 = vrot.slane %v477, 3
      %v1030 = vrot.slane %v478, 3
      %v1031 = vsel %vm958, %v1029, %v1030
      %v1032 = vrot.slane %v479, 3
      %v1033 = vsel %vm958, %v1030, %v1032
      %v1034 = vrot.slane %v480, 3
      %v1035 = vrot.slane %v481, 3
      %v1036 = vsel %vm958, %v1034, %v1035
      %v1037 = vrot.slane %v482, 3
      %v1038 = vsel %vm958, %v1035, %v1037
      %1039 = vrot.lane.b32.xlu0 %v961, 64
      %v1040 = vpop.permute.xlu0 %1039
      %1041 = vrot.lane.b32.xlu0 %v963, 64
      %v1042 = vpop.permute.xlu0 %1041
      %1043 = vrot.lane.b32.xlu0 %v966, 64
      %v1044 = vpop.permute.xlu0 %1043
      %1045 = vrot.lane.b32.xlu0 %v968, 64
      %v1046 = vpop.permute.xlu0 %1045
      %1047 = vrot.lane.b32.xlu0 %v971, 64
      %v1048 = vpop.permute.xlu0 %1047
      %1049 = vrot.lane.b32.xlu0 %v973, 64
      %v1050 = vpop.permute.xlu0 %1049
      %1051 = vrot.lane.b32.xlu0 %v976, 64
      %v1052 = vpop.permute.xlu0 %1051
      %1053 = vrot.lane.b32.xlu0 %v978, 64
      %v1054 = vpop.permute.xlu0 %1053
      %1055 = vrot.lane.b32.xlu0 %v981, 64
      %v1056 = vpop.permute.xlu0 %1055
      %1057 = vrot.lane.b32.xlu0 %v983, 64
      %v1058 = vpop.permute.xlu0 %1057
      %1059 = vrot.lane.b32.xlu0 %v986, 64
      %v1060 = vpop.permute.xlu0 %1059
      %1061 = vrot.lane.b32.xlu0 %v988, 64
      %v1062 = vpop.permute.xlu0 %1061
      %1063 = vrot.lane.b32.xlu0 %v991, 64
      %v1064 = vpop.permute.xlu0 %1063
      %1065 = vrot.lane.b32.xlu0 %v993, 64
      %v1066 = vpop.permute.xlu0 %1065
      %1067 = vrot.lane.b32.xlu0 %v996, 64
      %v1068 = vpop.permute.xlu0 %1067
      %1069 = vrot.lane.b32.xlu0 %v998, 64
      %v1070 = vpop.permute.xlu0 %1069
      %1071 = vrot.lane.b32.xlu0 %v1001, 64
      %v1072 = vpop.permute.xlu0 %1071
      %1073 = vrot.lane.b32.xlu0 %v1003, 64
      %v1074 = vpop.permute.xlu0 %1073
      %1075 = vrot.lane.b32.xlu0 %v1006, 64
      %v1076 = vpop.permute.xlu0 %1075
      %1077 = vrot.lane.b32.xlu0 %v1008, 64
      %v1078 = vpop.permute.xlu0 %1077
      %1079 = vrot.lane.b32.xlu0 %v1011, 64
      %v1080 = vpop.permute.xlu0 %1079
      %1081 = vrot.lane.b32.xlu0 %v1013, 64
      %v1082 = vpop.permute.xlu0 %1081
      %1083 = vrot.lane.b32.xlu0 %v1016, 64
      %v1084 = vpop.permute.xlu0 %1083
      %1085 = vrot.lane.b32.xlu0 %v1018, 64
      %v1086 = vpop.permute.xlu0 %1085
      %1087 = vrot.lane.b32.xlu0 %v1021, 64
      %v1088 = vpop.permute.xlu0 %1087
      %1089 = vrot.lane.b32.xlu0 %v1023, 64
      %v1090 = vpop.permute.xlu0 %1089
      %1091 = vrot.lane.b32.xlu0 %v1026, 64
      %v1092 = vpop.permute.xlu0 %1091
      %1093 = vrot.lane.b32.xlu0 %v1028, 64
      %v1094 = vpop.permute.xlu0 %1093
      %1095 = vrot.lane.b32.xlu0 %v1031, 64
      %v1096 = vpop.permute.xlu0 %1095
      %1097 = vrot.lane.b32.xlu0 %v1033, 64
      %v1098 = vpop.permute.xlu0 %1097
      %1099 = vrot.lane.b32.xlu0 %v1036, 64
      %v1100 = vpop.permute.xlu0 %1099
      %1101 = vrot.lane.b32.xlu0 %v1038, 64
      %v1102 = vpop.permute.xlu0 %1101
      %vm1135 = vcmask 523264
      %v1136 = vsel %vm1135, %v435, %v750
      %v1137 = vsel %vm1135, %v436, %v752
      %v1138 = vsel %vm1135, %v438, %v754
      %v1139 = vsel %vm1135, %v439, %v756
      %v1140 = vsel %vm1135, %v441, %v758
      %v1141 = vsel %vm1135, %v442, %v760
      %v1142 = vsel %vm1135, %v444, %v762
      %v1143 = vsel %vm1135, %v445, %v764
      %v1144 = vsel %vm1135, %v447, %v766
      %v1145 = vsel %vm1135, %v448, %v768
      %v1146 = vsel %vm1135, %v450, %v770
      %v1147 = vsel %vm1135, %v451, %v772
      %v1148 = vsel %vm1135, %v453, %v774
      %v1149 = vsel %vm1135, %v454, %v776
      %v1150 = vsel %vm1135, %v456, %v778
      %v1151 = vsel %vm1135, %v457, %v780
      %v1152 = vsel %vm1135, %v459, %v782
      %v1153 = vsel %vm1135, %v460, %v784
      %v1154 = vsel %vm1135, %v462, %v786
      %v1155 = vsel %vm1135, %v463, %v788
      %v1156 = vsel %vm1135, %v465, %v790
      %v1157 = vsel %vm1135, %v466, %v792
      %v1158 = vsel %vm1135, %v468, %v794
      %v1159 = vsel %vm1135, %v469, %v796
      %v1160 = vsel %vm1135, %v471, %v798
      %v1161 = vsel %vm1135, %v472, %v800
      %v1162 = vsel %vm1135, %v474, %v802
      %v1163 = vsel %vm1135, %v475, %v804
      %v1164 = vsel %vm1135, %v477, %v806
      %v1165 = vsel %vm1135, %v478, %v808
      %v1166 = vsel %vm1135, %v480, %v810
      %v1167 = vsel %vm1135, %v481, %v812
      %v1168 = vsel %vm1135, %v848, %v1040
      %v1169 = vsel %vm1135, %v850, %v1042
      %v1170 = vsel %vm1135, %v853, %v1044
      %v1171 = vsel %vm1135, %v855, %v1046
      %v1172 = vsel %vm1135, %v858, %v1048
      %v1173 = vsel %vm1135, %v860, %v1050
      %v1174 = vsel %vm1135, %v863, %v1052
      %v1175 = vsel %vm1135, %v865, %v1054
      %v1176 = vsel %vm1135, %v868, %v1056
      %v1177 = vsel %vm1135, %v870, %v1058
      %v1178 = vsel %vm1135, %v873, %v1060
      %v1179 = vsel %vm1135, %v875, %v1062
      %v1180 = vsel %vm1135, %v878, %v1064
      %v1181 = vsel %vm1135, %v880, %v1066
      %v1182 = vsel %vm1135, %v883, %v1068
      %v1183 = vsel %vm1135, %v885, %v1070
      %v1184 = vsel %vm1135, %v888, %v1072
      %v1185 = vsel %vm1135, %v890, %v1074
      %v1186 = vsel %vm1135, %v893, %v1076
      %v1187 = vsel %vm1135, %v895, %v1078
      %v1188 = vsel %vm1135, %v898, %v1080
      %v1189 = vsel %vm1135, %v900, %v1082
      %v1190 = vsel %vm1135, %v903, %v1084
      %v1191 = vsel %vm1135, %v905, %v1086
      %v1192 = vsel %vm1135, %v908, %v1088
      %v1193 = vsel %vm1135, %v910, %v1090
      %v1194 = vsel %vm1135, %v913, %v1092
      %v1195 = vsel %vm1135, %v915, %v1094
      %v1196 = vsel %vm1135, %v918, %v1096
      %v1197 = vsel %vm1135, %v920, %v1098
      %v1198 = vsel %vm1135, %v923, %v1100
      %v1199 = vsel %vm1135, %v925, %v1102
      %v1200 = vpack.c.bf16 %v1137, %v1136
      %v1201 = vpack.c.bf16 %v1169, %v1168
      %v1202 = vpack.c.bf16 %v1139, %v1138
      %v1203 = vpack.c.bf16 %v1171, %v1170
      %v1204 = vpack.c.bf16 %v1141, %v1140
      %v1205 = vpack.c.bf16 %v1173, %v1172
      %v1206 = vpack.c.bf16 %v1143, %v1142
      %v1207 = vpack.c.bf16 %v1175, %v1174
      %v1208 = vpack.c.bf16 %v1145, %v1144
      %v1209 = vpack.c.bf16 %v1177, %v1176
      %v1210 = vpack.c.bf16 %v1147, %v1146
      %v1211 = vpack.c.bf16 %v1179, %v1178
      %v1212 = vpack.c.bf16 %v1149, %v1148
      %v1213 = vpack.c.bf16 %v1181, %v1180
      %v1214 = vpack.c.bf16 %v1151, %v1150
      %v1215 = vpack.c.bf16 %v1183, %v1182
      %v1216 = vpack.c.bf16 %v1153, %v1152
      %v1217 = vpack.c.bf16 %v1185, %v1184
      %v1218 = vpack.c.bf16 %v1155, %v1154
      %v1219 = vpack.c.bf16 %v1187, %v1186
      %v1220 = vpack.c.bf16 %v1157, %v1156
      %v1221 = vpack.c.bf16 %v1189, %v1188
      %v1222 = vpack.c.bf16 %v1159, %v1158
      %v1223 = vpack.c.bf16 %v1191, %v1190
      %v1224 = vpack.c.bf16 %v1161, %v1160
      %v1225 = vpack.c.bf16 %v1193, %v1192
      %v1226 = vpack.c.bf16 %v1163, %v1162
      %v1227 = vpack.c.bf16 %v1195, %v1194
      %v1228 = vpack.c.bf16 %v1165, %v1164
      %v1229 = vpack.c.bf16 %v1197, %v1196
      %v1230 = vpack.c.bf16 %v1167, %v1166
      %v1231 = vpack.c.bf16 %v1199, %v1198
      %v1235 = vrot.slane %v483, 1
      %v1236 = vrot.slane %v484, 1
      %v1237 = vsel %vm668, %v1235, %v1236
      %v1238 = vrot.slane %v485, 1
      %v1239 = vsel %vm668, %v1236, %v1238
      %1240 = vrot.lane.b32.xlu0 %v1237, 64
      %v1241 = vpop.permute.xlu0 %1240
      %1242 = vrot.lane.b32.xlu0 %v1239, 64
      %v1243 = vpop.permute.xlu0 %1242
      %v1246 = vrot.slane %v483, 2
      %v1247 = vrot.slane %v484, 2
      %v1248 = vsel %vm845, %v1246, %v1247
      %v1249 = vrot.slane %v485, 2
      %v1250 = vsel %vm845, %v1247, %v1249
      %v1253 = vrot.slane %v483, 3
      %v1254 = vrot.slane %v484, 3
      %v1255 = vsel %vm958, %v1253, %v1254
      %v1256 = vrot.slane %v485, 3
      %v1257 = vsel %vm958, %v1254, %v1256
      %1258 = vrot.lane.b32.xlu0 %v1255, 64
      %v1259 = vpop.permute.xlu0 %1258
      %1260 = vrot.lane.b32.xlu0 %v1257, 64
      %v1261 = vpop.permute.xlu0 %1260
      %v1264 = vsel %vm1135, %v483, %v1241
      %v1265 = vsel %vm1135, %v484, %v1243
      %v1266 = vsel %vm1135, %v1248, %v1259
      %v1267 = vsel %vm1135, %v1250, %v1261
      %v1268 = vpack.c.bf16 %v1265, %v1264
      %v1269 = vpack.c.bf16 %v1267, %v1266
      %v1302 = vunpack.c.l.b16 %v524
      %v1303 = vunpack.c.l.b16 %v525
      %v1304 = vunpack.c.l.b16 %v526
      %v1305 = vunpack.c.l.b16 %v527
      %v1306 = vunpack.c.l.b16 %v528
      %v1307 = vunpack.c.l.b16 %v529
      %v1308 = vunpack.c.l.b16 %v530
      %v1309 = vunpack.c.l.b16 %v531
      %v1310 = vunpack.c.l.b16 %v532
      %v1311 = vunpack.c.l.b16 %v533
      %v1312 = vunpack.c.l.b16 %v534
      %v1313 = vunpack.c.l.b16 %v535
      %v1314 = vunpack.c.l.b16 %v536
      %v1315 = vunpack.c.l.b16 %v537
      %v1316 = vunpack.c.l.b16 %v538
      %v1317 = vunpack.c.l.b16 %v539
      %v1318 = vunpack.c.l.b16 %v540
      %v1319 = vunpack.c.l.b16 %v541
      %v1320 = vunpack.c.l.b16 %v542
      %v1321 = vunpack.c.l.b16 %v543
      %v1322 = vunpack.c.l.b16 %v544
      %v1323 = vunpack.c.l.b16 %v545
      %v1324 = vunpack.c.l.b16 %v546
      %v1325 = vunpack.c.l.b16 %v547
      %v1326 = vunpack.c.l.b16 %v548
      %v1327 = vunpack.c.l.b16 %v549
      %v1328 = vunpack.c.l.b16 %v550
      %v1329 = vunpack.c.l.b16 %v551
      %v1330 = vunpack.c.l.b16 %v552
      %v1331 = vunpack.c.l.b16 %v553
      %v1332 = vunpack.c.l.b16 %v554
      %v1333 = vunpack.c.l.b16 %v555
      %v1334 = vpack.c.b16 %v1303, %v1302
      %v1335 = vpack.c.b16 %v1305, %v1304
      %v1336 = vpack.c.b16 %v1307, %v1306
      %v1337 = vpack.c.b16 %v1309, %v1308
      %v1338 = vpack.c.b16 %v1311, %v1310
      %v1339 = vpack.c.b16 %v1313, %v1312
      %v1340 = vpack.c.b16 %v1315, %v1314
      %v1341 = vpack.c.b16 %v1317, %v1316
      %v1342 = vpack.c.b16 %v1319, %v1318
      %v1343 = vpack.c.b16 %v1321, %v1320
      %v1344 = vpack.c.b16 %v1323, %v1322
      %v1345 = vpack.c.b16 %v1325, %v1324
      %v1346 = vpack.c.b16 %v1327, %v1326
      %v1347 = vpack.c.b16 %v1329, %v1328
      %v1348 = vpack.c.b16 %v1331, %v1330
      %v1349 = vpack.c.b16 %v1333, %v1332
      %1366 = vmatpush.bf16.msra.mxu0 %v1341
      %1367 = vmatpush.bf16.msra.mxu0 %v1340
      %1368 = vmatpush.bf16.msra.mxu0 %v1339
      %1369 = vmatpush.bf16.msra.mxu0 %v1338
      %1370 = vmatpush.bf16.msra.mxu0 %v1337
      %1371 = vmatpush.bf16.msra.mxu0 %v1336
      %1372 = vmatpush.bf16.msra.mxu0 %v1335
      %1373 = vmatpush.bf16.msra.mxu0 %v1334
      %1374 = vmatmul.bf16.gmra.mxu0 %v1202
      %v1375 = vpop.f32.mrf.mxu0
      %v1376 = vadd.f32 0.0, %v1375
      %v1377 = vpop.f32.mrf.mxu0
      %v1378 = vadd.f32 0.0, %v1377
      %1379 = vmatmul.bf16.gmra.mxu0 %v1204
      %v1380 = vpop.f32.mrf.mxu0
      %v1381 = vadd.f32 0.0, %v1380
      %v1382 = vpop.f32.mrf.mxu0
      %v1383 = vadd.f32 0.0, %v1382
      %1384 = vmatmul.bf16.gmra.mxu0 %v1206
      %v1385 = vpop.f32.mrf.mxu0
      %v1386 = vadd.f32 0.0, %v1385
      %v1387 = vpop.f32.mrf.mxu0
      %v1388 = vadd.f32 0.0, %v1387
      %1389 = vmatmul.bf16.gmra.mxu0 %v1208
      %v1390 = vpop.f32.mrf.mxu0
      %v1391 = vadd.f32 0.0, %v1390
      %v1392 = vpop.f32.mrf.mxu0
      %v1393 = vadd.f32 0.0, %v1392
      %1394 = vmatmul.bf16.gmra.mxu0 %v1210
      %v1395 = vpop.f32.mrf.mxu0
      %v1396 = vadd.f32 0.0, %v1395
      %v1397 = vpop.f32.mrf.mxu0
      %v1398 = vadd.f32 0.0, %v1397
      %1399 = vmatmul.bf16.gmra.mxu0 %v1212
      %v1400 = vpop.f32.mrf.mxu0
      %v1401 = vadd.f32 0.0, %v1400
      %v1402 = vpop.f32.mrf.mxu0
      %v1403 = vadd.f32 0.0, %v1402
      %1404 = vmatmul.bf16.gmra.mxu0 %v1214
      %v1405 = vpop.f32.mrf.mxu0
      %v1406 = vadd.f32 0.0, %v1405
      %v1407 = vpop.f32.mrf.mxu0
      %v1408 = vadd.f32 0.0, %v1407
      %1409 = vmatmul.bf16.gmra.mxu0 %v1216
      %v1410 = vpop.f32.mrf.mxu0
      %v1411 = vadd.f32 0.0, %v1410
      %v1412 = vpop.f32.mrf.mxu0
      %v1413 = vadd.f32 0.0, %v1412
      %1414 = vmatmul.bf16.gmra.mxu0 %v1218
      %v1415 = vpop.f32.mrf.mxu0
      %v1416 = vadd.f32 0.0, %v1415
      %v1417 = vpop.f32.mrf.mxu0
      %v1418 = vadd.f32 0.0, %v1417
      %1419 = vmatmul.bf16.gmra.mxu0 %v1220
      %v1420 = vpop.f32.mrf.mxu0
      %v1421 = vadd.f32 0.0, %v1420
      %v1422 = vpop.f32.mrf.mxu0
      %v1423 = vadd.f32 0.0, %v1422
      %1424 = vmatmul.bf16.gmra.mxu0 %v1222
      %v1425 = vpop.f32.mrf.mxu0
      %v1426 = vadd.f32 0.0, %v1425
      %v1427 = vpop.f32.mrf.mxu0
      %v1428 = vadd.f32 0.0, %v1427
      %1429 = vmatmul.bf16.gmra.mxu0 %v1224
      %v1430 = vpop.f32.mrf.mxu0
      %v1431 = vadd.f32 0.0, %v1430
      %v1432 = vpop.f32.mrf.mxu0
      %v1433 = vadd.f32 0.0, %v1432
      %1434 = vmatmul.bf16.gmra.mxu0 %v1226
      %v1435 = vpop.f32.mrf.mxu0
      %v1436 = vadd.f32 0.0, %v1435
      %v1437 = vpop.f32.mrf.mxu0
      %v1438 = vadd.f32 0.0, %v1437
      %1439 = vmatmul.bf16.gmra.mxu0 %v1228
      %v1440 = vpop.f32.mrf.mxu0
      %v1441 = vadd.f32 0.0, %v1440
      %v1442 = vpop.f32.mrf.mxu0
      %v1443 = vadd.f32 0.0, %v1442
      %1444 = vmatmul.bf16.gmra.mxu0 %v1230
      %v1445 = vpop.f32.mrf.mxu0
      %v1446 = vadd.f32 0.0, %v1445
      %v1447 = vpop.f32.mrf.mxu0
      %v1448 = vadd.f32 0.0, %v1447
      %1449 = vmatmul.bf16.gmra.mxu0 %v1268
      %v1450 = vpop.f32.mrf.mxu0
      %v1451 = vadd.f32 0.0, %v1450
      %v1452 = vpop.f32.mrf.mxu0
      %v1453 = vadd.f32 0.0, %v1452
      %1454 = vdwg.mxu0
      %1455 = vmatpush.bf16.msra.mxu0 %v1349
      %1456 = vmatpush.bf16.msra.mxu0 %v1348
      %1457 = vmatpush.bf16.msra.mxu0 %v1347
      %1458 = vmatpush.bf16.msra.mxu0 %v1346
      %1459 = vmatpush.bf16.msra.mxu0 %v1345
      %1460 = vmatpush.bf16.msra.mxu0 %v1344
      %1461 = vmatpush.bf16.msra.mxu0 %v1343
      %1462 = vmatpush.bf16.msra.mxu0 %v1342
      %1463 = vmatmul.bf16.gmra.mxu0 %v1203
      %v1464 = vpop.f32.mrf.mxu0
      %v1465 = vadd.f32 %v1376, %v1464
      %v1466 = vpop.f32.mrf.mxu0
      %v1467 = vadd.f32 %v1378, %v1466
      %1468 = vmatmul.bf16.gmra.mxu0 %v1205
      %v1469 = vpop.f32.mrf.mxu0
      %v1470 = vadd.f32 %v1381, %v1469
      %v1471 = vpop.f32.mrf.mxu0
      %v1472 = vadd.f32 %v1383, %v1471
      %1473 = vmatmul.bf16.gmra.mxu0 %v1207
      %v1474 = vpop.f32.mrf.mxu0
      %v1475 = vadd.f32 %v1386, %v1474
      %v1476 = vpop.f32.mrf.mxu0
      %v1477 = vadd.f32 %v1388, %v1476
      %1478 = vmatmul.bf16.gmra.mxu0 %v1209
      %v1479 = vpop.f32.mrf.mxu0
      %v1480 = vadd.f32 %v1391, %v1479
      %v1481 = vpop.f32.mrf.mxu0
      %v1482 = vadd.f32 %v1393, %v1481
      %1483 = vmatmul.bf16.gmra.mxu0 %v1211
      %v1484 = vpop.f32.mrf.mxu0
      %v1485 = vadd.f32 %v1396, %v1484
      %v1486 = vpop.f32.mrf.mxu0
      %v1487 = vadd.f32 %v1398, %v1486
      %1488 = vmatmul.bf16.gmra.mxu0 %v1213
      %v1489 = vpop.f32.mrf.mxu0
      %v1490 = vadd.f32 %v1401, %v1489
      %v1491 = vpop.f32.mrf.mxu0
      %v1492 = vadd.f32 %v1403, %v1491
      %1493 = vmatmul.bf16.gmra.mxu0 %v1215
      %v1494 = vpop.f32.mrf.mxu0
      %v1495 = vadd.f32 %v1406, %v1494
      %v1496 = vpop.f32.mrf.mxu0
      %v1497 = vadd.f32 %v1408, %v1496
      %1498 = vmatmul.bf16.gmra.mxu0 %v1217
      %v1499 = vpop.f32.mrf.mxu0
      %v1500 = vadd.f32 %v1411, %v1499
      %v1501 = vpop.f32.mrf.mxu0
      %v1502 = vadd.f32 %v1413, %v1501
      %1503 = vmatmul.bf16.gmra.mxu0 %v1219
      %v1504 = vpop.f32.mrf.mxu0
      %v1505 = vadd.f32 %v1416, %v1504
      %v1506 = vpop.f32.mrf.mxu0
      %v1507 = vadd.f32 %v1418, %v1506
      %1508 = vmatmul.bf16.gmra.mxu0 %v1221
      %v1509 = vpop.f32.mrf.mxu0
      %v1510 = vadd.f32 %v1421, %v1509
      %v1511 = vpop.f32.mrf.mxu0
      %v1512 = vadd.f32 %v1423, %v1511
      %1513 = vmatmul.bf16.gmra.mxu0 %v1223
      %v1514 = vpop.f32.mrf.mxu0
      %v1515 = vadd.f32 %v1426, %v1514
      %v1516 = vpop.f32.mrf.mxu0
      %v1517 = vadd.f32 %v1428, %v1516
      %1518 = vmatmul.bf16.gmra.mxu0 %v1225
      %v1519 = vpop.f32.mrf.mxu0
      %v1520 = vadd.f32 %v1431, %v1519
      %v1521 = vpop.f32.mrf.mxu0
      %v1522 = vadd.f32 %v1433, %v1521
      %1523 = vmatmul.bf16.gmra.mxu0 %v1227
      %v1524 = vpop.f32.mrf.mxu0
      %v1525 = vadd.f32 %v1436, %v1524
      %v1526 = vpop.f32.mrf.mxu0
      %v1527 = vadd.f32 %v1438, %v1526
      %1528 = vmatmul.bf16.gmra.mxu0 %v1229
      %v1529 = vpop.f32.mrf.mxu0
      %v1530 = vadd.f32 %v1441, %v1529
      %v1531 = vpop.f32.mrf.mxu0
      %v1532 = vadd.f32 %v1443, %v1531
      %1533 = vmatmul.bf16.gmra.mxu0 %v1231
      %v1534 = vpop.f32.mrf.mxu0
      %v1535 = vadd.f32 %v1446, %v1534
      %v1536 = vpop.f32.mrf.mxu0
      %v1537 = vadd.f32 %v1448, %v1536
      %1538 = vmatmul.bf16.gmra.mxu0 %v1269
      %v1539 = vpop.f32.mrf.mxu0
      %v1540 = vadd.f32 %v1451, %v1539
      %v1541 = vpop.f32.mrf.mxu0
      %v1542 = vadd.f32 %v1453, %v1541
      %1543 = vdwg.mxu0
      %v1576 = vunpack.c.l.b16 %v492
      %v1577 = vunpack.c.l.b16 %v493
      %v1578 = vunpack.c.l.b16 %v494
      %v1579 = vunpack.c.l.b16 %v495
      %v1580 = vunpack.c.l.b16 %v496
      %v1581 = vunpack.c.l.b16 %v497
      %v1582 = vunpack.c.l.b16 %v498
      %v1583 = vunpack.c.l.b16 %v499
      %v1584 = vunpack.c.l.b16 %v500
      %v1585 = vunpack.c.l.b16 %v501
      %v1586 = vunpack.c.l.b16 %v502
      %v1587 = vunpack.c.l.b16 %v503
      %v1588 = vunpack.c.l.b16 %v504
      %v1589 = vunpack.c.l.b16 %v505
      %v1590 = vunpack.c.l.b16 %v506
      %v1591 = vunpack.c.l.b16 %v507
      %v1592 = vunpack.c.l.b16 %v508
      %v1593 = vunpack.c.l.b16 %v509
      %v1594 = vunpack.c.l.b16 %v510
      %v1595 = vunpack.c.l.b16 %v511
      %v1596 = vunpack.c.l.b16 %v512
      %v1597 = vunpack.c.l.b16 %v513
      %v1598 = vunpack.c.l.b16 %v514
      %v1599 = vunpack.c.l.b16 %v515
      %v1600 = vunpack.c.l.b16 %v516
      %v1601 = vunpack.c.l.b16 %v517
      %v1602 = vunpack.c.l.b16 %v518
      %v1603 = vunpack.c.l.b16 %v519
      %v1604 = vunpack.c.l.b16 %v520
      %v1605 = vunpack.c.l.b16 %v521
      %v1606 = vunpack.c.l.b16 %v522
      %v1607 = vunpack.c.l.b16 %v523
      %v1608 = vpack.c.b16 %v1577, %v1576
      %v1609 = vpack.c.b16 %v1579, %v1578
      %v1610 = vpack.c.b16 %v1581, %v1580
      %v1611 = vpack.c.b16 %v1583, %v1582
      %v1612 = vpack.c.b16 %v1585, %v1584
      %v1613 = vpack.c.b16 %v1587, %v1586
      %v1614 = vpack.c.b16 %v1589, %v1588
      %v1615 = vpack.c.b16 %v1591, %v1590
      %v1616 = vpack.c.b16 %v1593, %v1592
      %v1617 = vpack.c.b16 %v1595, %v1594
      %v1618 = vpack.c.b16 %v1597, %v1596
      %v1619 = vpack.c.b16 %v1599, %v1598
      %v1620 = vpack.c.b16 %v1601, %v1600
      %v1621 = vpack.c.b16 %v1603, %v1602
      %v1622 = vpack.c.b16 %v1605, %v1604
      %v1623 = vpack.c.b16 %v1607, %v1606
      %1640 = vmatpush.bf16.msra.mxu0 %v1615
      %1641 = vmatpush.bf16.msra.mxu0 %v1614
      %1642 = vmatpush.bf16.msra.mxu0 %v1613
      %1643 = vmatpush.bf16.msra.mxu0 %v1612
      %1644 = vmatpush.bf16.msra.mxu0 %v1611
      %1645 = vmatpush.bf16.msra.mxu0 %v1610
      %1646 = vmatpush.bf16.msra.mxu0 %v1609
      %1647 = vmatpush.bf16.msra.mxu0 %v1608
      %1648 = vmatmul.bf16.gmra.mxu0 %v1200
      %v1649 = vpop.f32.mrf.mxu0
      %v1650 = vadd.f32 %v1465, %v1649
      %v1651 = vpop.f32.mrf.mxu0
      %v1652 = vadd.f32 %v1467, %v1651
      %1653 = vmatmul.bf16.gmra.mxu0 %v1202
      %v1654 = vpop.f32.mrf.mxu0
      %v1655 = vadd.f32 %v1470, %v1654
      %v1656 = vpop.f32.mrf.mxu0
      %v1657 = vadd.f32 %v1472, %v1656
      %1658 = vmatmul.bf16.gmra.mxu0 %v1204
      %v1659 = vpop.f32.mrf.mxu0
      %v1660 = vadd.f32 %v1475, %v1659
      %v1661 = vpop.f32.mrf.mxu0
      %v1662 = vadd.f32 %v1477, %v1661
      %1663 = vmatmul.bf16.gmra.mxu0 %v1206
      %v1664 = vpop.f32.mrf.mxu0
      %v1665 = vadd.f32 %v1480, %v1664
      %v1666 = vpop.f32.mrf.mxu0
      %v1667 = vadd.f32 %v1482, %v1666
      %1668 = vmatmul.bf16.gmra.mxu0 %v1208
      %v1669 = vpop.f32.mrf.mxu0
      %v1670 = vadd.f32 %v1485, %v1669
      %v1671 = vpop.f32.mrf.mxu0
      %v1672 = vadd.f32 %v1487, %v1671
      %1673 = vmatmul.bf16.gmra.mxu0 %v1210
      %v1674 = vpop.f32.mrf.mxu0
      %v1675 = vadd.f32 %v1490, %v1674
      %v1676 = vpop.f32.mrf.mxu0
      %v1677 = vadd.f32 %v1492, %v1676
      %1678 = vmatmul.bf16.gmra.mxu0 %v1212
      %v1679 = vpop.f32.mrf.mxu0
      %v1680 = vadd.f32 %v1495, %v1679
      %v1681 = vpop.f32.mrf.mxu0
      %v1682 = vadd.f32 %v1497, %v1681
      %1683 = vmatmul.bf16.gmra.mxu0 %v1214
      %v1684 = vpop.f32.mrf.mxu0
      %v1685 = vadd.f32 %v1500, %v1684
      %v1686 = vpop.f32.mrf.mxu0
      %v1687 = vadd.f32 %v1502, %v1686
      %1688 = vmatmul.bf16.gmra.mxu0 %v1216
      %v1689 = vpop.f32.mrf.mxu0
      %v1690 = vadd.f32 %v1505, %v1689
      %v1691 = vpop.f32.mrf.mxu0
      %v1692 = vadd.f32 %v1507, %v1691
      %1693 = vmatmul.bf16.gmra.mxu0 %v1218
      %v1694 = vpop.f32.mrf.mxu0
      %v1695 = vadd.f32 %v1510, %v1694
      %v1696 = vpop.f32.mrf.mxu0
      %v1697 = vadd.f32 %v1512, %v1696
      %1698 = vmatmul.bf16.gmra.mxu0 %v1220
      %v1699 = vpop.f32.mrf.mxu0
      %v1700 = vadd.f32 %v1515, %v1699
      %v1701 = vpop.f32.mrf.mxu0
      %v1702 = vadd.f32 %v1517, %v1701
      %1703 = vmatmul.bf16.gmra.mxu0 %v1222
      %v1704 = vpop.f32.mrf.mxu0
      %v1705 = vadd.f32 %v1520, %v1704
      %v1706 = vpop.f32.mrf.mxu0
      %v1707 = vadd.f32 %v1522, %v1706
      %1708 = vmatmul.bf16.gmra.mxu0 %v1224
      %v1709 = vpop.f32.mrf.mxu0
      %v1710 = vadd.f32 %v1525, %v1709
      %v1711 = vpop.f32.mrf.mxu0
      %v1712 = vadd.f32 %v1527, %v1711
      %1713 = vmatmul.bf16.gmra.mxu0 %v1226
      %v1714 = vpop.f32.mrf.mxu0
      %v1715 = vadd.f32 %v1530, %v1714
      %v1716 = vpop.f32.mrf.mxu0
      %v1717 = vadd.f32 %v1532, %v1716
      %1718 = vmatmul.bf16.gmra.mxu0 %v1228
      %v1719 = vpop.f32.mrf.mxu0
      %v1720 = vadd.f32 %v1535, %v1719
      %v1721 = vpop.f32.mrf.mxu0
      %v1722 = vadd.f32 %v1537, %v1721
      %1723 = vmatmul.bf16.gmra.mxu0 %v1230
      %v1724 = vpop.f32.mrf.mxu0
      %v1725 = vadd.f32 %v1540, %v1724
      %v1726 = vpop.f32.mrf.mxu0
      %v1727 = vadd.f32 %v1542, %v1726
      %1728 = vdwg.mxu0
      %1729 = vmatpush.bf16.msra.mxu0 %v1623
      %1730 = vmatpush.bf16.msra.mxu0 %v1622
      %1731 = vmatpush.bf16.msra.mxu0 %v1621
      %1732 = vmatpush.bf16.msra.mxu0 %v1620
      %1733 = vmatpush.bf16.msra.mxu0 %v1619
      %1734 = vmatpush.bf16.msra.mxu0 %v1618
      %1735 = vmatpush.bf16.msra.mxu0 %v1617
      %1736 = vmatpush.bf16.msra.mxu0 %v1616
      %1737 = vmatmul.bf16.gmra.mxu0 %v1201
      %v1738 = vpop.f32.mrf.mxu0
      %v1739 = vadd.f32 %v1650, %v1738
      %v1740 = vpop.f32.mrf.mxu0
      %v1741 = vadd.f32 %v1652, %v1740
      %1742 = vmatmul.bf16.gmra.mxu0 %v1203
      %v1743 = vpop.f32.mrf.mxu0
      %v1744 = vadd.f32 %v1655, %v1743
      %v1745 = vpop.f32.mrf.mxu0
      %v1746 = vadd.f32 %v1657, %v1745
      %1747 = vmatmul.bf16.gmra.mxu0 %v1205
      %v1748 = vpop.f32.mrf.mxu0
      %v1749 = vadd.f32 %v1660, %v1748
      %v1750 = vpop.f32.mrf.mxu0
      %v1751 = vadd.f32 %v1662, %v1750
      %1752 = vmatmul.bf16.gmra.mxu0 %v1207
      %v1753 = vpop.f32.mrf.mxu0
      %v1754 = vadd.f32 %v1665, %v1753
      %v1755 = vpop.f32.mrf.mxu0
      %v1756 = vadd.f32 %v1667, %v1755
      %1757 = vmatmul.bf16.gmra.mxu0 %v1209
      %v1758 = vpop.f32.mrf.mxu0
      %v1759 = vadd.f32 %v1670, %v1758
      %v1760 = vpop.f32.mrf.mxu0
      %v1761 = vadd.f32 %v1672, %v1760
      %1762 = vmatmul.bf16.gmra.mxu0 %v1211
      %v1763 = vpop.f32.mrf.mxu0
      %v1764 = vadd.f32 %v1675, %v1763
      %v1765 = vpop.f32.mrf.mxu0
      %v1766 = vadd.f32 %v1677, %v1765
      %1767 = vmatmul.bf16.gmra.mxu0 %v1213
      %v1768 = vpop.f32.mrf.mxu0
      %v1769 = vadd.f32 %v1680, %v1768
      %v1770 = vpop.f32.mrf.mxu0
      %v1771 = vadd.f32 %v1682, %v1770
      %1772 = vmatmul.bf16.gmra.mxu0 %v1215
      %v1773 = vpop.f32.mrf.mxu0
      %v1774 = vadd.f32 %v1685, %v1773
      %v1775 = vpop.f32.mrf.mxu0
      %v1776 = vadd.f32 %v1687, %v1775
      %1777 = vmatmul.bf16.gmra.mxu0 %v1217
      %v1778 = vpop.f32.mrf.mxu0
      %v1779 = vadd.f32 %v1690, %v1778
      %v1780 = vpop.f32.mrf.mxu0
      %v1781 = vadd.f32 %v1692, %v1780
      %1782 = vmatmul.bf16.gmra.mxu0 %v1219
      %v1783 = vpop.f32.mrf.mxu0
      %v1784 = vadd.f32 %v1695, %v1783
      %v1785 = vpop.f32.mrf.mxu0
      %v1786 = vadd.f32 %v1697, %v1785
      %1787 = vmatmul.bf16.gmra.mxu0 %v1221
      %v1788 = vpop.f32.mrf.mxu0
      %v1789 = vadd.f32 %v1700, %v1788
      %v1790 = vpop.f32.mrf.mxu0
      %v1791 = vadd.f32 %v1702, %v1790
      %1792 = vmatmul.bf16.gmra.mxu0 %v1223
      %v1793 = vpop.f32.mrf.mxu0
      %v1794 = vadd.f32 %v1705, %v1793
      %v1795 = vpop.f32.mrf.mxu0
      %v1796 = vadd.f32 %v1707, %v1795
      %1797 = vmatmul.bf16.gmra.mxu0 %v1225
      %v1798 = vpop.f32.mrf.mxu0
      %v1799 = vadd.f32 %v1710, %v1798
      %v1800 = vpop.f32.mrf.mxu0
      %v1801 = vadd.f32 %v1712, %v1800
      %1802 = vmatmul.bf16.gmra.mxu0 %v1227
      %v1803 = vpop.f32.mrf.mxu0
      %v1804 = vadd.f32 %v1715, %v1803
      %v1805 = vpop.f32.mrf.mxu0
      %v1806 = vadd.f32 %v1717, %v1805
      %1807 = vmatmul.bf16.gmra.mxu0 %v1229
      %v1808 = vpop.f32.mrf.mxu0
      %v1809 = vadd.f32 %v1720, %v1808
      %v1810 = vpop.f32.mrf.mxu0
      %v1811 = vadd.f32 %v1722, %v1810
      %1812 = vmatmul.bf16.gmra.mxu0 %v1231
      %v1813 = vpop.f32.mrf.mxu0
      %v1814 = vadd.f32 %v1725, %v1813
      %v1815 = vpop.f32.mrf.mxu0
      %v1816 = vadd.f32 %v1727, %v1815
      %1817 = vdwg.mxu0
      %v1821 = vrot.slane %v486, 1
      %v1822 = vrot.slane %v487, 1
      %v1823 = vsel %vm668, %v1821, %v1822
      %v1824 = vrot.slane %v488, 1
      %v1825 = vsel %vm668, %v1822, %v1824
      %1826 = vrot.lane.b32.xlu0 %v1823, 64
      %v1827 = vpop.permute.xlu0 %1826
      %1828 = vrot.lane.b32.xlu0 %v1825, 64
      %v1829 = vpop.permute.xlu0 %1828
      %v1832 = vrot.slane %v486, 2
      %v1833 = vrot.slane %v487, 2
      %v1834 = vsel %vm845, %v1832, %v1833
      %v1835 = vrot.slane %v488, 2
      %v1836 = vsel %vm845, %v1833, %v1835
      %v1839 = vrot.slane %v486, 3
      %v1840 = vrot.slane %v487, 3
      %v1841 = vsel %vm958, %v1839, %v1840
      %v1842 = vrot.slane %v488, 3
      %v1843 = vsel %vm958, %v1840, %v1842
      %1844 = vrot.lane.b32.xlu0 %v1841, 64
      %v1845 = vpop.permute.xlu0 %1844
      %1846 = vrot.lane.b32.xlu0 %v1843, 64
      %v1847 = vpop.permute.xlu0 %1846
      %v1850 = vsel %vm1135, %v486, %v1827
      %v1851 = vsel %vm1135, %v487, %v1829
      %v1852 = vsel %vm1135, %v1834, %v1845
      %v1853 = vsel %vm1135, %v1836, %v1847
      %v1854 = vpack.c.bf16 %v1851, %v1850
      %v1855 = vpack.c.bf16 %v1853, %v1852
      %v1888 = vunpack.c.l.b16 %v556
      %v1889 = vunpack.c.l.b16 %v557
      %v1890 = vunpack.c.l.b16 %v558
      %v1891 = vunpack.c.l.b16 %v559
      %v1892 = vunpack.c.l.b16 %v560
      %v1893 = vunpack.c.l.b16 %v561
      %v1894 = vunpack.c.l.b16 %v562
      %v1895 = vunpack.c.l.b16 %v563
      %v1896 = vunpack.c.l.b16 %v564
      %v1897 = vunpack.c.l.b16 %v565
      %v1898 = vunpack.c.l.b16 %v566
      %v1899 = vunpack.c.l.b16 %v567
      %v1900 = vunpack.c.l.b16 %v568
      %v1901 = vunpack.c.l.b16 %v569
      %v1902 = vunpack.c.l.b16 %v570
      %v1903 = vunpack.c.l.b16 %v571
      %v1904 = vunpack.c.l.b16 %v572
      %v1905 = vunpack.c.l.b16 %v573
      %v1906 = vunpack.c.l.b16 %v574
      %v1907 = vunpack.c.l.b16 %v575
      %v1908 = vunpack.c.l.b16 %v576
      %v1909 = vunpack.c.l.b16 %v577
      %v1910 = vunpack.c.l.b16 %v578
      %v1911 = vunpack.c.l.b16 %v579
      %v1912 = vunpack.c.l.b16 %v580
      %v1913 = vunpack.c.l.b16 %v581
      %v1914 = vunpack.c.l.b16 %v582
      %v1915 = vunpack.c.l.b16 %v583
      %v1916 = vunpack.c.l.b16 %v584
      %v1917 = vunpack.c.l.b16 %v585
      %v1918 = vunpack.c.l.b16 %v586
      %v1919 = vunpack.c.l.b16 %v587
      %v1920 = vpack.c.b16 %v1889, %v1888
      %v1921 = vpack.c.b16 %v1891, %v1890
      %v1922 = vpack.c.b16 %v1893, %v1892
      %v1923 = vpack.c.b16 %v1895, %v1894
      %v1924 = vpack.c.b16 %v1897, %v1896
      %v1925 = vpack.c.b16 %v1899, %v1898
      %v1926 = vpack.c.b16 %v1901, %v1900
      %v1927 = vpack.c.b16 %v1903, %v1902
      %v1928 = vpack.c.b16 %v1905, %v1904
      %v1929 = vpack.c.b16 %v1907, %v1906
      %v1930 = vpack.c.b16 %v1909, %v1908
      %v1931 = vpack.c.b16 %v1911, %v1910
      %v1932 = vpack.c.b16 %v1913, %v1912
      %v1933 = vpack.c.b16 %v1915, %v1914
      %v1934 = vpack.c.b16 %v1917, %v1916
      %v1935 = vpack.c.b16 %v1919, %v1918
      %1952 = vmatpush.bf16.msra.mxu0 %v1927
      %1953 = vmatpush.bf16.msra.mxu0 %v1926
      %1954 = vmatpush.bf16.msra.mxu0 %v1925
      %1955 = vmatpush.bf16.msra.mxu0 %v1924
      %1956 = vmatpush.bf16.msra.mxu0 %v1923
      %1957 = vmatpush.bf16.msra.mxu0 %v1922
      %1958 = vmatpush.bf16.msra.mxu0 %v1921
      %1959 = vmatpush.bf16.msra.mxu0 %v1920
      %1960 = vmatmul.bf16.gmra.mxu0 %v1204
      %v1961 = vpop.f32.mrf.mxu0
      %v1962 = vadd.f32 0.0, %v1961
      %v1963 = vpop.f32.mrf.mxu0
      %v1964 = vadd.f32 0.0, %v1963
      %1965 = vmatmul.bf16.gmra.mxu0 %v1206
      %v1966 = vpop.f32.mrf.mxu0
      %v1967 = vadd.f32 0.0, %v1966
      %v1968 = vpop.f32.mrf.mxu0
      %v1969 = vadd.f32 0.0, %v1968
      %1970 = vmatmul.bf16.gmra.mxu0 %v1208
      %v1971 = vpop.f32.mrf.mxu0
      %v1972 = vadd.f32 0.0, %v1971
      %v1973 = vpop.f32.mrf.mxu0
      %v1974 = vadd.f32 0.0, %v1973
      %1975 = vmatmul.bf16.gmra.mxu0 %v1210
      %v1976 = vpop.f32.mrf.mxu0
      %v1977 = vadd.f32 0.0, %v1976
      %v1978 = vpop.f32.mrf.mxu0
      %v1979 = vadd.f32 0.0, %v1978
      %1980 = vmatmul.bf16.gmra.mxu0 %v1212
      %v1981 = vpop.f32.mrf.mxu0
      %v1982 = vadd.f32 0.0, %v1981
      %v1983 = vpop.f32.mrf.mxu0
      %v1984 = vadd.f32 0.0, %v1983
      %1985 = vmatmul.bf16.gmra.mxu0 %v1214
      %v1986 = vpop.f32.mrf.mxu0
      %v1987 = vadd.f32 0.0, %v1986
      %v1988 = vpop.f32.mrf.mxu0
      %v1989 = vadd.f32 0.0, %v1988
      %1990 = vmatmul.bf16.gmra.mxu0 %v1216
      %v1991 = vpop.f32.mrf.mxu0
      %v1992 = vadd.f32 0.0, %v1991
      %v1993 = vpop.f32.mrf.mxu0
      %v1994 = vadd.f32 0.0, %v1993
      %1995 = vmatmul.bf16.gmra.mxu0 %v1218
      %v1996 = vpop.f32.mrf.mxu0
      %v1997 = vadd.f32 0.0, %v1996
      %v1998 = vpop.f32.mrf.mxu0
      %v1999 = vadd.f32 0.0, %v1998
      %2000 = vmatmul.bf16.gmra.mxu0 %v1220
      %v2001 = vpop.f32.mrf.mxu0
      %v2002 = vadd.f32 0.0, %v2001
      %v2003 = vpop.f32.mrf.mxu0
      %v2004 = vadd.f32 0.0, %v2003
      %2005 = vmatmul.bf16.gmra.mxu0 %v1222
      %v2006 = vpop.f32.mrf.mxu0
      %v2007 = vadd.f32 0.0, %v2006
      %v2008 = vpop.f32.mrf.mxu0
      %v2009 = vadd.f32 0.0, %v2008
      %2010 = vmatmul.bf16.gmra.mxu0 %v1224
      %v2011 = vpop.f32.mrf.mxu0
      %v2012 = vadd.f32 0.0, %v2011
      %v2013 = vpop.f32.mrf.mxu0
      %v2014 = vadd.f32 0.0, %v2013
      %2015 = vmatmul.bf16.gmra.mxu0 %v1226
      %v2016 = vpop.f32.mrf.mxu0
      %v2017 = vadd.f32 0.0, %v2016
      %v2018 = vpop.f32.mrf.mxu0
      %v2019 = vadd.f32 0.0, %v2018
      %2020 = vmatmul.bf16.gmra.mxu0 %v1228
      %v2021 = vpop.f32.mrf.mxu0
      %v2022 = vadd.f32 0.0, %v2021
      %v2023 = vpop.f32.mrf.mxu0
      %v2024 = vadd.f32 0.0, %v2023
      %2025 = vmatmul.bf16.gmra.mxu0 %v1230
      %v2026 = vpop.f32.mrf.mxu0
      %v2027 = vadd.f32 0.0, %v2026
      %v2028 = vpop.f32.mrf.mxu0
      %v2029 = vadd.f32 0.0, %v2028
      %2030 = vmatmul.bf16.gmra.mxu0 %v1268
      %v2031 = vpop.f32.mrf.mxu0
      %v2032 = vadd.f32 0.0, %v2031
      %v2033 = vpop.f32.mrf.mxu0
      %v2034 = vadd.f32 0.0, %v2033
      %2035 = vmatmul.bf16.gmra.mxu0 %v1854
      %v2036 = vpop.f32.mrf.mxu0
      %v2037 = vadd.f32 0.0, %v2036
      %v2038 = vpop.f32.mrf.mxu0
      %v2039 = vadd.f32 0.0, %v2038
      %2040 = vdwg.mxu0
      %2041 = vmatpush.bf16.msra.mxu0 %v1935
      %2042 = vmatpush.bf16.msra.mxu0 %v1934
      %2043 = vmatpush.bf16.msra.mxu0 %v1933
      %2044 = vmatpush.bf16.msra.mxu0 %v1932
      %2045 = vmatpush.bf16.msra.mxu0 %v1931
      %2046 = vmatpush.bf16.msra.mxu0 %v1930
      %2047 = vmatpush.bf16.msra.mxu0 %v1929
      %2048 = vmatpush.bf16.msra.mxu0 %v1928
      %2049 = vmatmul.bf16.gmra.mxu0 %v1205
      %v2050 = vpop.f32.mrf.mxu0
      %v2051 = vadd.f32 %v1962, %v2050
      %v2052 = vpop.f32.mrf.mxu0
      %v2053 = vadd.f32 %v1964, %v2052
      %2054 = vmatmul.bf16.gmra.mxu0 %v1207
      %v2055 = vpop.f32.mrf.mxu0
      %v2056 = vadd.f32 %v1967, %v2055
      %v2057 = vpop.f32.mrf.mxu0
      %v2058 = vadd.f32 %v1969, %v2057
      %2059 = vmatmul.bf16.gmra.mxu0 %v1209
      %v2060 = vpop.f32.mrf.mxu0
      %v2061 = vadd.f32 %v1972, %v2060
      %v2062 = vpop.f32.mrf.mxu0
      %v2063 = vadd.f32 %v1974, %v2062
      %2064 = vmatmul.bf16.gmra.mxu0 %v1211
      %v2065 = vpop.f32.mrf.mxu0
      %v2066 = vadd.f32 %v1977, %v2065
      %v2067 = vpop.f32.mrf.mxu0
      %v2068 = vadd.f32 %v1979, %v2067
      %2069 = vmatmul.bf16.gmra.mxu0 %v1213
      %v2070 = vpop.f32.mrf.mxu0
      %v2071 = vadd.f32 %v1982, %v2070
      %v2072 = vpop.f32.mrf.mxu0
      %v2073 = vadd.f32 %v1984, %v2072
      %2074 = vmatmul.bf16.gmra.mxu0 %v1215
      %v2075 = vpop.f32.mrf.mxu0
      %v2076 = vadd.f32 %v1987, %v2075
      %v2077 = vpop.f32.mrf.mxu0
      %v2078 = vadd.f32 %v1989, %v2077
      %2079 = vmatmul.bf16.gmra.mxu0 %v1217
      %v2080 = vpop.f32.mrf.mxu0
      %v2081 = vadd.f32 %v1992, %v2080
      %v2082 = vpop.f32.mrf.mxu0
      %v2083 = vadd.f32 %v1994, %v2082
      %2084 = vmatmul.bf16.gmra.mxu0 %v1219
      %v2085 = vpop.f32.mrf.mxu0
      %v2086 = vadd.f32 %v1997, %v2085
      %v2087 = vpop.f32.mrf.mxu0
      %v2088 = vadd.f32 %v1999, %v2087
      %2089 = vmatmul.bf16.gmra.mxu0 %v1221
      %v2090 = vpop.f32.mrf.mxu0
      %v2091 = vadd.f32 %v2002, %v2090
      %v2092 = vpop.f32.mrf.mxu0
      %v2093 = vadd.f32 %v2004, %v2092
      %2094 = vmatmul.bf16.gmra.mxu0 %v1223
      %v2095 = vpop.f32.mrf.mxu0
      %v2096 = vadd.f32 %v2007, %v2095
      %v2097 = vpop.f32.mrf.mxu0
      %v2098 = vadd.f32 %v2009, %v2097
      %2099 = vmatmul.bf16.gmra.mxu0 %v1225
      %v2100 = vpop.f32.mrf.mxu0
      %v2101 = vadd.f32 %v2012, %v2100
      %v2102 = vpop.f32.mrf.mxu0
      %v2103 = vadd.f32 %v2014, %v2102
      %2104 = vmatmul.bf16.gmra.mxu0 %v1227
      %v2105 = vpop.f32.mrf.mxu0
      %v2106 = vadd.f32 %v2017, %v2105
      %v2107 = vpop.f32.mrf.mxu0
      %v2108 = vadd.f32 %v2019, %v2107
      %2109 = vmatmul.bf16.gmra.mxu0 %v1229
      %v2110 = vpop.f32.mrf.mxu0
      %v2111 = vadd.f32 %v2022, %v2110
      %v2112 = vpop.f32.mrf.mxu0
      %v2113 = vadd.f32 %v2024, %v2112
      %2114 = vmatmul.bf16.gmra.mxu0 %v1231
      %v2115 = vpop.f32.mrf.mxu0
      %v2116 = vadd.f32 %v2027, %v2115
      %v2117 = vpop.f32.mrf.mxu0
      %v2118 = vadd.f32 %v2029, %v2117
      %2119 = vmatmul.bf16.gmra.mxu0 %v1269
      %v2120 = vpop.f32.mrf.mxu0
      %v2121 = vadd.f32 %v2032, %v2120
      %v2122 = vpop.f32.mrf.mxu0
      %v2123 = vadd.f32 %v2034, %v2122
      %2124 = vmatmul.bf16.gmra.mxu0 %v1855
      %v2125 = vpop.f32.mrf.mxu0
      %v2126 = vadd.f32 %v2037, %v2125
      %v2127 = vpop.f32.mrf.mxu0
      %v2128 = vadd.f32 %v2039, %v2127
      %2129 = vdwg.mxu0
      %v2130 = vadd.f32 %v1739, %v2051
      %v2131 = vadd.f32 %v1741, %v2053
      %v2132 = vadd.f32 %v1744, %v2056
      %v2133 = vadd.f32 %v1746, %v2058
      %v2134 = vadd.f32 %v1749, %v2061
      %v2135 = vadd.f32 %v1751, %v2063
      %v2136 = vadd.f32 %v1754, %v2066
      %v2137 = vadd.f32 %v1756, %v2068
      %v2138 = vadd.f32 %v1759, %v2071
      %v2139 = vadd.f32 %v1761, %v2073
      %v2140 = vadd.f32 %v1764, %v2076
      %v2141 = vadd.f32 %v1766, %v2078
      %v2142 = vadd.f32 %v1769, %v2081
      %v2143 = vadd.f32 %v1771, %v2083
      %v2144 = vadd.f32 %v1774, %v2086
      %v2145 = vadd.f32 %v1776, %v2088
      %v2146 = vadd.f32 %v1779, %v2091
      %v2147 = vadd.f32 %v1781, %v2093
      %v2148 = vadd.f32 %v1784, %v2096
      %v2149 = vadd.f32 %v1786, %v2098
      %v2150 = vadd.f32 %v1789, %v2101
      %v2151 = vadd.f32 %v1791, %v2103
      %v2152 = vadd.f32 %v1794, %v2106
      %v2153 = vadd.f32 %v1796, %v2108
      %v2154 = vadd.f32 %v1799, %v2111
      %v2155 = vadd.f32 %v1801, %v2113
      %v2156 = vadd.f32 %v1804, %v2116
      %v2157 = vadd.f32 %v1806, %v2118
      %v2158 = vadd.f32 %v1809, %v2121
      %v2159 = vadd.f32 %v1811, %v2123
      %v2160 = vadd.f32 %v1814, %v2126
      %v2161 = vadd.f32 %v1816, %v2128
      %v2165 = vrot.slane %v489, 1
      %v2166 = vrot.slane %v490, 1
      %v2167 = vsel %vm668, %v2165, %v2166
      %v2168 = vrot.slane %v491, 1
      %v2169 = vsel %vm668, %v2166, %v2168
      %2170 = vrot.lane.b32.xlu0 %v2167, 64
      %v2171 = vpop.permute.xlu0 %2170
      %2172 = vrot.lane.b32.xlu0 %v2169, 64
      %v2173 = vpop.permute.xlu0 %2172
      %v2176 = vrot.slane %v489, 2
      %v2177 = vrot.slane %v490, 2
      %v2178 = vsel %vm845, %v2176, %v2177
      %v2179 = vrot.slane %v491, 2
      %v2180 = vsel %vm845, %v2177, %v2179
      %v2183 = vrot.slane %v489, 3
      %v2184 = vrot.slane %v490, 3
      %v2185 = vsel %vm958, %v2183, %v2184
      %v2186 = vrot.slane %v491, 3
      %v2187 = vsel %vm958, %v2184, %v2186
      %2188 = vrot.lane.b32.xlu0 %v2185, 64
      %v2189 = vpop.permute.xlu0 %2188
      %2190 = vrot.lane.b32.xlu0 %v2187, 64
      %v2191 = vpop.permute.xlu0 %2190
      %v2194 = vsel %vm1135, %v489, %v2171
      %v2195 = vsel %vm1135, %v490, %v2173
      %v2196 = vsel %vm1135, %v2178, %v2189
      %v2197 = vsel %vm1135, %v2180, %v2191
      %v2198 = vpack.c.bf16 %v2195, %v2194
      %v2199 = vpack.c.bf16 %v2197, %v2196
      %v2232 = vunpack.c.l.b16 %v588
      %v2233 = vunpack.c.l.b16 %v589
      %v2234 = vunpack.c.l.b16 %v590
      %v2235 = vunpack.c.l.b16 %v591
      %v2236 = vunpack.c.l.b16 %v592
      %v2237 = vunpack.c.l.b16 %v593
      %v2238 = vunpack.c.l.b16 %v594
      %v2239 = vunpack.c.l.b16 %v595
      %v2240 = vunpack.c.l.b16 %v596
      %v2241 = vunpack.c.l.b16 %v597
      %v2242 = vunpack.c.l.b16 %v598
      %v2243 = vunpack.c.l.b16 %v599
      %v2244 = vunpack.c.l.b16 %v600
      %v2245 = vunpack.c.l.b16 %v601
      %v2246 = vunpack.c.l.b16 %v602
      %v2247 = vunpack.c.l.b16 %v603
      %v2248 = vunpack.c.l.b16 %v604
      %v2249 = vunpack.c.l.b16 %v605
      %v2250 = vunpack.c.l.b16 %v606
      %v2251 = vunpack.c.l.b16 %v607
      %v2252 = vunpack.c.l.b16 %v608
      %v2253 = vunpack.c.l.b16 %v609
      %v2254 = vunpack.c.l.b16 %v610
      %v2255 = vunpack.c.l.b16 %v611
      %v2256 = vunpack.c.l.b16 %v612
      %v2257 = vunpack.c.l.b16 %v613
      %v2258 = vunpack.c.l.b16 %v614
      %v2259 = vunpack.c.l.b16 %v615
      %v2260 = vunpack.c.l.b16 %v616
      %v2261 = vunpack.c.l.b16 %v617
      %v2262 = vunpack.c.l.b16 %v618
      %v2263 = vunpack.c.l.b16 %v619
      %v2264 = vpack.c.b16 %v2233, %v2232
      %v2265 = vpack.c.b16 %v2235, %v2234
      %v2266 = vpack.c.b16 %v2237, %v2236
      %v2267 = vpack.c.b16 %v2239, %v2238
      %v2268 = vpack.c.b16 %v2241, %v2240
      %v2269 = vpack.c.b16 %v2243, %v2242
      %v2270 = vpack.c.b16 %v2245, %v2244
      %v2271 = vpack.c.b16 %v2247, %v2246
      %v2272 = vpack.c.b16 %v2249, %v2248
      %v2273 = vpack.c.b16 %v2251, %v2250
      %v2274 = vpack.c.b16 %v2253, %v2252
      %v2275 = vpack.c.b16 %v2255, %v2254
      %v2276 = vpack.c.b16 %v2257, %v2256
      %v2277 = vpack.c.b16 %v2259, %v2258
      %v2278 = vpack.c.b16 %v2261, %v2260
      %v2279 = vpack.c.b16 %v2263, %v2262
      %2296 = vmatpush.bf16.msra.mxu0 %v2271
      %2297 = vmatpush.bf16.msra.mxu0 %v2270
      %2298 = vmatpush.bf16.msra.mxu0 %v2269
      %2299 = vmatpush.bf16.msra.mxu0 %v2268
      %2300 = vmatpush.bf16.msra.mxu0 %v2267
      %2301 = vmatpush.bf16.msra.mxu0 %v2266
      %2302 = vmatpush.bf16.msra.mxu0 %v2265
      %2303 = vmatpush.bf16.msra.mxu0 %v2264
      %2304 = vmatmul.bf16.gmra.mxu0 %v1206
      %v2305 = vpop.f32.mrf.mxu0
      %v2306 = vadd.f32 0.0, %v2305
      %v2307 = vpop.f32.mrf.mxu0
      %v2308 = vadd.f32 0.0, %v2307
      %2309 = vmatmul.bf16.gmra.mxu0 %v1208
      %v2310 = vpop.f32.mrf.mxu0
      %v2311 = vadd.f32 0.0, %v2310
      %v2312 = vpop.f32.mrf.mxu0
      %v2313 = vadd.f32 0.0, %v2312
      %2314 = vmatmul.bf16.gmra.mxu0 %v1210
      %v2315 = vpop.f32.mrf.mxu0
      %v2316 = vadd.f32 0.0, %v2315
      %v2317 = vpop.f32.mrf.mxu0
      %v2318 = vadd.f32 0.0, %v2317
      %2319 = vmatmul.bf16.gmra.mxu0 %v1212
      %v2320 = vpop.f32.mrf.mxu0
      %v2321 = vadd.f32 0.0, %v2320
      %v2322 = vpop.f32.mrf.mxu0
      %v2323 = vadd.f32 0.0, %v2322
      %2324 = vmatmul.bf16.gmra.mxu0 %v1214
      %v2325 = vpop.f32.mrf.mxu0
      %v2326 = vadd.f32 0.0, %v2325
      %v2327 = vpop.f32.mrf.mxu0
      %v2328 = vadd.f32 0.0, %v2327
      %2329 = vmatmul.bf16.gmra.mxu0 %v1216
      %v2330 = vpop.f32.mrf.mxu0
      %v2331 = vadd.f32 0.0, %v2330
      %v2332 = vpop.f32.mrf.mxu0
      %v2333 = vadd.f32 0.0, %v2332
      %2334 = vmatmul.bf16.gmra.mxu0 %v1218
      %v2335 = vpop.f32.mrf.mxu0
      %v2336 = vadd.f32 0.0, %v2335
      %v2337 = vpop.f32.mrf.mxu0
      %v2338 = vadd.f32 0.0, %v2337
      %2339 = vmatmul.bf16.gmra.mxu0 %v1220
      %v2340 = vpop.f32.mrf.mxu0
      %v2341 = vadd.f32 0.0, %v2340
      %v2342 = vpop.f32.mrf.mxu0
      %v2343 = vadd.f32 0.0, %v2342
      %2344 = vmatmul.bf16.gmra.mxu0 %v1222
      %v2345 = vpop.f32.mrf.mxu0
      %v2346 = vadd.f32 0.0, %v2345
      %v2347 = vpop.f32.mrf.mxu0
      %v2348 = vadd.f32 0.0, %v2347
      %2349 = vmatmul.bf16.gmra.mxu0 %v1224
      %v2350 = vpop.f32.mrf.mxu0
      %v2351 = vadd.f32 0.0, %v2350
      %v2352 = vpop.f32.mrf.mxu0
      %v2353 = vadd.f32 0.0, %v2352
      %2354 = vmatmul.bf16.gmra.mxu0 %v1226
      %v2355 = vpop.f32.mrf.mxu0
      %v2356 = vadd.f32 0.0, %v2355
      %v2357 = vpop.f32.mrf.mxu0
      %v2358 = vadd.f32 0.0, %v2357
      %2359 = vmatmul.bf16.gmra.mxu0 %v1228
      %v2360 = vpop.f32.mrf.mxu0
      %v2361 = vadd.f32 0.0, %v2360
      %v2362 = vpop.f32.mrf.mxu0
      %v2363 = vadd.f32 0.0, %v2362
      %2364 = vmatmul.bf16.gmra.mxu0 %v1230
      %v2365 = vpop.f32.mrf.mxu0
      %v2366 = vadd.f32 0.0, %v2365
      %v2367 = vpop.f32.mrf.mxu0
      %v2368 = vadd.f32 0.0, %v2367
      %2369 = vmatmul.bf16.gmra.mxu0 %v1268
      %v2370 = vpop.f32.mrf.mxu0
      %v2371 = vadd.f32 0.0, %v2370
      %v2372 = vpop.f32.mrf.mxu0
      %v2373 = vadd.f32 0.0, %v2372
      %2374 = vmatmul.bf16.gmra.mxu0 %v1854
      %v2375 = vpop.f32.mrf.mxu0
      %v2376 = vadd.f32 0.0, %v2375
      %v2377 = vpop.f32.mrf.mxu0
      %v2378 = vadd.f32 0.0, %v2377
      %2379 = vmatmul.bf16.gmra.mxu0 %v2198
      %v2380 = vpop.f32.mrf.mxu0
      %v2381 = vadd.f32 0.0, %v2380
      %v2382 = vpop.f32.mrf.mxu0
      %v2383 = vadd.f32 0.0, %v2382
      %2384 = vdwg.mxu0
      %2385 = vmatpush.bf16.msra.mxu0 %v2279
      %2386 = vmatpush.bf16.msra.mxu0 %v2278
      %2387 = vmatpush.bf16.msra.mxu0 %v2277
      %2388 = vmatpush.bf16.msra.mxu0 %v2276
      %2389 = vmatpush.bf16.msra.mxu0 %v2275
      %2390 = vmatpush.bf16.msra.mxu0 %v2274
      %2391 = vmatpush.bf16.msra.mxu0 %v2273
      %2392 = vmatpush.bf16.msra.mxu0 %v2272
      %2393 = vmatmul.bf16.gmra.mxu0 %v1207
      %v2394 = vpop.f32.mrf.mxu0
      %v2395 = vadd.f32 %v2306, %v2394
      %v2396 = vpop.f32.mrf.mxu0
      %v2397 = vadd.f32 %v2308, %v2396
      %2398 = vmatmul.bf16.gmra.mxu0 %v1209
      %v2399 = vpop.f32.mrf.mxu0
      %v2400 = vadd.f32 %v2311, %v2399
      %v2401 = vpop.f32.mrf.mxu0
      %v2402 = vadd.f32 %v2313, %v2401
      %2403 = vmatmul.bf16.gmra.mxu0 %v1211
      %v2404 = vpop.f32.mrf.mxu0
      %v2405 = vadd.f32 %v2316, %v2404
      %v2406 = vpop.f32.mrf.mxu0
      %v2407 = vadd.f32 %v2318, %v2406
      %2408 = vmatmul.bf16.gmra.mxu0 %v1213
      %v2409 = vpop.f32.mrf.mxu0
      %v2410 = vadd.f32 %v2321, %v2409
      %v2411 = vpop.f32.mrf.mxu0
      %v2412 = vadd.f32 %v2323, %v2411
      %2413 = vmatmul.bf16.gmra.mxu0 %v1215
      %v2414 = vpop.f32.mrf.mxu0
      %v2415 = vadd.f32 %v2326, %v2414
      %v2416 = vpop.f32.mrf.mxu0
      %v2417 = vadd.f32 %v2328, %v2416
      %2418 = vmatmul.bf16.gmra.mxu0 %v1217
      %v2419 = vpop.f32.mrf.mxu0
      %v2420 = vadd.f32 %v2331, %v2419
      %v2421 = vpop.f32.mrf.mxu0
      %v2422 = vadd.f32 %v2333, %v2421
      %2423 = vmatmul.bf16.gmra.mxu0 %v1219
      %v2424 = vpop.f32.mrf.mxu0
      %v2425 = vadd.f32 %v2336, %v2424
      %v2426 = vpop.f32.mrf.mxu0
      %v2427 = vadd.f32 %v2338, %v2426
      %2428 = vmatmul.bf16.gmra.mxu0 %v1221
      %v2429 = vpop.f32.mrf.mxu0
      %v2430 = vadd.f32 %v2341, %v2429
      %v2431 = vpop.f32.mrf.mxu0
      %v2432 = vadd.f32 %v2343, %v2431
      %2433 = vmatmul.bf16.gmra.mxu0 %v1223
      %v2434 = vpop.f32.mrf.mxu0
      %v2435 = vadd.f32 %v2346, %v2434
      %v2436 = vpop.f32.mrf.mxu0
      %v2437 = vadd.f32 %v2348, %v2436
      %2438 = vmatmul.bf16.gmra.mxu0 %v1225
      %v2439 = vpop.f32.mrf.mxu0
      %v2440 = vadd.f32 %v2351, %v2439
      %v2441 = vpop.f32.mrf.mxu0
      %v2442 = vadd.f32 %v2353, %v2441
      %2443 = vmatmul.bf16.gmra.mxu0 %v1227
      %v2444 = vpop.f32.mrf.mxu0
      %v2445 = vadd.f32 %v2356, %v2444
      %v2446 = vpop.f32.mrf.mxu0
      %v2447 = vadd.f32 %v2358, %v2446
      %2448 = vmatmul.bf16.gmra.mxu0 %v1229
      %v2449 = vpop.f32.mrf.mxu0
      %v2450 = vadd.f32 %v2361, %v2449
      %v2451 = vpop.f32.mrf.mxu0
      %v2452 = vadd.f32 %v2363, %v2451
      %2453 = vmatmul.bf16.gmra.mxu0 %v1231
      %v2454 = vpop.f32.mrf.mxu0
      %v2455 = vadd.f32 %v2366, %v2454
      %v2456 = vpop.f32.mrf.mxu0
      %v2457 = vadd.f32 %v2368, %v2456
      %2458 = vmatmul.bf16.gmra.mxu0 %v1269
      %v2459 = vpop.f32.mrf.mxu0
      %v2460 = vadd.f32 %v2371, %v2459
      %v2461 = vpop.f32.mrf.mxu0
      %v2462 = vadd.f32 %v2373, %v2461
      %2463 = vmatmul.bf16.gmra.mxu0 %v1855
      %v2464 = vpop.f32.mrf.mxu0
      %v2465 = vadd.f32 %v2376, %v2464
      %v2466 = vpop.f32.mrf.mxu0
      %v2467 = vadd.f32 %v2378, %v2466
      %2468 = vmatmul.bf16.gmra.mxu0 %v2199
      %v2469 = vpop.f32.mrf.mxu0
      %v2470 = vadd.f32 %v2381, %v2469
      %v2471 = vpop.f32.mrf.mxu0
      %v2472 = vadd.f32 %v2383, %v2471
      %2473 = vdwg.mxu0
      %v2474 = vadd.f32 %v2130, %v2395
      %v2475 = vadd.f32 %v2131, %v2397
      %v2476 = vadd.f32 %v2132, %v2400
      %v2477 = vadd.f32 %v2133, %v2402
      %v2478 = vadd.f32 %v2134, %v2405
      %v2479 = vadd.f32 %v2135, %v2407
      %v2480 = vadd.f32 %v2136, %v2410
      %v2481 = vadd.f32 %v2137, %v2412
      %v2482 = vadd.f32 %v2138, %v2415
      %v2483 = vadd.f32 %v2139, %v2417
      %v2484 = vadd.f32 %v2140, %v2420
      %v2485 = vadd.f32 %v2141, %v2422
      %v2486 = vadd.f32 %v2142, %v2425
      %v2487 = vadd.f32 %v2143, %v2427
      %v2488 = vadd.f32 %v2144, %v2430
      %v2489 = vadd.f32 %v2145, %v2432
      %v2490 = vadd.f32 %v2146, %v2435
      %v2491 = vadd.f32 %v2147, %v2437
      %v2492 = vadd.f32 %v2148, %v2440
      %v2493 = vadd.f32 %v2149, %v2442
      %v2494 = vadd.f32 %v2150, %v2445
      %v2495 = vadd.f32 %v2151, %v2447
      %v2496 = vadd.f32 %v2152, %v2450
      %v2497 = vadd.f32 %v2153, %v2452
      %v2498 = vadd.f32 %v2154, %v2455
      %v2499 = vadd.f32 %v2155, %v2457
      %v2500 = vadd.f32 %v2156, %v2460
      %v2501 = vadd.f32 %v2157, %v2462
      %v2502 = vadd.f32 %v2158, %v2465
      %v2503 = vadd.f32 %v2159, %v2467
      %v2504 = vadd.f32 %v2160, %v2470
      %v2505 = vadd.f32 %v2161, %v2472
      %v2506 = vadd.f32 %v218, %v2474
      %v2507 = vadd.f32 %v219, %v2475
      %v2508 = vadd.f32 %v220, %v2476
      %v2509 = vadd.f32 %v221, %v2477
      %v2510 = vadd.f32 %v222, %v2478
      %v2511 = vadd.f32 %v223, %v2479
      %v2512 = vadd.f32 %v224, %v2480
      %v2513 = vadd.f32 %v225, %v2481
      %v2514 = vadd.f32 %v226, %v2482
      %v2515 = vadd.f32 %v227, %v2483
      %v2516 = vadd.f32 %v228, %v2484
      %v2517 = vadd.f32 %v229, %v2485
      %v2518 = vadd.f32 %v230, %v2486
      %v2519 = vadd.f32 %v231, %v2487
      %v2520 = vadd.f32 %v232, %v2488
      %v2521 = vadd.f32 %v233, %v2489
      %v2522 = vadd.f32 %v234, %v2490
      %v2523 = vadd.f32 %v235, %v2491
      %v2524 = vadd.f32 %v236, %v2492
      %v2525 = vadd.f32 %v237, %v2493
      %v2526 = vadd.f32 %v238, %v2494
      %v2527 = vadd.f32 %v239, %v2495
      %v2528 = vadd.f32 %v240, %v2496
      %v2529 = vadd.f32 %v241, %v2497
      %v2530 = vadd.f32 %v242, %v2498
      %v2531 = vadd.f32 %v243, %v2499
      %v2532 = vadd.f32 %v244, %v2500
      %v2533 = vadd.f32 %v245, %v2501
      %v2534 = vadd.f32 %v246, %v2502
      %v2535 = vadd.f32 %v247, %v2503
      %v2536 = vadd.f32 %v248, %v2504
      %v2537 = vadd.f32 %v249, %v2505
      %v2538 = vsub.f32 %v2506, %v346
      %v2539 = vsub.f32 %v2507, %v347
      %v2540 = vsub.f32 %v2508, %v348
      %v2541 = vsub.f32 %v2509, %v349
      %v2542 = vsub.f32 %v2510, %v350
      %v2543 = vsub.f32 %v2511, %v351
      %v2544 = vsub.f32 %v2512, %v352
      %v2545 = vsub.f32 %v2513, %v353
      %v2546 = vsub.f32 %v2514, %v354
      %v2547 = vsub.f32 %v2515, %v355
      %v2548 = vsub.f32 %v2516, %v356
      %v2549 = vsub.f32 %v2517, %v357
      %v2550 = vsub.f32 %v2518, %v358
      %v2551 = vsub.f32 %v2519, %v359
      %v2552 = vsub.f32 %v2520, %v360
      %v2553 = vsub.f32 %v2521, %v361
      %v2554 = vsub.f32 %v2522, %v362
      %v2555 = vsub.f32 %v2523, %v363
      %v2556 = vsub.f32 %v2524, %v364
      %v2557 = vsub.f32 %v2525, %v365
      %v2558 = vsub.f32 %v2526, %v366
      %v2559 = vsub.f32 %v2527, %v367
      %v2560 = vsub.f32 %v2528, %v368
      %v2561 = vsub.f32 %v2529, %v369
      %v2562 = vsub.f32 %v2530, %v370
      %v2563 = vsub.f32 %v2531, %v371
      %v2564 = vsub.f32 %v2532, %v372
      %v2565 = vsub.f32 %v2533, %v373
      %v2566 = vsub.f32 %v2534, %v374
      %v2567 = vsub.f32 %v2535, %v375
      %v2568 = vsub.f32 %v2536, %v376
      %v2569 = vsub.f32 %v2537, %v377
      %2570 = vst.msk [vmem:[#allocation2] sm:$0xff] %vm1135, %v2538
      %2571 = vst.msk [vmem:[#allocation2 + $0x8] sm:$0xff] %vm1135, %v2539
      %2572 = vst.msk [vmem:[#allocation2 + $0x10] sm:$0xff] %vm1135, %v2540
      %2573 = vst.msk [vmem:[#allocation2 + $0x18] sm:$0xff] %vm1135, %v2541
      %2574 = vst.msk [vmem:[#allocation2 + $0x20] sm:$0xff] %vm1135, %v2542
      %2575 = vst.msk [vmem:[#allocation2 + $0x28] sm:$0xff] %vm1135, %v2543
      %2576 = vst.msk [vmem:[#allocation2 + $0x30] sm:$0xff] %vm1135, %v2544
      %2577 = vst.msk [vmem:[#allocation2 + $0x38] sm:$0xff] %vm1135, %v2545
      %2578 = vst.msk [vmem:[#allocation2 + $0x40] sm:$0xff] %vm1135, %v2546
      %2579 = vst.msk [vmem:[#allocation2 + $0x48] sm:$0xff] %vm1135, %v2547
      %2580 = vst.msk [vmem:[#allocation2 + $0x50] sm:$0xff] %vm1135, %v2548
      %2581 = vst.msk [vmem:[#allocation2 + $0x58] sm:$0xff] %vm1135, %v2549
      %2582 = vst.msk [vmem:[#allocation2 + $0x60] sm:$0xff] %vm1135, %v2550
      %2583 = vst.msk [vmem:[#allocation2 + $0x68] sm:$0xff] %vm1135, %v2551
      %2584 = vst.msk [vmem:[#allocation2 + $0x70] sm:$0xff] %vm1135, %v2552
      %2585 = vst.msk [vmem:[#allocation2 + $0x78] sm:$0xff] %vm1135, %v2553
      %2586 = vst.msk [vmem:[#allocation2 + $0x80] sm:$0xff] %vm1135, %v2554
      %2587 = vst.msk [vmem:[#allocation2 + $0x88] sm:$0xff] %vm1135, %v2555
      %2588 = vst.msk [vmem:[#allocation2 + $0x90] sm:$0xff] %vm1135, %v2556
      %2589 = vst.msk [vmem:[#allocation2 + $0x98] sm:$0xff] %vm1135, %v2557
      %2590 = vst.msk [vmem:[#allocation2 + $0xa0] sm:$0xff] %vm1135, %v2558
      %2591 = vst.msk [vmem:[#allocation2 + $0xa8] sm:$0xff] %vm1135, %v2559
      %2592 = vst.msk [vmem:[#allocation2 + $0xb0] sm:$0xff] %vm1135, %v2560
      %2593 = vst.msk [vmem:[#allocation2 + $0xb8] sm:$0xff] %vm1135, %v2561
      %2594 = vst.msk [vmem:[#allocation2 + $0xc0] sm:$0xff] %vm1135, %v2562
      %2595 = vst.msk [vmem:[#allocation2 + $0xc8] sm:$0xff] %vm1135, %v2563
      %2596 = vst.msk [vmem:[#allocation2 + $0xd0] sm:$0xff] %vm1135, %v2564
      %2597 = vst.msk [vmem:[#allocation2 + $0xd8] sm:$0xff] %vm1135, %v2565
      %2598 = vst.msk [vmem:[#allocation2 + $0xe0] sm:$0xff] %vm1135, %v2566
      %2599 = vst.msk [vmem:[#allocation2 + $0xe8] sm:$0xff] %vm1135, %v2567
      %2600 = vst.msk [vmem:[#allocation2 + $0xf0] sm:$0xff] %vm1135, %v2568
      %2601 = vst.msk [vmem:[#allocation2 + $0xf8] sm:$0xff] %vm1135, %v2569
      %2602 = vst.msk [vmem:[#allocation3] sm:$0xff] %vm1135, %v346
      %2603 = vst.msk [vmem:[#allocation3 + $0x8] sm:$0xff] %vm1135, %v347
      %2604 = vst.msk [vmem:[#allocation3 + $0x10] sm:$0xff] %vm1135, %v348
      %2605 = vst.msk [vmem:[#allocation3 + $0x18] sm:$0xff] %vm1135, %v349
      %2606 = vst.msk [vmem:[#allocation3 + $0x20] sm:$0xff] %vm1135, %v350
      %2607 = vst.msk [vmem:[#allocation3 + $0x28] sm:$0xff] %vm1135, %v351
      %2608 = vst.msk [vmem:[#allocation3 + $0x30] sm:$0xff] %vm1135, %v352
      %2609 = vst.msk [vmem:[#allocation3 + $0x38] sm:$0xff] %vm1135, %v353
      %2610 = vst.msk [vmem:[#allocation3 + $0x40] sm:$0xff] %vm1135, %v354
      %2611 = vst.msk [vmem:[#allocation3 + $0x48] sm:$0xff] %vm1135, %v355
      %2612 = vst.msk [vmem:[#allocation3 + $0x50] sm:$0xff] %vm1135, %v356
      %2613 = vst.msk [vmem:[#allocation3 + $0x58] sm:$0xff] %vm1135, %v357
      %2614 = vst.msk [vmem:[#allocation3 + $0x60] sm:$0xff] %vm1135, %v358
      %2615 = vst.msk [vmem:[#allocation3 + $0x68] sm:$0xff] %vm1135, %v359
      %2616 = vst.msk [vmem:[#allocation3 + $0x70] sm:$0xff] %vm1135, %v360
      %2617 = vst.msk [vmem:[#allocation3 + $0x78] sm:$0xff] %vm1135, %v361
      %2618 = vst.msk [vmem:[#allocation3 + $0x80] sm:$0xff] %vm1135, %v362
      %2619 = vst.msk [vmem:[#allocation3 + $0x88] sm:$0xff] %vm1135, %v363
      %2620 = vst.msk [vmem:[#allocation3 + $0x90] sm:$0xff] %vm1135, %v364
      %2621 = vst.msk [vmem:[#allocation3 + $0x98] sm:$0xff] %vm1135, %v365
      %2622 = vst.msk [vmem:[#allocation3 + $0xa0] sm:$0xff] %vm1135, %v366
      %2623 = vst.msk [vmem:[#allocation3 + $0xa8] sm:$0xff] %vm1135, %v367
      %2624 = vst.msk [vmem:[#allocation3 + $0xb0] sm:$0xff] %vm1135, %v368
      %2625 = vst.msk [vmem:[#allocation3 + $0xb8] sm:$0xff] %vm1135, %v369
      %2626 = vst.msk [vmem:[#allocation3 + $0xc0] sm:$0xff] %vm1135, %v370
      %2627 = vst.msk [vmem:[#allocation3 + $0xc8] sm:$0xff] %vm1135, %v371
      %2628 = vst.msk [vmem:[#allocation3 + $0xd0] sm:$0xff] %vm1135, %v372
      %2629 = vst.msk [vmem:[#allocation3 + $0xd8] sm:$0xff] %vm1135, %v373
      %2630 = vst.msk [vmem:[#allocation3 + $0xe0] sm:$0xff] %vm1135, %v374
      %2631 = vst.msk [vmem:[#allocation3 + $0xe8] sm:$0xff] %vm1135, %v375
      %2632 = vst.msk [vmem:[#allocation3 + $0xf0] sm:$0xff] %vm1135, %v376
      %2633 = vst.msk [vmem:[#allocation3 + $0xf8] sm:$0xff] %vm1135, %v377
      %v2634 = vld [vmem:[#allocation3] ss:$2 sm:$0xff]
      %s2635 = scalar_lea.vmem [#allocation3], 16
      %v2636 = vld [vmem:[%s2635] ss:$2 sm:$0xff]
      %s2637 = scalar_lea.vmem [#allocation3], 32
      %v2638 = vld [vmem:[%s2637] ss:$2 sm:$0xff]
      %s2639 = scalar_lea.vmem [#allocation3], 48
      %v2640 = vld [vmem:[%s2639] ss:$2 sm:$0xff]
      %s2641 = scalar_lea.vmem [#allocation3], 64
      %v2642 = vld [vmem:[%s2641] ss:$2 sm:$0xff]
      %s2643 = scalar_lea.vmem [#allocation3], 80
      %v2644 = vld [vmem:[%s2643] ss:$2 sm:$0xff]
      %s2645 = scalar_lea.vmem [#allocation3], 96
      %v2646 = vld [vmem:[%s2645] ss:$2 sm:$0xff]
      %s2647 = scalar_lea.vmem [#allocation3], 112
      %v2648 = vld [vmem:[%s2647] ss:$2 sm:$0xff]
      %s2649 = scalar_lea.vmem [#allocation3], 128
      %v2650 = vld [vmem:[%s2649] ss:$2 sm:$0xff]
      %s2651 = scalar_lea.vmem [#allocation3], 144
      %v2652 = vld [vmem:[%s2651] ss:$2 sm:$0xff]
      %s2653 = scalar_lea.vmem [#allocation3], 160
      %v2654 = vld [vmem:[%s2653] ss:$2 sm:$0xff]
      %s2655 = scalar_lea.vmem [#allocation3], 176
      %v2656 = vld [vmem:[%s2655] ss:$2 sm:$0xff]
      %s2657 = scalar_lea.vmem [#allocation3], 192
      %v2658 = vld [vmem:[%s2657] ss:$2 sm:$0xff]
      %s2659 = scalar_lea.vmem [#allocation3], 208
      %v2660 = vld [vmem:[%s2659] ss:$2 sm:$0xff]
      %s2661 = scalar_lea.vmem [#allocation3], 224
      %v2662 = vld [vmem:[%s2661] ss:$2 sm:$0xff]
      %s2663 = scalar_lea.vmem [#allocation3], 240
      %v2664 = vld [vmem:[%s2663] ss:$2 sm:$0xff]
      %s2665 = scalar_lea.vmem [#allocation3], 1
      %v2666 = vld [vmem:[%s2665] ss:$2 sm:$0xff]
      %s2667 = scalar_lea.vmem [#allocation3], 17
      %v2668 = vld [vmem:[%s2667] ss:$2 sm:$0xff]
      %s2669 = scalar_lea.vmem [#allocation3], 33
      %v2670 = vld [vmem:[%s2669] ss:$2 sm:$0xff]
      %s2671 = scalar_lea.vmem [#allocation3], 49
      %v2672 = vld [vmem:[%s2671] ss:$2 sm:$0xff]
      %s2673 = scalar_lea.vmem [#allocation3], 65
      %v2674 = vld [vmem:[%s2673] ss:$2 sm:$0xff]
      %s2675 = scalar_lea.vmem [#allocation3], 81
      %v2676 = vld [vmem:[%s2675] ss:$2 sm:$0xff]
      %s2677 = scalar_lea.vmem [#allocation3], 97
      %v2678 = vld [vmem:[%s2677] ss:$2 sm:$0xff]
      %s2679 = scalar_lea.vmem [#allocation3], 113
      %v2680 = vld [vmem:[%s2679] ss:$2 sm:$0xff]
      %s2681 = scalar_lea.vmem [#allocation3], 129
      %v2682 = vld [vmem:[%s2681] ss:$2 sm:$0xff]
      %s2683 = scalar_lea.vmem [#allocation3], 145
      %v2684 = vld [vmem:[%s2683] ss:$2 sm:$0xff]
      %s2685 = scalar_lea.vmem [#allocation3], 161
      %v2686 = vld [vmem:[%s2685] ss:$2 sm:$0xff]
      %s2687 = scalar_lea.vmem [#allocation3], 177
      %v2688 = vld [vmem:[%s2687] ss:$2 sm:$0xff]
      %s2689 = scalar_lea.vmem [#allocation3], 193
      %v2690 = vld [vmem:[%s2689] ss:$2 sm:$0xff]
      %s2691 = scalar_lea.vmem [#allocation3], 209
      %v2692 = vld [vmem:[%s2691] ss:$2 sm:$0xff]
      %s2693 = scalar_lea.vmem [#allocation3], 225
      %v2694 = vld [vmem:[%s2693] ss:$2 sm:$0xff]
      %s2695 = scalar_lea.vmem [#allocation3], 241
      %v2696 = vld [vmem:[%s2695] ss:$2 sm:$0xff]
      %v2697 = vadd.f32 %v2634, %v2666
      %v2698 = vadd.f32 %v2636, %v2668
      %v2699 = vadd.f32 %v2638, %v2670
      %v2700 = vadd.f32 %v2640, %v2672
      %v2701 = vadd.f32 %v2642, %v2674
      %v2702 = vadd.f32 %v2644, %v2676
      %v2703 = vadd.f32 %v2646, %v2678
      %v2704 = vadd.f32 %v2648, %v2680
      %v2705 = vadd.f32 %v2650, %v2682
      %v2706 = vadd.f32 %v2652, %v2684
      %v2707 = vadd.f32 %v2654, %v2686
      %v2708 = vadd.f32 %v2656, %v2688
      %v2709 = vadd.f32 %v2658, %v2690
      %v2710 = vadd.f32 %v2660, %v2692
      %v2711 = vadd.f32 %v2662, %v2694
      %v2712 = vadd.f32 %v2664, %v2696
      %v2713 = vadd.f32 %v2697, %v2698
      %v2714 = vadd.f32 %v2699, %v2700
      %v2715 = vadd.f32 %v2701, %v2702
      %v2716 = vadd.f32 %v2703, %v2704
      %v2717 = vadd.f32 %v2705, %v2706
      %v2718 = vadd.f32 %v2707, %v2708
      %v2719 = vadd.f32 %v2709, %v2710
      %v2720 = vadd.f32 %v2711, %v2712
      %v2721 = vmul.f32 %v2713, 0.25
      %v2722 = vmul.f32 %v2714, 0.25
      %v2723 = vmul.f32 %v2715, 0.25
      %v2724 = vmul.f32 %v2716, 0.25
      %v2725 = vmul.f32 %v2717, 0.25
      %v2726 = vmul.f32 %v2718, 0.25
      %v2727 = vmul.f32 %v2719, 0.25
      %v2728 = vmul.f32 %v2720, 0.25
      %vm2729 = vcmask 519168
      %2730 = vst.msk [vmem:[%s179] sm:$0xf] %vm2729, 0
      %vm2731 = vcmask 516096
      %vm2732 = vsmask.f32 256
      %vm2733 = vmand %vm2731, %vm2732
      %v2734 = vld [vmem:[%s179 + $0x4] sm:$0x1]
      %v2735 = vsel %vm2733, 0, %v2734
      %2736 = vst [vmem:[%s179 + $0x4] sm:$0x1] %v2735
      %2737 = vst.msk [vmem:[%s179 + $0x8] sm:$0xf] %vm2729, 0
      %v2738 = vld [vmem:[%s179 + $0xc] sm:$0x1]
      %v2739 = vsel %vm2733, 0, %v2738
      %2740 = vst [vmem:[%s179 + $0xc] sm:$0x1] %v2739
      %2741 = vst.msk [vmem:[%s179 + $0x10] sm:$0xf] %vm2729, 0
      %v2742 = vld [vmem:[%s179 + $0x14] sm:$0x1]
      %v2743 = vsel %vm2733, 0, %v2742
      %2744 = vst [vmem:[%s179 + $0x14] sm:$0x1] %v2743
      %2745 = vst.msk [vmem:[%s179 + $0x18] sm:$0xf] %vm2729, 0
      %v2746 = vld [vmem:[%s179 + $0x1c] sm:$0x1]
      %v2747 = vsel %vm2733, 0, %v2746
      %2748 = vst [vmem:[%s179 + $0x1c] sm:$0x1] %v2747
      %2749 = vst.msk [vmem:[%s179 + $0x20] sm:$0xf] %vm2729, 0
      %v2750 = vld [vmem:[%s179 + $0x24] sm:$0x1]
      %v2751 = vsel %vm2733, 0, %v2750
      %2752 = vst [vmem:[%s179 + $0x24] sm:$0x1] %v2751
      %2753 = vst.msk [vmem:[%s179 + $0x28] sm:$0xf] %vm2729, 0
      %v2754 = vld [vmem:[%s179 + $0x2c] sm:$0x1]
      %v2755 = vsel %vm2733, 0, %v2754
      %2756 = vst [vmem:[%s179 + $0x2c] sm:$0x1] %v2755
      %2757 = vst.msk [vmem:[%s179 + $0x30] sm:$0xf] %vm2729, 0
      %v2758 = vld [vmem:[%s179 + $0x34] sm:$0x1]
      %v2759 = vsel %vm2733, 0, %v2758
      %2760 = vst [vmem:[%s179 + $0x34] sm:$0x1] %v2759
      %2761 = vst.msk [vmem:[%s179 + $0x38] sm:$0xf] %vm2729, 0
      %v2762 = vld [vmem:[%s179 + $0x3c] sm:$0x1]
      %v2763 = vsel %vm2733, 0, %v2762
      %2764 = vst [vmem:[%s179 + $0x3c] sm:$0x1] %v2763
      %2765 = vst.msk [vmem:[%s179 + $0x40] sm:$0xf] %vm2729, 0
      %v2766 = vld [vmem:[%s179 + $0x44] sm:$0x1]
      %v2767 = vsel %vm2733, 0, %v2766
      %2768 = vst [vmem:[%s179 + $0x44] sm:$0x1] %v2767
      %v2769 = vpack.c.bf16 %v2721, %v2721
      %v2770 = vpack.c.bf16 %v2722, %v2722
      %v2771 = vpack.c.bf16 %v2723, %v2723
      %v2772 = vpack.c.bf16 %v2724, %v2724
      %v2773 = vpack.c.bf16 %v2725, %v2725
      %v2774 = vpack.c.bf16 %v2726, %v2726
      %v2775 = vpack.c.bf16 %v2727, %v2727
      %v2776 = vpack.c.bf16 %v2728, %v2728
      %2777 = vst.msk [vmem:[%s179] sm:$0xf] %vm2729, %v2769
      %2778 = vst.msk [vmem:[%s179 + $0x8] sm:$0xf] %vm2729, %v2770
      %2779 = vst.msk [vmem:[%s179 + $0x10] sm:$0xf] %vm2729, %v2771
      %2780 = vst.msk [vmem:[%s179 + $0x18] sm:$0xf] %vm2729, %v2772
      %2781 = vst.msk [vmem:[%s179 + $0x20] sm:$0xf] %vm2729, %v2773
      %2782 = vst.msk [vmem:[%s179 + $0x28] sm:$0xf] %vm2729, %v2774
      %2783 = vst.msk [vmem:[%s179 + $0x30] sm:$0xf] %vm2729, %v2775
      %2784 = vst.msk [vmem:[%s179 + $0x38] sm:$0xf] %vm2729, %v2776
      %p2785 = scmp.lt.s32.totalorder %s18, 5
      %s2786 = scalar_select %p2785, %s18, 5
      %p2787 = scmp.lt.s32.totalorder %s17, 1
      %s2788 = scalar_select %p2787, %s17, 1
      %s2789 = smul.addr %s2788, 18
      %s2790 = smul.addr %s2786, 36
      %s2791 = sadd.s32 %s2789, %s2790
      %s2792 = smul.addr %s2791, 4
      %s2793 = scalar_lea.vmem %s2, %s2792
      // Predicated region
      $region33: #{escape_net_snn_forward.5} parent=27 // pred_check
        %p2794 = pneg %p94
      $region34: #{escape_net_snn_forward.5} parent=27 // pred_check_branch
        %2796 = sbr.rel (%p2794) target = $region36
      $region35: #{escape_net_snn_forward.5} parent=27 // pred_region
        _
      $region36: #{escape_net_snn_forward.5} parent=27 // pred_fallthru
        _
    $region28: #{escape_net_snn_forward.5} parent=5 // pred_fallthru
      _
    %p2797 = scmp.le.s32.totalorder 2, %s8
    // Predicated region
    $region37: #{escape_net_snn_forward.5} parent=5 // pred_check
      %p2798 = pneg %p2797
    $region38: #{escape_net_snn_forward.5} parent=5 // pred_check_branch
      %2800 = sbr.rel (%p2798) target = $region40
    $region39: #{escape_net_snn_forward.5} parent=5 // pred_region
      %s2801 = ssub.s32 %s8, 2
      // Predicated region
      $region41: #{escape_net_snn_forward.5} parent=39 // pred_check
        %p2802 = pneg %p100
      $region42: #{escape_net_snn_forward.5} parent=39 // pred_check_branch
        %2804 = sbr.rel (%p2802) target = $region44
      $region43: #{escape_net_snn_forward.5} parent=39 // pred_region
        %p2805 = scmp.lt.s32.totalorder %s20, 5
        %s2806 = scalar_select %p2805, %s20, 5
        %p2807 = scmp.lt.s32.totalorder %s19, 1
        %s2808 = scalar_select %p2807, %s19, 1
        %s2809 = smul.addr %s2808, 18
        %s2810 = smul.addr %s2806, 36
        %s2811 = sadd.s32 %s2809, %s2810
        %s2812 = smul.addr %s2811, 4
        %s2813 = scalar_lea.vmem %s2, %s2812
      $region44: #{escape_net_snn_forward.5} parent=39 // pred_fallthru
        _
    $region40: #{escape_net_snn_forward.5} parent=5 // pred_fallthru
      _
  $region6: #{escape_net_snn_forward.5} parent=0 // loop_footer
    %s12 = sadd.s32 1, %s8
  $region7: #{escape_net_snn_forward.5} parent=0 // loop_footer_branch
    %7 = sbr.rel target = $region3
  $region8: #{escape_net_snn_forward.5} parent=0 // loop_exit
    _

// kernel: escape_net_snn_forward.6
$region0: #{escape_net_snn_forward.6}
  #allocation0 [shape = 'u32[]', space=smem, size = 0x4, offset = 0x4, fixed_abs, tag = 'smem constant byte address 0x4 - core index']
  #allocation1 [shape = 'u32[72,128]{1,0:T(1,128)}', space=vmem, size = 0x9000, scoped, tag = 'internal scratch']
  #allocation2 [shape = 'f32[64,64]{1,0:T(8,128)}', space=vmem, size = 0x8000, scoped, tag = 'scratch operand']
  #allocation3 [shape = 'f32[64,64]{1,0:T(8,128)}', space=vmem, size = 0x8000, scoped, tag = 'scratch operand']
  %s0 = inlined_call_operand.vmem [shape: bf16[6,2,9,9,64], index: 0, kind: input, shape index: {}]
  %s1 = inlined_call_operand.vmem [shape: bf16[256,64], index: 1, kind: input, shape index: {}]
  %s2 = inlined_call_operand.vmem [shape: bf16[2,6,64,64], index: 2, kind: output, shape index: {}]
  %s3 = sld [smem:[#allocation0]]
  $region45: #{escape_net_snn_forward.6} parent=0
    _
  %s5 = ssub.s32 1, %s3
  %s6 = scalar_select 0, %s5, %s3
  loop: start=0, step=1, limit=14
  $region2: #{escape_net_snn_forward.6} parent=0 // loop_pre_header
    _
  $region3: #{escape_net_snn_forward.6} parent=0 // loop_header
    %s8 = sphi 0, %s12
    %p9 = scmp.ge.s32.totalorder %s8, 14
    %s15 = sphi 0, %s27
    %s16 = sphi 0, %s23
    %s17 = sphi 0, %s15
    %s18 = sphi 0, %s16
    %s19 = sphi 0, %s17
    %s20 = sphi 0, %s18
    %s32 = sphi 0, %s34
    %s35 = sphi 0, %s32
    %s36 = sphi 0, %s35
    %s52 = sphi 0, %s36
    %s56 = sphi 0, %s56
    %s58 = sphi 0, %s56
    %s59 = sphi 0, %s58
    %s73 = sphi 0, %s59
    %s81 = sphi 0, %s83
    %s84 = sphi 0, %s81
    %s85 = sphi 0, %s84
    %s101 = sphi 0, %s85
  $region4: #{escape_net_snn_forward.6} parent=0 // loop_header_branch
    %11 = sbr.rel (%p9) target = $region8
  $region5: #{escape_net_snn_forward.6} parent=0 // loop_body
    %s13 = ssub.s32 %s8, 1
    %s14 = ssub.s32 %s8, 2
    %s21 = sadd.s32 1, %s16
    %p22 = scmp.ge.s32.totalorder %s21, 6
    %s23 = scalar_select %p22, 0, %s21
    %s24 = sadd.s32 1, %s15
    %s25 = scalar_select %p22, %s24, %s15
    %p26 = scmp.ge.s32.totalorder %s25, 2
    %s27 = scalar_select %p26, 0, %s25
    %s28 = ssub.s32 %s16, %s23
    %s29 = ssub.s32 %s15, %s27
    %s30 = sor.u32 %s28, %s29
    %p31 = scmp.eq.s32.totalorder %s30, 0
    %s33 = sadd.s32 %s32, 1
    %s34 = scalar_select %p31, %s32, %s33
    %p37 = pneg %p31
    %p38 = scmp.eq.s32.totalorder %s8, 11
    %p39 = por %p37, %p38
    %p40 = scmp.ne.s32.totalorder %s32, %s35
    %p41 = scmp.eq.s32.totalorder %s8, 0
    %p42 = por %p40, %p41
    %p43 = scmp.ne.s32.totalorder %s32, %s35
    %p44 = scmp.eq.s32.totalorder %s13, 11
    %p45 = por %p43, %p44
    %p46 = scmp.ne.s32.totalorder %s35, %s36
    %p47 = scmp.eq.s32.totalorder %s13, 0
    %p48 = por %p46, %p47
    %p49 = scmp.ne.s32.totalorder %s35, %s36
    %p50 = scmp.eq.s32.totalorder %s14, 11
    %p51 = por %p49, %p50
    %p53 = scmp.ne.s32.totalorder %s36, %s52
    %p54 = scmp.eq.s32.totalorder %s14, 0
    %p55 = por %p53, %p54
    %s57 = sadd.s32 %s56, 1
    %p60 = scmp.eq.s32.totalorder %s8, 11
    %p61 = scmp.ne.s32.totalorder %s56, %s58
    %p62 = scmp.eq.s32.totalorder %s8, 0
    %p63 = por %p61, %p62
    %p64 = scmp.ne.s32.totalorder %s56, %s58
    %p65 = scmp.eq.s32.totalorder %s13, 11
    %p66 = por %p64, %p65
    %p67 = scmp.ne.s32.totalorder %s58, %s59
    %p68 = scmp.eq.s32.totalorder %s13, 0
    %p69 = por %p67, %p68
    %p70 = scmp.ne.s32.totalorder %s58, %s59
    %p71 = scmp.eq.s32.totalorder %s14, 11
    %p72 = por %p70, %p71
    %p74 = scmp.ne.s32.totalorder %s59, %s73
    %p75 = scmp.eq.s32.totalorder %s14, 0
    %p76 = por %p74, %p75
    %s77 = ssub.s32 %s15, %s27
    %s78 = ssub.s32 %s16, %s23
    %s79 = sor.u32 %s77, %s78
    %p80 = scmp.eq.s32.totalorder %s79, 0
    %s82 = sadd.s32 %s81, 1
    %s83 = scalar_select %p80, %s81, %s82
    %p86 = pneg %p80
    %p87 = scmp.eq.s32.totalorder %s8, 11
    %p88 = por %p86, %p87
    %p89 = scmp.ne.s32.totalorder %s81, %s84
    %p90 = scmp.eq.s32.totalorder %s8, 0
    %p91 = por %p89, %p90
    %p92 = scmp.ne.s32.totalorder %s81, %s84
    %p93 = scmp.eq.s32.totalorder %s13, 11
    %p94 = por %p92, %p93
    %p95 = scmp.ne.s32.totalorder %s84, %s85
    %p96 = scmp.eq.s32.totalorder %s13, 0
    %p97 = por %p95, %p96
    %p98 = scmp.ne.s32.totalorder %s84, %s85
    %p99 = scmp.eq.s32.totalorder %s14, 11
    %p100 = por %p98, %p99
    %p102 = scmp.ne.s32.totalorder %s85, %s101
    %p103 = scmp.eq.s32.totalorder %s14, 0
    %p104 = por %p102, %p103
    %p105 = scmp.le.s32.totalorder 1, %s8
    %p106 = scmp.lt.s32.totalorder %s8, 13
    %p107 = pnand %p105, %p106
    %p108 = pneg %p107
    // Predicated region
    $region9: #{escape_net_snn_forward.6} parent=5 // pred_check
      _
    $region10: #{escape_net_snn_forward.6} parent=5 // pred_check_branch
      %110 = sbr.rel (%p107) target = $region12
    $region11: #{escape_net_snn_forward.6} parent=5 // pred_region
      %s111 = ssub.s32 %s8, 1
      // Predicated region
      $region13: #{escape_net_snn_forward.6} parent=11 // pred_check
        %p112 = pneg %p69
      $region14: #{escape_net_snn_forward.6} parent=11 // pred_check_branch
        %114 = sbr.rel (%p112) target = $region16
      $region15: #{escape_net_snn_forward.6} parent=11 // pred_region
        _
      $region16: #{escape_net_snn_forward.6} parent=11 // pred_fallthru
        _
    $region12: #{escape_net_snn_forward.6} parent=5 // pred_fallthru
      _
    %p115 = scmp.lt.s32.totalorder %s8, 12
    // Predicated region
    $region17: #{escape_net_snn_forward.6} parent=5 // pred_check
      %p116 = pneg %p115
    $region18: #{escape_net_snn_forward.6} parent=5 // pred_check_branch
      %118 = sbr.rel (%p116) target = $region20
    $region19: #{escape_net_snn_forward.6} parent=5 // pred_region
      // Predicated region
      $region21: #{escape_net_snn_forward.6} parent=19 // pred_check
        %p119 = pneg %p42
      $region22: #{escape_net_snn_forward.6} parent=19 // pred_check_branch
        %121 = sbr.rel (%p119) target = $region24
      $region23: #{escape_net_snn_forward.6} parent=19 // pred_region
        %p122 = scmp.lt.s32.totalorder %s16, 5
        %s123 = scalar_select %p122, %s16, 5
        %p124 = scmp.lt.s32.totalorder %s15, 1
        %s125 = scalar_select %p124, %s15, 1
        %s126 = smul.addr %s125, 18
        %s127 = smul.addr %s123, 36
        %s128 = sadd.s32 %s126, %s127
        %s129 = smul.addr %s128, 4
        %s130 = scalar_lea.vmem %s0, %s129
      $region24: #{escape_net_snn_forward.6} parent=19 // pred_fallthru
        _
    $region20: #{escape_net_snn_forward.6} parent=5 // pred_fallthru
      _
    %p131 = scmp.le.s32.totalorder 1, %s8
    %p132 = scmp.lt.s32.totalorder %s8, 13
    %p133 = pnand %p131, %p132
    %p134 = pneg %p133
    // Predicated region
    $region25: #{escape_net_snn_forward.6} parent=5 // pred_check
      _
    $region26: #{escape_net_snn_forward.6} parent=5 // pred_check_branch
      %136 = sbr.rel (%p133) target = $region28
    $region27: #{escape_net_snn_forward.6} parent=5 // pred_region
      %s137 = ssub.s32 %s8, 1
      %p138 = scmp.lt.s32.totalorder %s18, 5
      %s139 = scalar_select %p138, %s18, 5
      %p140 = scmp.lt.s32.totalorder %s17, 1
      %s141 = scalar_select %p140, %s17, 1
      %s142 = smul.addr %s141, 18
      %s143 = smul.addr %s139, 36
      %s144 = sadd.s32 %s142, %s143
      %s145 = smul.addr %s144, 4
      %s146 = scalar_lea.vmem %s0, %s145
      %p147 = pneg %p48
      %p148 = pneg %p45
      %p149 = pneg %p69
      %p150 = pneg %p66
      %p151 = pneg %p97
      %p152 = pneg %p94
      %p153 = scmp.lt.s32.totalorder %s17, 1
      %s154 = scalar_select %p153, %s17, 1
      %p155 = scmp.lt.s32.totalorder %s18, 5
      %s156 = scalar_select %p155, %s18, 5
      %s157 = smul.addr %s156, 8
      %s158 = smul.addr %s154, 48
      %s159 = sadd.s32 %s157, %s158
      %s160 = smul.addr %s159, 4
      %s161 = scalar_lea.vmem %s2, %s160
      %p162 = scmp.lt.s32.totalorder %s18, 5
      %s163 = scalar_select %p162, %s18, 5
      %p164 = scmp.lt.s32.totalorder %s17, 1
      %s165 = scalar_select %p164, %s17, 1
      %s166 = smul.addr %s165, 18
      %s167 = smul.addr %s163, 36
      %s168 = sadd.s32 %s166, %s167
      %s169 = smul.addr %s168, 4
      %s170 = scalar_lea.vmem %s0, %s169
      %p171 = scmp.lt.s32.totalorder %s17, 1
      %s172 = scalar_select %p171, %s17, 1
      %p173 = scmp.lt.s32.totalorder %s18, 5
      %s174 = scalar_select %p173, %s18, 5
      %s175 = smul.addr %s174, 8
      %s176 = smul.addr %s172, 48
      %s177 = sadd.s32 %s175, %s176
      %s178 = smul.addr %s177, 4
      %s179 = scalar_lea.vmem %s2, %s178
      %p180 = scmp.eq.s32.totalorder %s18, 0
      // Predicated region
      $region29: #{escape_net_snn_forward.6} parent=27 // pred_check
        %p181 = pneg %p180
      $region30: #{escape_net_snn_forward.6} parent=27 // pred_check_branch
        %183 = sbr.rel (%p181) target = $region32
      $region31: #{escape_net_snn_forward.6} parent=27 // pred_region
        %vm184 = vcmask 523264
        %185 = vst.msk [vmem:[#allocation2] sm:$0xff] %vm184, 0.0
        %186 = vst.msk [vmem:[#allocation2 + $0x8] sm:$0xff] %vm184, 0.0
        %187 = vst.msk [vmem:[#allocation2 + $0x10] sm:$0xff] %vm184, 0.0
        %188 = vst.msk [vmem:[#allocation2 + $0x18] sm:$0xff] %vm184, 0.0
        %189 = vst.msk [vmem:[#allocation2 + $0x20] sm:$0xff] %vm184, 0.0
        %190 = vst.msk [vmem:[#allocation2 + $0x28] sm:$0xff] %vm184, 0.0
        %191 = vst.msk [vmem:[#allocation2 + $0x30] sm:$0xff] %vm184, 0.0
        %192 = vst.msk [vmem:[#allocation2 + $0x38] sm:$0xff] %vm184, 0.0
      $region32: #{escape_net_snn_forward.6} parent=27 // pred_fallthru
        _
      %v193 = vld [vmem:[#allocation2] sm:$0xff]
      %v194 = vld [vmem:[#allocation2 + $0x8] sm:$0xff]
      %v195 = vld [vmem:[#allocation2 + $0x10] sm:$0xff]
      %v196 = vld [vmem:[#allocation2 + $0x18] sm:$0xff]
      %v197 = vld [vmem:[#allocation2 + $0x20] sm:$0xff]
      %v198 = vld [vmem:[#allocation2 + $0x28] sm:$0xff]
      %v199 = vld [vmem:[#allocation2 + $0x30] sm:$0xff]
      %v200 = vld [vmem:[#allocation2 + $0x38] sm:$0xff]
      %v201 = vsub.f32 %v193, 1.0
      %v202 = vsub.f32 %v194, 1.0
      %v203 = vsub.f32 %v195, 1.0
      %v204 = vsub.f32 %v196, 1.0
      %v205 = vsub.f32 %v197, 1.0
      %v206 = vsub.f32 %v198, 1.0
      %v207 = vsub.f32 %v199, 1.0
      %v208 = vsub.f32 %v200, 1.0
      %vm209 = vcmp.gt.f32.partialorder %v201, 0.0
      %vm210 = vcmp.gt.f32.partialorder %v202, 0.0
      %vm211 = vcmp.gt.f32.partialorder %v203, 0.0
      %vm212 = vcmp.gt.f32.partialorder %v204, 0.0
      %vm213 = vcmp.gt.f32.partialorder %v205, 0.0
      %vm214 = vcmp.gt.f32.partialorder %v206, 0.0
      %vm215 = vcmp.gt.f32.partialorder %v207, 0.0
      %vm216 = vcmp.gt.f32.partialorder %v208, 0.0
      %v217 = vsel %vm209, 1, 0
      %v218 = vsel %vm210, 1, 0
      %v219 = vsel %vm211, 1, 0
      %v220 = vsel %vm212, 1, 0
      %v221 = vsel %vm213, 1, 0
      %v222 = vsel %vm214, 1, 0
      %v223 = vsel %vm215, 1, 0
      %v224 = vsel %vm216, 1, 0
      %v225 = vcvt.s32.f32 %v217
      %v226 = vcvt.s32.f32 %v218
      %v227 = vcvt.s32.f32 %v219
      %v228 = vcvt.s32.f32 %v220
      %v229 = vcvt.s32.f32 %v221
      %v230 = vcvt.s32.f32 %v222
      %v231 = vcvt.s32.f32 %v223
      %v232 = vcvt.s32.f32 %v224
      %v233 = vld [vmem:[%s170] sm:$0xf]
      %v234 = vld [vmem:[%s170 + $0x4] sm:$0x1]
      %v235 = vld [vmem:[%s170 + $0x8] sm:$0xf]
      %v236 = vld [vmem:[%s170 + $0xc] sm:$0x1]
      %v237 = vld [vmem:[%s170 + $0x10] sm:$0xf]
      %v238 = vld [vmem:[%s170 + $0x14] sm:$0x1]
      %v239 = vld [vmem:[%s170 + $0x18] sm:$0xf]
      %v240 = vld [vmem:[%s170 + $0x1c] sm:$0x1]
      %v241 = vld [vmem:[%s170 + $0x20] sm:$0xf]
      %v242 = vld [vmem:[%s170 + $0x24] sm:$0x1]
      %v243 = vld [vmem:[%s170 + $0x28] sm:$0xf]
      %v244 = vld [vmem:[%s170 + $0x2c] sm:$0x1]
      %v245 = vld [vmem:[%s170 + $0x30] sm:$0xf]
      %v246 = vld [vmem:[%s170 + $0x34] sm:$0x1]
      %v247 = vld [vmem:[%s170 + $0x38] sm:$0xf]
      %v248 = vld [vmem:[%s170 + $0x3c] sm:$0x1]
      %v249 = vld [vmem:[%s170 + $0x40] sm:$0xf]
      %v250 = vld [vmem:[%s170 + $0x44] sm:$0x1]
      %v251 = vunpack.c.l.bf16 %v233
      %v252 = vunpack.c.l.bf16 %v234
      %v253 = vunpack.c.l.bf16 %v235
      %v254 = vunpack.c.l.bf16 %v236
      %v255 = vunpack.c.l.bf16 %v237
      %v256 = vunpack.c.l.bf16 %v238
      %v257 = vunpack.c.l.bf16 %v239
      %v258 = vunpack.c.l.bf16 %v240
      %v259 = vunpack.c.l.bf16 %v241
      %v260 = vunpack.c.l.bf16 %v242
      %v261 = vunpack.c.l.bf16 %v243
      %v262 = vunpack.c.l.bf16 %v244
      %v263 = vunpack.c.l.bf16 %v245
      %v264 = vunpack.c.l.bf16 %v246
      %v265 = vunpack.c.l.bf16 %v247
      %v266 = vunpack.c.l.bf16 %v248
      %v267 = vunpack.c.l.bf16 %v249
      %v268 = vunpack.c.l.bf16 %v250
      %v269 = vld [vmem:[%s1] sm:$0xf]
      %v270 = vld [vmem:[%s1 + $0x4] sm:$0xf]
      %v271 = vld [vmem:[%s1 + $0x8] sm:$0xf]
      %v272 = vld [vmem:[%s1 + $0xc] sm:$0xf]
      %v273 = vld [vmem:[%s1 + $0x10] sm:$0xf]
      %v274 = vld [vmem:[%s1 + $0x14] sm:$0xf]
      %v275 = vld [vmem:[%s1 + $0x18] sm:$0xf]
      %v276 = vld [vmem:[%s1 + $0x1c] sm:$0xf]
      %v277 = vld [vmem:[%s1 + $0x20] sm:$0xf]
      %v278 = vld [vmem:[%s1 + $0x24] sm:$0xf]
      %v279 = vld [vmem:[%s1 + $0x28] sm:$0xf]
      %v280 = vld [vmem:[%s1 + $0x2c] sm:$0xf]
      %v281 = vld [vmem:[%s1 + $0x30] sm:$0xf]
      %v282 = vld [vmem:[%s1 + $0x34] sm:$0xf]
      %v283 = vld [vmem:[%s1 + $0x38] sm:$0xf]
      %v284 = vld [vmem:[%s1 + $0x3c] sm:$0xf]
      %v285 = vld [vmem:[%s1 + $0x40] sm:$0xf]
      %v286 = vld [vmem:[%s1 + $0x44] sm:$0xf]
      %v287 = vld [vmem:[%s1 + $0x48] sm:$0xf]
      %v288 = vld [vmem:[%s1 + $0x4c] sm:$0xf]
      %v289 = vld [vmem:[%s1 + $0x50] sm:$0xf]
      %v290 = vld [vmem:[%s1 + $0x54] sm:$0xf]
      %v291 = vld [vmem:[%s1 + $0x58] sm:$0xf]
      %v292 = vld [vmem:[%s1 + $0x5c] sm:$0xf]
      %v293 = vld [vmem:[%s1 + $0x60] sm:$0xf]
      %v294 = vld [vmem:[%s1 + $0x64] sm:$0xf]
      %v295 = vld [vmem:[%s1 + $0x68] sm:$0xf]
      %v296 = vld [vmem:[%s1 + $0x6c] sm:$0xf]
      %v297 = vld [vmem:[%s1 + $0x70] sm:$0xf]
      %v298 = vld [vmem:[%s1 + $0x74] sm:$0xf]
      %v299 = vld [vmem:[%s1 + $0x78] sm:$0xf]
      %v300 = vld [vmem:[%s1 + $0x7c] sm:$0xf]
      %vm317 = vcmask 1046528
      %v318 = vrot.slane %v251, 1
      %v319 = vrot.slane %v252, 1
      %v320 = vsel %vm317, %v318, %v319
      %v321 = vrot.slane %v253, 1
      %v322 = vrot.slane %v254, 1
      %v323 = vsel %vm317, %v321, %v322
      %v324 = vrot.slane %v255, 1
      %v325 = vrot.slane %v256, 1
      %v326 = vsel %vm317, %v324, %v325
      %v327 = vrot.slane %v257, 1
      %v328 = vrot.slane %v258, 1
      %v329 = vsel %vm317, %v327, %v328
      %v330 = vrot.slane %v259, 1
      %v331 = vrot.slane %v260, 1
      %v332 = vsel %vm317, %v330, %v331
      %v333 = vrot.slane %v261, 1
      %v334 = vrot.slane %v262, 1
      %v335 = vsel %vm317, %v333, %v334
      %v336 = vrot.slane %v263, 1
      %v337 = vrot.slane %v264, 1
      %v338 = vsel %vm317, %v336, %v337
      %v339 = vrot.slane %v265, 1
      %v340 = vrot.slane %v266, 1
      %v341 = vsel %vm317, %v339, %v340
      %342 = vrot.lane.b32.xlu0 %v320, 64
      %v343 = vpop.permute.xlu0 %342
      %344 = vrot.lane.b32.xlu0 %v323, 64
      %v345 = vpop.permute.xlu0 %344
      %346 = vrot.lane.b32.xlu0 %v326, 64
      %v347 = vpop.permute.xlu0 %346
      %348 = vrot.lane.b32.xlu0 %v329, 64
      %v349 = vpop.permute.xlu0 %348
      %350 = vrot.lane.b32.xlu0 %v332, 64
      %v351 = vpop.permute.xlu0 %350
      %352 = vrot.lane.b32.xlu0 %v335, 64
      %v353 = vpop.permute.xlu0 %352
      %354 = vrot.lane.b32.xlu0 %v338, 64
      %v355 = vpop.permute.xlu0 %354
      %356 = vrot.lane.b32.xlu0 %v341, 64
      %v357 = vpop.permute.xlu0 %356
      %vm366 = vcmask 523264
      %v367 = vsel %vm366, %v251, %v343
      %v368 = vsel %vm366, %v253, %v345
      %v369 = vsel %vm366, %v255, %v347
      %v370 = vsel %vm366, %v257, %v349
      %v371 = vsel %vm366, %v259, %v351
      %v372 = vsel %vm366, %v261, %v353
      %v373 = vsel %vm366, %v263, %v355
      %v374 = vsel %vm366, %v265, %v357
      %v375 = vpack.c.bf16 %v368, %v367
      %v376 = vpack.c.bf16 %v370, %v369
      %v377 = vpack.c.bf16 %v372, %v371
      %v378 = vpack.c.bf16 %v374, %v373
      %v381 = vrot.slane %v267, 1
      %v382 = vrot.slane %v268, 1
      %v383 = vsel %vm317, %v381, %v382
      %384 = vrot.lane.b32.xlu0 %v383, 64
      %v385 = vpop.permute.xlu0 %384
      %v387 = vsel %vm366, %v267, %v385
      %v388 = vpack.c.bf16 %v369, %v368
      %v389 = vpack.c.bf16 %v371, %v370
      %v390 = vpack.c.bf16 %v373, %v372
      %v391 = vpack.c.bf16 %v387, %v374
      %v408 = vunpack.c.l.b16 %v285
      %v409 = vunpack.c.l.b16 %v286
      %v410 = vunpack.c.l.b16 %v287
      %v411 = vunpack.c.l.b16 %v288
      %v412 = vunpack.c.l.b16 %v289
      %v413 = vunpack.c.l.b16 %v290
      %v414 = vunpack.c.l.b16 %v291
      %v415 = vunpack.c.l.b16 %v292
      %v416 = vunpack.c.l.b16 %v293
      %v417 = vunpack.c.l.b16 %v294
      %v418 = vunpack.c.l.b16 %v295
      %v419 = vunpack.c.l.b16 %v296
      %v420 = vunpack.c.l.b16 %v297
      %v421 = vunpack.c.l.b16 %v298
      %v422 = vunpack.c.l.b16 %v299
      %v423 = vunpack.c.l.b16 %v300
      %v424 = vpack.c.b16 %v409, %v408
      %v425 = vpack.c.b16 %v411, %v410
      %v426 = vpack.c.b16 %v413, %v412
      %v427 = vpack.c.b16 %v415, %v414
      %v428 = vpack.c.b16 %v417, %v416
      %v429 = vpack.c.b16 %v419, %v418
      %v430 = vpack.c.b16 %v421, %v420
      %v431 = vpack.c.b16 %v423, %v422
      %440 = vmatpush.bf16.msra.mxu0 %v431
      %441 = vmatpush.bf16.msra.mxu0 %v430
      %442 = vmatpush.bf16.msra.mxu0 %v429
      %443 = vmatpush.bf16.msra.mxu0 %v428
      %444 = vmatpush.bf16.msra.mxu0 %v427
      %445 = vmatpush.bf16.msra.mxu0 %v426
      %446 = vmatpush.bf16.msra.mxu0 %v425
      %447 = vmatpush.bf16.msra.mxu0 %v424
      %448 = vmatmul.bf16.gmra.mxu0 %v388
      %v449 = vpop.f32.mrf.mxu0
      %v450 = vadd.f32 0.0, %v449
      %v451 = vpop.f32.mrf.mxu0
      %v452 = vadd.f32 0.0, %v451
      %453 = vmatmul.bf16.gmra.mxu0 %v389
      %v454 = vpop.f32.mrf.mxu0
      %v455 = vadd.f32 0.0, %v454
      %v456 = vpop.f32.mrf.mxu0
      %v457 = vadd.f32 0.0, %v456
      %458 = vmatmul.bf16.gmra.mxu0 %v390
      %v459 = vpop.f32.mrf.mxu0
      %v460 = vadd.f32 0.0, %v459
      %v461 = vpop.f32.mrf.mxu0
      %v462 = vadd.f32 0.0, %v461
      %463 = vmatmul.bf16.gmra.mxu0 %v391
      %v464 = vpop.f32.mrf.mxu0
      %v465 = vadd.f32 0.0, %v464
      %v466 = vpop.f32.mrf.mxu0
      %v467 = vadd.f32 0.0, %v466
      %468 = vdwg.mxu0
      %v485 = vunpack.c.l.b16 %v269
      %v486 = vunpack.c.l.b16 %v270
      %v487 = vunpack.c.l.b16 %v271
      %v488 = vunpack.c.l.b16 %v272
      %v489 = vunpack.c.l.b16 %v273
      %v490 = vunpack.c.l.b16 %v274
      %v491 = vunpack.c.l.b16 %v275
      %v492 = vunpack.c.l.b16 %v276
      %v493 = vunpack.c.l.b16 %v277
      %v494 = vunpack.c.l.b16 %v278
      %v495 = vunpack.c.l.b16 %v279
      %v496 = vunpack.c.l.b16 %v280
      %v497 = vunpack.c.l.b16 %v281
      %v498 = vunpack.c.l.b16 %v282
      %v499 = vunpack.c.l.b16 %v283
      %v500 = vunpack.c.l.b16 %v284
      %v501 = vpack.c.b16 %v486, %v485
      %v502 = vpack.c.b16 %v488, %v487
      %v503 = vpack.c.b16 %v490, %v489
      %v504 = vpack.c.b16 %v492, %v491
      %v505 = vpack.c.b16 %v494, %v493
      %v506 = vpack.c.b16 %v496, %v495
      %v507 = vpack.c.b16 %v498, %v497
      %v508 = vpack.c.b16 %v500, %v499
      %517 = vmatpush.bf16.msra.mxu0 %v508
      %518 = vmatpush.bf16.msra.mxu0 %v507
      %519 = vmatpush.bf16.msra.mxu0 %v506
      %520 = vmatpush.bf16.msra.mxu0 %v505
      %521 = vmatpush.bf16.msra.mxu0 %v504
      %522 = vmatpush.bf16.msra.mxu0 %v503
      %523 = vmatpush.bf16.msra.mxu0 %v502
      %524 = vmatpush.bf16.msra.mxu0 %v501
      %525 = vmatmul.bf16.gmra.mxu0 %v375
      %v526 = vpop.f32.mrf.mxu0
      %v527 = vadd.f32 %v450, %v526
      %v528 = vpop.f32.mrf.mxu0
      %v529 = vadd.f32 %v452, %v528
      %530 = vmatmul.bf16.gmra.mxu0 %v376
      %v531 = vpop.f32.mrf.mxu0
      %v532 = vadd.f32 %v455, %v531
      %v533 = vpop.f32.mrf.mxu0
      %v534 = vadd.f32 %v457, %v533
      %535 = vmatmul.bf16.gmra.mxu0 %v377
      %v536 = vpop.f32.mrf.mxu0
      %v537 = vadd.f32 %v460, %v536
      %v538 = vpop.f32.mrf.mxu0
      %v539 = vadd.f32 %v462, %v538
      %540 = vmatmul.bf16.gmra.mxu0 %v378
      %v541 = vpop.f32.mrf.mxu0
      %v542 = vadd.f32 %v465, %v541
      %v543 = vpop.f32.mrf.mxu0
      %v544 = vadd.f32 %v467, %v543
      %545 = vdwg.mxu0
      %v546 = vadd.f32 %v193, %v527
      %v547 = vadd.f32 %v194, %v529
      %v548 = vadd.f32 %v195, %v532
      %v549 = vadd.f32 %v196, %v534
      %v550 = vadd.f32 %v197, %v537
      %v551 = vadd.f32 %v198, %v539
      %v552 = vadd.f32 %v199, %v542
      %v553 = vadd.f32 %v200, %v544
      %v554 = vsub.f32 %v546, %v225
      %v555 = vsub.f32 %v547, %v226
      %v556 = vsub.f32 %v548, %v227
      %v557 = vsub.f32 %v549, %v228
      %v558 = vsub.f32 %v550, %v229
      %v559 = vsub.f32 %v551, %v230
      %v560 = vsub.f32 %v552, %v231
      %v561 = vsub.f32 %v553, %v232
      %562 = vst.msk [vmem:[#allocation2] sm:$0xff] %vm366, %v554
      %563 = vst.msk [vmem:[#allocation2 + $0x8] sm:$0xff] %vm366, %v555
      %564 = vst.msk [vmem:[#allocation2 + $0x10] sm:$0xff] %vm366, %v556
      %565 = vst.msk [vmem:[#allocation2 + $0x18] sm:$0xff] %vm366, %v557
      %566 = vst.msk [vmem:[#allocation2 + $0x20] sm:$0xff] %vm366, %v558
      %567 = vst.msk [vmem:[#allocation2 + $0x28] sm:$0xff] %vm366, %v559
      %568 = vst.msk [vmem:[#allocation2 + $0x30] sm:$0xff] %vm366, %v560
      %569 = vst.msk [vmem:[#allocation2 + $0x38] sm:$0xff] %vm366, %v561
      %v570 = vpack.c.bf16 %v225, %v225
      %v571 = vpack.c.bf16 %v226, %v226
      %v572 = vpack.c.bf16 %v227, %v227
      %v573 = vpack.c.bf16 %v228, %v228
      %v574 = vpack.c.bf16 %v229, %v229
      %v575 = vpack.c.bf16 %v230, %v230
      %v576 = vpack.c.bf16 %v231, %v231
      %v577 = vpack.c.bf16 %v232, %v232
      %vm578 = vcmask 519168
      %579 = vst.msk [vmem:[%s179] sm:$0xf] %vm578, %v570
      %580 = vst.msk [vmem:[%s179 + $0x4] sm:$0xf] %vm578, %v571
      %581 = vst.msk [vmem:[%s179 + $0x8] sm:$0xf] %vm578, %v572
      %582 = vst.msk [vmem:[%s179 + $0xc] sm:$0xf] %vm578, %v573
      %583 = vst.msk [vmem:[%s179 + $0x10] sm:$0xf] %vm578, %v574
      %584 = vst.msk [vmem:[%s179 + $0x14] sm:$0xf] %vm578, %v575
      %585 = vst.msk [vmem:[%s179 + $0x18] sm:$0xf] %vm578, %v576
      %586 = vst.msk [vmem:[%s179 + $0x1c] sm:$0xf] %vm578, %v577
      %p587 = scmp.lt.s32.totalorder %s17, 1
      %s588 = scalar_select %p587, %s17, 1
      %p589 = scmp.lt.s32.totalorder %s18, 5
      %s590 = scalar_select %p589, %s18, 5
      %s591 = smul.addr %s590, 8
      %s592 = smul.addr %s588, 48
      %s593 = sadd.s32 %s591, %s592
      %s594 = smul.addr %s593, 4
      %s595 = scalar_lea.vmem %s2, %s594
      // Predicated region
      $region33: #{escape_net_snn_forward.6} parent=27 // pred_check
        %p596 = pneg %p94
      $region34: #{escape_net_snn_forward.6} parent=27 // pred_check_branch
        %598 = sbr.rel (%p596) target = $region36
      $region35: #{escape_net_snn_forward.6} parent=27 // pred_region
        _
      $region36: #{escape_net_snn_forward.6} parent=27 // pred_fallthru
        _
    $region28: #{escape_net_snn_forward.6} parent=5 // pred_fallthru
      _
    %p599 = scmp.le.s32.totalorder 2, %s8
    // Predicated region
    $region37: #{escape_net_snn_forward.6} parent=5 // pred_check
      %p600 = pneg %p599
    $region38: #{escape_net_snn_forward.6} parent=5 // pred_check_branch
      %602 = sbr.rel (%p600) target = $region40
    $region39: #{escape_net_snn_forward.6} parent=5 // pred_region
      %s603 = ssub.s32 %s8, 2
      // Predicated region
      $region41: #{escape_net_snn_forward.6} parent=39 // pred_check
        %p604 = pneg %p100
      $region42: #{escape_net_snn_forward.6} parent=39 // pred_check_branch
        %606 = sbr.rel (%p604) target = $region44
      $region43: #{escape_net_snn_forward.6} parent=39 // pred_region
        %p607 = scmp.lt.s32.totalorder %s19, 1
        %s608 = scalar_select %p607, %s19, 1
        %p609 = scmp.lt.s32.totalorder %s20, 5
        %s610 = scalar_select %p609, %s20, 5
        %s611 = smul.addr %s610, 8
        %s612 = smul.addr %s608, 48
        %s613 = sadd.s32 %s611, %s612
        %s614 = smul.addr %s613, 4
        %s615 = scalar_lea.vmem %s2, %s614
      $region44: #{escape_net_snn_forward.6} parent=39 // pred_fallthru
        _
    $region40: #{escape_net_snn_forward.6} parent=5 // pred_fallthru
      _
  $region6: #{escape_net_snn_forward.6} parent=0 // loop_footer
    %s12 = sadd.s32 1, %s8
  $region7: #{escape_net_snn_forward.6} parent=0 // loop_footer_branch
    %7 = sbr.rel target = $region3
  $region8: #{escape_net_snn_forward.6} parent=0 // loop_exit
    _

// kernel: escape_net_snn_forward.7
$region0: #{escape_net_snn_forward.7}
  #allocation0 [shape = 'u32[]', space=smem, size = 0x4, offset = 0x4, fixed_abs, tag = 'smem constant byte address 0x4 - core index']
  #allocation1 [shape = 'u32[72,128]{1,0:T(1,128)}', space=vmem, size = 0x9000, scoped, tag = 'internal scratch']
  #allocation2 [shape = 'f32[6,256]{1,0:T(8,128)}', space=vmem, size = 0x2000, scoped, tag = 'scratch operand']
  %s0 = inlined_call_operand.vmem [shape: bf16[2,6,4096], index: 0, kind: input, shape index: {}]
  %s1 = inlined_call_operand.vmem [shape: bf16[4096,256], index: 1, kind: input, shape index: {}]
  %s2 = inlined_call_operand.vmem [shape: bf16[256,3], index: 2, kind: input, shape index: {}]
  %s3 = inlined_call_operand.hbm [shape: f32[2,1,3], index: 3, kind: output, shape index: {}]
  %s4 = sld [smem:[#allocation0]]
  $region52: #{escape_net_snn_forward.7} parent=0
    _
  %s6 = ssub.s32 1, %s4
  %s7 = scalar_select 0, %s6, %s4
  $region1: #{escape_net_snn_forward.7} parent=0
    #allocation3 [shape = 'u8[1024]{0}', space=vmem, size = 0x400, scoped, tag = 'output window, operand 0']
    #allocation4 [shape = 's32[2]{0}', space=sflag, size = 0x8, scoped, tag = 'scoped memory for escape_net_snn_forward.7']
    %8 = vsyncpa [#allocation4], 0
    %s9 = scalar_lea.sflag [#allocation4], 1
    %10 = vsyncpa %s9, 0
    loop: start=0, step=1, limit=4
    $region2: #{escape_net_snn_forward.7} parent=1 // loop_pre_header
      _
    $region3: #{escape_net_snn_forward.7} parent=1 // loop_header
      %s12 = sphi 0, %s16
      %p13 = scmp.ge.s32.totalorder %s12, 4
      %s22 = sphi 0, %s24
      %s25 = sphi 0, %s22
      %s26 = sphi 0, %s25
      %s42 = sphi 0, %s26
      %s46 = sphi 0, %s46
      %s48 = sphi 0, %s46
      %s49 = sphi 0, %s48
      %s63 = sphi 0, %s49
      %s67 = sphi 0, %s67
      %s69 = sphi 0, %s67
      %s70 = sphi 0, %s69
      %s84 = sphi 0, %s70
      %s90 = sphi 0, %s92
      %s93 = sphi 0, %s90
      %s94 = sphi 0, %s93
      %s110 = sphi 0, %s94
    $region4: #{escape_net_snn_forward.7} parent=1 // loop_header_branch
      %15 = sbr.rel (%p13) target = $region8
    $region5: #{escape_net_snn_forward.7} parent=1 // loop_body
      %s17 = ssub.s32 %s12, 1
      %s18 = ssub.s32 %s12, 2
      %s19 = sadd.s32 %s12, 1
      %s20 = ssub.s32 %s12, %s19
      %p21 = scmp.eq.s32.totalorder %s20, 0
      %s23 = sadd.s32 %s22, 1
      %s24 = scalar_select %p21, %s22, %s23
      %p27 = pneg %p21
      %p28 = scmp.eq.s32.totalorder %s12, 1
      %p29 = por %p27, %p28
      %p30 = scmp.ne.s32.totalorder %s22, %s25
      %p31 = scmp.eq.s32.totalorder %s12, 0
      %p32 = por %p30, %p31
      %p33 = scmp.ne.s32.totalorder %s22, %s25
      %p34 = scmp.eq.s32.totalorder %s17, 1
      %p35 = por %p33, %p34
      %p36 = scmp.ne.s32.totalorder %s25, %s26
      %p37 = scmp.eq.s32.totalorder %s17, 0
      %p38 = por %p36, %p37
      %p39 = scmp.ne.s32.totalorder %s25, %s26
      %p40 = scmp.eq.s32.totalorder %s18, 1
      %p41 = por %p39, %p40
      %p43 = scmp.ne.s32.totalorder %s26, %s42
      %p44 = scmp.eq.s32.totalorder %s18, 0
      %p45 = por %p43, %p44
      %s47 = sadd.s32 %s46, 1
      %p50 = scmp.eq.s32.totalorder %s12, 1
      %p51 = scmp.ne.s32.totalorder %s46, %s48
      %p52 = scmp.eq.s32.totalorder %s12, 0
      %p53 = por %p51, %p52
      %p54 = scmp.ne.s32.totalorder %s46, %s48
      %p55 = scmp.eq.s32.totalorder %s17, 1
      %p56 = por %p54, %p55
      %p57 = scmp.ne.s32.totalorder %s48, %s49
      %p58 = scmp.eq.s32.totalorder %s17, 0
      %p59 = por %p57, %p58
      %p60 = scmp.ne.s32.totalorder %s48, %s49
      %p61 = scmp.eq.s32.totalorder %s18, 1
      %p62 = por %p60, %p61
      %p64 = scmp.ne.s32.totalorder %s49, %s63
      %p65 = scmp.eq.s32.totalorder %s18, 0
      %p66 = por %p64, %p65
      %s68 = sadd.s32 %s67, 1
      %p71 = scmp.eq.s32.totalorder %s12, 1
      %p72 = scmp.ne.s32.totalorder %s67, %s69
      %p73 = scmp.eq.s32.totalorder %s12, 0
      %p74 = por %p72, %p73
      %p75 = scmp.ne.s32.totalorder %s67, %s69
      %p76 = scmp.eq.s32.totalorder %s17, 1
      %p77 = por %p75, %p76
      %p78 = scmp.ne.s32.totalorder %s69, %s70
      %p79 = scmp.eq.s32.totalorder %s17, 0
      %p80 = por %p78, %p79
      %p81 = scmp.ne.s32.totalorder %s69, %s70
      %p82 = scmp.eq.s32.totalorder %s18, 1
      %p83 = por %p81, %p82
      %p85 = scmp.ne.s32.totalorder %s70, %s84
      %p86 = scmp.eq.s32.totalorder %s18, 0
      %p87 = por %p85, %p86
      %s88 = ssub.s32 %s12, %s19
      %p89 = scmp.eq.s32.totalorder %s88, 0
      %s91 = sadd.s32 %s90, 1
      %s92 = scalar_select %p89, %s90, %s91
      %p95 = pneg %p89
      %p96 = scmp.eq.s32.totalorder %s12, 1
      %p97 = por %p95, %p96
      %p98 = scmp.ne.s32.totalorder %s90, %s93
      %p99 = scmp.eq.s32.totalorder %s12, 0
      %p100 = por %p98, %p99
      %p101 = scmp.ne.s32.totalorder %s90, %s93
      %p102 = scmp.eq.s32.totalorder %s17, 1
      %p103 = por %p101, %p102
      %p104 = scmp.ne.s32.totalorder %s93, %s94
      %p105 = scmp.eq.s32.totalorder %s17, 0
      %p106 = por %p104, %p105
      %p107 = scmp.ne.s32.totalorder %s93, %s94
      %p108 = scmp.eq.s32.totalorder %s18, 1
      %p109 = por %p107, %p108
      %p111 = scmp.ne.s32.totalorder %s94, %s110
      %p112 = scmp.eq.s32.totalorder %s18, 0
      %p113 = por %p111, %p112
      %p114 = scmp.le.s32.totalorder 1, %s12
      %p115 = scmp.lt.s32.totalorder %s12, 3
      %p116 = pnand %p114, %p115
      %p117 = pneg %p116
      // Predicated region
      $region9: #{escape_net_snn_forward.7} parent=5 // pred_check
        _
      $region10: #{escape_net_snn_forward.7} parent=5 // pred_check_branch
        %119 = sbr.rel (%p116) target = $region12
      $region11: #{escape_net_snn_forward.7} parent=5 // pred_region
        %s120 = ssub.s32 %s12, 1
        // Predicated region
        $region13: #{escape_net_snn_forward.7} parent=11 // pred_check
          %p121 = pneg %p59
        $region14: #{escape_net_snn_forward.7} parent=11 // pred_check_branch
          %123 = sbr.rel (%p121) target = $region16
        $region15: #{escape_net_snn_forward.7} parent=11 // pred_region
          _
        $region16: #{escape_net_snn_forward.7} parent=11 // pred_fallthru
          _
        // Predicated region
        $region17: #{escape_net_snn_forward.7} parent=11 // pred_check
          %p124 = pneg %p80
        $region18: #{escape_net_snn_forward.7} parent=11 // pred_check_branch
          %126 = sbr.rel (%p124) target = $region20
        $region19: #{escape_net_snn_forward.7} parent=11 // pred_region
          _
        $region20: #{escape_net_snn_forward.7} parent=11 // pred_fallthru
          _
      $region12: #{escape_net_snn_forward.7} parent=5 // pred_fallthru
        _
      %p127 = scmp.lt.s32.totalorder %s12, 2
      // Predicated region
      $region21: #{escape_net_snn_forward.7} parent=5 // pred_check
        %p128 = pneg %p127
      $region22: #{escape_net_snn_forward.7} parent=5 // pred_check_branch
        %130 = sbr.rel (%p128) target = $region24
      $region23: #{escape_net_snn_forward.7} parent=5 // pred_region
        // Predicated region
        $region25: #{escape_net_snn_forward.7} parent=23 // pred_check
          %p131 = pneg %p32
        $region26: #{escape_net_snn_forward.7} parent=23 // pred_check_branch
          %133 = sbr.rel (%p131) target = $region28
        $region27: #{escape_net_snn_forward.7} parent=23 // pred_region
          %p134 = scmp.lt.s32.totalorder %s12, 1
          %s135 = scalar_select %p134, %s12, 1
          %s136 = smul.addr %s135, 32
          %s137 = smul.addr %s136, 4
          %s138 = scalar_lea.vmem %s0, %s137
        $region28: #{escape_net_snn_forward.7} parent=23 // pred_fallthru
          _
      $region24: #{escape_net_snn_forward.7} parent=5 // pred_fallthru
        _
      %p139 = scmp.le.s32.totalorder 1, %s12
      %p140 = scmp.lt.s32.totalorder %s12, 3
      %p141 = pnand %p139, %p140
      %p142 = pneg %p141
      // Predicated region
      $region29: #{escape_net_snn_forward.7} parent=5 // pred_check
        _
      $region30: #{escape_net_snn_forward.7} parent=5 // pred_check_branch
        %144 = sbr.rel (%p141) target = $region32
      $region31: #{escape_net_snn_forward.7} parent=5 // pred_region
        %s145 = ssub.s32 %s12, 1
        %p146 = scmp.lt.s32.totalorder %s17, 1
        %s147 = scalar_select %p146, %s17, 1
        %s148 = smul.addr %s147, 32
        %s149 = smul.addr %s148, 4
        %s150 = scalar_lea.vmem %s0, %s149
        %p151 = pneg %p38
        %p152 = pneg %p35
        %p153 = pneg %p59
        %p154 = pneg %p56
        %p155 = pneg %p80
        %p156 = pneg %p77
        %p157 = pneg %p106
        %p158 = pneg %p103
        %s159 = sand.u32 %s93, 1
        %s160 = scalar_lea.sflag [#allocation4], %s159
        %s161 = sand.u32 %s93, 1
        %s162 = scalar_lea.vmem [#allocation3], %s161
        %p163 = scmp.lt.s32.totalorder %s17, 1
        %s164 = scalar_select %p163, %s17, 1
        %s165 = smul.addr %s164, 32
        %s166 = smul.addr %s165, 4
        %s167 = scalar_lea.vmem %s0, %s166
        %v168 = vld [vmem:[%s167] sm:$0x77]
        %v169 = vld [vmem:[%s167 + $0x8] sm:$0x77]
        %v170 = vld [vmem:[%s167 + $0x10] sm:$0x77]
        %v171 = vld [vmem:[%s167 + $0x18] sm:$0x77]
        %v172 = vld [vmem:[%s167 + $0x20] sm:$0x77]
        %v173 = vld [vmem:[%s167 + $0x28] sm:$0x77]
        %v174 = vld [vmem:[%s167 + $0x30] sm:$0x77]
        %v175 = vld [vmem:[%s167 + $0x38] sm:$0x77]
        %v176 = vld [vmem:[%s167 + $0x40] sm:$0x77]
        %v177 = vld [vmem:[%s167 + $0x48] sm:$0x77]
        %v178 = vld [vmem:[%s167 + $0x50] sm:$0x77]
        %v179 = vld [vmem:[%s167 + $0x58] sm:$0x77]
        %v180 = vld [vmem:[%s167 + $0x60] sm:$0x77]
        %v181 = vld [vmem:[%s167 + $0x68] sm:$0x77]
        %v182 = vld [vmem:[%s167 + $0x70] sm:$0x77]
        %v183 = vld [vmem:[%s167 + $0x78] sm:$0x77]
        %v184 = vld [vmem:[%s1] sm:$0xff]
        %v185 = vld [vmem:[%s1 + $0x8] sm:$0xff]
        %v186 = vld [vmem:[%s1 + $0x10] sm:$0xff]
        %v187 = vld [vmem:[%s1 + $0x18] sm:$0xff]
        %v188 = vld [vmem:[%s1 + $0x20] sm:$0xff]
        %v189 = vld [vmem:[%s1 + $0x28] sm:$0xff]
        %v190 = vld [vmem:[%s1 + $0x30] sm:$0xff]
        %v191 = vld [vmem:[%s1 + $0x38] sm:$0xff]
        %v192 = vld [vmem:[%s1 + $0x40] sm:$0xff]
        %v193 = vld [vmem:[%s1 + $0x48] sm:$0xff]
        %v194 = vld [vmem:[%s1 + $0x50] sm:$0xff]
        %v195 = vld [vmem:[%s1 + $0x58] sm:$0xff]
        %v196 = vld [vmem:[%s1 + $0x60] sm:$0xff]
        %v197 = vld [vmem:[%s1 + $0x68] sm:$0xff]
        %v198 = vld [vmem:[%s1 + $0x70] sm:$0xff]
        %v199 = vld [vmem:[%s1 + $0x78] sm:$0xff]
        %v200 = vld [vmem:[%s1 + $0x80] sm:$0xff]
        %v201 = vld [vmem:[%s1 + $0x88] sm:$0xff]
        %v202 = vld [vmem:[%s1 + $0x90] sm:$0xff]
        %v203 = vld [vmem:[%s1 + $0x98] sm:$0xff]
        %v204 = vld [vmem:[%s1 + $0xa0] sm:$0xff]
        %v205 = vld [vmem:[%s1 + $0xa8] sm:$0xff]
        %v206 = vld [vmem:[%s1 + $0xb0] sm:$0xff]
        %v207 = vld [vmem:[%s1 + $0xb8] sm:$0xff]
        %v208 = vld [vmem:[%s1 + $0xc0] sm:$0xff]
        %v209 = vld [vmem:[%s1 + $0xc8] sm:$0xff]
        %v210 = vld [vmem:[%s1 + $0xd0] sm:$0xff]
        %v211 = vld [vmem:[%s1 + $0xd8] sm:$0xff]
        %v212 = vld [vmem:[%s1 + $0xe0] sm:$0xff]
        %v213 = vld [vmem:[%s1 + $0xe8] sm:$0xff]
        %v214 = vld [vmem:[%s1 + $0xf0] sm:$0xff]
        %v215 = vld [vmem:[%s1 + $0xf8] sm:$0xff]
        %v216 = vld [vmem:[%s1 + $0x100] sm:$0xff]
        %v217 = vld [vmem:[%s1 + $0x108] sm:$0xff]
        %v218 = vld [vmem:[%s1 + $0x110] sm:$0xff]
        %v219 = vld [vmem:[%s1 + $0x118] sm:$0xff]
        %v220 = vld [vmem:[%s1 + $0x120] sm:$0xff]
        %v221 = vld [vmem:[%s1 + $0x128] sm:$0xff]
        %v222 = vld [vmem:[%s1 + $0x130] sm:$0xff]
        %v223 = vld [vmem:[%s1 + $0x138] sm:$0xff]
        %v224 = vld [vmem:[%s1 + $0x140] sm:$0xff]
        %v225 = vld [vmem:[%s1 + $0x148] sm:$0xff]
        %v226 = vld [vmem:[%s1 + $0x150] sm:$0xff]
        %v227 = vld [vmem:[%s1 + $0x158] sm:$0xff]
        %v228 = vld [vmem:[%s1 + $0x160] sm:$0xff]
        %v229 = vld [vmem:[%s1 + $0x168] sm:$0xff]
        %v230 = vld [vmem:[%s1 + $0x170] sm:$0xff]
        %v231 = vld [vmem:[%s1 + $0x178] sm:$0xff]
        %v232 = vld [vmem:[%s1 + $0x180] sm:$0xff]
        %v233 = vld [vmem:[%s1 + $0x188] sm:$0xff]
        %v234 = vld [vmem:[%s1 + $0x190] sm:$0xff]
        %v235 = vld [vmem:[%s1 + $0x198] sm:$0xff]
        %v236 = vld [vmem:[%s1 + $0x1a0] sm:$0xff]
        %v237 = vld [vmem:[%s1 + $0x1a8] sm:$0xff]
        %v238 = vld [vmem:[%s1 + $0x1b0] sm:$0xff]
        %v239 = vld [vmem:[%s1 + $0x1b8] sm:$0xff]
        %v240 = vld [vmem:[%s1 + $0x1c0] sm:$0xff]
        %v241 = vld [vmem:[%s1 + $0x1c8] sm:$0xff]
        %v242 = vld [vmem:[%s1 + $0x1d0] sm:$0xff]
        %v243 = vld [vmem:[%s1 + $0x1d8] sm:$0xff]
        %v244 = vld [vmem:[%s1 + $0x1e0] sm:$0xff]
        %v245 = vld [vmem:[%s1 + $0x1e8] sm:$0xff]
        %v246 = vld [vmem:[%s1 + $0x1f0] sm:$0xff]
        %v247 = vld [vmem:[%s1 + $0x1f8] sm:$0xff]
        %v248 = vld [vmem:[%s1 + $0x200] sm:$0xff]
        %v249 = vld [vmem:[%s1 + $0x208] sm:$0xff]
        %v250 = vld [vmem:[%s1 + $0x210] sm:$0xff]
        %v251 = vld [vmem:[%s1 + $0x218] sm:$0xff]
        %v252 = vld [vmem:[%s1 + $0x220] sm:$0xff]
        %v253 = vld [vmem:[%s1 + $0x228] sm:$0xff]
        %v254 = vld [vmem:[%s1 + $0x230] sm:$0xff]
        %v255 = vld [vmem:[%s1 + $0x238] sm:$0xff]
        %v256 = vld [vmem:[%s1 + $0x240] sm:$0xff]
        %v257 = vld [vmem:[%s1 + $0x248] sm:$0xff]
        %v258 = vld [vmem:[%s1 + $0x250] sm:$0xff]
        %v259 = vld [vmem:[%s1 + $0x258] sm:$0xff]
        %v260 = vld [vmem:[%s1 + $0x260] sm:$0xff]
        %v261 = vld [vmem:[%s1 + $0x268] sm:$0xff]
        %v262 = vld [vmem:[%s1 + $0x270] sm:$0xff]
        %v263 = vld [vmem:[%s1 + $0x278] sm:$0xff]
        %v264 = vld [vmem:[%s1 + $0x280] sm:$0xff]
        %v265 = vld [vmem:[%s1 + $0x288] sm:$0xff]
        %v266 = vld [vmem:[%s1 + $0x290] sm:$0xff]
        %v267 = vld [vmem:[%s1 + $0x298] sm:$0xff]
        %v268 = vld [vmem:[%s1 + $0x2a0] sm:$0xff]
        %v269 = vld [vmem:[%s1 + $0x2a8] sm:$0xff]
        %v270 = vld [vmem:[%s1 + $0x2b0] sm:$0xff]
        %v271 = vld [vmem:[%s1 + $0x2b8] sm:$0xff]
        %v272 = vld [vmem:[%s1 + $0x2c0] sm:$0xff]
        %v273 = vld [vmem:[%s1 + $0x2c8] sm:$0xff]
        %v274 = vld [vmem:[%s1 + $0x2d0] sm:$0xff]
        %v275 = vld [vmem:[%s1 + $0x2d8] sm:$0xff]
        %v276 = vld [vmem:[%s1 + $0x2e0] sm:$0xff]
        %v277 = vld [vmem:[%s1 + $0x2e8] sm:$0xff]
        %v278 = vld [vmem:[%s1 + $0x2f0] sm:$0xff]
        %v279 = vld [vmem:[%s1 + $0x2f8] sm:$0xff]
        %v280 = vld [vmem:[%s1 + $0x300] sm:$0xff]
        %v281 = vld [vmem:[%s1 + $0x308] sm:$0xff]
        %v282 = vld [vmem:[%s1 + $0x310] sm:$0xff]
        %v283 = vld [vmem:[%s1 + $0x318] sm:$0xff]
        %v284 = vld [vmem:[%s1 + $0x320] sm:$0xff]
        %v285 = vld [vmem:[%s1 + $0x328] sm:$0xff]
        %v286 = vld [vmem:[%s1 + $0x330] sm:$0xff]
        %v287 = vld [vmem:[%s1 + $0x338] sm:$0xff]
        %v288 = vld [vmem:[%s1 + $0x340] sm:$0xff]
        %v289 = vld [vmem:[%s1 + $0x348] sm:$0xff]
        %v290 = vld [vmem:[%s1 + $0x350] sm:$0xff]
        %v291 = vld [vmem:[%s1 + $0x358] sm:$0xff]
        %v292 = vld [vmem:[%s1 + $0x360] sm:$0xff]
        %v293 = vld [vmem:[%s1 + $0x368] sm:$0xff]
        %v294 = vld [vmem:[%s1 + $0x370] sm:$0xff]
        %v295 = vld [vmem:[%s1 + $0x378] sm:$0xff]
        %v296 = vld [vmem:[%s1 + $0x380] sm:$0xff]
        %v297 = vld [vmem:[%s1 + $0x388] sm:$0xff]
        %v298 = vld [vmem:[%s1 + $0x390] sm:$0xff]
        %v299 = vld [vmem:[%s1 + $0x398] sm:$0xff]
        %v300 = vld [vmem:[%s1 + $0x3a0] sm:$0xff]
        %v301 = vld [vmem:[%s1 + $0x3a8] sm:$0xff]
        %v302 = vld [vmem:[%s1 + $0x3b0] sm:$0xff]
        %v303 = vld [vmem:[%s1 + $0x3b8] sm:$0xff]
        %v304 = vld [vmem:[%s1 + $0x3c0] sm:$0xff]
        %v305 = vld [vmem:[%s1 + $0x3c8] sm:$0xff]
        %v306 = vld [vmem:[%s1 + $0x3d0] sm:$0xff]
        %v307 = vld [vmem:[%s1 + $0x3d8] sm:$0xff]
        %v308 = vld [vmem:[%s1 + $0x3e0] sm:$0xff]
        %v309 = vld [vmem:[%s1 + $0x3e8] sm:$0xff]
        %v310 = vld [vmem:[%s1 + $0x3f0] sm:$0xff]
        %v311 = vld [vmem:[%s1 + $0x3f8] sm:$0xff]
        %v312 = vld [vmem:[%s1 + $0x400] sm:$0xff]
        %v313 = vld [vmem:[%s1 + $0x408] sm:$0xff]
        %v314 = vld [vmem:[%s1 + $0x410] sm:$0xff]
        %v315 = vld [vmem:[%s1 + $0x418] sm:$0xff]
        %v316 = vld [vmem:[%s1 + $0x420] sm:$0xff]
        %v317 = vld [vmem:[%s1 + $0x428] sm:$0xff]
        %v318 = vld [vmem:[%s1 + $0x430] sm:$0xff]
        %v319 = vld [vmem:[%s1 + $0x438] sm:$0xff]
        %v320 = vld [vmem:[%s1 + $0x440] sm:$0xff]
        %v321 = vld [vmem:[%s1 + $0x448] sm:$0xff]
        %v322 = vld [vmem:[%s1 + $0x450] sm:$0xff]
        %v323 = vld [vmem:[%s1 + $0x458] sm:$0xff]
        %v324 = vld [vmem:[%s1 + $0x460] sm:$0xff]
        %v325 = vld [vmem:[%s1 + $0x468] sm:$0xff]
        %v326 = vld [vmem:[%s1 + $0x470] sm:$0xff]
        %v327 = vld [vmem:[%s1 + $0x478] sm:$0xff]
        %v328 = vld [vmem:[%s1 + $0x480] sm:$0xff]
        %v329 = vld [vmem:[%s1 + $0x488] sm:$0xff]
        %v330 = vld [vmem:[%s1 + $0x490] sm:$0xff]
        %v331 = vld [vmem:[%s1 + $0x498] sm:$0xff]
        %v332 = vld [vmem:[%s1 + $0x4a0] sm:$0xff]
        %v333 = vld [vmem:[%s1 + $0x4a8] sm:$0xff]
        %v334 = vld [vmem:[%s1 + $0x4b0] sm:$0xff]
        %v335 = vld [vmem:[%s1 + $0x4b8] sm:$0xff]
        %v336 = vld [vmem:[%s1 + $0x4c0] sm:$0xff]
        %v337 = vld [vmem:[%s1 + $0x4c8] sm:$0xff]
        %v338 = vld [vmem:[%s1 + $0x4d0] sm:$0xff]
        %v339 = vld [vmem:[%s1 + $0x4d8] sm:$0xff]
        %v340 = vld [vmem:[%s1 + $0x4e0] sm:$0xff]
        %v341 = vld [vmem:[%s1 + $0x4e8] sm:$0xff]
        %v342 = vld [vmem:[%s1 + $0x4f0] sm:$0xff]
        %v343 = vld [vmem:[%s1 + $0x4f8] sm:$0xff]
        %v344 = vld [vmem:[%s1 + $0x500] sm:$0xff]
        %v345 = vld [vmem:[%s1 + $0x508] sm:$0xff]
        %v346 = vld [vmem:[%s1 + $0x510] sm:$0xff]
        %v347 = vld [vmem:[%s1 + $0x518] sm:$0xff]
        %v348 = vld [vmem:[%s1 + $0x520] sm:$0xff]
        %v349 = vld [vmem:[%s1 + $0x528] sm:$0xff]
        %v350 = vld [vmem:[%s1 + $0x530] sm:$0xff]
        %v351 = vld [vmem:[%s1 + $0x538] sm:$0xff]
        %v352 = vld [vmem:[%s1 + $0x540] sm:$0xff]
        %v353 = vld [vmem:[%s1 + $0x548] sm:$0xff]
        %v354 = vld [vmem:[%s1 + $0x550] sm:$0xff]
        %v355 = vld [vmem:[%s1 + $0x558] sm:$0xff]
        %v356 = vld [vmem:[%s1 + $0x560] sm:$0xff]
        %v357 = vld [vmem:[%s1 + $0x568] sm:$0xff]
        %v358 = vld [vmem:[%s1 + $0x570] sm:$0xff]
        %v359 = vld [vmem:[%s1 + $0x578] sm:$0xff]
        %v360 = vld [vmem:[%s1 + $0x580] sm:$0xff]
        %v361 = vld [vmem:[%s1 + $0x588] sm:$0xff]
        %v362 = vld [vmem:[%s1 + $0x590] sm:$0xff]
        %v363 = vld [vmem:[%s1 + $0x598] sm:$0xff]
        %v364 = vld [vmem:[%s1 + $0x5a0] sm:$0xff]
        %v365 = vld [vmem:[%s1 + $0x5a8] sm:$0xff]
        %v366 = vld [vmem:[%s1 + $0x5b0] sm:$0xff]
        %v367 = vld [vmem:[%s1 + $0x5b8] sm:$0xff]
        %v368 = vld [vmem:[%s1 + $0x5c0] sm:$0xff]
        %v369 = vld [vmem:[%s1 + $0x5c8] sm:$0xff]
        %v370 = vld [vmem:[%s1 + $0x5d0] sm:$0xff]
        %v371 = vld [vmem:[%s1 + $0x5d8] sm:$0xff]
        %v372 = vld [vmem:[%s1 + $0x5e0] sm:$0xff]
        %v373 = vld [vmem:[%s1 + $0x5e8] sm:$0xff]
        %v374 = vld [vmem:[%s1 + $0x5f0] sm:$0xff]
        %v375 = vld [vmem:[%s1 + $0x5f8] sm:$0xff]
        %v376 = vld [vmem:[%s1 + $0x600] sm:$0xff]
        %v377 = vld [vmem:[%s1 + $0x608] sm:$0xff]
        %v378 = vld [vmem:[%s1 + $0x610] sm:$0xff]
        %v379 = vld [vmem:[%s1 + $0x618] sm:$0xff]
        %v380 = vld [vmem:[%s1 + $0x620] sm:$0xff]
        %v381 = vld [vmem:[%s1 + $0x628] sm:$0xff]
        %v382 = vld [vmem:[%s1 + $0x630] sm:$0xff]
        %v383 = vld [vmem:[%s1 + $0x638] sm:$0xff]
        %v384 = vld [vmem:[%s1 + $0x640] sm:$0xff]
        %v385 = vld [vmem:[%s1 + $0x648] sm:$0xff]
        %v386 = vld [vmem:[%s1 + $0x650] sm:$0xff]
        %v387 = vld [vmem:[%s1 + $0x658] sm:$0xff]
        %v388 = vld [vmem:[%s1 + $0x660] sm:$0xff]
        %v389 = vld [vmem:[%s1 + $0x668] sm:$0xff]
        %v390 = vld [vmem:[%s1 + $0x670] sm:$0xff]
        %v391 = vld [vmem:[%s1 + $0x678] sm:$0xff]
        %v392 = vld [vmem:[%s1 + $0x680] sm:$0xff]
        %v393 = vld [vmem:[%s1 + $0x688] sm:$0xff]
        %v394 = vld [vmem:[%s1 + $0x690] sm:$0xff]
        %v395 = vld [vmem:[%s1 + $0x698] sm:$0xff]
        %v396 = vld [vmem:[%s1 + $0x6a0] sm:$0xff]
        %v397 = vld [vmem:[%s1 + $0x6a8] sm:$0xff]
        %v398 = vld [vmem:[%s1 + $0x6b0] sm:$0xff]
        %v399 = vld [vmem:[%s1 + $0x6b8] sm:$0xff]
        %v400 = vld [vmem:[%s1 + $0x6c0] sm:$0xff]
        %v401 = vld [vmem:[%s1 + $0x6c8] sm:$0xff]
        %v402 = vld [vmem:[%s1 + $0x6d0] sm:$0xff]
        %v403 = vld [vmem:[%s1 + $0x6d8] sm:$0xff]
        %v404 = vld [vmem:[%s1 + $0x6e0] sm:$0xff]
        %v405 = vld [vmem:[%s1 + $0x6e8] sm:$0xff]
        %v406 = vld [vmem:[%s1 + $0x6f0] sm:$0xff]
        %v407 = vld [vmem:[%s1 + $0x6f8] sm:$0xff]
        %v408 = vld [vmem:[%s1 + $0x700] sm:$0xff]
        %v409 = vld [vmem:[%s1 + $0x708] sm:$0xff]
        %v410 = vld [vmem:[%s1 + $0x710] sm:$0xff]
        %v411 = vld [vmem:[%s1 + $0x718] sm:$0xff]
        %v412 = vld [vmem:[%s1 + $0x720] sm:$0xff]
        %v413 = vld [vmem:[%s1 + $0x728] sm:$0xff]
        %v414 = vld [vmem:[%s1 + $0x730] sm:$0xff]
        %v415 = vld [vmem:[%s1 + $0x738] sm:$0xff]
        %v416 = vld [vmem:[%s1 + $0x740] sm:$0xff]
        %v417 = vld [vmem:[%s1 + $0x748] sm:$0xff]
        %v418 = vld [vmem:[%s1 + $0x750] sm:$0xff]
        %v419 = vld [vmem:[%s1 + $0x758] sm:$0xff]
        %v420 = vld [vmem:[%s1 + $0x760] sm:$0xff]
        %v421 = vld [vmem:[%s1 + $0x768] sm:$0xff]
        %v422 = vld [vmem:[%s1 + $0x770] sm:$0xff]
        %v423 = vld [vmem:[%s1 + $0x778] sm:$0xff]
        %v424 = vld [vmem:[%s1 + $0x780] sm:$0xff]
        %v425 = vld [vmem:[%s1 + $0x788] sm:$0xff]
        %v426 = vld [vmem:[%s1 + $0x790] sm:$0xff]
        %v427 = vld [vmem:[%s1 + $0x798] sm:$0xff]
        %v428 = vld [vmem:[%s1 + $0x7a0] sm:$0xff]
        %v429 = vld [vmem:[%s1 + $0x7a8] sm:$0xff]
        %v430 = vld [vmem:[%s1 + $0x7b0] sm:$0xff]
        %v431 = vld [vmem:[%s1 + $0x7b8] sm:$0xff]
        %v432 = vld [vmem:[%s1 + $0x7c0] sm:$0xff]
        %v433 = vld [vmem:[%s1 + $0x7c8] sm:$0xff]
        %v434 = vld [vmem:[%s1 + $0x7d0] sm:$0xff]
        %v435 = vld [vmem:[%s1 + $0x7d8] sm:$0xff]
        %v436 = vld [vmem:[%s1 + $0x7e0] sm:$0xff]
        %v437 = vld [vmem:[%s1 + $0x7e8] sm:$0xff]
        %v438 = vld [vmem:[%s1 + $0x7f0] sm:$0xff]
        %v439 = vld [vmem:[%s1 + $0x7f8] sm:$0xff]
        %v440 = vld [vmem:[%s1 + $0x800] sm:$0xff]
        %v441 = vld [vmem:[%s1 + $0x808] sm:$0xff]
        %v442 = vld [vmem:[%s1 + $0x810] sm:$0xff]
        %v443 = vld [vmem:[%s1 + $0x818] sm:$0xff]
        %v444 = vld [vmem:[%s1 + $0x820] sm:$0xff]
        %v445 = vld [vmem:[%s1 + $0x828] sm:$0xff]
        %v446 = vld [vmem:[%s1 + $0x830] sm:$0xff]
        %v447 = vld [vmem:[%s1 + $0x838] sm:$0xff]
        %v448 = vld [vmem:[%s1 + $0x840] sm:$0xff]
        %v449 = vld [vmem:[%s1 + $0x848] sm:$0xff]
        %v450 = vld [vmem:[%s1 + $0x850] sm:$0xff]
        %v451 = vld [vmem:[%s1 + $0x858] sm:$0xff]
        %v452 = vld [vmem:[%s1 + $0x860] sm:$0xff]
        %v453 = vld [vmem:[%s1 + $0x868] sm:$0xff]
        %v454 = vld [vmem:[%s1 + $0x870] sm:$0xff]
        %v455 = vld [vmem:[%s1 + $0x878] sm:$0xff]
        %v456 = vld [vmem:[%s1 + $0x880] sm:$0xff]
        %v457 = vld [vmem:[%s1 + $0x888] sm:$0xff]
        %v458 = vld [vmem:[%s1 + $0x890] sm:$0xff]
        %v459 = vld [vmem:[%s1 + $0x898] sm:$0xff]
        %v460 = vld [vmem:[%s1 + $0x8a0] sm:$0xff]
        %v461 = vld [vmem:[%s1 + $0x8a8] sm:$0xff]
        %v462 = vld [vmem:[%s1 + $0x8b0] sm:$0xff]
        %v463 = vld [vmem:[%s1 + $0x8b8] sm:$0xff]
        %v464 = vld [vmem:[%s1 + $0x8c0] sm:$0xff]
        %v465 = vld [vmem:[%s1 + $0x8c8] sm:$0xff]
        %v466 = vld [vmem:[%s1 + $0x8d0] sm:$0xff]
        %v467 = vld [vmem:[%s1 + $0x8d8] sm:$0xff]
        %v468 = vld [vmem:[%s1 + $0x8e0] sm:$0xff]
        %v469 = vld [vmem:[%s1 + $0x8e8] sm:$0xff]
        %v470 = vld [vmem:[%s1 + $0x8f0] sm:$0xff]
        %v471 = vld [vmem:[%s1 + $0x8f8] sm:$0xff]
        %v472 = vld [vmem:[%s1 + $0x900] sm:$0xff]
        %v473 = vld [vmem:[%s1 + $0x908] sm:$0xff]
        %v474 = vld [vmem:[%s1 + $0x910] sm:$0xff]
        %v475 = vld [vmem:[%s1 + $0x918] sm:$0xff]
        %v476 = vld [vmem:[%s1 + $0x920] sm:$0xff]
        %v477 = vld [vmem:[%s1 + $0x928] sm:$0xff]
        %v478 = vld [vmem:[%s1 + $0x930] sm:$0xff]
        %v479 = vld [vmem:[%s1 + $0x938] sm:$0xff]
        %v480 = vld [vmem:[%s1 + $0x940] sm:$0xff]
        %v481 = vld [vmem:[%s1 + $0x948] sm:$0xff]
        %v482 = vld [vmem:[%s1 + $0x950] sm:$0xff]
        %v483 = vld [vmem:[%s1 + $0x958] sm:$0xff]
        %v484 = vld [vmem:[%s1 + $0x960] sm:$0xff]
        %v485 = vld [vmem:[%s1 + $0x968] sm:$0xff]
        %v486 = vld [vmem:[%s1 + $0x970] sm:$0xff]
        %v487 = vld [vmem:[%s1 + $0x978] sm:$0xff]
        %v488 = vld [vmem:[%s1 + $0x980] sm:$0xff]
        %v489 = vld [vmem:[%s1 + $0x988] sm:$0xff]
        %v490 = vld [vmem:[%s1 + $0x990] sm:$0xff]
        %v491 = vld [vmem:[%s1 + $0x998] sm:$0xff]
        %v492 = vld [vmem:[%s1 + $0x9a0] sm:$0xff]
        %v493 = vld [vmem:[%s1 + $0x9a8] sm:$0xff]
        %v494 = vld [vmem:[%s1 + $0x9b0] sm:$0xff]
        %v495 = vld [vmem:[%s1 + $0x9b8] sm:$0xff]
        %v496 = vld [vmem:[%s1 + $0x9c0] sm:$0xff]
        %v497 = vld [vmem:[%s1 + $0x9c8] sm:$0xff]
        %v498 = vld [vmem:[%s1 + $0x9d0] sm:$0xff]
        %v499 = vld [vmem:[%s1 + $0x9d8] sm:$0xff]
        %v500 = vld [vmem:[%s1 + $0x9e0] sm:$0xff]
        %v501 = vld [vmem:[%s1 + $0x9e8] sm:$0xff]
        %v502 = vld [vmem:[%s1 + $0x9f0] sm:$0xff]
        %v503 = vld [vmem:[%s1 + $0x9f8] sm:$0xff]
        %v504 = vld [vmem:[%s1 + $0xa00] sm:$0xff]
        %v505 = vld [vmem:[%s1 + $0xa08] sm:$0xff]
        %v506 = vld [vmem:[%s1 + $0xa10] sm:$0xff]
        %v507 = vld [vmem:[%s1 + $0xa18] sm:$0xff]
        %v508 = vld [vmem:[%s1 + $0xa20] sm:$0xff]
        %v509 = vld [vmem:[%s1 + $0xa28] sm:$0xff]
        %v510 = vld [vmem:[%s1 + $0xa30] sm:$0xff]
        %v511 = vld [vmem:[%s1 + $0xa38] sm:$0xff]
        %v512 = vld [vmem:[%s1 + $0xa40] sm:$0xff]
        %v513 = vld [vmem:[%s1 + $0xa48] sm:$0xff]
        %v514 = vld [vmem:[%s1 + $0xa50] sm:$0xff]
        %v515 = vld [vmem:[%s1 + $0xa58] sm:$0xff]
        %v516 = vld [vmem:[%s1 + $0xa60] sm:$0xff]
        %v517 = vld [vmem:[%s1 + $0xa68] sm:$0xff]
        %v518 = vld [vmem:[%s1 + $0xa70] sm:$0xff]
        %v519 = vld [vmem:[%s1 + $0xa78] sm:$0xff]
        %v520 = vld [vmem:[%s1 + $0xa80] sm:$0xff]
        %v521 = vld [vmem:[%s1 + $0xa88] sm:$0xff]
        %v522 = vld [vmem:[%s1 + $0xa90] sm:$0xff]
        %v523 = vld [vmem:[%s1 + $0xa98] sm:$0xff]
        %v524 = vld [vmem:[%s1 + $0xaa0] sm:$0xff]
        %v525 = vld [vmem:[%s1 + $0xaa8] sm:$0xff]
        %v526 = vld [vmem:[%s1 + $0xab0] sm:$0xff]
        %v527 = vld [vmem:[%s1 + $0xab8] sm:$0xff]
        %v528 = vld [vmem:[%s1 + $0xac0] sm:$0xff]
        %v529 = vld [vmem:[%s1 + $0xac8] sm:$0xff]
        %v530 = vld [vmem:[%s1 + $0xad0] sm:$0xff]
        %v531 = vld [vmem:[%s1 + $0xad8] sm:$0xff]
        %v532 = vld [vmem:[%s1 + $0xae0] sm:$0xff]
        %v533 = vld [vmem:[%s1 + $0xae8] sm:$0xff]
        %v534 = vld [vmem:[%s1 + $0xaf0] sm:$0xff]
        %v535 = vld [vmem:[%s1 + $0xaf8] sm:$0xff]
        %v536 = vld [vmem:[%s1 + $0xb00] sm:$0xff]
        %v537 = vld [vmem:[%s1 + $0xb08] sm:$0xff]
        %v538 = vld [vmem:[%s1 + $0xb10] sm:$0xff]
        %v539 = vld [vmem:[%s1 + $0xb18] sm:$0xff]
        %v540 = vld [vmem:[%s1 + $0xb20] sm:$0xff]
        %v541 = vld [vmem:[%s1 + $0xb28] sm:$0xff]
        %v542 = vld [vmem:[%s1 + $0xb30] sm:$0xff]
        %v543 = vld [vmem:[%s1 + $0xb38] sm:$0xff]
        %v544 = vld [vmem:[%s1 + $0xb40] sm:$0xff]
        %v545 = vld [vmem:[%s1 + $0xb48] sm:$0xff]
        %v546 = vld [vmem:[%s1 + $0xb50] sm:$0xff]
        %v547 = vld [vmem:[%s1 + $0xb58] sm:$0xff]
        %v548 = vld [vmem:[%s1 + $0xb60] sm:$0xff]
        %v549 = vld [vmem:[%s1 + $0xb68] sm:$0xff]
        %v550 = vld [vmem:[%s1 + $0xb70] sm:$0xff]
        %v551 = vld [vmem:[%s1 + $0xb78] sm:$0xff]
        %v552 = vld [vmem:[%s1 + $0xb80] sm:$0xff]
        %v553 = vld [vmem:[%s1 + $0xb88] sm:$0xff]
        %v554 = vld [vmem:[%s1 + $0xb90] sm:$0xff]
        %v555 = vld [vmem:[%s1 + $0xb98] sm:$0xff]
        %v556 = vld [vmem:[%s1 + $0xba0] sm:$0xff]
        %v557 = vld [vmem:[%s1 + $0xba8] sm:$0xff]
        %v558 = vld [vmem:[%s1 + $0xbb0] sm:$0xff]
        %v559 = vld [vmem:[%s1 + $0xbb8] sm:$0xff]
        %v560 = vld [vmem:[%s1 + $0xbc0] sm:$0xff]
        %v561 = vld [vmem:[%s1 + $0xbc8] sm:$0xff]
        %v562 = vld [vmem:[%s1 + $0xbd0] sm:$0xff]
        %v563 = vld [vmem:[%s1 + $0xbd8] sm:$0xff]
        %v564 = vld [vmem:[%s1 + $0xbe0] sm:$0xff]
        %v565 = vld [vmem:[%s1 + $0xbe8] sm:$0xff]
        %v566 = vld [vmem:[%s1 + $0xbf0] sm:$0xff]
        %v567 = vld [vmem:[%s1 + $0xbf8] sm:$0xff]
        %v568 = vld [vmem:[%s1 + $0xc00] sm:$0xff]
        %v569 = vld [vmem:[%s1 + $0xc08] sm:$0xff]
        %v570 = vld [vmem:[%s1 + $0xc10] sm:$0xff]
        %v571 = vld [vmem:[%s1 + $0xc18] sm:$0xff]
        %v572 = vld [vmem:[%s1 + $0xc20] sm:$0xff]
        %v573 = vld [vmem:[%s1 + $0xc28] sm:$0xff]
        %v574 = vld [vmem:[%s1 + $0xc30] sm:$0xff]
        %v575 = vld [vmem:[%s1 + $0xc38] sm:$0xff]
        %v576 = vld [vmem:[%s1 + $0xc40] sm:$0xff]
        %v577 = vld [vmem:[%s1 + $0xc48] sm:$0xff]
        %v578 = vld [vmem:[%s1 + $0xc50] sm:$0xff]
        %v579 = vld [vmem:[%s1 + $0xc58] sm:$0xff]
        %v580 = vld [vmem:[%s1 + $0xc60] sm:$0xff]
        %v581 = vld [vmem:[%s1 + $0xc68] sm:$0xff]
        %v582 = vld [vmem:[%s1 + $0xc70] sm:$0xff]
        %v583 = vld [vmem:[%s1 + $0xc78] sm:$0xff]
        %v584 = vld [vmem:[%s1 + $0xc80] sm:$0xff]
        %v585 = vld [vmem:[%s1 + $0xc88] sm:$0xff]
        %v586 = vld [vmem:[%s1 + $0xc90] sm:$0xff]
        %v587 = vld [vmem:[%s1 + $0xc98] sm:$0xff]
        %v588 = vld [vmem:[%s1 + $0xca0] sm:$0xff]
        %v589 = vld [vmem:[%s1 + $0xca8] sm:$0xff]
        %v590 = vld [vmem:[%s1 + $0xcb0] sm:$0xff]
        %v591 = vld [vmem:[%s1 + $0xcb8] sm:$0xff]
        %v592 = vld [vmem:[%s1 + $0xcc0] sm:$0xff]
        %v593 = vld [vmem:[%s1 + $0xcc8] sm:$0xff]
        %v594 = vld [vmem:[%s1 + $0xcd0] sm:$0xff]
        %v595 = vld [vmem:[%s1 + $0xcd8] sm:$0xff]
        %v596 = vld [vmem:[%s1 + $0xce0] sm:$0xff]
        %v597 = vld [vmem:[%s1 + $0xce8] sm:$0xff]
        %v598 = vld [vmem:[%s1 + $0xcf0] sm:$0xff]
        %v599 = vld [vmem:[%s1 + $0xcf8] sm:$0xff]
        %v600 = vld [vmem:[%s1 + $0xd00] sm:$0xff]
        %v601 = vld [vmem:[%s1 + $0xd08] sm:$0xff]
        %v602 = vld [vmem:[%s1 + $0xd10] sm:$0xff]
        %v603 = vld [vmem:[%s1 + $0xd18] sm:$0xff]
        %v604 = vld [vmem:[%s1 + $0xd20] sm:$0xff]
        %v605 = vld [vmem:[%s1 + $0xd28] sm:$0xff]
        %v606 = vld [vmem:[%s1 + $0xd30] sm:$0xff]
        %v607 = vld [vmem:[%s1 + $0xd38] sm:$0xff]
        %v608 = vld [vmem:[%s1 + $0xd40] sm:$0xff]
        %v609 = vld [vmem:[%s1 + $0xd48] sm:$0xff]
        %v610 = vld [vmem:[%s1 + $0xd50] sm:$0xff]
        %v611 = vld [vmem:[%s1 + $0xd58] sm:$0xff]
        %v612 = vld [vmem:[%s1 + $0xd60] sm:$0xff]
        %v613 = vld [vmem:[%s1 + $0xd68] sm:$0xff]
        %v614 = vld [vmem:[%s1 + $0xd70] sm:$0xff]
        %v615 = vld [vmem:[%s1 + $0xd78] sm:$0xff]
        %v616 = vld [vmem:[%s1 + $0xd80] sm:$0xff]
        %v617 = vld [vmem:[%s1 + $0xd88] sm:$0xff]
        %v618 = vld [vmem:[%s1 + $0xd90] sm:$0xff]
        %v619 = vld [vmem:[%s1 + $0xd98] sm:$0xff]
        %v620 = vld [vmem:[%s1 + $0xda0] sm:$0xff]
        %v621 = vld [vmem:[%s1 + $0xda8] sm:$0xff]
        %v622 = vld [vmem:[%s1 + $0xdb0] sm:$0xff]
        %v623 = vld [vmem:[%s1 + $0xdb8] sm:$0xff]
        %v624 = vld [vmem:[%s1 + $0xdc0] sm:$0xff]
        %v625 = vld [vmem:[%s1 + $0xdc8] sm:$0xff]
        %v626 = vld [vmem:[%s1 + $0xdd0] sm:$0xff]
        %v627 = vld [vmem:[%s1 + $0xdd8] sm:$0xff]
        %v628 = vld [vmem:[%s1 + $0xde0] sm:$0xff]
        %v629 = vld [vmem:[%s1 + $0xde8] sm:$0xff]
        %v630 = vld [vmem:[%s1 + $0xdf0] sm:$0xff]
        %v631 = vld [vmem:[%s1 + $0xdf8] sm:$0xff]
        %v632 = vld [vmem:[%s1 + $0xe00] sm:$0xff]
        %v633 = vld [vmem:[%s1 + $0xe08] sm:$0xff]
        %v634 = vld [vmem:[%s1 + $0xe10] sm:$0xff]
        %v635 = vld [vmem:[%s1 + $0xe18] sm:$0xff]
        %v636 = vld [vmem:[%s1 + $0xe20] sm:$0xff]
        %v637 = vld [vmem:[%s1 + $0xe28] sm:$0xff]
        %v638 = vld [vmem:[%s1 + $0xe30] sm:$0xff]
        %v639 = vld [vmem:[%s1 + $0xe38] sm:$0xff]
        %v640 = vld [vmem:[%s1 + $0xe40] sm:$0xff]
        %v641 = vld [vmem:[%s1 + $0xe48] sm:$0xff]
        %v642 = vld [vmem:[%s1 + $0xe50] sm:$0xff]
        %v643 = vld [vmem:[%s1 + $0xe58] sm:$0xff]
        %v644 = vld [vmem:[%s1 + $0xe60] sm:$0xff]
        %v645 = vld [vmem:[%s1 + $0xe68] sm:$0xff]
        %v646 = vld [vmem:[%s1 + $0xe70] sm:$0xff]
        %v647 = vld [vmem:[%s1 + $0xe78] sm:$0xff]
        %v648 = vld [vmem:[%s1 + $0xe80] sm:$0xff]
        %v649 = vld [vmem:[%s1 + $0xe88] sm:$0xff]
        %v650 = vld [vmem:[%s1 + $0xe90] sm:$0xff]
        %v651 = vld [vmem:[%s1 + $0xe98] sm:$0xff]
        %v652 = vld [vmem:[%s1 + $0xea0] sm:$0xff]
        %v653 = vld [vmem:[%s1 + $0xea8] sm:$0xff]
        %v654 = vld [vmem:[%s1 + $0xeb0] sm:$0xff]
        %v655 = vld [vmem:[%s1 + $0xeb8] sm:$0xff]
        %v656 = vld [vmem:[%s1 + $0xec0] sm:$0xff]
        %v657 = vld [vmem:[%s1 + $0xec8] sm:$0xff]
        %v658 = vld [vmem:[%s1 + $0xed0] sm:$0xff]
        %v659 = vld [vmem:[%s1 + $0xed8] sm:$0xff]
        %v660 = vld [vmem:[%s1 + $0xee0] sm:$0xff]
        %v661 = vld [vmem:[%s1 + $0xee8] sm:$0xff]
        %v662 = vld [vmem:[%s1 + $0xef0] sm:$0xff]
        %v663 = vld [vmem:[%s1 + $0xef8] sm:$0xff]
        %v664 = vld [vmem:[%s1 + $0xf00] sm:$0xff]
        %v665 = vld [vmem:[%s1 + $0xf08] sm:$0xff]
        %v666 = vld [vmem:[%s1 + $0xf10] sm:$0xff]
        %v667 = vld [vmem:[%s1 + $0xf18] sm:$0xff]
        %v668 = vld [vmem:[%s1 + $0xf20] sm:$0xff]
        %v669 = vld [vmem:[%s1 + $0xf28] sm:$0xff]
        %v670 = vld [vmem:[%s1 + $0xf30] sm:$0xff]
        %v671 = vld [vmem:[%s1 + $0xf38] sm:$0xff]
        %v672 = vld [vmem:[%s1 + $0xf40] sm:$0xff]
        %v673 = vld [vmem:[%s1 + $0xf48] sm:$0xff]
        %v674 = vld [vmem:[%s1 + $0xf50] sm:$0xff]
        %v675 = vld [vmem:[%s1 + $0xf58] sm:$0xff]
        %v676 = vld [vmem:[%s1 + $0xf60] sm:$0xff]
        %v677 = vld [vmem:[%s1 + $0xf68] sm:$0xff]
        %v678 = vld [vmem:[%s1 + $0xf70] sm:$0xff]
        %v679 = vld [vmem:[%s1 + $0xf78] sm:$0xff]
        %v680 = vld [vmem:[%s1 + $0xf80] sm:$0xff]
        %v681 = vld [vmem:[%s1 + $0xf88] sm:$0xff]
        %v682 = vld [vmem:[%s1 + $0xf90] sm:$0xff]
        %v683 = vld [vmem:[%s1 + $0xf98] sm:$0xff]
        %v684 = vld [vmem:[%s1 + $0xfa0] sm:$0xff]
        %v685 = vld [vmem:[%s1 + $0xfa8] sm:$0xff]
        %v686 = vld [vmem:[%s1 + $0xfb0] sm:$0xff]
        %v687 = vld [vmem:[%s1 + $0xfb8] sm:$0xff]
        %v688 = vld [vmem:[%s1 + $0xfc0] sm:$0xff]
        %v689 = vld [vmem:[%s1 + $0xfc8] sm:$0xff]
        %v690 = vld [vmem:[%s1 + $0xfd0] sm:$0xff]
        %v691 = vld [vmem:[%s1 + $0xfd8] sm:$0xff]
        %v692 = vld [vmem:[%s1 + $0xfe0] sm:$0xff]
        %v693 = vld [vmem:[%s1 + $0xfe8] sm:$0xff]
        %v694 = vld [vmem:[%s1 + $0xff0] sm:$0xff]
        %v695 = vld [vmem:[%s1 + $0xff8] sm:$0xff]
        %v712 = vunpack.c.l.b16 %v168
        %v713 = vunpack.c.h.b16 %v168
        %v714 = vunpack.c.l.b16 %v169
        %v715 = vunpack.c.h.b16 %v169
        %v716 = vunpack.c.l.b16 %v170
        %v717 = vunpack.c.h.b16 %v170
        %v718 = vunpack.c.l.b16 %v171
        %v719 = vunpack.c.h.b16 %v171
        %v720 = vunpack.c.l.b16 %v172
        %v721 = vunpack.c.h.b16 %v172
        %v722 = vunpack.c.l.b16 %v173
        %v723 = vunpack.c.h.b16 %v173
        %v724 = vunpack.c.l.b16 %v174
        %v725 = vunpack.c.h.b16 %v174
        %v726 = vunpack.c.l.b16 %v175
        %v727 = vunpack.c.h.b16 %v175
        %v728 = vunpack.c.l.b16 %v176
        %v729 = vunpack.c.h.b16 %v176
        %v730 = vunpack.c.l.b16 %v177
        %v731 = vunpack.c.h.b16 %v177
        %v732 = vunpack.c.l.b16 %v178
        %v733 = vunpack.c.h.b16 %v178
        %v734 = vunpack.c.l.b16 %v179
        %v735 = vunpack.c.h.b16 %v179
        %v736 = vunpack.c.l.b16 %v180
        %v737 = vunpack.c.h.b16 %v180
        %v738 = vunpack.c.l.b16 %v181
        %v739 = vunpack.c.h.b16 %v181
        %v740 = vunpack.c.l.b16 %v182
        %v741 = vunpack.c.h.b16 %v182
        %v742 = vunpack.c.l.b16 %v183
        %v743 = vunpack.c.h.b16 %v183
        %v744 = vpack.c.b16 %v712, %v712
        %v745 = vpack.c.b16 %v713, %v713
        %v746 = vpack.c.b16 %v714, %v714
        %v747 = vpack.c.b16 %v715, %v715
        %v748 = vpack.c.b16 %v716, %v716
        %v749 = vpack.c.b16 %v717, %v717
        %v750 = vpack.c.b16 %v718, %v718
        %v751 = vpack.c.b16 %v719, %v719
        %v752 = vpack.c.b16 %v720, %v720
        %v753 = vpack.c.b16 %v721, %v721
        %v754 = vpack.c.b16 %v722, %v722
        %v755 = vpack.c.b16 %v723, %v723
        %v756 = vpack.c.b16 %v724, %v724
        %v757 = vpack.c.b16 %v725, %v725
        %v758 = vpack.c.b16 %v726, %v726
        %v759 = vpack.c.b16 %v727, %v727
        %v760 = vpack.c.b16 %v728, %v728
        %v761 = vpack.c.b16 %v729, %v729
        %v762 = vpack.c.b16 %v730, %v730
        %v763 = vpack.c.b16 %v731, %v731
        %v764 = vpack.c.b16 %v732, %v732
        %v765 = vpack.c.b16 %v733, %v733
        %v766 = vpack.c.b16 %v734, %v734
        %v767 = vpack.c.b16 %v735, %v735
        %v768 = vpack.c.b16 %v736, %v736
        %v769 = vpack.c.b16 %v737, %v737
        %v770 = vpack.c.b16 %v738, %v738
        %v771 = vpack.c.b16 %v739, %v739
        %v772 = vpack.c.b16 %v740, %v740
        %v773 = vpack.c.b16 %v741, %v741
        %v774 = vpack.c.b16 %v742, %v742
        %v775 = vpack.c.b16 %v743, %v743
        %v1320 = vunpack.c.l.b16 %v184
        %v1321 = vunpack.c.h.b16 %v184
        %v1322 = vunpack.c.l.b16 %v185
        %v1323 = vunpack.c.h.b16 %v185
        %v1324 = vunpack.c.l.b16 %v186
        %v1325 = vunpack.c.h.b16 %v186
        %v1326 = vunpack.c.l.b16 %v187
        %v1327 = vunpack.c.h.b16 %v187
        %v1328 = vunpack.c.l.b16 %v188
        %v1329 = vunpack.c.h.b16 %v188
        %v1330 = vunpack.c.l.b16 %v189
        %v1331 = vunpack.c.h.b16 %v189
        %v1332 = vunpack.c.l.b16 %v190
        %v1333 = vunpack.c.h.b16 %v190
        %v1334 = vunpack.c.l.b16 %v191
        %v1335 = vunpack.c.h.b16 %v191
        %v1336 = vunpack.c.l.b16 %v192
        %v1337 = vunpack.c.h.b16 %v192
        %v1338 = vunpack.c.l.b16 %v193
        %v1339 = vunpack.c.h.b16 %v193
        %v1340 = vunpack.c.l.b16 %v194
        %v1341 = vunpack.c.h.b16 %v194
        %v1342 = vunpack.c.l.b16 %v195
        %v1343 = vunpack.c.h.b16 %v195
        %v1344 = vunpack.c.l.b16 %v196
        %v1345 = vunpack.c.h.b16 %v196
        %v1346 = vunpack.c.l.b16 %v197
        %v1347 = vunpack.c.h.b16 %v197
        %v1348 = vunpack.c.l.b16 %v198
        %v1349 = vunpack.c.h.b16 %v198
        %v1350 = vunpack.c.l.b16 %v199
        %v1351 = vunpack.c.h.b16 %v199
        %v1352 = vunpack.c.l.b16 %v200
        %v1353 = vunpack.c.h.b16 %v200
        %v1354 = vunpack.c.l.b16 %v201
        %v1355 = vunpack.c.h.b16 %v201
        %v1356 = vunpack.c.l.b16 %v202
        %v1357 = vunpack.c.h.b16 %v202
        %v1358 = vunpack.c.l.b16 %v203
        %v1359 = vunpack.c.h.b16 %v203
        %v1360 = vunpack.c.l.b16 %v204
        %v1361 = vunpack.c.h.b16 %v204
        %v1362 = vunpack.c.l.b16 %v205
        %v1363 = vunpack.c.h.b16 %v205
        %v1364 = vunpack.c.l.b16 %v206
        %v1365 = vunpack.c.h.b16 %v206
        %v1366 = vunpack.c.l.b16 %v207
        %v1367 = vunpack.c.h.b16 %v207
        %v1368 = vunpack.c.l.b16 %v208
        %v1369 = vunpack.c.h.b16 %v208
        %v1370 = vunpack.c.l.b16 %v209
        %v1371 = vunpack.c.h.b16 %v209
        %v1372 = vunpack.c.l.b16 %v210
        %v1373 = vunpack.c.h.b16 %v210
        %v1374 = vunpack.c.l.b16 %v211
        %v1375 = vunpack.c.h.b16 %v211
        %v1376 = vunpack.c.l.b16 %v212
        %v1377 = vunpack.c.h.b16 %v212
        %v1378 = vunpack.c.l.b16 %v213
        %v1379 = vunpack.c.h.b16 %v213
        %v1380 = vunpack.c.l.b16 %v214
        %v1381 = vunpack.c.h.b16 %v214
        %v1382 = vunpack.c.l.b16 %v215
        %v1383 = vunpack.c.h.b16 %v215
        %v1384 = vunpack.c.l.b16 %v216
        %v1385 = vunpack.c.h.b16 %v216
        %v1386 = vunpack.c.l.b16 %v217
        %v1387 = vunpack.c.h.b16 %v217
        %v1388 = vunpack.c.l.b16 %v218
        %v1389 = vunpack.c.h.b16 %v218
        %v1390 = vunpack.c.l.b16 %v219
        %v1391 = vunpack.c.h.b16 %v219
        %v1392 = vunpack.c.l.b16 %v220
        %v1393 = vunpack.c.h.b16 %v220
        %v1394 = vunpack.c.l.b16 %v221
        %v1395 = vunpack.c.h.b16 %v221
        %v1396 = vunpack.c.l.b16 %v222
        %v1397 = vunpack.c.h.b16 %v222
        %v1398 = vunpack.c.l.b16 %v223
        %v1399 = vunpack.c.h.b16 %v223
        %v1400 = vunpack.c.l.b16 %v224
        %v1401 = vunpack.c.h.b16 %v224
        %v1402 = vunpack.c.l.b16 %v225
        %v1403 = vunpack.c.h.b16 %v225
        %v1404 = vunpack.c.l.b16 %v226
        %v1405 = vunpack.c.h.b16 %v226
        %v1406 = vunpack.c.l.b16 %v227
        %v1407 = vunpack.c.h.b16 %v227
        %v1408 = vunpack.c.l.b16 %v228
        %v1409 = vunpack.c.h.b16 %v228
        %v1410 = vunpack.c.l.b16 %v229
        %v1411 = vunpack.c.h.b16 %v229
        %v1412 = vunpack.c.l.b16 %v230
        %v1413 = vunpack.c.h.b16 %v230
        %v1414 = vunpack.c.l.b16 %v231
        %v1415 = vunpack.c.h.b16 %v231
        %v1416 = vunpack.c.l.b16 %v232
        %v1417 = vunpack.c.h.b16 %v232
        %v1418 = vunpack.c.l.b16 %v233
        %v1419 = vunpack.c.h.b16 %v233
        %v1420 = vunpack.c.l.b16 %v234
        %v1421 = vunpack.c.h.b16 %v234
        %v1422 = vunpack.c.l.b16 %v235
        %v1423 = vunpack.c.h.b16 %v235
        %v1424 = vunpack.c.l.b16 %v236
        %v1425 = vunpack.c.h.b16 %v236
        %v1426 = vunpack.c.l.b16 %v237
        %v1427 = vunpack.c.h.b16 %v237
        %v1428 = vunpack.c.l.b16 %v238
        %v1429 = vunpack.c.h.b16 %v238
        %v1430 = vunpack.c.l.b16 %v239
        %v1431 = vunpack.c.h.b16 %v239
        %v1432 = vunpack.c.l.b16 %v240
        %v1433 = vunpack.c.h.b16 %v240
        %v1434 = vunpack.c.l.b16 %v241
        %v1435 = vunpack.c.h.b16 %v241
        %v1436 = vunpack.c.l.b16 %v242
        %v1437 = vunpack.c.h.b16 %v242
        %v1438 = vunpack.c.l.b16 %v243
        %v1439 = vunpack.c.h.b16 %v243
        %v1440 = vunpack.c.l.b16 %v244
        %v1441 = vunpack.c.h.b16 %v244
        %v1442 = vunpack.c.l.b16 %v245
        %v1443 = vunpack.c.h.b16 %v245
        %v1444 = vunpack.c.l.b16 %v246
        %v1445 = vunpack.c.h.b16 %v246
        %v1446 = vunpack.c.l.b16 %v247
        %v1447 = vunpack.c.h.b16 %v247
        %v1448 = vunpack.c.l.b16 %v248
        %v1449 = vunpack.c.h.b16 %v248
        %v1450 = vunpack.c.l.b16 %v249
        %v1451 = vunpack.c.h.b16 %v249
        %v1452 = vunpack.c.l.b16 %v250
        %v1453 = vunpack.c.h.b16 %v250
        %v1454 = vunpack.c.l.b16 %v251
        %v1455 = vunpack.c.h.b16 %v251
        %v1456 = vunpack.c.l.b16 %v252
        %v1457 = vunpack.c.h.b16 %v252
        %v1458 = vunpack.c.l.b16 %v253
        %v1459 = vunpack.c.h.b16 %v253
        %v1460 = vunpack.c.l.b16 %v254
        %v1461 = vunpack.c.h.b16 %v254
        %v1462 = vunpack.c.l.b16 %v255
        %v1463 = vunpack.c.h.b16 %v255
        %v1464 = vunpack.c.l.b16 %v256
        %v1465 = vunpack.c.h.b16 %v256
        %v1466 = vunpack.c.l.b16 %v257
        %v1467 = vunpack.c.h.b16 %v257
        %v1468 = vunpack.c.l.b16 %v258
        %v1469 = vunpack.c.h.b16 %v258
        %v1470 = vunpack.c.l.b16 %v259
        %v1471 = vunpack.c.h.b16 %v259
        %v1472 = vunpack.c.l.b16 %v260
        %v1473 = vunpack.c.h.b16 %v260
        %v1474 = vunpack.c.l.b16 %v261
        %v1475 = vunpack.c.h.b16 %v261
        %v1476 = vunpack.c.l.b16 %v262
        %v1477 = vunpack.c.h.b16 %v262
        %v1478 = vunpack.c.l.b16 %v263
        %v1479 = vunpack.c.h.b16 %v263
        %v1480 = vunpack.c.l.b16 %v264
        %v1481 = vunpack.c.h.b16 %v264
        %v1482 = vunpack.c.l.b16 %v265
        %v1483 = vunpack.c.h.b16 %v265
        %v1484 = vunpack.c.l.b16 %v266
        %v1485 = vunpack.c.h.b16 %v266
        %v1486 = vunpack.c.l.b16 %v267
        %v1487 = vunpack.c.h.b16 %v267
        %v1488 = vunpack.c.l.b16 %v268
        %v1489 = vunpack.c.h.b16 %v268
        %v1490 = vunpack.c.l.b16 %v269
        %v1491 = vunpack.c.h.b16 %v269
        %v1492 = vunpack.c.l.b16 %v270
        %v1493 = vunpack.c.h.b16 %v270
        %v1494 = vunpack.c.l.b16 %v271
        %v1495 = vunpack.c.h.b16 %v271
        %v1496 = vunpack.c.l.b16 %v272
        %v1497 = vunpack.c.h.b16 %v272
        %v1498 = vunpack.c.l.b16 %v273
        %v1499 = vunpack.c.h.b16 %v273
        %v1500 = vunpack.c.l.b16 %v274
        %v1501 = vunpack.c.h.b16 %v274
        %v1502 = vunpack.c.l.b16 %v275
        %v1503 = vunpack.c.h.b16 %v275
        %v1504 = vunpack.c.l.b16 %v276
        %v1505 = vunpack.c.h.b16 %v276
        %v1506 = vunpack.c.l.b16 %v277
        %v1507 = vunpack.c.h.b16 %v277
        %v1508 = vunpack.c.l.b16 %v278
        %v1509 = vunpack.c.h.b16 %v278
        %v1510 = vunpack.c.l.b16 %v279
        %v1511 = vunpack.c.h.b16 %v279
        %v1512 = vunpack.c.l.b16 %v280
        %v1513 = vunpack.c.h.b16 %v280
        %v1514 = vunpack.c.l.b16 %v281
        %v1515 = vunpack.c.h.b16 %v281
        %v1516 = vunpack.c.l.b16 %v282
        %v1517 = vunpack.c.h.b16 %v282
        %v1518 = vunpack.c.l.b16 %v283
        %v1519 = vunpack.c.h.b16 %v283
        %v1520 = vunpack.c.l.b16 %v284
        %v1521 = vunpack.c.h.b16 %v284
        %v1522 = vunpack.c.l.b16 %v285
        %v1523 = vunpack.c.h.b16 %v285
        %v1524 = vunpack.c.l.b16 %v286
        %v1525 = vunpack.c.h.b16 %v286
        %v1526 = vunpack.c.l.b16 %v287
        %v1527 = vunpack.c.h.b16 %v287
        %v1528 = vunpack.c.l.b16 %v288
        %v1529 = vunpack.c.h.b16 %v288
        %v1530 = vunpack.c.l.b16 %v289
        %v1531 = vunpack.c.h.b16 %v289
        %v1532 = vunpack.c.l.b16 %v290
        %v1533 = vunpack.c.h.b16 %v290
        %v1534 = vunpack.c.l.b16 %v291
        %v1535 = vunpack.c.h.b16 %v291
        %v1536 = vunpack.c.l.b16 %v292
        %v1537 = vunpack.c.h.b16 %v292
        %v1538 = vunpack.c.l.b16 %v293
        %v1539 = vunpack.c.h.b16 %v293
        %v1540 = vunpack.c.l.b16 %v294
        %v1541 = vunpack.c.h.b16 %v294
        %v1542 = vunpack.c.l.b16 %v295
        %v1543 = vunpack.c.h.b16 %v295
        %v1544 = vunpack.c.l.b16 %v296
        %v1545 = vunpack.c.h.b16 %v296
        %v1546 = vunpack.c.l.b16 %v297
        %v1547 = vunpack.c.h.b16 %v297
        %v1548 = vunpack.c.l.b16 %v298
        %v1549 = vunpack.c.h.b16 %v298
        %v1550 = vunpack.c.l.b16 %v299
        %v1551 = vunpack.c.h.b16 %v299
        %v1552 = vunpack.c.l.b16 %v300
        %v1553 = vunpack.c.h.b16 %v300
        %v1554 = vunpack.c.l.b16 %v301
        %v1555 = vunpack.c.h.b16 %v301
        %v1556 = vunpack.c.l.b16 %v302
        %v1557 = vunpack.c.h.b16 %v302
        %v1558 = vunpack.c.l.b16 %v303
        %v1559 = vunpack.c.h.b16 %v303
        %v1560 = vunpack.c.l.b16 %v304
        %v1561 = vunpack.c.h.b16 %v304
        %v1562 = vunpack.c.l.b16 %v305
        %v1563 = vunpack.c.h.b16 %v305
        %v1564 = vunpack.c.l.b16 %v306
        %v1565 = vunpack.c.h.b16 %v306
        %v1566 = vunpack.c.l.b16 %v307
        %v1567 = vunpack.c.h.b16 %v307
        %v1568 = vunpack.c.l.b16 %v308
        %v1569 = vunpack.c.h.b16 %v308
        %v1570 = vunpack.c.l.b16 %v309
        %v1571 = vunpack.c.h.b16 %v309
        %v1572 = vunpack.c.l.b16 %v310
        %v1573 = vunpack.c.h.b16 %v310
        %v1574 = vunpack.c.l.b16 %v311
        %v1575 = vunpack.c.h.b16 %v311
        %v1576 = vunpack.c.l.b16 %v312
        %v1577 = vunpack.c.h.b16 %v312
        %v1578 = vunpack.c.l.b16 %v313
        %v1579 = vunpack.c.h.b16 %v313
        %v1580 = vunpack.c.l.b16 %v314
        %v1581 = vunpack.c.h.b16 %v314
        %v1582 = vunpack.c.l.b16 %v315
        %v1583 = vunpack.c.h.b16 %v315
        %v1584 = vunpack.c.l.b16 %v316
        %v1585 = vunpack.c.h.b16 %v316
        %v1586 = vunpack.c.l.b16 %v317
        %v1587 = vunpack.c.h.b16 %v317
        %v1588 = vunpack.c.l.b16 %v318
        %v1589 = vunpack.c.h.b16 %v318
        %v1590 = vunpack.c.l.b16 %v319
        %v1591 = vunpack.c.h.b16 %v319
        %v1592 = vunpack.c.l.b16 %v320
        %v1593 = vunpack.c.h.b16 %v320
        %v1594 = vunpack.c.l.b16 %v321
        %v1595 = vunpack.c.h.b16 %v321
        %v1596 = vunpack.c.l.b16 %v322
        %v1597 = vunpack.c.h.b16 %v322
        %v1598 = vunpack.c.l.b16 %v323
        %v1599 = vunpack.c.h.b16 %v323
        %v1600 = vunpack.c.l.b16 %v324
        %v1601 = vunpack.c.h.b16 %v324
        %v1602 = vunpack.c.l.b16 %v325
        %v1603 = vunpack.c.h.b16 %v325
        %v1604 = vunpack.c.l.b16 %v326
        %v1605 = vunpack.c.h.b16 %v326
        %v1606 = vunpack.c.l.b16 %v327
        %v1607 = vunpack.c.h.b16 %v327
        %v1608 = vunpack.c.l.b16 %v328
        %v1609 = vunpack.c.h.b16 %v328
        %v1610 = vunpack.c.l.b16 %v329
        %v1611 = vunpack.c.h.b16 %v329
        %v1612 = vunpack.c.l.b16 %v330
        %v1613 = vunpack.c.h.b16 %v330
        %v1614 = vunpack.c.l.b16 %v331
        %v1615 = vunpack.c.h.b16 %v331
        %v1616 = vunpack.c.l.b16 %v332
        %v1617 = vunpack.c.h.b16 %v332
        %v1618 = vunpack.c.l.b16 %v333
        %v1619 = vunpack.c.h.b16 %v333
        %v1620 = vunpack.c.l.b16 %v334
        %v1621 = vunpack.c.h.b16 %v334
        %v1622 = vunpack.c.l.b16 %v335
        %v1623 = vunpack.c.h.b16 %v335
        %v1624 = vunpack.c.l.b16 %v336
        %v1625 = vunpack.c.h.b16 %v336
        %v1626 = vunpack.c.l.b16 %v337
        %v1627 = vunpack.c.h.b16 %v337
        %v1628 = vunpack.c.l.b16 %v338
        %v1629 = vunpack.c.h.b16 %v338
        %v1630 = vunpack.c.l.b16 %v339
        %v1631 = vunpack.c.h.b16 %v339
        %v1632 = vunpack.c.l.b16 %v340
        %v1633 = vunpack.c.h.b16 %v340
        %v1634 = vunpack.c.l.b16 %v341
        %v1635 = vunpack.c.h.b16 %v341
        %v1636 = vunpack.c.l.b16 %v342
        %v1637 = vunpack.c.h.b16 %v342
        %v1638 = vunpack.c.l.b16 %v343
        %v1639 = vunpack.c.h.b16 %v343
        %v1640 = vunpack.c.l.b16 %v344
        %v1641 = vunpack.c.h.b16 %v344
        %v1642 = vunpack.c.l.b16 %v345
        %v1643 = vunpack.c.h.b16 %v345
        %v1644 = vunpack.c.l.b16 %v346
        %v1645 = vunpack.c.h.b16 %v346
        %v1646 = vunpack.c.l.b16 %v347
        %v1647 = vunpack.c.h.b16 %v347
        %v1648 = vunpack.c.l.b16 %v348
        %v1649 = vunpack.c.h.b16 %v348
        %v1650 = vunpack.c.l.b16 %v349
        %v1651 = vunpack.c.h.b16 %v349
        %v1652 = vunpack.c.l.b16 %v350
        %v1653 = vunpack.c.h.b16 %v350
        %v1654 = vunpack.c.l.b16 %v351
        %v1655 = vunpack.c.h.b16 %v351
        %v1656 = vunpack.c.l.b16 %v352
        %v1657 = vunpack.c.h.b16 %v352
        %v1658 = vunpack.c.l.b16 %v353
        %v1659 = vunpack.c.h.b16 %v353
        %v1660 = vunpack.c.l.b16 %v354
        %v1661 = vunpack.c.h.b16 %v354
        %v1662 = vunpack.c.l.b16 %v355
        %v1663 = vunpack.c.h.b16 %v355
        %v1664 = vunpack.c.l.b16 %v356
        %v1665 = vunpack.c.h.b16 %v356
        %v1666 = vunpack.c.l.b16 %v357
        %v1667 = vunpack.c.h.b16 %v357
        %v1668 = vunpack.c.l.b16 %v358
        %v1669 = vunpack.c.h.b16 %v358
        %v1670 = vunpack.c.l.b16 %v359
        %v1671 = vunpack.c.h.b16 %v359
        %v1672 = vunpack.c.l.b16 %v360
        %v1673 = vunpack.c.h.b16 %v360
        %v1674 = vunpack.c.l.b16 %v361
        %v1675 = vunpack.c.h.b16 %v361
        %v1676 = vunpack.c.l.b16 %v362
        %v1677 = vunpack.c.h.b16 %v362
        %v1678 = vunpack.c.l.b16 %v363
        %v1679 = vunpack.c.h.b16 %v363
        %v1680 = vunpack.c.l.b16 %v364
        %v1681 = vunpack.c.h.b16 %v364
        %v1682 = vunpack.c.l.b16 %v365
        %v1683 = vunpack.c.h.b16 %v365
        %v1684 = vunpack.c.l.b16 %v366
        %v1685 = vunpack.c.h.b16 %v366
        %v1686 = vunpack.c.l.b16 %v367
        %v1687 = vunpack.c.h.b16 %v367
        %v1688 = vunpack.c.l.b16 %v368
        %v1689 = vunpack.c.h.b16 %v368
        %v1690 = vunpack.c.l.b16 %v369
        %v1691 = vunpack.c.h.b16 %v369
        %v1692 = vunpack.c.l.b16 %v370
        %v1693 = vunpack.c.h.b16 %v370
        %v1694 = vunpack.c.l.b16 %v371
        %v1695 = vunpack.c.h.b16 %v371
        %v1696 = vunpack.c.l.b16 %v372
        %v1697 = vunpack.c.h.b16 %v372
        %v1698 = vunpack.c.l.b16 %v373
        %v1699 = vunpack.c.h.b16 %v373
        %v1700 = vunpack.c.l.b16 %v374
        %v1701 = vunpack.c.h.b16 %v374
        %v1702 = vunpack.c.l.b16 %v375
        %v1703 = vunpack.c.h.b16 %v375
        %v1704 = vunpack.c.l.b16 %v376
        %v1705 = vunpack.c.h.b16 %v376
        %v1706 = vunpack.c.l.b16 %v377
        %v1707 = vunpack.c.h.b16 %v377
        %v1708 = vunpack.c.l.b16 %v378
        %v1709 = vunpack.c.h.b16 %v378
        %v1710 = vunpack.c.l.b16 %v379
        %v1711 = vunpack.c.h.b16 %v379
        %v1712 = vunpack.c.l.b16 %v380
        %v1713 = vunpack.c.h.b16 %v380
        %v1714 = vunpack.c.l.b16 %v381
        %v1715 = vunpack.c.h.b16 %v381
        %v1716 = vunpack.c.l.b16 %v382
        %v1717 = vunpack.c.h.b16 %v382
        %v1718 = vunpack.c.l.b16 %v383
        %v1719 = vunpack.c.h.b16 %v383
        %v1720 = vunpack.c.l.b16 %v384
        %v1721 = vunpack.c.h.b16 %v384
        %v1722 = vunpack.c.l.b16 %v385
        %v1723 = vunpack.c.h.b16 %v385
        %v1724 = vunpack.c.l.b16 %v386
        %v1725 = vunpack.c.h.b16 %v386
        %v1726 = vunpack.c.l.b16 %v387
        %v1727 = vunpack.c.h.b16 %v387
        %v1728 = vunpack.c.l.b16 %v388
        %v1729 = vunpack.c.h.b16 %v388
        %v1730 = vunpack.c.l.b16 %v389
        %v1731 = vunpack.c.h.b16 %v389
        %v1732 = vunpack.c.l.b16 %v390
        %v1733 = vunpack.c.h.b16 %v390
        %v1734 = vunpack.c.l.b16 %v391
        %v1735 = vunpack.c.h.b16 %v391
        %v1736 = vunpack.c.l.b16 %v392
        %v1737 = vunpack.c.h.b16 %v392
        %v1738 = vunpack.c.l.b16 %v393
        %v1739 = vunpack.c.h.b16 %v393
        %v1740 = vunpack.c.l.b16 %v394
        %v1741 = vunpack.c.h.b16 %v394
        %v1742 = vunpack.c.l.b16 %v395
        %v1743 = vunpack.c.h.b16 %v395
        %v1744 = vunpack.c.l.b16 %v396
        %v1745 = vunpack.c.h.b16 %v396
        %v1746 = vunpack.c.l.b16 %v397
        %v1747 = vunpack.c.h.b16 %v397
        %v1748 = vunpack.c.l.b16 %v398
        %v1749 = vunpack.c.h.b16 %v398
        %v1750 = vunpack.c.l.b16 %v399
        %v1751 = vunpack.c.h.b16 %v399
        %v1752 = vunpack.c.l.b16 %v400
        %v1753 = vunpack.c.h.b16 %v400
        %v1754 = vunpack.c.l.b16 %v401
        %v1755 = vunpack.c.h.b16 %v401
        %v1756 = vunpack.c.l.b16 %v402
        %v1757 = vunpack.c.h.b16 %v402
        %v1758 = vunpack.c.l.b16 %v403
        %v1759 = vunpack.c.h.b16 %v403
        %v1760 = vunpack.c.l.b16 %v404
        %v1761 = vunpack.c.h.b16 %v404
        %v1762 = vunpack.c.l.b16 %v405
        %v1763 = vunpack.c.h.b16 %v405
        %v1764 = vunpack.c.l.b16 %v406
        %v1765 = vunpack.c.h.b16 %v406
        %v1766 = vunpack.c.l.b16 %v407
        %v1767 = vunpack.c.h.b16 %v407
        %v1768 = vunpack.c.l.b16 %v408
        %v1769 = vunpack.c.h.b16 %v408
        %v1770 = vunpack.c.l.b16 %v409
        %v1771 = vunpack.c.h.b16 %v409
        %v1772 = vunpack.c.l.b16 %v410
        %v1773 = vunpack.c.h.b16 %v410
        %v1774 = vunpack.c.l.b16 %v411
        %v1775 = vunpack.c.h.b16 %v411
        %v1776 = vunpack.c.l.b16 %v412
        %v1777 = vunpack.c.h.b16 %v412
        %v1778 = vunpack.c.l.b16 %v413
        %v1779 = vunpack.c.h.b16 %v413
        %v1780 = vunpack.c.l.b16 %v414
        %v1781 = vunpack.c.h.b16 %v414
        %v1782 = vunpack.c.l.b16 %v415
        %v1783 = vunpack.c.h.b16 %v415
        %v1784 = vunpack.c.l.b16 %v416
        %v1785 = vunpack.c.h.b16 %v416
        %v1786 = vunpack.c.l.b16 %v417
        %v1787 = vunpack.c.h.b16 %v417
        %v1788 = vunpack.c.l.b16 %v418
        %v1789 = vunpack.c.h.b16 %v418
        %v1790 = vunpack.c.l.b16 %v419
        %v1791 = vunpack.c.h.b16 %v419
        %v1792 = vunpack.c.l.b16 %v420
        %v1793 = vunpack.c.h.b16 %v420
        %v1794 = vunpack.c.l.b16 %v421
        %v1795 = vunpack.c.h.b16 %v421
        %v1796 = vunpack.c.l.b16 %v422
        %v1797 = vunpack.c.h.b16 %v422
        %v1798 = vunpack.c.l.b16 %v423
        %v1799 = vunpack.c.h.b16 %v423
        %v1800 = vunpack.c.l.b16 %v424
        %v1801 = vunpack.c.h.b16 %v424
        %v1802 = vunpack.c.l.b16 %v425
        %v1803 = vunpack.c.h.b16 %v425
        %v1804 = vunpack.c.l.b16 %v426
        %v1805 = vunpack.c.h.b16 %v426
        %v1806 = vunpack.c.l.b16 %v427
        %v1807 = vunpack.c.h.b16 %v427
        %v1808 = vunpack.c.l.b16 %v428
        %v1809 = vunpack.c.h.b16 %v428
        %v1810 = vunpack.c.l.b16 %v429
        %v1811 = vunpack.c.h.b16 %v429
        %v1812 = vunpack.c.l.b16 %v430
        %v1813 = vunpack.c.h.b16 %v430
        %v1814 = vunpack.c.l.b16 %v431
        %v1815 = vunpack.c.h.b16 %v431
        %v1816 = vunpack.c.l.b16 %v432
        %v1817 = vunpack.c.h.b16 %v432
        %v1818 = vunpack.c.l.b16 %v433
        %v1819 = vunpack.c.h.b16 %v433
        %v1820 = vunpack.c.l.b16 %v434
        %v1821 = vunpack.c.h.b16 %v434
        %v1822 = vunpack.c.l.b16 %v435
        %v1823 = vunpack.c.h.b16 %v435
        %v1824 = vunpack.c.l.b16 %v436
        %v1825 = vunpack.c.h.b16 %v436
        %v1826 = vunpack.c.l.b16 %v437
        %v1827 = vunpack.c.h.b16 %v437
        %v1828 = vunpack.c.l.b16 %v438
        %v1829 = vunpack.c.h.b16 %v438
        %v1830 = vunpack.c.l.b16 %v439
        %v1831 = vunpack.c.h.b16 %v439
        %v1832 = vunpack.c.l.b16 %v440
        %v1833 = vunpack.c.h.b16 %v440
        %v1834 = vunpack.c.l.b16 %v441
        %v1835 = vunpack.c.h.b16 %v441
        %v1836 = vunpack.c.l.b16 %v442
        %v1837 = vunpack.c.h.b16 %v442
        %v1838 = vunpack.c.l.b16 %v443
        %v1839 = vunpack.c.h.b16 %v443
        %v1840 = vunpack.c.l.b16 %v444
        %v1841 = vunpack.c.h.b16 %v444
        %v1842 = vunpack.c.l.b16 %v445
        %v1843 = vunpack.c.h.b16 %v445
        %v1844 = vunpack.c.l.b16 %v446
        %v1845 = vunpack.c.h.b16 %v446
        %v1846 = vunpack.c.l.b16 %v447
        %v1847 = vunpack.c.h.b16 %v447
        %v1848 = vunpack.c.l.b16 %v448
        %v1849 = vunpack.c.h.b16 %v448
        %v1850 = vunpack.c.l.b16 %v449
        %v1851 = vunpack.c.h.b16 %v449
        %v1852 = vunpack.c.l.b16 %v450
        %v1853 = vunpack.c.h.b16 %v450
        %v1854 = vunpack.c.l.b16 %v451
        %v1855 = vunpack.c.h.b16 %v451
        %v1856 = vunpack.c.l.b16 %v452
        %v1857 = vunpack.c.h.b16 %v452
        %v1858 = vunpack.c.l.b16 %v453
        %v1859 = vunpack.c.h.b16 %v453
        %v1860 = vunpack.c.l.b16 %v454
        %v1861 = vunpack.c.h.b16 %v454
        %v1862 = vunpack.c.l.b16 %v455
        %v1863 = vunpack.c.h.b16 %v455
        %v1864 = vunpack.c.l.b16 %v456
        %v1865 = vunpack.c.h.b16 %v456
        %v1866 = vunpack.c.l.b16 %v457
        %v1867 = vunpack.c.h.b16 %v457
        %v1868 = vunpack.c.l.b16 %v458
        %v1869 = vunpack.c.h.b16 %v458
        %v1870 = vunpack.c.l.b16 %v459
        %v1871 = vunpack.c.h.b16 %v459
        %v1872 = vunpack.c.l.b16 %v460
        %v1873 = vunpack.c.h.b16 %v460
        %v1874 = vunpack.c.l.b16 %v461
        %v1875 = vunpack.c.h.b16 %v461
        %v1876 = vunpack.c.l.b16 %v462
        %v1877 = vunpack.c.h.b16 %v462
        %v1878 = vunpack.c.l.b16 %v463
        %v1879 = vunpack.c.h.b16 %v463
        %v1880 = vunpack.c.l.b16 %v464
        %v1881 = vunpack.c.h.b16 %v464
        %v1882 = vunpack.c.l.b16 %v465
        %v1883 = vunpack.c.h.b16 %v465
        %v1884 = vunpack.c.l.b16 %v466
        %v1885 = vunpack.c.h.b16 %v466
        %v1886 = vunpack.c.l.b16 %v467
        %v1887 = vunpack.c.h.b16 %v467
        %v1888 = vunpack.c.l.b16 %v468
        %v1889 = vunpack.c.h.b16 %v468
        %v1890 = vunpack.c.l.b16 %v469
        %v1891 = vunpack.c.h.b16 %v469
        %v1892 = vunpack.c.l.b16 %v470
        %v1893 = vunpack.c.h.b16 %v470
        %v1894 = vunpack.c.l.b16 %v471
        %v1895 = vunpack.c.h.b16 %v471
        %v1896 = vunpack.c.l.b16 %v472
        %v1897 = vunpack.c.h.b16 %v472
        %v1898 = vunpack.c.l.b16 %v473
        %v1899 = vunpack.c.h.b16 %v473
        %v1900 = vunpack.c.l.b16 %v474
        %v1901 = vunpack.c.h.b16 %v474
        %v1902 = vunpack.c.l.b16 %v475
        %v1903 = vunpack.c.h.b16 %v475
        %v1904 = vunpack.c.l.b16 %v476
        %v1905 = vunpack.c.h.b16 %v476
        %v1906 = vunpack.c.l.b16 %v477
        %v1907 = vunpack.c.h.b16 %v477
        %v1908 = vunpack.c.l.b16 %v478
        %v1909 = vunpack.c.h.b16 %v478
        %v1910 = vunpack.c.l.b16 %v479
        %v1911 = vunpack.c.h.b16 %v479
        %v1912 = vunpack.c.l.b16 %v480
        %v1913 = vunpack.c.h.b16 %v480
        %v1914 = vunpack.c.l.b16 %v481
        %v1915 = vunpack.c.h.b16 %v481
        %v1916 = vunpack.c.l.b16 %v482
        %v1917 = vunpack.c.h.b16 %v482
        %v1918 = vunpack.c.l.b16 %v483
        %v1919 = vunpack.c.h.b16 %v483
        %v1920 = vunpack.c.l.b16 %v484
        %v1921 = vunpack.c.h.b16 %v484
        %v1922 = vunpack.c.l.b16 %v485
        %v1923 = vunpack.c.h.b16 %v485
        %v1924 = vunpack.c.l.b16 %v486
        %v1925 = vunpack.c.h.b16 %v486
        %v1926 = vunpack.c.l.b16 %v487
        %v1927 = vunpack.c.h.b16 %v487
        %v1928 = vunpack.c.l.b16 %v488
        %v1929 = vunpack.c.h.b16 %v488
        %v1930 = vunpack.c.l.b16 %v489
        %v1931 = vunpack.c.h.b16 %v489
        %v1932 = vunpack.c.l.b16 %v490
        %v1933 = vunpack.c.h.b16 %v490
        %v1934 = vunpack.c.l.b16 %v491
        %v1935 = vunpack.c.h.b16 %v491
        %v1936 = vunpack.c.l.b16 %v492
        %v1937 = vunpack.c.h.b16 %v492
        %v1938 = vunpack.c.l.b16 %v493
        %v1939 = vunpack.c.h.b16 %v493
        %v1940 = vunpack.c.l.b16 %v494
        %v1941 = vunpack.c.h.b16 %v494
        %v1942 = vunpack.c.l.b16 %v495
        %v1943 = vunpack.c.h.b16 %v495
        %v1944 = vunpack.c.l.b16 %v496
        %v1945 = vunpack.c.h.b16 %v496
        %v1946 = vunpack.c.l.b16 %v497
        %v1947 = vunpack.c.h.b16 %v497
        %v1948 = vunpack.c.l.b16 %v498
        %v1949 = vunpack.c.h.b16 %v498
        %v1950 = vunpack.c.l.b16 %v499
        %v1951 = vunpack.c.h.b16 %v499
        %v1952 = vunpack.c.l.b16 %v500
        %v1953 = vunpack.c.h.b16 %v500
        %v1954 = vunpack.c.l.b16 %v501
        %v1955 = vunpack.c.h.b16 %v501
        %v1956 = vunpack.c.l.b16 %v502
        %v1957 = vunpack.c.h.b16 %v502
        %v1958 = vunpack.c.l.b16 %v503
        %v1959 = vunpack.c.h.b16 %v503
        %v1960 = vunpack.c.l.b16 %v504
        %v1961 = vunpack.c.h.b16 %v504
        %v1962 = vunpack.c.l.b16 %v505
        %v1963 = vunpack.c.h.b16 %v505
        %v1964 = vunpack.c.l.b16 %v506
        %v1965 = vunpack.c.h.b16 %v506
        %v1966 = vunpack.c.l.b16 %v507
        %v1967 = vunpack.c.h.b16 %v507
        %v1968 = vunpack.c.l.b16 %v508
        %v1969 = vunpack.c.h.b16 %v508
        %v1970 = vunpack.c.l.b16 %v509
        %v1971 = vunpack.c.h.b16 %v509
        %v1972 = vunpack.c.l.b16 %v510
        %v1973 = vunpack.c.h.b16 %v510
        %v1974 = vunpack.c.l.b16 %v511
        %v1975 = vunpack.c.h.b16 %v511
        %v1976 = vunpack.c.l.b16 %v512
        %v1977 = vunpack.c.h.b16 %v512
        %v1978 = vunpack.c.l.b16 %v513
        %v1979 = vunpack.c.h.b16 %v513
        %v1980 = vunpack.c.l.b16 %v514
        %v1981 = vunpack.c.h.b16 %v514
        %v1982 = vunpack.c.l.b16 %v515
        %v1983 = vunpack.c.h.b16 %v515
        %v1984 = vunpack.c.l.b16 %v516
        %v1985 = vunpack.c.h.b16 %v516
        %v1986 = vunpack.c.l.b16 %v517
        %v1987 = vunpack.c.h.b16 %v517
        %v1988 = vunpack.c.l.b16 %v518
        %v1989 = vunpack.c.h.b16 %v518
        %v1990 = vunpack.c.l.b16 %v519
        %v1991 = vunpack.c.h.b16 %v519
        %v1992 = vunpack.c.l.b16 %v520
        %v1993 = vunpack.c.h.b16 %v520
        %v1994 = vunpack.c.l.b16 %v521
        %v1995 = vunpack.c.h.b16 %v521
        %v1996 = vunpack.c.l.b16 %v522
        %v1997 = vunpack.c.h.b16 %v522
        %v1998 = vunpack.c.l.b16 %v523
        %v1999 = vunpack.c.h.b16 %v523
        %v2000 = vunpack.c.l.b16 %v524
        %v2001 = vunpack.c.h.b16 %v524
        %v2002 = vunpack.c.l.b16 %v525
        %v2003 = vunpack.c.h.b16 %v525
        %v2004 = vunpack.c.l.b16 %v526
        %v2005 = vunpack.c.h.b16 %v526
        %v2006 = vunpack.c.l.b16 %v527
        %v2007 = vunpack.c.h.b16 %v527
        %v2008 = vunpack.c.l.b16 %v528
        %v2009 = vunpack.c.h.b16 %v528
        %v2010 = vunpack.c.l.b16 %v529
        %v2011 = vunpack.c.h.b16 %v529
        %v2012 = vunpack.c.l.b16 %v530
        %v2013 = vunpack.c.h.b16 %v530
        %v2014 = vunpack.c.l.b16 %v531
        %v2015 = vunpack.c.h.b16 %v531
        %v2016 = vunpack.c.l.b16 %v532
        %v2017 = vunpack.c.h.b16 %v532
        %v2018 = vunpack.c.l.b16 %v533
        %v2019 = vunpack.c.h.b16 %v533
        %v2020 = vunpack.c.l.b16 %v534
        %v2021 = vunpack.c.h.b16 %v534
        %v2022 = vunpack.c.l.b16 %v535
        %v2023 = vunpack.c.h.b16 %v535
        %v2024 = vunpack.c.l.b16 %v536
        %v2025 = vunpack.c.h.b16 %v536
        %v2026 = vunpack.c.l.b16 %v537
        %v2027 = vunpack.c.h.b16 %v537
        %v2028 = vunpack.c.l.b16 %v538
        %v2029 = vunpack.c.h.b16 %v538
        %v2030 = vunpack.c.l.b16 %v539
        %v2031 = vunpack.c.h.b16 %v539
        %v2032 = vunpack.c.l.b16 %v540
        %v2033 = vunpack.c.h.b16 %v540
        %v2034 = vunpack.c.l.b16 %v541
        %v2035 = vunpack.c.h.b16 %v541
        %v2036 = vunpack.c.l.b16 %v542
        %v2037 = vunpack.c.h.b16 %v542
        %v2038 = vunpack.c.l.b16 %v543
        %v2039 = vunpack.c.h.b16 %v543
        %v2040 = vunpack.c.l.b16 %v544
        %v2041 = vunpack.c.h.b16 %v544
        %v2042 = vunpack.c.l.b16 %v545
        %v2043 = vunpack.c.h.b16 %v545
        %v2044 = vunpack.c.l.b16 %v546
        %v2045 = vunpack.c.h.b16 %v546
        %v2046 = vunpack.c.l.b16 %v547
        %v2047 = vunpack.c.h.b16 %v547
        %v2048 = vunpack.c.l.b16 %v548
        %v2049 = vunpack.c.h.b16 %v548
        %v2050 = vunpack.c.l.b16 %v549
        %v2051 = vunpack.c.h.b16 %v549
        %v2052 = vunpack.c.l.b16 %v550
        %v2053 = vunpack.c.h.b16 %v550
        %v2054 = vunpack.c.l.b16 %v551
        %v2055 = vunpack.c.h.b16 %v551
        %v2056 = vunpack.c.l.b16 %v552
        %v2057 = vunpack.c.h.b16 %v552
        %v2058 = vunpack.c.l.b16 %v553
        %v2059 = vunpack.c.h.b16 %v553
        %v2060 = vunpack.c.l.b16 %v554
        %v2061 = vunpack.c.h.b16 %v554
        %v2062 = vunpack.c.l.b16 %v555
        %v2063 = vunpack.c.h.b16 %v555
        %v2064 = vunpack.c.l.b16 %v556
        %v2065 = vunpack.c.h.b16 %v556
        %v2066 = vunpack.c.l.b16 %v557
        %v2067 = vunpack.c.h.b16 %v557
        %v2068 = vunpack.c.l.b16 %v558
        %v2069 = vunpack.c.h.b16 %v558
        %v2070 = vunpack.c.l.b16 %v559
        %v2071 = vunpack.c.h.b16 %v559
        %v2072 = vunpack.c.l.b16 %v560
        %v2073 = vunpack.c.h.b16 %v560
        %v2074 = vunpack.c.l.b16 %v561
        %v2075 = vunpack.c.h.b16 %v561
        %v2076 = vunpack.c.l.b16 %v562
        %v2077 = vunpack.c.h.b16 %v562
        %v2078 = vunpack.c.l.b16 %v563
        %v2079 = vunpack.c.h.b16 %v563
        %v2080 = vunpack.c.l.b16 %v564
        %v2081 = vunpack.c.h.b16 %v564
        %v2082 = vunpack.c.l.b16 %v565
        %v2083 = vunpack.c.h.b16 %v565
        %v2084 = vunpack.c.l.b16 %v566
        %v2085 = vunpack.c.h.b16 %v566
        %v2086 = vunpack.c.l.b16 %v567
        %v2087 = vunpack.c.h.b16 %v567
        %v2088 = vunpack.c.l.b16 %v568
        %v2089 = vunpack.c.h.b16 %v568
        %v2090 = vunpack.c.l.b16 %v569
        %v2091 = vunpack.c.h.b16 %v569
        %v2092 = vunpack.c.l.b16 %v570
        %v2093 = vunpack.c.h.b16 %v570
        %v2094 = vunpack.c.l.b16 %v571
        %v2095 = vunpack.c.h.b16 %v571
        %v2096 = vunpack.c.l.b16 %v572
        %v2097 = vunpack.c.h.b16 %v572
        %v2098 = vunpack.c.l.b16 %v573
        %v2099 = vunpack.c.h.b16 %v573
        %v2100 = vunpack.c.l.b16 %v574
        %v2101 = vunpack.c.h.b16 %v574
        %v2102 = vunpack.c.l.b16 %v575
        %v2103 = vunpack.c.h.b16 %v575
        %v2104 = vunpack.c.l.b16 %v576
        %v2105 = vunpack.c.h.b16 %v576
        %v2106 = vunpack.c.l.b16 %v577
        %v2107 = vunpack.c.h.b16 %v577
        %v2108 = vunpack.c.l.b16 %v578
        %v2109 = vunpack.c.h.b16 %v578
        %v2110 = vunpack.c.l.b16 %v579
        %v2111 = vunpack.c.h.b16 %v579
        %v2112 = vunpack.c.l.b16 %v580
        %v2113 = vunpack.c.h.b16 %v580
        %v2114 = vunpack.c.l.b16 %v581
        %v2115 = vunpack.c.h.b16 %v581
        %v2116 = vunpack.c.l.b16 %v582
        %v2117 = vunpack.c.h.b16 %v582
        %v2118 = vunpack.c.l.b16 %v583
        %v2119 = vunpack.c.h.b16 %v583
        %v2120 = vunpack.c.l.b16 %v584
        %v2121 = vunpack.c.h.b16 %v584
        %v2122 = vunpack.c.l.b16 %v585
        %v2123 = vunpack.c.h.b16 %v585
        %v2124 = vunpack.c.l.b16 %v586
        %v2125 = vunpack.c.h.b16 %v586
        %v2126 = vunpack.c.l.b16 %v587
        %v2127 = vunpack.c.h.b16 %v587
        %v2128 = vunpack.c.l.b16 %v588
        %v2129 = vunpack.c.h.b16 %v588
        %v2130 = vunpack.c.l.b16 %v589
        %v2131 = vunpack.c.h.b16 %v589
        %v2132 = vunpack.c.l.b16 %v590
        %v2133 = vunpack.c.h.b16 %v590
        %v2134 = vunpack.c.l.b16 %v591
        %v2135 = vunpack.c.h.b16 %v591
        %v2136 = vunpack.c.l.b16 %v592
        %v2137 = vunpack.c.h.b16 %v592
        %v2138 = vunpack.c.l.b16 %v593
        %v2139 = vunpack.c.h.b16 %v593
        %v2140 = vunpack.c.l.b16 %v594
        %v2141 = vunpack.c.h.b16 %v594
        %v2142 = vunpack.c.l.b16 %v595
        %v2143 = vunpack.c.h.b16 %v595
        %v2144 = vunpack.c.l.b16 %v596
        %v2145 = vunpack.c.h.b16 %v596
        %v2146 = vunpack.c.l.b16 %v597
        %v2147 = vunpack.c.h.b16 %v597
        %v2148 = vunpack.c.l.b16 %v598
        %v2149 = vunpack.c.h.b16 %v598
        %v2150 = vunpack.c.l.b16 %v599
        %v2151 = vunpack.c.h.b16 %v599
        %v2152 = vunpack.c.l.b16 %v600
        %v2153 = vunpack.c.h.b16 %v600
        %v2154 = vunpack.c.l.b16 %v601
        %v2155 = vunpack.c.h.b16 %v601
        %v2156 = vunpack.c.l.b16 %v602
        %v2157 = vunpack.c.h.b16 %v602
        %v2158 = vunpack.c.l.b16 %v603
        %v2159 = vunpack.c.h.b16 %v603
        %v2160 = vunpack.c.l.b16 %v604
        %v2161 = vunpack.c.h.b16 %v604
        %v2162 = vunpack.c.l.b16 %v605
        %v2163 = vunpack.c.h.b16 %v605
        %v2164 = vunpack.c.l.b16 %v606
        %v2165 = vunpack.c.h.b16 %v606
        %v2166 = vunpack.c.l.b16 %v607
        %v2167 = vunpack.c.h.b16 %v607
        %v2168 = vunpack.c.l.b16 %v608
        %v2169 = vunpack.c.h.b16 %v608
        %v2170 = vunpack.c.l.b16 %v609
        %v2171 = vunpack.c.h.b16 %v609
        %v2172 = vunpack.c.l.b16 %v610
        %v2173 = vunpack.c.h.b16 %v610
        %v2174 = vunpack.c.l.b16 %v611
        %v2175 = vunpack.c.h.b16 %v611
        %v2176 = vunpack.c.l.b16 %v612
        %v2177 = vunpack.c.h.b16 %v612
        %v2178 = vunpack.c.l.b16 %v613
        %v2179 = vunpack.c.h.b16 %v613
        %v2180 = vunpack.c.l.b16 %v614
        %v2181 = vunpack.c.h.b16 %v614
        %v2182 = vunpack.c.l.b16 %v615
        %v2183 = vunpack.c.h.b16 %v615
        %v2184 = vunpack.c.l.b16 %v616
        %v2185 = vunpack.c.h.b16 %v616
        %v2186 = vunpack.c.l.b16 %v617
        %v2187 = vunpack.c.h.b16 %v617
        %v2188 = vunpack.c.l.b16 %v618
        %v2189 = vunpack.c.h.b16 %v618
        %v2190 = vunpack.c.l.b16 %v619
        %v2191 = vunpack.c.h.b16 %v619
        %v2192 = vunpack.c.l.b16 %v620
        %v2193 = vunpack.c.h.b16 %v620
        %v2194 = vunpack.c.l.b16 %v621
        %v2195 = vunpack.c.h.b16 %v621
        %v2196 = vunpack.c.l.b16 %v622
        %v2197 = vunpack.c.h.b16 %v622
        %v2198 = vunpack.c.l.b16 %v623
        %v2199 = vunpack.c.h.b16 %v623
        %v2200 = vunpack.c.l.b16 %v624
        %v2201 = vunpack.c.h.b16 %v624
        %v2202 = vunpack.c.l.b16 %v625
        %v2203 = vunpack.c.h.b16 %v625
        %v2204 = vunpack.c.l.b16 %v626
        %v2205 = vunpack.c.h.b16 %v626
        %v2206 = vunpack.c.l.b16 %v627
        %v2207 = vunpack.c.h.b16 %v627
        %v2208 = vunpack.c.l.b16 %v628
        %v2209 = vunpack.c.h.b16 %v628
        %v2210 = vunpack.c.l.b16 %v629
        %v2211 = vunpack.c.h.b16 %v629
        %v2212 = vunpack.c.l.b16 %v630
        %v2213 = vunpack.c.h.b16 %v630
        %v2214 = vunpack.c.l.b16 %v631
        %v2215 = vunpack.c.h.b16 %v631
        %v2216 = vunpack.c.l.b16 %v632
        %v2217 = vunpack.c.h.b16 %v632
        %v2218 = vunpack.c.l.b16 %v633
        %v2219 = vunpack.c.h.b16 %v633
        %v2220 = vunpack.c.l.b16 %v634
        %v2221 = vunpack.c.h.b16 %v634
        %v2222 = vunpack.c.l.b16 %v635
        %v2223 = vunpack.c.h.b16 %v635
        %v2224 = vunpack.c.l.b16 %v636
        %v2225 = vunpack.c.h.b16 %v636
        %v2226 = vunpack.c.l.b16 %v637
        %v2227 = vunpack.c.h.b16 %v637
        %v2228 = vunpack.c.l.b16 %v638
        %v2229 = vunpack.c.h.b16 %v638
        %v2230 = vunpack.c.l.b16 %v639
        %v2231 = vunpack.c.h.b16 %v639
        %v2232 = vunpack.c.l.b16 %v640
        %v2233 = vunpack.c.h.b16 %v640
        %v2234 = vunpack.c.l.b16 %v641
        %v2235 = vunpack.c.h.b16 %v641
        %v2236 = vunpack.c.l.b16 %v642
        %v2237 = vunpack.c.h.b16 %v642
        %v2238 = vunpack.c.l.b16 %v643
        %v2239 = vunpack.c.h.b16 %v643
        %v2240 = vunpack.c.l.b16 %v644
        %v2241 = vunpack.c.h.b16 %v644
        %v2242 = vunpack.c.l.b16 %v645
        %v2243 = vunpack.c.h.b16 %v645
        %v2244 = vunpack.c.l.b16 %v646
        %v2245 = vunpack.c.h.b16 %v646
        %v2246 = vunpack.c.l.b16 %v647
        %v2247 = vunpack.c.h.b16 %v647
        %v2248 = vunpack.c.l.b16 %v648
        %v2249 = vunpack.c.h.b16 %v648
        %v2250 = vunpack.c.l.b16 %v649
        %v2251 = vunpack.c.h.b16 %v649
        %v2252 = vunpack.c.l.b16 %v650
        %v2253 = vunpack.c.h.b16 %v650
        %v2254 = vunpack.c.l.b16 %v651
        %v2255 = vunpack.c.h.b16 %v651
        %v2256 = vunpack.c.l.b16 %v652
        %v2257 = vunpack.c.h.b16 %v652
        %v2258 = vunpack.c.l.b16 %v653
        %v2259 = vunpack.c.h.b16 %v653
        %v2260 = vunpack.c.l.b16 %v654
        %v2261 = vunpack.c.h.b16 %v654
        %v2262 = vunpack.c.l.b16 %v655
        %v2263 = vunpack.c.h.b16 %v655
        %v2264 = vunpack.c.l.b16 %v656
        %v2265 = vunpack.c.h.b16 %v656
        %v2266 = vunpack.c.l.b16 %v657
        %v2267 = vunpack.c.h.b16 %v657
        %v2268 = vunpack.c.l.b16 %v658
        %v2269 = vunpack.c.h.b16 %v658
        %v2270 = vunpack.c.l.b16 %v659
        %v2271 = vunpack.c.h.b16 %v659
        %v2272 = vunpack.c.l.b16 %v660
        %v2273 = vunpack.c.h.b16 %v660
        %v2274 = vunpack.c.l.b16 %v661
        %v2275 = vunpack.c.h.b16 %v661
        %v2276 = vunpack.c.l.b16 %v662
        %v2277 = vunpack.c.h.b16 %v662
        %v2278 = vunpack.c.l.b16 %v663
        %v2279 = vunpack.c.h.b16 %v663
        %v2280 = vunpack.c.l.b16 %v664
        %v2281 = vunpack.c.h.b16 %v664
        %v2282 = vunpack.c.l.b16 %v665
        %v2283 = vunpack.c.h.b16 %v665
        %v2284 = vunpack.c.l.b16 %v666
        %v2285 = vunpack.c.h.b16 %v666
        %v2286 = vunpack.c.l.b16 %v667
        %v2287 = vunpack.c.h.b16 %v667
        %v2288 = vunpack.c.l.b16 %v668
        %v2289 = vunpack.c.h.b16 %v668
        %v2290 = vunpack.c.l.b16 %v669
        %v2291 = vunpack.c.h.b16 %v669
        %v2292 = vunpack.c.l.b16 %v670
        %v2293 = vunpack.c.h.b16 %v670
        %v2294 = vunpack.c.l.b16 %v671
        %v2295 = vunpack.c.h.b16 %v671
        %v2296 = vunpack.c.l.b16 %v672
        %v2297 = vunpack.c.h.b16 %v672
        %v2298 = vunpack.c.l.b16 %v673
        %v2299 = vunpack.c.h.b16 %v673
        %v2300 = vunpack.c.l.b16 %v674
        %v2301 = vunpack.c.h.b16 %v674
        %v2302 = vunpack.c.l.b16 %v675
        %v2303 = vunpack.c.h.b16 %v675
        %v2304 = vunpack.c.l.b16 %v676
        %v2305 = vunpack.c.h.b16 %v676
        %v2306 = vunpack.c.l.b16 %v677
        %v2307 = vunpack.c.h.b16 %v677
        %v2308 = vunpack.c.l.b16 %v678
        %v2309 = vunpack.c.h.b16 %v678
        %v2310 = vunpack.c.l.b16 %v679
        %v2311 = vunpack.c.h.b16 %v679
        %v2312 = vunpack.c.l.b16 %v680
        %v2313 = vunpack.c.h.b16 %v680
        %v2314 = vunpack.c.l.b16 %v681
        %v2315 = vunpack.c.h.b16 %v681
        %v2316 = vunpack.c.l.b16 %v682
        %v2317 = vunpack.c.h.b16 %v682
        %v2318 = vunpack.c.l.b16 %v683
        %v2319 = vunpack.c.h.b16 %v683
        %v2320 = vunpack.c.l.b16 %v684
        %v2321 = vunpack.c.h.b16 %v684
        %v2322 = vunpack.c.l.b16 %v685
        %v2323 = vunpack.c.h.b16 %v685
        %v2324 = vunpack.c.l.b16 %v686
        %v2325 = vunpack.c.h.b16 %v686
        %v2326 = vunpack.c.l.b16 %v687
        %v2327 = vunpack.c.h.b16 %v687
        %v2328 = vunpack.c.l.b16 %v688
        %v2329 = vunpack.c.h.b16 %v688
        %v2330 = vunpack.c.l.b16 %v689
        %v2331 = vunpack.c.h.b16 %v689
        %v2332 = vunpack.c.l.b16 %v690
        %v2333 = vunpack.c.h.b16 %v690
        %v2334 = vunpack.c.l.b16 %v691
        %v2335 = vunpack.c.h.b16 %v691
        %v2336 = vunpack.c.l.b16 %v692
        %v2337 = vunpack.c.h.b16 %v692
        %v2338 = vunpack.c.l.b16 %v693
        %v2339 = vunpack.c.h.b16 %v693
        %v2340 = vunpack.c.l.b16 %v694
        %v2341 = vunpack.c.h.b16 %v694
        %v2342 = vunpack.c.l.b16 %v695
        %v2343 = vunpack.c.h.b16 %v695
        %v2344 = vpack.c.b16 %v1322, %v1320
        %v2345 = vpack.c.b16 %v1323, %v1321
        %v2346 = vpack.c.b16 %v1326, %v1324
        %v2347 = vpack.c.b16 %v1327, %v1325
        %v2348 = vpack.c.b16 %v1330, %v1328
        %v2349 = vpack.c.b16 %v1331, %v1329
        %v2350 = vpack.c.b16 %v1334, %v1332
        %v2351 = vpack.c.b16 %v1335, %v1333
        %v2352 = vpack.c.b16 %v1338, %v1336
        %v2353 = vpack.c.b16 %v1339, %v1337
        %v2354 = vpack.c.b16 %v1342, %v1340
        %v2355 = vpack.c.b16 %v1343, %v1341
        %v2356 = vpack.c.b16 %v1346, %v1344
        %v2357 = vpack.c.b16 %v1347, %v1345
        %v2358 = vpack.c.b16 %v1350, %v1348
        %v2359 = vpack.c.b16 %v1351, %v1349
        %v2360 = vpack.c.b16 %v1354, %v1352
        %v2361 = vpack.c.b16 %v1355, %v1353
        %v2362 = vpack.c.b16 %v1358, %v1356
        %v2363 = vpack.c.b16 %v1359, %v1357
        %v2364 = vpack.c.b16 %v1362, %v1360
        %v2365 = vpack.c.b16 %v1363, %v1361
        %v2366 = vpack.c.b16 %v1366, %v1364
        %v2367 = vpack.c.b16 %v1367, %v1365
        %v2368 = vpack.c.b16 %v1370, %v1368
        %v2369 = vpack.c.b16 %v1371, %v1369
        %v2370 = vpack.c.b16 %v1374, %v1372
        %v2371 = vpack.c.b16 %v1375, %v1373
        %v2372 = vpack.c.b16 %v1378, %v1376
        %v2373 = vpack.c.b16 %v1379, %v1377
        %v2374 = vpack.c.b16 %v1382, %v1380
        %v2375 = vpack.c.b16 %v1383, %v1381
        %v2376 = vpack.c.b16 %v1386, %v1384
        %v2377 = vpack.c.b16 %v1387, %v1385
        %v2378 = vpack.c.b16 %v1390, %v1388
        %v2379 = vpack.c.b16 %v1391, %v1389
        %v2380 = vpack.c.b16 %v1394, %v1392
        %v2381 = vpack.c.b16 %v1395, %v1393
        %v2382 = vpack.c.b16 %v1398, %v1396
        %v2383 = vpack.c.b16 %v1399, %v1397
        %v2384 = vpack.c.b16 %v1402, %v1400
        %v2385 = vpack.c.b16 %v1403, %v1401
        %v2386 = vpack.c.b16 %v1406, %v1404
        %v2387 = vpack.c.b16 %v1407, %v1405
        %v2388 = vpack.c.b16 %v1410, %v1408
        %v2389 = vpack.c.b16 %v1411, %v1409
        %v2390 = vpack.c.b16 %v1414, %v1412
        %v2391 = vpack.c.b16 %v1415, %v1413
        %v2392 = vpack.c.b16 %v1418, %v1416
        %v2393 = vpack.c.b16 %v1419, %v1417
        %v2394 = vpack.c.b16 %v1422, %v1420
        %v2395 = vpack.c.b16 %v1423, %v1421
        %v2396 = vpack.c.b16 %v1426, %v1424
        %v2397 = vpack.c.b16 %v1427, %v1425
        %v2398 = vpack.c.b16 %v1430, %v1428
        %v2399 = vpack.c.b16 %v1431, %v1429
        %v2400 = vpack.c.b16 %v1434, %v1432
        %v2401 = vpack.c.b16 %v1435, %v1433
        %v2402 = vpack.c.b16 %v1438, %v1436
        %v2403 = vpack.c.b16 %v1439, %v1437
        %v2404 = vpack.c.b16 %v1442, %v1440
        %v2405 = vpack.c.b16 %v1443, %v1441
        %v2406 = vpack.c.b16 %v1446, %v1444
        %v2407 = vpack.c.b16 %v1447, %v1445
        %v2408 = vpack.c.b16 %v1450, %v1448
        %v2409 = vpack.c.b16 %v1451, %v1449
        %v2410 = vpack.c.b16 %v1454, %v1452
        %v2411 = vpack.c.b16 %v1455, %v1453
        %v2412 = vpack.c.b16 %v1458, %v1456
        %v2413 = vpack.c.b16 %v1459, %v1457
        %v2414 = vpack.c.b16 %v1462, %v1460
        %v2415 = vpack.c.b16 %v1463, %v1461
        %v2416 = vpack.c.b16 %v1466, %v1464
        %v2417 = vpack.c.b16 %v1467, %v1465
        %v2418 = vpack.c.b16 %v1470, %v1468
        %v2419 = vpack.c.b16 %v1471, %v1469
        %v2420 = vpack.c.b16 %v1474, %v1472
        %v2421 = vpack.c.b16 %v1475, %v1473
        %v2422 = vpack.c.b16 %v1478, %v1476
        %v2423 = vpack.c.b16 %v1479, %v1477
        %v2424 = vpack.c.b16 %v1482, %v1480
        %v2425 = vpack.c.b16 %v1483, %v1481
        %v2426 = vpack.c.b16 %v1486, %v1484
        %v2427 = vpack.c.b16 %v1487, %v1485
        %v2428 = vpack.c.b16 %v1490, %v1488
        %v2429 = vpack.c.b16 %v1491, %v1489
        %v2430 = vpack.c.b16 %v1494, %v1492
        %v2431 = vpack.c.b16 %v1495, %v1493
        %v2432 = vpack.c.b16 %v1498, %v1496
        %v2433 = vpack.c.b16 %v1499, %v1497
        %v2434 = vpack.c.b16 %v1502, %v1500
        %v2435 = vpack.c.b16 %v1503, %v1501
        %v2436 = vpack.c.b16 %v1506, %v1504
        %v2437 = vpack.c.b16 %v1507, %v1505
        %v2438 = vpack.c.b16 %v1510, %v1508
        %v2439 = vpack.c.b16 %v1511, %v1509
        %v2440 = vpack.c.b16 %v1514, %v1512
        %v2441 = vpack.c.b16 %v1515, %v1513
        %v2442 = vpack.c.b16 %v1518, %v1516
        %v2443 = vpack.c.b16 %v1519, %v1517
        %v2444 = vpack.c.b16 %v1522, %v1520
        %v2445 = vpack.c.b16 %v1523, %v1521
        %v2446 = vpack.c.b16 %v1526, %v1524
        %v2447 = vpack.c.b16 %v1527, %v1525
        %v2448 = vpack.c.b16 %v1530, %v1528
        %v2449 = vpack.c.b16 %v1531, %v1529
        %v2450 = vpack.c.b16 %v1534, %v1532
        %v2451 = vpack.c.b16 %v1535, %v1533
        %v2452 = vpack.c.b16 %v1538, %v1536
        %v2453 = vpack.c.b16 %v1539, %v1537
        %v2454 = vpack.c.b16 %v1542, %v1540
        %v2455 = vpack.c.b16 %v1543, %v1541
        %v2456 = vpack.c.b16 %v1546, %v1544
        %v2457 = vpack.c.b16 %v1547, %v1545
        %v2458 = vpack.c.b16 %v1550, %v1548
        %v2459 = vpack.c.b16 %v1551, %v1549
        %v2460 = vpack.c.b16 %v1554, %v1552
        %v2461 = vpack.c.b16 %v1555, %v1553
        %v2462 = vpack.c.b16 %v1558, %v1556
        %v2463 = vpack.c.b16 %v1559, %v1557
        %v2464 = vpack.c.b16 %v1562, %v1560
        %v2465 = vpack.c.b16 %v1563, %v1561
        %v2466 = vpack.c.b16 %v1566, %v1564
        %v2467 = vpack.c.b16 %v1567, %v1565
        %v2468 = vpack.c.b16 %v1570, %v1568
        %v2469 = vpack.c.b16 %v1571, %v1569
        %v2470 = vpack.c.b16 %v1574, %v1572
        %v2471 = vpack.c.b16 %v1575, %v1573
        %v2472 = vpack.c.b16 %v1578, %v1576
        %v2473 = vpack.c.b16 %v1579, %v1577
        %v2474 = vpack.c.b16 %v1582, %v1580
        %v2475 = vpack.c.b16 %v1583, %v1581
        %v2476 = vpack.c.b16 %v1586, %v1584
        %v2477 = vpack.c.b16 %v1587, %v1585
        %v2478 = vpack.c.b16 %v1590, %v1588
        %v2479 = vpack.c.b16 %v1591, %v1589
        %v2480 = vpack.c.b16 %v1594, %v1592
        %v2481 = vpack.c.b16 %v1595, %v1593
        %v2482 = vpack.c.b16 %v1598, %v1596
        %v2483 = vpack.c.b16 %v1599, %v1597
        %v2484 = vpack.c.b16 %v1602, %v1600
        %v2485 = vpack.c.b16 %v1603, %v1601
        %v2486 = vpack.c.b16 %v1606, %v1604
        %v2487 = vpack.c.b16 %v1607, %v1605
        %v2488 = vpack.c.b16 %v1610, %v1608
        %v2489 = vpack.c.b16 %v1611, %v1609
        %v2490 = vpack.c.b16 %v1614, %v1612
        %v2491 = vpack.c.b16 %v1615, %v1613
        %v2492 = vpack.c.b16 %v1618, %v1616
        %v2493 = vpack.c.b16 %v1619, %v1617
        %v2494 = vpack.c.b16 %v1622, %v1620
        %v2495 = vpack.c.b16 %v1623, %v1621
        %v2496 = vpack.c.b16 %v1626, %v1624
        %v2497 = vpack.c.b16 %v1627, %v1625
        %v2498 = vpack.c.b16 %v1630, %v1628
        %v2499 = vpack.c.b16 %v1631, %v1629
        %v2500 = vpack.c.b16 %v1634, %v1632
        %v2501 = vpack.c.b16 %v1635, %v1633
        %v2502 = vpack.c.b16 %v1638, %v1636
        %v2503 = vpack.c.b16 %v1639, %v1637
        %v2504 = vpack.c.b16 %v1642, %v1640
        %v2505 = vpack.c.b16 %v1643, %v1641
        %v2506 = vpack.c.b16 %v1646, %v1644
        %v2507 = vpack.c.b16 %v1647, %v1645
        %v2508 = vpack.c.b16 %v1650, %v1648
        %v2509 = vpack.c.b16 %v1651, %v1649
        %v2510 = vpack.c.b16 %v1654, %v1652
        %v2511 = vpack.c.b16 %v1655, %v1653
        %v2512 = vpack.c.b16 %v1658, %v1656
        %v2513 = vpack.c.b16 %v1659, %v1657
        %v2514 = vpack.c.b16 %v1662, %v1660
        %v2515 = vpack.c.b16 %v1663, %v1661
        %v2516 = vpack.c.b16 %v1666, %v1664
        %v2517 = vpack.c.b16 %v1667, %v1665
        %v2518 = vpack.c.b16 %v1670, %v1668
        %v2519 = vpack.c.b16 %v1671, %v1669
        %v2520 = vpack.c.b16 %v1674, %v1672
        %v2521 = vpack.c.b16 %v1675, %v1673
        %v2522 = vpack.c.b16 %v1678, %v1676
        %v2523 = vpack.c.b16 %v1679, %v1677
        %v2524 = vpack.c.b16 %v1682, %v1680
        %v2525 = vpack.c.b16 %v1683, %v1681
        %v2526 = vpack.c.b16 %v1686, %v1684
        %v2527 = vpack.c.b16 %v1687, %v1685
        %v2528 = vpack.c.b16 %v1690, %v1688
        %v2529 = vpack.c.b16 %v1691, %v1689
        %v2530 = vpack.c.b16 %v1694, %v1692
        %v2531 = vpack.c.b16 %v1695, %v1693
        %v2532 = vpack.c.b16 %v1698, %v1696
        %v2533 = vpack.c.b16 %v1699, %v1697
        %v2534 = vpack.c.b16 %v1702, %v1700
        %v2535 = vpack.c.b16 %v1703, %v1701
        %v2536 = vpack.c.b16 %v1706, %v1704
        %v2537 = vpack.c.b16 %v1707, %v1705
        %v2538 = vpack.c.b16 %v1710, %v1708
        %v2539 = vpack.c.b16 %v1711, %v1709
        %v2540 = vpack.c.b16 %v1714, %v1712
        %v2541 = vpack.c.b16 %v1715, %v1713
        %v2542 = vpack.c.b16 %v1718, %v1716
        %v2543 = vpack.c.b16 %v1719, %v1717
        %v2544 = vpack.c.b16 %v1722, %v1720
        %v2545 = vpack.c.b16 %v1723, %v1721
        %v2546 = vpack.c.b16 %v1726, %v1724
        %v2547 = vpack.c.b16 %v1727, %v1725
        %v2548 = vpack.c.b16 %v1730, %v1728
        %v2549 = vpack.c.b16 %v1731, %v1729
        %v2550 = vpack.c.b16 %v1734, %v1732
        %v2551 = vpack.c.b16 %v1735, %v1733
        %v2552 = vpack.c.b16 %v1738, %v1736
        %v2553 = vpack.c.b16 %v1739, %v1737
        %v2554 = vpack.c.b16 %v1742, %v1740
        %v2555 = vpack.c.b16 %v1743, %v1741
        %v2556 = vpack.c.b16 %v1746, %v1744
        %v2557 = vpack.c.b16 %v1747, %v1745
        %v2558 = vpack.c.b16 %v1750, %v1748
        %v2559 = vpack.c.b16 %v1751, %v1749
        %v2560 = vpack.c.b16 %v1754, %v1752
        %v2561 = vpack.c.b16 %v1755, %v1753
        %v2562 = vpack.c.b16 %v1758, %v1756
        %v2563 = vpack.c.b16 %v1759, %v1757
        %v2564 = vpack.c.b16 %v1762, %v1760
        %v2565 = vpack.c.b16 %v1763, %v1761
        %v2566 = vpack.c.b16 %v1766, %v1764
        %v2567 = vpack.c.b16 %v1767, %v1765
        %v2568 = vpack.c.b16 %v1770, %v1768
        %v2569 = vpack.c.b16 %v1771, %v1769
        %v2570 = vpack.c.b16 %v1774, %v1772
        %v2571 = vpack.c.b16 %v1775, %v1773
        %v2572 = vpack.c.b16 %v1778, %v1776
        %v2573 = vpack.c.b16 %v1779, %v1777
        %v2574 = vpack.c.b16 %v1782, %v1780
        %v2575 = vpack.c.b16 %v1783, %v1781
        %v2576 = vpack.c.b16 %v1786, %v1784
        %v2577 = vpack.c.b16 %v1787, %v1785
        %v2578 = vpack.c.b16 %v1790, %v1788
        %v2579 = vpack.c.b16 %v1791, %v1789
        %v2580 = vpack.c.b16 %v1794, %v1792
        %v2581 = vpack.c.b16 %v1795, %v1793
        %v2582 = vpack.c.b16 %v1798, %v1796
        %v2583 = vpack.c.b16 %v1799, %v1797
        %v2584 = vpack.c.b16 %v1802, %v1800
        %v2585 = vpack.c.b16 %v1803, %v1801
        %v2586 = vpack.c.b16 %v1806, %v1804
        %v2587 = vpack.c.b16 %v1807, %v1805
        %v2588 = vpack.c.b16 %v1810, %v1808
        %v2589 = vpack.c.b16 %v1811, %v1809
        %v2590 = vpack.c.b16 %v1814, %v1812
        %v2591 = vpack.c.b16 %v1815, %v1813
        %v2592 = vpack.c.b16 %v1818, %v1816
        %v2593 = vpack.c.b16 %v1819, %v1817
        %v2594 = vpack.c.b16 %v1822, %v1820
        %v2595 = vpack.c.b16 %v1823, %v1821
        %v2596 = vpack.c.b16 %v1826, %v1824
        %v2597 = vpack.c.b16 %v1827, %v1825
        %v2598 = vpack.c.b16 %v1830, %v1828
        %v2599 = vpack.c.b16 %v1831, %v1829
        %v2600 = vpack.c.b16 %v1834, %v1832
        %v2601 = vpack.c.b16 %v1835, %v1833
        %v2602 = vpack.c.b16 %v1838, %v1836
        %v2603 = vpack.c.b16 %v1839, %v1837
        %v2604 = vpack.c.b16 %v1842, %v1840
        %v2605 = vpack.c.b16 %v1843, %v1841
        %v2606 = vpack.c.b16 %v1846, %v1844
        %v2607 = vpack.c.b16 %v1847, %v1845
        %v2608 = vpack.c.b16 %v1850, %v1848
        %v2609 = vpack.c.b16 %v1851, %v1849
        %v2610 = vpack.c.b16 %v1854, %v1852
        %v2611 = vpack.c.b16 %v1855, %v1853
        %v2612 = vpack.c.b16 %v1858, %v1856
        %v2613 = vpack.c.b16 %v1859, %v1857
        %v2614 = vpack.c.b16 %v1862, %v1860
        %v2615 = vpack.c.b16 %v1863, %v1861
        %v2616 = vpack.c.b16 %v1866, %v1864
        %v2617 = vpack.c.b16 %v1867, %v1865
        %v2618 = vpack.c.b16 %v1870, %v1868
        %v2619 = vpack.c.b16 %v1871, %v1869
        %v2620 = vpack.c.b16 %v1874, %v1872
        %v2621 = vpack.c.b16 %v1875, %v1873
        %v2622 = vpack.c.b16 %v1878, %v1876
        %v2623 = vpack.c.b16 %v1879, %v1877
        %v2624 = vpack.c.b16 %v1882, %v1880
        %v2625 = vpack.c.b16 %v1883, %v1881
        %v2626 = vpack.c.b16 %v1886, %v1884
        %v2627 = vpack.c.b16 %v1887, %v1885
        %v2628 = vpack.c.b16 %v1890, %v1888
        %v2629 = vpack.c.b16 %v1891, %v1889
        %v2630 = vpack.c.b16 %v1894, %v1892
        %v2631 = vpack.c.b16 %v1895, %v1893
        %v2632 = vpack.c.b16 %v1898, %v1896
        %v2633 = vpack.c.b16 %v1899, %v1897
        %v2634 = vpack.c.b16 %v1902, %v1900
        %v2635 = vpack.c.b16 %v1903, %v1901
        %v2636 = vpack.c.b16 %v1906, %v1904
        %v2637 = vpack.c.b16 %v1907, %v1905
        %v2638 = vpack.c.b16 %v1910, %v1908
        %v2639 = vpack.c.b16 %v1911, %v1909
        %v2640 = vpack.c.b16 %v1914, %v1912
        %v2641 = vpack.c.b16 %v1915, %v1913
        %v2642 = vpack.c.b16 %v1918, %v1916
        %v2643 = vpack.c.b16 %v1919, %v1917
        %v2644 = vpack.c.b16 %v1922, %v1920
        %v2645 = vpack.c.b16 %v1923, %v1921
        %v2646 = vpack.c.b16 %v1926, %v1924
        %v2647 = vpack.c.b16 %v1927, %v1925
        %v2648 = vpack.c.b16 %v1930, %v1928
        %v2649 = vpack.c.b16 %v1931, %v1929
        %v2650 = vpack.c.b16 %v1934, %v1932
        %v2651 = vpack.c.b16 %v1935, %v1933
        %v2652 = vpack.c.b16 %v1938, %v1936
        %v2653 = vpack.c.b16 %v1939, %v1937
        %v2654 = vpack.c.b16 %v1942, %v1940
        %v2655 = vpack.c.b16 %v1943, %v1941
        %v2656 = vpack.c.b16 %v1946, %v1944
        %v2657 = vpack.c.b16 %v1947, %v1945
        %v2658 = vpack.c.b16 %v1950, %v1948
        %v2659 = vpack.c.b16 %v1951, %v1949
        %v2660 = vpack.c.b16 %v1954, %v1952
        %v2661 = vpack.c.b16 %v1955, %v1953
        %v2662 = vpack.c.b16 %v1958, %v1956
        %v2663 = vpack.c.b16 %v1959, %v1957
        %v2664 = vpack.c.b16 %v1962, %v1960
        %v2665 = vpack.c.b16 %v1963, %v1961
        %v2666 = vpack.c.b16 %v1966, %v1964
        %v2667 = vpack.c.b16 %v1967, %v1965
        %v2668 = vpack.c.b16 %v1970, %v1968
        %v2669 = vpack.c.b16 %v1971, %v1969
        %v2670 = vpack.c.b16 %v1974, %v1972
        %v2671 = vpack.c.b16 %v1975, %v1973
        %v2672 = vpack.c.b16 %v1978, %v1976
        %v2673 = vpack.c.b16 %v1979, %v1977
        %v2674 = vpack.c.b16 %v1982, %v1980
        %v2675 = vpack.c.b16 %v1983, %v1981
        %v2676 = vpack.c.b16 %v1986, %v1984
        %v2677 = vpack.c.b16 %v1987, %v1985
        %v2678 = vpack.c.b16 %v1990, %v1988
        %v2679 = vpack.c.b16 %v1991, %v1989
        %v2680 = vpack.c.b16 %v1994, %v1992
        %v2681 = vpack.c.b16 %v1995, %v1993
        %v2682 = vpack.c.b16 %v1998, %v1996
        %v2683 = vpack.c.b16 %v1999, %v1997
        %v2684 = vpack.c.b16 %v2002, %v2000
        %v2685 = vpack.c.b16 %v2003, %v2001
        %v2686 = vpack.c.b16 %v2006, %v2004
        %v2687 = vpack.c.b16 %v2007, %v2005
        %v2688 = vpack.c.b16 %v2010, %v2008
        %v2689 = vpack.c.b16 %v2011, %v2009
        %v2690 = vpack.c.b16 %v2014, %v2012
        %v2691 = vpack.c.b16 %v2015, %v2013
        %v2692 = vpack.c.b16 %v2018, %v2016
        %v2693 = vpack.c.b16 %v2019, %v2017
        %v2694 = vpack.c.b16 %v2022, %v2020
        %v2695 = vpack.c.b16 %v2023, %v2021
        %v2696 = vpack.c.b16 %v2026, %v2024
        %v2697 = vpack.c.b16 %v2027, %v2025
        %v2698 = vpack.c.b16 %v2030, %v2028
        %v2699 = vpack.c.b16 %v2031, %v2029
        %v2700 = vpack.c.b16 %v2034, %v2032
        %v2701 = vpack.c.b16 %v2035, %v2033
        %v2702 = vpack.c.b16 %v2038, %v2036
        %v2703 = vpack.c.b16 %v2039, %v2037
        %v2704 = vpack.c.b16 %v2042, %v2040
        %v2705 = vpack.c.b16 %v2043, %v2041
        %v2706 = vpack.c.b16 %v2046, %v2044
        %v2707 = vpack.c.b16 %v2047, %v2045
        %v2708 = vpack.c.b16 %v2050, %v2048
        %v2709 = vpack.c.b16 %v2051, %v2049
        %v2710 = vpack.c.b16 %v2054, %v2052
        %v2711 = vpack.c.b16 %v2055, %v2053
        %v2712 = vpack.c.b16 %v2058, %v2056
        %v2713 = vpack.c.b16 %v2059, %v2057
        %v2714 = vpack.c.b16 %v2062, %v2060
        %v2715 = vpack.c.b16 %v2063, %v2061
        %v2716 = vpack.c.b16 %v2066, %v2064
        %v2717 = vpack.c.b16 %v2067, %v2065
        %v2718 = vpack.c.b16 %v2070, %v2068
        %v2719 = vpack.c.b16 %v2071, %v2069
        %v2720 = vpack.c.b16 %v2074, %v2072
        %v2721 = vpack.c.b16 %v2075, %v2073
        %v2722 = vpack.c.b16 %v2078, %v2076
        %v2723 = vpack.c.b16 %v2079, %v2077
        %v2724 = vpack.c.b16 %v2082, %v2080
        %v2725 = vpack.c.b16 %v2083, %v2081
        %v2726 = vpack.c.b16 %v2086, %v2084
        %v2727 = vpack.c.b16 %v2087, %v2085
        %v2728 = vpack.c.b16 %v2090, %v2088
        %v2729 = vpack.c.b16 %v2091, %v2089
        %v2730 = vpack.c.b16 %v2094, %v2092
        %v2731 = vpack.c.b16 %v2095, %v2093
        %v2732 = vpack.c.b16 %v2098, %v2096
        %v2733 = vpack.c.b16 %v2099, %v2097
        %v2734 = vpack.c.b16 %v2102, %v2100
        %v2735 = vpack.c.b16 %v2103, %v2101
        %v2736 = vpack.c.b16 %v2106, %v2104
        %v2737 = vpack.c.b16 %v2107, %v2105
        %v2738 = vpack.c.b16 %v2110, %v2108
        %v2739 = vpack.c.b16 %v2111, %v2109
        %v2740 = vpack.c.b16 %v2114, %v2112
        %v2741 = vpack.c.b16 %v2115, %v2113
        %v2742 = vpack.c.b16 %v2118, %v2116
        %v2743 = vpack.c.b16 %v2119, %v2117
        %v2744 = vpack.c.b16 %v2122, %v2120
        %v2745 = vpack.c.b16 %v2123, %v2121
        %v2746 = vpack.c.b16 %v2126, %v2124
        %v2747 = vpack.c.b16 %v2127, %v2125
        %v2748 = vpack.c.b16 %v2130, %v2128
        %v2749 = vpack.c.b16 %v2131, %v2129
        %v2750 = vpack.c.b16 %v2134, %v2132
        %v2751 = vpack.c.b16 %v2135, %v2133
        %v2752 = vpack.c.b16 %v2138, %v2136
        %v2753 = vpack.c.b16 %v2139, %v2137
        %v2754 = vpack.c.b16 %v2142, %v2140
        %v2755 = vpack.c.b16 %v2143, %v2141
        %v2756 = vpack.c.b16 %v2146, %v2144
        %v2757 = vpack.c.b16 %v2147, %v2145
        %v2758 = vpack.c.b16 %v2150, %v2148
        %v2759 = vpack.c.b16 %v2151, %v2149
        %v2760 = vpack.c.b16 %v2154, %v2152
        %v2761 = vpack.c.b16 %v2155, %v2153
        %v2762 = vpack.c.b16 %v2158, %v2156
        %v2763 = vpack.c.b16 %v2159, %v2157
        %v2764 = vpack.c.b16 %v2162, %v2160
        %v2765 = vpack.c.b16 %v2163, %v2161
        %v2766 = vpack.c.b16 %v2166, %v2164
        %v2767 = vpack.c.b16 %v2167, %v2165
        %v2768 = vpack.c.b16 %v2170, %v2168
        %v2769 = vpack.c.b16 %v2171, %v2169
        %v2770 = vpack.c.b16 %v2174, %v2172
        %v2771 = vpack.c.b16 %v2175, %v2173
        %v2772 = vpack.c.b16 %v2178, %v2176
        %v2773 = vpack.c.b16 %v2179, %v2177
        %v2774 = vpack.c.b16 %v2182, %v2180
        %v2775 = vpack.c.b16 %v2183, %v2181
        %v2776 = vpack.c.b16 %v2186, %v2184
        %v2777 = vpack.c.b16 %v2187, %v2185
        %v2778 = vpack.c.b16 %v2190, %v2188
        %v2779 = vpack.c.b16 %v2191, %v2189
        %v2780 = vpack.c.b16 %v2194, %v2192
        %v2781 = vpack.c.b16 %v2195, %v2193
        %v2782 = vpack.c.b16 %v2198, %v2196
        %v2783 = vpack.c.b16 %v2199, %v2197
        %v2784 = vpack.c.b16 %v2202, %v2200
        %v2785 = vpack.c.b16 %v2203, %v2201
        %v2786 = vpack.c.b16 %v2206, %v2204
        %v2787 = vpack.c.b16 %v2207, %v2205
        %v2788 = vpack.c.b16 %v2210, %v2208
        %v2789 = vpack.c.b16 %v2211, %v2209
        %v2790 = vpack.c.b16 %v2214, %v2212
        %v2791 = vpack.c.b16 %v2215, %v2213
        %v2792 = vpack.c.b16 %v2218, %v2216
        %v2793 = vpack.c.b16 %v2219, %v2217
        %v2794 = vpack.c.b16 %v2222, %v2220
        %v2795 = vpack.c.b16 %v2223, %v2221
        %v2796 = vpack.c.b16 %v2226, %v2224
        %v2797 = vpack.c.b16 %v2227, %v2225
        %v2798 = vpack.c.b16 %v2230, %v2228
        %v2799 = vpack.c.b16 %v2231, %v2229
        %v2800 = vpack.c.b16 %v2234, %v2232
        %v2801 = vpack.c.b16 %v2235, %v2233
        %v2802 = vpack.c.b16 %v2238, %v2236
        %v2803 = vpack.c.b16 %v2239, %v2237
        %v2804 = vpack.c.b16 %v2242, %v2240
        %v2805 = vpack.c.b16 %v2243, %v2241
        %v2806 = vpack.c.b16 %v2246, %v2244
        %v2807 = vpack.c.b16 %v2247, %v2245
        %v2808 = vpack.c.b16 %v2250, %v2248
        %v2809 = vpack.c.b16 %v2251, %v2249
        %v2810 = vpack.c.b16 %v2254, %v2252
        %v2811 = vpack.c.b16 %v2255, %v2253
        %v2812 = vpack.c.b16 %v2258, %v2256
        %v2813 = vpack.c.b16 %v2259, %v2257
        %v2814 = vpack.c.b16 %v2262, %v2260
        %v2815 = vpack.c.b16 %v2263, %v2261
        %v2816 = vpack.c.b16 %v2266, %v2264
        %v2817 = vpack.c.b16 %v2267, %v2265
        %v2818 = vpack.c.b16 %v2270, %v2268
        %v2819 = vpack.c.b16 %v2271, %v2269
        %v2820 = vpack.c.b16 %v2274, %v2272
        %v2821 = vpack.c.b16 %v2275, %v2273
        %v2822 = vpack.c.b16 %v2278, %v2276
        %v2823 = vpack.c.b16 %v2279, %v2277
        %v2824 = vpack.c.b16 %v2282, %v2280
        %v2825 = vpack.c.b16 %v2283, %v2281
        %v2826 = vpack.c.b16 %v2286, %v2284
        %v2827 = vpack.c.b16 %v2287, %v2285
        %v2828 = vpack.c.b16 %v2290, %v2288
        %v2829 = vpack.c.b16 %v2291, %v2289
        %v2830 = vpack.c.b16 %v2294, %v2292
        %v2831 = vpack.c.b16 %v2295, %v2293
        %v2832 = vpack.c.b16 %v2298, %v2296
        %v2833 = vpack.c.b16 %v2299, %v2297
        %v2834 = vpack.c.b16 %v2302, %v2300
        %v2835 = vpack.c.b16 %v2303, %v2301
        %v2836 = vpack.c.b16 %v2306, %v2304
        %v2837 = vpack.c.b16 %v2307, %v2305
        %v2838 = vpack.c.b16 %v2310, %v2308
        %v2839 = vpack.c.b16 %v2311, %v2309
        %v2840 = vpack.c.b16 %v2314, %v2312
        %v2841 = vpack.c.b16 %v2315, %v2313
        %v2842 = vpack.c.b16 %v2318, %v2316
        %v2843 = vpack.c.b16 %v2319, %v2317
        %v2844 = vpack.c.b16 %v2322, %v2320
        %v2845 = vpack.c.b16 %v2323, %v2321
        %v2846 = vpack.c.b16 %v2326, %v2324
        %v2847 = vpack.c.b16 %v2327, %v2325
        %v2848 = vpack.c.b16 %v2330, %v2328
        %v2849 = vpack.c.b16 %v2331, %v2329
        %v2850 = vpack.c.b16 %v2334, %v2332
        %v2851 = vpack.c.b16 %v2335, %v2333
        %v2852 = vpack.c.b16 %v2338, %v2336
        %v2853 = vpack.c.b16 %v2339, %v2337
        %v2854 = vpack.c.b16 %v2342, %v2340
        %v2855 = vpack.c.b16 %v2343, %v2341
        %3368 = vmatpush.bf16.msra.mxu0 %v2358
        %3369 = vmatpush.bf16.msra.mxu0 %v2356
        %3370 = vmatpush.bf16.msra.mxu0 %v2354
        %3371 = vmatpush.bf16.msra.mxu0 %v2352
        %3372 = vmatpush.bf16.msra.mxu0 %v2350
        %3373 = vmatpush.bf16.msra.mxu0 %v2348
        %3374 = vmatpush.bf16.msra.mxu0 %v2346
        %3375 = vmatpush.bf16.msra.mxu0 %v2344
        %3376 = vmatmul.bf16.gmra.mxu0 %v744
        %v3377 = vpop.f32.mrf.mxu0
        %v3378 = vadd.f32 0.0, %v3377
        %v3379 = vpop.f32.mrf.mxu0
        %3380 = vdwg.mxu0
        %3381 = vmatpush.bf16.msra.mxu0 %v2374
        %3382 = vmatpush.bf16.msra.mxu0 %v2372
        %3383 = vmatpush.bf16.msra.mxu0 %v2370
        %3384 = vmatpush.bf16.msra.mxu0 %v2368
        %3385 = vmatpush.bf16.msra.mxu0 %v2366
        %3386 = vmatpush.bf16.msra.mxu0 %v2364
        %3387 = vmatpush.bf16.msra.mxu0 %v2362
        %3388 = vmatpush.bf16.msra.mxu0 %v2360
        %3389 = vmatmul.bf16.gmra.mxu0 %v745
        %v3390 = vpop.f32.mrf.mxu0
        %v3391 = vadd.f32 %v3378, %v3390
        %v3392 = vpop.f32.mrf.mxu0
        %3393 = vdwg.mxu0
        %3394 = vmatpush.bf16.msra.mxu0 %v2390
        %3395 = vmatpush.bf16.msra.mxu0 %v2388
        %3396 = vmatpush.bf16.msra.mxu0 %v2386
        %3397 = vmatpush.bf16.msra.mxu0 %v2384
        %3398 = vmatpush.bf16.msra.mxu0 %v2382
        %3399 = vmatpush.bf16.msra.mxu0 %v2380
        %3400 = vmatpush.bf16.msra.mxu0 %v2378
        %3401 = vmatpush.bf16.msra.mxu0 %v2376
        %3402 = vmatmul.bf16.gmra.mxu0 %v746
        %v3403 = vpop.f32.mrf.mxu0
        %v3404 = vadd.f32 %v3391, %v3403
        %v3405 = vpop.f32.mrf.mxu0
        %3406 = vdwg.mxu0
        %3407 = vmatpush.bf16.msra.mxu0 %v2406
        %3408 = vmatpush.bf16.msra.mxu0 %v2404
        %3409 = vmatpush.bf16.msra.mxu0 %v2402
        %3410 = vmatpush.bf16.msra.mxu0 %v2400
        %3411 = vmatpush.bf16.msra.mxu0 %v2398
        %3412 = vmatpush.bf16.msra.mxu0 %v2396
        %3413 = vmatpush.bf16.msra.mxu0 %v2394
        %3414 = vmatpush.bf16.msra.mxu0 %v2392
        %3415 = vmatmul.bf16.gmra.mxu0 %v747
        %v3416 = vpop.f32.mrf.mxu0
        %v3417 = vadd.f32 %v3404, %v3416
        %v3418 = vpop.f32.mrf.mxu0
        %3419 = vdwg.mxu0
        %3420 = vmatpush.bf16.msra.mxu0 %v2422
        %3421 = vmatpush.bf16.msra.mxu0 %v2420
        %3422 = vmatpush.bf16.msra.mxu0 %v2418
        %3423 = vmatpush.bf16.msra.mxu0 %v2416
        %3424 = vmatpush.bf16.msra.mxu0 %v2414
        %3425 = vmatpush.bf16.msra.mxu0 %v2412
        %3426 = vmatpush.bf16.msra.mxu0 %v2410
        %3427 = vmatpush.bf16.msra.mxu0 %v2408
        %3428 = vmatmul.bf16.gmra.mxu0 %v748
        %v3429 = vpop.f32.mrf.mxu0
        %v3430 = vadd.f32 %v3417, %v3429
        %v3431 = vpop.f32.mrf.mxu0
        %3432 = vdwg.mxu0
        %3433 = vmatpush.bf16.msra.mxu0 %v2438
        %3434 = vmatpush.bf16.msra.mxu0 %v2436
        %3435 = vmatpush.bf16.msra.mxu0 %v2434
        %3436 = vmatpush.bf16.msra.mxu0 %v2432
        %3437 = vmatpush.bf16.msra.mxu0 %v2430
        %3438 = vmatpush.bf16.msra.mxu0 %v2428
        %3439 = vmatpush.bf16.msra.mxu0 %v2426
        %3440 = vmatpush.bf16.msra.mxu0 %v2424
        %3441 = vmatmul.bf16.gmra.mxu0 %v749
        %v3442 = vpop.f32.mrf.mxu0
        %v3443 = vadd.f32 %v3430, %v3442
        %v3444 = vpop.f32.mrf.mxu0
        %3445 = vdwg.mxu0
        %3446 = vmatpush.bf16.msra.mxu0 %v2454
        %3447 = vmatpush.bf16.msra.mxu0 %v2452
        %3448 = vmatpush.bf16.msra.mxu0 %v2450
        %3449 = vmatpush.bf16.msra.mxu0 %v2448
        %3450 = vmatpush.bf16.msra.mxu0 %v2446
        %3451 = vmatpush.bf16.msra.mxu0 %v2444
        %3452 = vmatpush.bf16.msra.mxu0 %v2442
        %3453 = vmatpush.bf16.msra.mxu0 %v2440
        %3454 = vmatmul.bf16.gmra.mxu0 %v750
        %v3455 = vpop.f32.mrf.mxu0
        %v3456 = vadd.f32 %v3443, %v3455
        %v3457 = vpop.f32.mrf.mxu0
        %3458 = vdwg.mxu0
        %3459 = vmatpush.bf16.msra.mxu0 %v2470
        %3460 = vmatpush.bf16.msra.mxu0 %v2468
        %3461 = vmatpush.bf16.msra.mxu0 %v2466
        %3462 = vmatpush.bf16.msra.mxu0 %v2464
        %3463 = vmatpush.bf16.msra.mxu0 %v2462
        %3464 = vmatpush.bf16.msra.mxu0 %v2460
        %3465 = vmatpush.bf16.msra.mxu0 %v2458
        %3466 = vmatpush.bf16.msra.mxu0 %v2456
        %3467 = vmatmul.bf16.gmra.mxu0 %v751
        %v3468 = vpop.f32.mrf.mxu0
        %v3469 = vadd.f32 %v3456, %v3468
        %v3470 = vpop.f32.mrf.mxu0
        %3471 = vdwg.mxu0
        %3472 = vmatpush.bf16.msra.mxu0 %v2486
        %3473 = vmatpush.bf16.msra.mxu0 %v2484
        %3474 = vmatpush.bf16.msra.mxu0 %v2482
        %3475 = vmatpush.bf16.msra.mxu0 %v2480
        %3476 = vmatpush.bf16.msra.mxu0 %v2478
        %3477 = vmatpush.bf16.msra.mxu0 %v2476
        %3478 = vmatpush.bf16.msra.mxu0 %v2474
        %3479 = vmatpush.bf16.msra.mxu0 %v2472
        %3480 = vmatmul.bf16.gmra.mxu0 %v752
        %v3481 = vpop.f32.mrf.mxu0
        %v3482 = vadd.f32 %v3469, %v3481
        %v3483 = vpop.f32.mrf.mxu0
        %3484 = vdwg.mxu0
        %3485 = vmatpush.bf16.msra.mxu0 %v2502
        %3486 = vmatpush.bf16.msra.mxu0 %v2500
        %3487 = vmatpush.bf16.msra.mxu0 %v2498
        %3488 = vmatpush.bf16.msra.mxu0 %v2496
        %3489 = vmatpush.bf16.msra.mxu0 %v2494
        %3490 = vmatpush.bf16.msra.mxu0 %v2492
        %3491 = vmatpush.bf16.msra.mxu0 %v2490
        %3492 = vmatpush.bf16.msra.mxu0 %v2488
        %3493 = vmatmul.bf16.gmra.mxu0 %v753
        %v3494 = vpop.f32.mrf.mxu0
        %v3495 = vadd.f32 %v3482, %v3494
        %v3496 = vpop.f32.mrf.mxu0
        %3497 = vdwg.mxu0
        %3498 = vmatpush.bf16.msra.mxu0 %v2518
        %3499 = vmatpush.bf16.msra.mxu0 %v2516
        %3500 = vmatpush.bf16.msra.mxu0 %v2514
        %3501 = vmatpush.bf16.msra.mxu0 %v2512
        %3502 = vmatpush.bf16.msra.mxu0 %v2510
        %3503 = vmatpush.bf16.msra.mxu0 %v2508
        %3504 = vmatpush.bf16.msra.mxu0 %v2506
        %3505 = vmatpush.bf16.msra.mxu0 %v2504
        %3506 = vmatmul.bf16.gmra.mxu0 %v754
        %v3507 = vpop.f32.mrf.mxu0
        %v3508 = vadd.f32 %v3495, %v3507
        %v3509 = vpop.f32.mrf.mxu0
        %3510 = vdwg.mxu0
        %3511 = vmatpush.bf16.msra.mxu0 %v2534
        %3512 = vmatpush.bf16.msra.mxu0 %v2532
        %3513 = vmatpush.bf16.msra.mxu0 %v2530
        %3514 = vmatpush.bf16.msra.mxu0 %v2528
        %3515 = vmatpush.bf16.msra.mxu0 %v2526
        %3516 = vmatpush.bf16.msra.mxu0 %v2524
        %3517 = vmatpush.bf16.msra.mxu0 %v2522
        %3518 = vmatpush.bf16.msra.mxu0 %v2520
        %3519 = vmatmul.bf16.gmra.mxu0 %v755
        %v3520 = vpop.f32.mrf.mxu0
        %v3521 = vadd.f32 %v3508, %v3520
        %v3522 = vpop.f32.mrf.mxu0
        %3523 = vdwg.mxu0
        %3524 = vmatpush.bf16.msra.mxu0 %v2550
        %3525 = vmatpush.bf16.msra.mxu0 %v2548
        %3526 = vmatpush.bf16.msra.mxu0 %v2546
        %3527 = vmatpush.bf16.msra.mxu0 %v2544
        %3528 = vmatpush.bf16.msra.mxu0 %v2542
        %3529 = vmatpush.bf16.msra.mxu0 %v2540
        %3530 = vmatpush.bf16.msra.mxu0 %v2538
        %3531 = vmatpush.bf16.msra.mxu0 %v2536
        %3532 = vmatmul.bf16.gmra.mxu0 %v756
        %v3533 = vpop.f32.mrf.mxu0
        %v3534 = vadd.f32 %v3521, %v3533
        %v3535 = vpop.f32.mrf.mxu0
        %3536 = vdwg.mxu0
        %3537 = vmatpush.bf16.msra.mxu0 %v2566
        %3538 = vmatpush.bf16.msra.mxu0 %v2564
        %3539 = vmatpush.bf16.msra.mxu0 %v2562
        %3540 = vmatpush.bf16.msra.mxu0 %v2560
        %3541 = vmatpush.bf16.msra.mxu0 %v2558
        %3542 = vmatpush.bf16.msra.mxu0 %v2556
        %3543 = vmatpush.bf16.msra.mxu0 %v2554
        %3544 = vmatpush.bf16.msra.mxu0 %v2552
        %3545 = vmatmul.bf16.gmra.mxu0 %v757
        %v3546 = vpop.f32.mrf.mxu0
        %v3547 = vadd.f32 %v3534, %v3546
        %v3548 = vpop.f32.mrf.mxu0
        %3549 = vdwg.mxu0
        %3550 = vmatpush.bf16.msra.mxu0 %v2582
        %3551 = vmatpush.bf16.msra.mxu0 %v2580
        %3552 = vmatpush.bf16.msra.mxu0 %v2578
        %3553 = vmatpush.bf16.msra.mxu0 %v2576
        %3554 = vmatpush.bf16.msra.mxu0 %v2574
        %3555 = vmatpush.bf16.msra.mxu0 %v2572
        %3556 = vmatpush.bf16.msra.mxu0 %v2570
        %3557 = vmatpush.bf16.msra.mxu0 %v2568
        %3558 = vmatmul.bf16.gmra.mxu0 %v758
        %v3559 = vpop.f32.mrf.mxu0
        %v3560 = vadd.f32 %v3547, %v3559
        %v3561 = vpop.f32.mrf.mxu0
        %3562 = vdwg.mxu0
        %3563 = vmatpush.bf16.msra.mxu0 %v2598
        %3564 = vmatpush.bf16.msra.mxu0 %v2596
        %3565 = vmatpush.bf16.msra.mxu0 %v2594
        %3566 = vmatpush.bf16.msra.mxu0 %v2592
        %3567 = vmatpush.bf16.msra.mxu0 %v2590
        %3568 = vmatpush.bf16.msra.mxu0 %v2588
        %3569 = vmatpush.bf16.msra.mxu0 %v2586
        %3570 = vmatpush.bf16.msra.mxu0 %v2584
        %3571 = vmatmul.bf16.gmra.mxu0 %v759
        %v3572 = vpop.f32.mrf.mxu0
        %v3573 = vadd.f32 %v3560, %v3572
        %v3574 = vpop.f32.mrf.mxu0
        %3575 = vdwg.mxu0
        %3576 = vmatpush.bf16.msra.mxu0 %v2614
        %3577 = vmatpush.bf16.msra.mxu0 %v2612
        %3578 = vmatpush.bf16.msra.mxu0 %v2610
        %3579 = vmatpush.bf16.msra.mxu0 %v2608
        %3580 = vmatpush.bf16.msra.mxu0 %v2606
        %3581 = vmatpush.bf16.msra.mxu0 %v2604
        %3582 = vmatpush.bf16.msra.mxu0 %v2602
        %3583 = vmatpush.bf16.msra.mxu0 %v2600
        %3584 = vmatmul.bf16.gmra.mxu0 %v760
        %v3585 = vpop.f32.mrf.mxu0
        %v3586 = vadd.f32 %v3573, %v3585
        %v3587 = vpop.f32.mrf.mxu0
        %3588 = vdwg.mxu0
        %3589 = vmatpush.bf16.msra.mxu0 %v2630
        %3590 = vmatpush.bf16.msra.mxu0 %v2628
        %3591 = vmatpush.bf16.msra.mxu0 %v2626
        %3592 = vmatpush.bf16.msra.mxu0 %v2624
        %3593 = vmatpush.bf16.msra.mxu0 %v2622
        %3594 = vmatpush.bf16.msra.mxu0 %v2620
        %3595 = vmatpush.bf16.msra.mxu0 %v2618
        %3596 = vmatpush.bf16.msra.mxu0 %v2616
        %3597 = vmatmul.bf16.gmra.mxu0 %v761
        %v3598 = vpop.f32.mrf.mxu0
        %v3599 = vadd.f32 %v3586, %v3598
        %v3600 = vpop.f32.mrf.mxu0
        %3601 = vdwg.mxu0
        %3602 = vmatpush.bf16.msra.mxu0 %v2646
        %3603 = vmatpush.bf16.msra.mxu0 %v2644
        %3604 = vmatpush.bf16.msra.mxu0 %v2642
        %3605 = vmatpush.bf16.msra.mxu0 %v2640
        %3606 = vmatpush.bf16.msra.mxu0 %v2638
        %3607 = vmatpush.bf16.msra.mxu0 %v2636
        %3608 = vmatpush.bf16.msra.mxu0 %v2634
        %3609 = vmatpush.bf16.msra.mxu0 %v2632
        %3610 = vmatmul.bf16.gmra.mxu0 %v762
        %v3611 = vpop.f32.mrf.mxu0
        %v3612 = vadd.f32 %v3599, %v3611
        %v3613 = vpop.f32.mrf.mxu0
        %3614 = vdwg.mxu0
        %3615 = vmatpush.bf16.msra.mxu0 %v2662
        %3616 = vmatpush.bf16.msra.mxu0 %v2660
        %3617 = vmatpush.bf16.msra.mxu0 %v2658
        %3618 = vmatpush.bf16.msra.mxu0 %v2656
        %3619 = vmatpush.bf16.msra.mxu0 %v2654
        %3620 = vmatpush.bf16.msra.mxu0 %v2652
        %3621 = vmatpush.bf16.msra.mxu0 %v2650
        %3622 = vmatpush.bf16.msra.mxu0 %v2648
        %3623 = vmatmul.bf16.gmra.mxu0 %v763
        %v3624 = vpop.f32.mrf.mxu0
        %v3625 = vadd.f32 %v3612, %v3624
        %v3626 = vpop.f32.mrf.mxu0
        %3627 = vdwg.mxu0
        %3628 = vmatpush.bf16.msra.mxu0 %v2678
        %3629 = vmatpush.bf16.msra.mxu0 %v2676
        %3630 = vmatpush.bf16.msra.mxu0 %v2674
        %3631 = vmatpush.bf16.msra.mxu0 %v2672
        %3632 = vmatpush.bf16.msra.mxu0 %v2670
        %3633 = vmatpush.bf16.msra.mxu0 %v2668
        %3634 = vmatpush.bf16.msra.mxu0 %v2666
        %3635 = vmatpush.bf16.msra.mxu0 %v2664
        %3636 = vmatmul.bf16.gmra.mxu0 %v764
        %v3637 = vpop.f32.mrf.mxu0
        %v3638 = vadd.f32 %v3625, %v3637
        %v3639 = vpop.f32.mrf.mxu0
        %3640 = vdwg.mxu0
        %3641 = vmatpush.bf16.msra.mxu0 %v2694
        %3642 = vmatpush.bf16.msra.mxu0 %v2692
        %3643 = vmatpush.bf16.msra.mxu0 %v2690
        %3644 = vmatpush.bf16.msra.mxu0 %v2688
        %3645 = vmatpush.bf16.msra.mxu0 %v2686
        %3646 = vmatpush.bf16.msra.mxu0 %v2684
        %3647 = vmatpush.bf16.msra.mxu0 %v2682
        %3648 = vmatpush.bf16.msra.mxu0 %v2680
        %3649 = vmatmul.bf16.gmra.mxu0 %v765
        %v3650 = vpop.f32.mrf.mxu0
        %v3651 = vadd.f32 %v3638, %v3650
        %v3652 = vpop.f32.mrf.mxu0
        %3653 = vdwg.mxu0
        %3654 = vmatpush.bf16.msra.mxu0 %v2710
        %3655 = vmatpush.bf16.msra.mxu0 %v2708
        %3656 = vmatpush.bf16.msra.mxu0 %v2706
        %3657 = vmatpush.bf16.msra.mxu0 %v2704
        %3658 = vmatpush.bf16.msra.mxu0 %v2702
        %3659 = vmatpush.bf16.msra.mxu0 %v2700
        %3660 = vmatpush.bf16.msra.mxu0 %v2698
        %3661 = vmatpush.bf16.msra.mxu0 %v2696
        %3662 = vmatmul.bf16.gmra.mxu0 %v766
        %v3663 = vpop.f32.mrf.mxu0
        %v3664 = vadd.f32 %v3651, %v3663
        %v3665 = vpop.f32.mrf.mxu0
        %3666 = vdwg.mxu0
        %3667 = vmatpush.bf16.msra.mxu0 %v2726
        %3668 = vmatpush.bf16.msra.mxu0 %v2724
        %3669 = vmatpush.bf16.msra.mxu0 %v2722
        %3670 = vmatpush.bf16.msra.mxu0 %v2720
        %3671 = vmatpush.bf16.msra.mxu0 %v2718
        %3672 = vmatpush.bf16.msra.mxu0 %v2716
        %3673 = vmatpush.bf16.msra.mxu0 %v2714
        %3674 = vmatpush.bf16.msra.mxu0 %v2712
        %3675 = vmatmul.bf16.gmra.mxu0 %v767
        %v3676 = vpop.f32.mrf.mxu0
        %v3677 = vadd.f32 %v3664, %v3676
        %v3678 = vpop.f32.mrf.mxu0
        %3679 = vdwg.mxu0
        %3680 = vmatpush.bf16.msra.mxu0 %v2742
        %3681 = vmatpush.bf16.msra.mxu0 %v2740
        %3682 = vmatpush.bf16.msra.mxu0 %v2738
        %3683 = vmatpush.bf16.msra.mxu0 %v2736
        %3684 = vmatpush.bf16.msra.mxu0 %v2734
        %3685 = vmatpush.bf16.msra.mxu0 %v2732
        %3686 = vmatpush.bf16.msra.mxu0 %v2730
        %3687 = vmatpush.bf16.msra.mxu0 %v2728
        %3688 = vmatmul.bf16.gmra.mxu0 %v768
        %v3689 = vpop.f32.mrf.mxu0
        %v3690 = vadd.f32 %v3677, %v3689
        %v3691 = vpop.f32.mrf.mxu0
        %3692 = vdwg.mxu0
        %3693 = vmatpush.bf16.msra.mxu0 %v2758
        %3694 = vmatpush.bf16.msra.mxu0 %v2756
        %3695 = vmatpush.bf16.msra.mxu0 %v2754
        %3696 = vmatpush.bf16.msra.mxu0 %v2752
        %3697 = vmatpush.bf16.msra.mxu0 %v2750
        %3698 = vmatpush.bf16.msra.mxu0 %v2748
        %3699 = vmatpush.bf16.msra.mxu0 %v2746
        %3700 = vmatpush.bf16.msra.mxu0 %v2744
        %3701 = vmatmul.bf16.gmra.mxu0 %v769
        %v3702 = vpop.f32.mrf.mxu0
        %v3703 = vadd.f32 %v3690, %v3702
        %v3704 = vpop.f32.mrf.mxu0
        %3705 = vdwg.mxu0
        %3706 = vmatpush.bf16.msra.mxu0 %v2774
        %3707 = vmatpush.bf16.msra.mxu0 %v2772
        %3708 = vmatpush.bf16.msra.mxu0 %v2770
        %3709 = vmatpush.bf16.msra.mxu0 %v2768
        %3710 = vmatpush.bf16.msra.mxu0 %v2766
        %3711 = vmatpush.bf16.msra.mxu0 %v2764
        %3712 = vmatpush.bf16.msra.mxu0 %v2762
        %3713 = vmatpush.bf16.msra.mxu0 %v2760
        %3714 = vmatmul.bf16.gmra.mxu0 %v770
        %v3715 = vpop.f32.mrf.mxu0
        %v3716 = vadd.f32 %v3703, %v3715
        %v3717 = vpop.f32.mrf.mxu0
        %3718 = vdwg.mxu0
        %3719 = vmatpush.bf16.msra.mxu0 %v2790
        %3720 = vmatpush.bf16.msra.mxu0 %v2788
        %3721 = vmatpush.bf16.msra.mxu0 %v2786
        %3722 = vmatpush.bf16.msra.mxu0 %v2784
        %3723 = vmatpush.bf16.msra.mxu0 %v2782
        %3724 = vmatpush.bf16.msra.mxu0 %v2780
        %3725 = vmatpush.bf16.msra.mxu0 %v2778
        %3726 = vmatpush.bf16.msra.mxu0 %v2776
        %3727 = vmatmul.bf16.gmra.mxu0 %v771
        %v3728 = vpop.f32.mrf.mxu0
        %v3729 = vadd.f32 %v3716, %v3728
        %v3730 = vpop.f32.mrf.mxu0
        %3731 = vdwg.mxu0
        %3732 = vmatpush.bf16.msra.mxu0 %v2806
        %3733 = vmatpush.bf16.msra.mxu0 %v2804
        %3734 = vmatpush.bf16.msra.mxu0 %v2802
        %3735 = vmatpush.bf16.msra.mxu0 %v2800
        %3736 = vmatpush.bf16.msra.mxu0 %v2798
        %3737 = vmatpush.bf16.msra.mxu0 %v2796
        %3738 = vmatpush.bf16.msra.mxu0 %v2794
        %3739 = vmatpush.bf16.msra.mxu0 %v2792
        %3740 = vmatmul.bf16.gmra.mxu0 %v772
        %v3741 = vpop.f32.mrf.mxu0
        %v3742 = vadd.f32 %v3729, %v3741
        %v3743 = vpop.f32.mrf.mxu0
        %3744 = vdwg.mxu0
        %3745 = vmatpush.bf16.msra.mxu0 %v2822
        %3746 = vmatpush.bf16.msra.mxu0 %v2820
        %3747 = vmatpush.bf16.msra.mxu0 %v2818
        %3748 = vmatpush.bf16.msra.mxu0 %v2816
        %3749 = vmatpush.bf16.msra.mxu0 %v2814
        %3750 = vmatpush.bf16.msra.mxu0 %v2812
        %3751 = vmatpush.bf16.msra.mxu0 %v2810
        %3752 = vmatpush.bf16.msra.mxu0 %v2808
        %3753 = vmatmul.bf16.gmra.mxu0 %v773
        %v3754 = vpop.f32.mrf.mxu0
        %v3755 = vadd.f32 %v3742, %v3754
        %v3756 = vpop.f32.mrf.mxu0
        %3757 = vdwg.mxu0
        %3758 = vmatpush.bf16.msra.mxu0 %v2838
        %3759 = vmatpush.bf16.msra.mxu0 %v2836
        %3760 = vmatpush.bf16.msra.mxu0 %v2834
        %3761 = vmatpush.bf16.msra.mxu0 %v2832
        %3762 = vmatpush.bf16.msra.mxu0 %v2830
        %3763 = vmatpush.bf16.msra.mxu0 %v2828
        %3764 = vmatpush.bf16.msra.mxu0 %v2826
        %3765 = vmatpush.bf16.msra.mxu0 %v2824
        %3766 = vmatmul.bf16.gmra.mxu0 %v774
        %v3767 = vpop.f32.mrf.mxu0
        %v3768 = vadd.f32 %v3755, %v3767
        %v3769 = vpop.f32.mrf.mxu0
        %3770 = vdwg.mxu0
        %3771 = vmatpush.bf16.msra.mxu0 %v2854
        %3772 = vmatpush.bf16.msra.mxu0 %v2852
        %3773 = vmatpush.bf16.msra.mxu0 %v2850
        %3774 = vmatpush.bf16.msra.mxu0 %v2848
        %3775 = vmatpush.bf16.msra.mxu0 %v2846
        %3776 = vmatpush.bf16.msra.mxu0 %v2844
        %3777 = vmatpush.bf16.msra.mxu0 %v2842
        %3778 = vmatpush.bf16.msra.mxu0 %v2840
        %3779 = vmatmul.bf16.gmra.mxu0 %v775
        %v3780 = vpop.f32.mrf.mxu0
        %v3781 = vadd.f32 %v3768, %v3780
        %v3782 = vpop.f32.mrf.mxu0
        %3783 = vdwg.mxu0
        %3784 = vmatpush.bf16.msra.mxu0 %v2359
        %3785 = vmatpush.bf16.msra.mxu0 %v2357
        %3786 = vmatpush.bf16.msra.mxu0 %v2355
        %3787 = vmatpush.bf16.msra.mxu0 %v2353
        %3788 = vmatpush.bf16.msra.mxu0 %v2351
        %3789 = vmatpush.bf16.msra.mxu0 %v2349
        %3790 = vmatpush.bf16.msra.mxu0 %v2347
        %3791 = vmatpush.bf16.msra.mxu0 %v2345
        %3792 = vmatmul.bf16.gmra.mxu0 %v744
        %v3793 = vpop.f32.mrf.mxu0
        %v3794 = vadd.f32 0.0, %v3793
        %v3795 = vpop.f32.mrf.mxu0
        %3796 = vdwg.mxu0
        %3797 = vmatpush.bf16.msra.mxu0 %v2375
        %3798 = vmatpush.bf16.msra.mxu0 %v2373
        %3799 = vmatpush.bf16.msra.mxu0 %v2371
        %3800 = vmatpush.bf16.msra.mxu0 %v2369
        %3801 = vmatpush.bf16.msra.mxu0 %v2367
        %3802 = vmatpush.bf16.msra.mxu0 %v2365
        %3803 = vmatpush.bf16.msra.mxu0 %v2363
        %3804 = vmatpush.bf16.msra.mxu0 %v2361
        %3805 = vmatmul.bf16.gmra.mxu0 %v745
        %v3806 = vpop.f32.mrf.mxu0
        %v3807 = vadd.f32 %v3794, %v3806
        %v3808 = vpop.f32.mrf.mxu0
        %3809 = vdwg.mxu0
        %3810 = vmatpush.bf16.msra.mxu0 %v2391
        %3811 = vmatpush.bf16.msra.mxu0 %v2389
        %3812 = vmatpush.bf16.msra.mxu0 %v2387
        %3813 = vmatpush.bf16.msra.mxu0 %v2385
        %3814 = vmatpush.bf16.msra.mxu0 %v2383
        %3815 = vmatpush.bf16.msra.mxu0 %v2381
        %3816 = vmatpush.bf16.msra.mxu0 %v2379
        %3817 = vmatpush.bf16.msra.mxu0 %v2377
        %3818 = vmatmul.bf16.gmra.mxu0 %v746
        %v3819 = vpop.f32.mrf.mxu0
        %v3820 = vadd.f32 %v3807, %v3819
        %v3821 = vpop.f32.mrf.mxu0
        %3822 = vdwg.mxu0
        %3823 = vmatpush.bf16.msra.mxu0 %v2407
        %3824 = vmatpush.bf16.msra.mxu0 %v2405
        %3825 = vmatpush.bf16.msra.mxu0 %v2403
        %3826 = vmatpush.bf16.msra.mxu0 %v2401
        %3827 = vmatpush.bf16.msra.mxu0 %v2399
        %3828 = vmatpush.bf16.msra.mxu0 %v2397
        %3829 = vmatpush.bf16.msra.mxu0 %v2395
        %3830 = vmatpush.bf16.msra.mxu0 %v2393
        %3831 = vmatmul.bf16.gmra.mxu0 %v747
        %v3832 = vpop.f32.mrf.mxu0
        %v3833 = vadd.f32 %v3820, %v3832
        %v3834 = vpop.f32.mrf.mxu0
        %3835 = vdwg.mxu0
        %3836 = vmatpush.bf16.msra.mxu0 %v2423
        %3837 = vmatpush.bf16.msra.mxu0 %v2421
        %3838 = vmatpush.bf16.msra.mxu0 %v2419
        %3839 = vmatpush.bf16.msra.mxu0 %v2417
        %3840 = vmatpush.bf16.msra.mxu0 %v2415
        %3841 = vmatpush.bf16.msra.mxu0 %v2413
        %3842 = vmatpush.bf16.msra.mxu0 %v2411
        %3843 = vmatpush.bf16.msra.mxu0 %v2409
        %3844 = vmatmul.bf16.gmra.mxu0 %v748
        %v3845 = vpop.f32.mrf.mxu0
        %v3846 = vadd.f32 %v3833, %v3845
        %v3847 = vpop.f32.mrf.mxu0
        %3848 = vdwg.mxu0
        %3849 = vmatpush.bf16.msra.mxu0 %v2439
        %3850 = vmatpush.bf16.msra.mxu0 %v2437
        %3851 = vmatpush.bf16.msra.mxu0 %v2435
        %3852 = vmatpush.bf16.msra.mxu0 %v2433
        %3853 = vmatpush.bf16.msra.mxu0 %v2431
        %3854 = vmatpush.bf16.msra.mxu0 %v2429
        %3855 = vmatpush.bf16.msra.mxu0 %v2427
        %3856 = vmatpush.bf16.msra.mxu0 %v2425
        %3857 = vmatmul.bf16.gmra.mxu0 %v749
        %v3858 = vpop.f32.mrf.mxu0
        %v3859 = vadd.f32 %v3846, %v3858
        %v3860 = vpop.f32.mrf.mxu0
        %3861 = vdwg.mxu0
        %3862 = vmatpush.bf16.msra.mxu0 %v2455
        %3863 = vmatpush.bf16.msra.mxu0 %v2453
        %3864 = vmatpush.bf16.msra.mxu0 %v2451
        %3865 = vmatpush.bf16.msra.mxu0 %v2449
        %3866 = vmatpush.bf16.msra.mxu0 %v2447
        %3867 = vmatpush.bf16.msra.mxu0 %v2445
        %3868 = vmatpush.bf16.msra.mxu0 %v2443
        %3869 = vmatpush.bf16.msra.mxu0 %v2441
        %3870 = vmatmul.bf16.gmra.mxu0 %v750
        %v3871 = vpop.f32.mrf.mxu0
        %v3872 = vadd.f32 %v3859, %v3871
        %v3873 = vpop.f32.mrf.mxu0
        %3874 = vdwg.mxu0
        %3875 = vmatpush.bf16.msra.mxu0 %v2471
        %3876 = vmatpush.bf16.msra.mxu0 %v2469
        %3877 = vmatpush.bf16.msra.mxu0 %v2467
        %3878 = vmatpush.bf16.msra.mxu0 %v2465
        %3879 = vmatpush.bf16.msra.mxu0 %v2463
        %3880 = vmatpush.bf16.msra.mxu0 %v2461
        %3881 = vmatpush.bf16.msra.mxu0 %v2459
        %3882 = vmatpush.bf16.msra.mxu0 %v2457
        %3883 = vmatmul.bf16.gmra.mxu0 %v751
        %v3884 = vpop.f32.mrf.mxu0
        %v3885 = vadd.f32 %v3872, %v3884
        %v3886 = vpop.f32.mrf.mxu0
        %3887 = vdwg.mxu0
        %3888 = vmatpush.bf16.msra.mxu0 %v2487
        %3889 = vmatpush.bf16.msra.mxu0 %v2485
        %3890 = vmatpush.bf16.msra.mxu0 %v2483
        %3891 = vmatpush.bf16.msra.mxu0 %v2481
        %3892 = vmatpush.bf16.msra.mxu0 %v2479
        %3893 = vmatpush.bf16.msra.mxu0 %v2477
        %3894 = vmatpush.bf16.msra.mxu0 %v2475
        %3895 = vmatpush.bf16.msra.mxu0 %v2473
        %3896 = vmatmul.bf16.gmra.mxu0 %v752
        %v3897 = vpop.f32.mrf.mxu0
        %v3898 = vadd.f32 %v3885, %v3897
        %v3899 = vpop.f32.mrf.mxu0
        %3900 = vdwg.mxu0
        %3901 = vmatpush.bf16.msra.mxu0 %v2503
        %3902 = vmatpush.bf16.msra.mxu0 %v2501
        %3903 = vmatpush.bf16.msra.mxu0 %v2499
        %3904 = vmatpush.bf16.msra.mxu0 %v2497
        %3905 = vmatpush.bf16.msra.mxu0 %v2495
        %3906 = vmatpush.bf16.msra.mxu0 %v2493
        %3907 = vmatpush.bf16.msra.mxu0 %v2491
        %3908 = vmatpush.bf16.msra.mxu0 %v2489
        %3909 = vmatmul.bf16.gmra.mxu0 %v753
        %v3910 = vpop.f32.mrf.mxu0
        %v3911 = vadd.f32 %v3898, %v3910
        %v3912 = vpop.f32.mrf.mxu0
        %3913 = vdwg.mxu0
        %3914 = vmatpush.bf16.msra.mxu0 %v2519
        %3915 = vmatpush.bf16.msra.mxu0 %v2517
        %3916 = vmatpush.bf16.msra.mxu0 %v2515
        %3917 = vmatpush.bf16.msra.mxu0 %v2513
        %3918 = vmatpush.bf16.msra.mxu0 %v2511
        %3919 = vmatpush.bf16.msra.mxu0 %v2509
        %3920 = vmatpush.bf16.msra.mxu0 %v2507
        %3921 = vmatpush.bf16.msra.mxu0 %v2505
        %3922 = vmatmul.bf16.gmra.mxu0 %v754
        %v3923 = vpop.f32.mrf.mxu0
        %v3924 = vadd.f32 %v3911, %v3923
        %v3925 = vpop.f32.mrf.mxu0
        %3926 = vdwg.mxu0
        %3927 = vmatpush.bf16.msra.mxu0 %v2535
        %3928 = vmatpush.bf16.msra.mxu0 %v2533
        %3929 = vmatpush.bf16.msra.mxu0 %v2531
        %3930 = vmatpush.bf16.msra.mxu0 %v2529
        %3931 = vmatpush.bf16.msra.mxu0 %v2527
        %3932 = vmatpush.bf16.msra.mxu0 %v2525
        %3933 = vmatpush.bf16.msra.mxu0 %v2523
        %3934 = vmatpush.bf16.msra.mxu0 %v2521
        %3935 = vmatmul.bf16.gmra.mxu0 %v755
        %v3936 = vpop.f32.mrf.mxu0
        %v3937 = vadd.f32 %v3924, %v3936
        %v3938 = vpop.f32.mrf.mxu0
        %3939 = vdwg.mxu0
        %3940 = vmatpush.bf16.msra.mxu0 %v2551
        %3941 = vmatpush.bf16.msra.mxu0 %v2549
        %3942 = vmatpush.bf16.msra.mxu0 %v2547
        %3943 = vmatpush.bf16.msra.mxu0 %v2545
        %3944 = vmatpush.bf16.msra.mxu0 %v2543
        %3945 = vmatpush.bf16.msra.mxu0 %v2541
        %3946 = vmatpush.bf16.msra.mxu0 %v2539
        %3947 = vmatpush.bf16.msra.mxu0 %v2537
        %3948 = vmatmul.bf16.gmra.mxu0 %v756
        %v3949 = vpop.f32.mrf.mxu0
        %v3950 = vadd.f32 %v3937, %v3949
        %v3951 = vpop.f32.mrf.mxu0
        %3952 = vdwg.mxu0
        %3953 = vmatpush.bf16.msra.mxu0 %v2567
        %3954 = vmatpush.bf16.msra.mxu0 %v2565
        %3955 = vmatpush.bf16.msra.mxu0 %v2563
        %3956 = vmatpush.bf16.msra.mxu0 %v2561
        %3957 = vmatpush.bf16.msra.mxu0 %v2559
        %3958 = vmatpush.bf16.msra.mxu0 %v2557
        %3959 = vmatpush.bf16.msra.mxu0 %v2555
        %3960 = vmatpush.bf16.msra.mxu0 %v2553
        %3961 = vmatmul.bf16.gmra.mxu0 %v757
        %v3962 = vpop.f32.mrf.mxu0
        %v3963 = vadd.f32 %v3950, %v3962
        %v3964 = vpop.f32.mrf.mxu0
        %3965 = vdwg.mxu0
        %3966 = vmatpush.bf16.msra.mxu0 %v2583
        %3967 = vmatpush.bf16.msra.mxu0 %v2581
        %3968 = vmatpush.bf16.msra.mxu0 %v2579
        %3969 = vmatpush.bf16.msra.mxu0 %v2577
        %3970 = vmatpush.bf16.msra.mxu0 %v2575
        %3971 = vmatpush.bf16.msra.mxu0 %v2573
        %3972 = vmatpush.bf16.msra.mxu0 %v2571
        %3973 = vmatpush.bf16.msra.mxu0 %v2569
        %3974 = vmatmul.bf16.gmra.mxu0 %v758
        %v3975 = vpop.f32.mrf.mxu0
        %v3976 = vadd.f32 %v3963, %v3975
        %v3977 = vpop.f32.mrf.mxu0
        %3978 = vdwg.mxu0
        %3979 = vmatpush.bf16.msra.mxu0 %v2599
        %3980 = vmatpush.bf16.msra.mxu0 %v2597
        %3981 = vmatpush.bf16.msra.mxu0 %v2595
        %3982 = vmatpush.bf16.msra.mxu0 %v2593
        %3983 = vmatpush.bf16.msra.mxu0 %v2591
        %3984 = vmatpush.bf16.msra.mxu0 %v2589
        %3985 = vmatpush.bf16.msra.mxu0 %v2587
        %3986 = vmatpush.bf16.msra.mxu0 %v2585
        %3987 = vmatmul.bf16.gmra.mxu0 %v759
        %v3988 = vpop.f32.mrf.mxu0
        %v3989 = vadd.f32 %v3976, %v3988
        %v3990 = vpop.f32.mrf.mxu0
        %3991 = vdwg.mxu0
        %3992 = vmatpush.bf16.msra.mxu0 %v2615
        %3993 = vmatpush.bf16.msra.mxu0 %v2613
        %3994 = vmatpush.bf16.msra.mxu0 %v2611
        %3995 = vmatpush.bf16.msra.mxu0 %v2609
        %3996 = vmatpush.bf16.msra.mxu0 %v2607
        %3997 = vmatpush.bf16.msra.mxu0 %v2605
        %3998 = vmatpush.bf16.msra.mxu0 %v2603
        %3999 = vmatpush.bf16.msra.mxu0 %v2601
        %4000 = vmatmul.bf16.gmra.mxu0 %v760
        %v4001 = vpop.f32.mrf.mxu0
        %v4002 = vadd.f32 %v3989, %v4001
        %v4003 = vpop.f32.mrf.mxu0
        %4004 = vdwg.mxu0
        %4005 = vmatpush.bf16.msra.mxu0 %v2631
        %4006 = vmatpush.bf16.msra.mxu0 %v2629
        %4007 = vmatpush.bf16.msra.mxu0 %v2627
        %4008 = vmatpush.bf16.msra.mxu0 %v2625
        %4009 = vmatpush.bf16.msra.mxu0 %v2623
        %4010 = vmatpush.bf16.msra.mxu0 %v2621
        %4011 = vmatpush.bf16.msra.mxu0 %v2619
        %4012 = vmatpush.bf16.msra.mxu0 %v2617
        %4013 = vmatmul.bf16.gmra.mxu0 %v761
        %v4014 = vpop.f32.mrf.mxu0
        %v4015 = vadd.f32 %v4002, %v4014
        %v4016 = vpop.f32.mrf.mxu0
        %4017 = vdwg.mxu0
        %4018 = vmatpush.bf16.msra.mxu0 %v2647
        %4019 = vmatpush.bf16.msra.mxu0 %v2645
        %4020 = vmatpush.bf16.msra.mxu0 %v2643
        %4021 = vmatpush.bf16.msra.mxu0 %v2641
        %4022 = vmatpush.bf16.msra.mxu0 %v2639
        %4023 = vmatpush.bf16.msra.mxu0 %v2637
        %4024 = vmatpush.bf16.msra.mxu0 %v2635
        %4025 = vmatpush.bf16.msra.mxu0 %v2633
        %4026 = vmatmul.bf16.gmra.mxu0 %v762
        %v4027 = vpop.f32.mrf.mxu0
        %v4028 = vadd.f32 %v4015, %v4027
        %v4029 = vpop.f32.mrf.mxu0
        %4030 = vdwg.mxu0
        %4031 = vmatpush.bf16.msra.mxu0 %v2663
        %4032 = vmatpush.bf16.msra.mxu0 %v2661
        %4033 = vmatpush.bf16.msra.mxu0 %v2659
        %4034 = vmatpush.bf16.msra.mxu0 %v2657
        %4035 = vmatpush.bf16.msra.mxu0 %v2655
        %4036 = vmatpush.bf16.msra.mxu0 %v2653
        %4037 = vmatpush.bf16.msra.mxu0 %v2651
        %4038 = vmatpush.bf16.msra.mxu0 %v2649
        %4039 = vmatmul.bf16.gmra.mxu0 %v763
        %v4040 = vpop.f32.mrf.mxu0
        %v4041 = vadd.f32 %v4028, %v4040
        %v4042 = vpop.f32.mrf.mxu0
        %4043 = vdwg.mxu0
        %4044 = vmatpush.bf16.msra.mxu0 %v2679
        %4045 = vmatpush.bf16.msra.mxu0 %v2677
        %4046 = vmatpush.bf16.msra.mxu0 %v2675
        %4047 = vmatpush.bf16.msra.mxu0 %v2673
        %4048 = vmatpush.bf16.msra.mxu0 %v2671
        %4049 = vmatpush.bf16.msra.mxu0 %v2669
        %4050 = vmatpush.bf16.msra.mxu0 %v2667
        %4051 = vmatpush.bf16.msra.mxu0 %v2665
        %4052 = vmatmul.bf16.gmra.mxu0 %v764
        %v4053 = vpop.f32.mrf.mxu0
        %v4054 = vadd.f32 %v4041, %v4053
        %v4055 = vpop.f32.mrf.mxu0
        %4056 = vdwg.mxu0
        %4057 = vmatpush.bf16.msra.mxu0 %v2695
        %4058 = vmatpush.bf16.msra.mxu0 %v2693
        %4059 = vmatpush.bf16.msra.mxu0 %v2691
        %4060 = vmatpush.bf16.msra.mxu0 %v2689
        %4061 = vmatpush.bf16.msra.mxu0 %v2687
        %4062 = vmatpush.bf16.msra.mxu0 %v2685
        %4063 = vmatpush.bf16.msra.mxu0 %v2683
        %4064 = vmatpush.bf16.msra.mxu0 %v2681
        %4065 = vmatmul.bf16.gmra.mxu0 %v765
        %v4066 = vpop.f32.mrf.mxu0
        %v4067 = vadd.f32 %v4054, %v4066
        %v4068 = vpop.f32.mrf.mxu0
        %4069 = vdwg.mxu0
        %4070 = vmatpush.bf16.msra.mxu0 %v2711
        %4071 = vmatpush.bf16.msra.mxu0 %v2709
        %4072 = vmatpush.bf16.msra.mxu0 %v2707
        %4073 = vmatpush.bf16.msra.mxu0 %v2705
        %4074 = vmatpush.bf16.msra.mxu0 %v2703
        %4075 = vmatpush.bf16.msra.mxu0 %v2701
        %4076 = vmatpush.bf16.msra.mxu0 %v2699
        %4077 = vmatpush.bf16.msra.mxu0 %v2697
        %4078 = vmatmul.bf16.gmra.mxu0 %v766
        %v4079 = vpop.f32.mrf.mxu0
        %v4080 = vadd.f32 %v4067, %v4079
        %v4081 = vpop.f32.mrf.mxu0
        %4082 = vdwg.mxu0
        %4083 = vmatpush.bf16.msra.mxu0 %v2727
        %4084 = vmatpush.bf16.msra.mxu0 %v2725
        %4085 = vmatpush.bf16.msra.mxu0 %v2723
        %4086 = vmatpush.bf16.msra.mxu0 %v2721
        %4087 = vmatpush.bf16.msra.mxu0 %v2719
        %4088 = vmatpush.bf16.msra.mxu0 %v2717
        %4089 = vmatpush.bf16.msra.mxu0 %v2715
        %4090 = vmatpush.bf16.msra.mxu0 %v2713
        %4091 = vmatmul.bf16.gmra.mxu0 %v767
        %v4092 = vpop.f32.mrf.mxu0
        %v4093 = vadd.f32 %v4080, %v4092
        %v4094 = vpop.f32.mrf.mxu0
        %4095 = vdwg.mxu0
        %4096 = vmatpush.bf16.msra.mxu0 %v2743
        %4097 = vmatpush.bf16.msra.mxu0 %v2741
        %4098 = vmatpush.bf16.msra.mxu0 %v2739
        %4099 = vmatpush.bf16.msra.mxu0 %v2737
        %4100 = vmatpush.bf16.msra.mxu0 %v2735
        %4101 = vmatpush.bf16.msra.mxu0 %v2733
        %4102 = vmatpush.bf16.msra.mxu0 %v2731
        %4103 = vmatpush.bf16.msra.mxu0 %v2729
        %4104 = vmatmul.bf16.gmra.mxu0 %v768
        %v4105 = vpop.f32.mrf.mxu0
        %v4106 = vadd.f32 %v4093, %v4105
        %v4107 = vpop.f32.mrf.mxu0
        %4108 = vdwg.mxu0
        %4109 = vmatpush.bf16.msra.mxu0 %v2759
        %4110 = vmatpush.bf16.msra.mxu0 %v2757
        %4111 = vmatpush.bf16.msra.mxu0 %v2755
        %4112 = vmatpush.bf16.msra.mxu0 %v2753
        %4113 = vmatpush.bf16.msra.mxu0 %v2751
        %4114 = vmatpush.bf16.msra.mxu0 %v2749
        %4115 = vmatpush.bf16.msra.mxu0 %v2747
        %4116 = vmatpush.bf16.msra.mxu0 %v2745
        %4117 = vmatmul.bf16.gmra.mxu0 %v769
        %v4118 = vpop.f32.mrf.mxu0
        %v4119 = vadd.f32 %v4106, %v4118
        %v4120 = vpop.f32.mrf.mxu0
        %4121 = vdwg.mxu0
        %4122 = vmatpush.bf16.msra.mxu0 %v2775
        %4123 = vmatpush.bf16.msra.mxu0 %v2773
        %4124 = vmatpush.bf16.msra.mxu0 %v2771
        %4125 = vmatpush.bf16.msra.mxu0 %v2769
        %4126 = vmatpush.bf16.msra.mxu0 %v2767
        %4127 = vmatpush.bf16.msra.mxu0 %v2765
        %4128 = vmatpush.bf16.msra.mxu0 %v2763
        %4129 = vmatpush.bf16.msra.mxu0 %v2761
        %4130 = vmatmul.bf16.gmra.mxu0 %v770
        %v4131 = vpop.f32.mrf.mxu0
        %v4132 = vadd.f32 %v4119, %v4131
        %v4133 = vpop.f32.mrf.mxu0
        %4134 = vdwg.mxu0
        %4135 = vmatpush.bf16.msra.mxu0 %v2791
        %4136 = vmatpush.bf16.msra.mxu0 %v2789
        %4137 = vmatpush.bf16.msra.mxu0 %v2787
        %4138 = vmatpush.bf16.msra.mxu0 %v2785
        %4139 = vmatpush.bf16.msra.mxu0 %v2783
        %4140 = vmatpush.bf16.msra.mxu0 %v2781
        %4141 = vmatpush.bf16.msra.mxu0 %v2779
        %4142 = vmatpush.bf16.msra.mxu0 %v2777
        %4143 = vmatmul.bf16.gmra.mxu0 %v771
        %v4144 = vpop.f32.mrf.mxu0
        %v4145 = vadd.f32 %v4132, %v4144
        %v4146 = vpop.f32.mrf.mxu0
        %4147 = vdwg.mxu0
        %4148 = vmatpush.bf16.msra.mxu0 %v2807
        %4149 = vmatpush.bf16.msra.mxu0 %v2805
        %4150 = vmatpush.bf16.msra.mxu0 %v2803
        %4151 = vmatpush.bf16.msra.mxu0 %v2801
        %4152 = vmatpush.bf16.msra.mxu0 %v2799
        %4153 = vmatpush.bf16.msra.mxu0 %v2797
        %4154 = vmatpush.bf16.msra.mxu0 %v2795
        %4155 = vmatpush.bf16.msra.mxu0 %v2793
        %4156 = vmatmul.bf16.gmra.mxu0 %v772
        %v4157 = vpop.f32.mrf.mxu0
        %v4158 = vadd.f32 %v4145, %v4157
        %v4159 = vpop.f32.mrf.mxu0
        %4160 = vdwg.mxu0
        %4161 = vmatpush.bf16.msra.mxu0 %v2823
        %4162 = vmatpush.bf16.msra.mxu0 %v2821
        %4163 = vmatpush.bf16.msra.mxu0 %v2819
        %4164 = vmatpush.bf16.msra.mxu0 %v2817
        %4165 = vmatpush.bf16.msra.mxu0 %v2815
        %4166 = vmatpush.bf16.msra.mxu0 %v2813
        %4167 = vmatpush.bf16.msra.mxu0 %v2811
        %4168 = vmatpush.bf16.msra.mxu0 %v2809
        %4169 = vmatmul.bf16.gmra.mxu0 %v773
        %v4170 = vpop.f32.mrf.mxu0
        %v4171 = vadd.f32 %v4158, %v4170
        %v4172 = vpop.f32.mrf.mxu0
        %4173 = vdwg.mxu0
        %4174 = vmatpush.bf16.msra.mxu0 %v2839
        %4175 = vmatpush.bf16.msra.mxu0 %v2837
        %4176 = vmatpush.bf16.msra.mxu0 %v2835
        %4177 = vmatpush.bf16.msra.mxu0 %v2833
        %4178 = vmatpush.bf16.msra.mxu0 %v2831
        %4179 = vmatpush.bf16.msra.mxu0 %v2829
        %4180 = vmatpush.bf16.msra.mxu0 %v2827
        %4181 = vmatpush.bf16.msra.mxu0 %v2825
        %4182 = vmatmul.bf16.gmra.mxu0 %v774
        %v4183 = vpop.f32.mrf.mxu0
        %v4184 = vadd.f32 %v4171, %v4183
        %v4185 = vpop.f32.mrf.mxu0
        %4186 = vdwg.mxu0
        %4187 = vmatpush.bf16.msra.mxu0 %v2855
        %4188 = vmatpush.bf16.msra.mxu0 %v2853
        %4189 = vmatpush.bf16.msra.mxu0 %v2851
        %4190 = vmatpush.bf16.msra.mxu0 %v2849
        %4191 = vmatpush.bf16.msra.mxu0 %v2847
        %4192 = vmatpush.bf16.msra.mxu0 %v2845
        %4193 = vmatpush.bf16.msra.mxu0 %v2843
        %4194 = vmatpush.bf16.msra.mxu0 %v2841
        %4195 = vmatmul.bf16.gmra.mxu0 %v775
        %v4196 = vpop.f32.mrf.mxu0
        %v4197 = vadd.f32 %v4184, %v4196
        %v4198 = vpop.f32.mrf.mxu0
        %4199 = vdwg.mxu0
        %4200 = vst [vmem:[#allocation2] sm:$0x3f] %v3781
        %4201 = vst [vmem:[#allocation2 + $0x8] sm:$0x3f] %v4197
        %v4202 = vld [vmem:[%s2] sm:$0xf]
        %v4203 = vld [vmem:[%s2 + $0x4] sm:$0xf]
        %v4204 = vld [vmem:[%s2 + $0x8] sm:$0xf]
        %v4205 = vld [vmem:[%s2 + $0xc] sm:$0xf]
        %v4206 = vld [vmem:[%s2 + $0x10] sm:$0xf]
        %v4207 = vld [vmem:[%s2 + $0x14] sm:$0xf]
        %v4208 = vld [vmem:[%s2 + $0x18] sm:$0xf]
        %v4209 = vld [vmem:[%s2 + $0x1c] sm:$0xf]
        %v4210 = vld [vmem:[%s2 + $0x20] sm:$0xf]
        %v4211 = vld [vmem:[%s2 + $0x24] sm:$0xf]
        %v4212 = vld [vmem:[%s2 + $0x28] sm:$0xf]
        %v4213 = vld [vmem:[%s2 + $0x2c] sm:$0xf]
        %v4214 = vld [vmem:[%s2 + $0x30] sm:$0xf]
        %v4215 = vld [vmem:[%s2 + $0x34] sm:$0xf]
        %v4216 = vld [vmem:[%s2 + $0x38] sm:$0xf]
        %v4217 = vld [vmem:[%s2 + $0x3c] sm:$0xf]
        %v4218 = vld [vmem:[%s2 + $0x40] sm:$0xf]
        %v4219 = vld [vmem:[%s2 + $0x44] sm:$0xf]
        %v4220 = vld [vmem:[%s2 + $0x48] sm:$0xf]
        %v4221 = vld [vmem:[%s2 + $0x4c] sm:$0xf]
        %v4222 = vld [vmem:[%s2 + $0x50] sm:$0xf]
        %v4223 = vld [vmem:[%s2 + $0x54] sm:$0xf]
        %v4224 = vld [vmem:[%s2 + $0x58] sm:$0xf]
        %v4225 = vld [vmem:[%s2 + $0x5c] sm:$0xf]
        %v4226 = vld [vmem:[%s2 + $0x60] sm:$0xf]
        %v4227 = vld [vmem:[%s2 + $0x64] sm:$0xf]
        %v4228 = vld [vmem:[%s2 + $0x68] sm:$0xf]
        %v4229 = vld [vmem:[%s2 + $0x6c] sm:$0xf]
        %v4230 = vld [vmem:[%s2 + $0x70] sm:$0xf]
        %v4231 = vld [vmem:[%s2 + $0x74] sm:$0xf]
        %v4232 = vld [vmem:[%s2 + $0x78] sm:$0xf]
        %v4233 = vld [vmem:[%s2 + $0x7c] sm:$0xf]
        loop: start=0, step=1, limit=6
        $region33: #{escape_net_snn_forward.7} parent=31 // loop_pre_header
          _
        $region34: #{escape_net_snn_forward.7} parent=31 // loop_header
          %s4235 = sphi 0, %s4239
          %p4236 = scmp.ge.s32.totalorder %s4235, 6
          %v4240 = vphi 0.0, %v4256
          %v4241 = vphi 0.0, %v4417
        $region35: #{escape_net_snn_forward.7} parent=31 // loop_header_branch
          %4238 = sbr.rel (%p4236) target = $region39
        $region36: #{escape_net_snn_forward.7} parent=31 // loop_body
          %v4242 = vsub.f32 %v4240, 1.0
          %vm4243 = vcmp.gt.f32.partialorder %v4242, 0.0
          %v4244 = vsel %vm4243, 1, 0
          %v4245 = vcvt.s32.f32 %v4244
          %s4246 = sshra.s32 %s4235, 3
          %s4247 = sand.u32 %s4235, 7
          %s4248 = sshra.s32 %s4235, 3
          %s4249 = sand.u32 %s4235, 7
          %s4250 = smul.u32 %s4246, 2
          %s4251 = smul.u32 %s4250, 8
          %s4252 = sadd.s32 %s4251, %s4249
          %s4253 = scalar_lea.vmem [#allocation2], %s4252
          %v4254 = vld [vmem:[%s4253] ss:$8 sm:$0x3]
          %v4255 = vadd.f32 %v4240, %v4254
          %v4256 = vsub.f32 %v4255, %v4245
          %v4257 = vsub.f32 %v4241, 1.0
          %vm4258 = vcmp.gt.f32.partialorder %v4257, 0.0
          %v4259 = vsel %vm4258, 1, 0
          %v4260 = vcvt.s32.f32 %v4259
          %vm4261 = vcmask 16384
          %v4262 = vsel %vm4261, %v4260, -inf
          %4263 = vmax.xlane.f32.xlu0 %v4262
          %v4264 = vpop.xlane.xlu0 %4263
          %v4265 = vsub.f32 %v4260, %v4264
          %v4266 = vmul.f32 %v4265, 1.442695
          %v4267 = vpow.pop %v4266
          %v4268 = vsel %vm4261, %v4267, 0.0
          %4269 = vadd.xlane.f32.xlu0 %v4268
          %v4270 = vpop.xlane.xlu0 %4269
          %v4271 = vrcp.pop %v4270
          %v4272 = vmul.f32 %v4270, %v4271
          %v4273 = vsub.f32 1.0, %v4272
          %v4274 = vmul.f32 %v4271, %v4273
          %v4275 = vadd.f32 %v4271, %v4274
          %vm4276 = vweird.f32 %v4270
          %vm4277 = vweird.f32 %v4271
          %vm4278 = vmor %vm4276, %vm4277
          %v4279 = vsel %vm4278, %v4271, %v4275
          %v4280 = vand.u32 2147483647, %v4270
          %vm4281 = vcmp.eq.f32.partialorder %v4280, 8.507059e+37
          %v4282 = vand.u32 %v4270, 2147483648
          %v4283 = vor.u32 1.1754944e-38, %v4282
          %v4284 = vsel %vm4281, %v4283, %v4279
          %v4285 = vmul.f32 %v4267, %v4284
          %v4287 = vperm.slane %v4245, 0
          %v4288 = vperm.slane %v4245, 1
          %v4291 = vpack.c.bf16 %v4287, %v4287
          %v4292 = vpack.c.bf16 %v4288, %v4288
          %v4325 = vunpack.c.l.b16 %v4202
          %v4326 = vunpack.c.l.b16 %v4203
          %v4327 = vunpack.c.l.b16 %v4204
          %v4328 = vunpack.c.l.b16 %v4205
          %v4329 = vunpack.c.l.b16 %v4206
          %v4330 = vunpack.c.l.b16 %v4207
          %v4331 = vunpack.c.l.b16 %v4208
          %v4332 = vunpack.c.l.b16 %v4209
          %v4333 = vunpack.c.l.b16 %v4210
          %v4334 = vunpack.c.l.b16 %v4211
          %v4335 = vunpack.c.l.b16 %v4212
          %v4336 = vunpack.c.l.b16 %v4213
          %v4337 = vunpack.c.l.b16 %v4214
          %v4338 = vunpack.c.l.b16 %v4215
          %v4339 = vunpack.c.l.b16 %v4216
          %v4340 = vunpack.c.l.b16 %v4217
          %v4341 = vunpack.c.l.b16 %v4218
          %v4342 = vunpack.c.l.b16 %v4219
          %v4343 = vunpack.c.l.b16 %v4220
          %v4344 = vunpack.c.l.b16 %v4221
          %v4345 = vunpack.c.l.b16 %v4222
          %v4346 = vunpack.c.l.b16 %v4223
          %v4347 = vunpack.c.l.b16 %v4224
          %v4348 = vunpack.c.l.b16 %v4225
          %v4349 = vunpack.c.l.b16 %v4226
          %v4350 = vunpack.c.l.b16 %v4227
          %v4351 = vunpack.c.l.b16 %v4228
          %v4352 = vunpack.c.l.b16 %v4229
          %v4353 = vunpack.c.l.b16 %v4230
          %v4354 = vunpack.c.l.b16 %v4231
          %v4355 = vunpack.c.l.b16 %v4232
          %v4356 = vunpack.c.l.b16 %v4233
          %v4357 = vpack.c.b16 %v4326, %v4325
          %v4358 = vpack.c.b16 %v4328, %v4327
          %v4359 = vpack.c.b16 %v4330, %v4329
          %v4360 = vpack.c.b16 %v4332, %v4331
          %v4361 = vpack.c.b16 %v4334, %v4333
          %v4362 = vpack.c.b16 %v4336, %v4335
          %v4363 = vpack.c.b16 %v4338, %v4337
          %v4364 = vpack.c.b16 %v4340, %v4339
          %v4365 = vpack.c.b16 %v4342, %v4341
          %v4366 = vpack.c.b16 %v4344, %v4343
          %v4367 = vpack.c.b16 %v4346, %v4345
          %v4368 = vpack.c.b16 %v4348, %v4347
          %v4369 = vpack.c.b16 %v4350, %v4349
          %v4370 = vpack.c.b16 %v4352, %v4351
          %v4371 = vpack.c.b16 %v4354, %v4353
          %v4372 = vpack.c.b16 %v4356, %v4355
          %4389 = vmatpush.bf16.msra.mxu0 %v4364
          %4390 = vmatpush.bf16.msra.mxu0 %v4363
          %4391 = vmatpush.bf16.msra.mxu0 %v4362
          %4392 = vmatpush.bf16.msra.mxu0 %v4361
          %4393 = vmatpush.bf16.msra.mxu0 %v4360
          %4394 = vmatpush.bf16.msra.mxu0 %v4359
          %4395 = vmatpush.bf16.msra.mxu0 %v4358
          %4396 = vmatpush.bf16.msra.mxu0 %v4357
          %4397 = vmatmul.bf16.gmra.mxu0 %v4291
          %v4398 = vpop.f32.mrf.mxu0
          %v4399 = vadd.f32 0.0, %v4398
          %v4400 = vpop.f32.mrf.mxu0
          %4401 = vdwg.mxu0
          %4402 = vmatpush.bf16.msra.mxu0 %v4372
          %4403 = vmatpush.bf16.msra.mxu0 %v4371
          %4404 = vmatpush.bf16.msra.mxu0 %v4370
          %4405 = vmatpush.bf16.msra.mxu0 %v4369
          %4406 = vmatpush.bf16.msra.mxu0 %v4368
          %4407 = vmatpush.bf16.msra.mxu0 %v4367
          %4408 = vmatpush.bf16.msra.mxu0 %v4366
          %4409 = vmatpush.bf16.msra.mxu0 %v4365
          %4410 = vmatmul.bf16.gmra.mxu0 %v4292
          %v4411 = vpop.f32.mrf.mxu0
          %v4412 = vadd.f32 %v4399, %v4411
          %v4413 = vpop.f32.mrf.mxu0
          %4414 = vdwg.mxu0
          %v4415 = vadd.f32 %v4241, %v4412
          %v4416 = vsub.f32 %v4415, %v4260
          %v4417 = vadd.f32 %v4416, %v4285
        $region37: #{escape_net_snn_forward.7} parent=31 // loop_footer
          %s4239 = sadd.s32 1, %s4235
        $region38: #{escape_net_snn_forward.7} parent=31 // loop_footer_branch
          %4234 = sbr.rel target = $region34
        $region39: #{escape_net_snn_forward.7} parent=31 // loop_exit
          _
        %vm4418 = vcmask 16384
        %4419 = vst.msk [vmem:[%s162] sm:$0x1] %vm4418, %v4241
        %s4420 = sand.u32 %s93, 1
        %s4421 = scalar_lea.sflag [#allocation4], %s4420
        %s4422 = sand.u32 %s93, 1
        %s4423 = scalar_lea.vmem [#allocation3], %s4422
        // Predicated region
        $region40: #{escape_net_snn_forward.7} parent=31 // pred_check
          %p4424 = pneg %p103
        $region41: #{escape_net_snn_forward.7} parent=31 // pred_check_branch
          %4426 = sbr.rel (%p4424) target = $region43
        $region42: #{escape_net_snn_forward.7} parent=31 // pred_region
          %4428 = vsyncadd %s4421, 0
          %s4429 = scalar_lea.hbm %s3, %s17
          %s4431 = sshll.u32 %s4423, 4
          %s4432 = int_to_ptr.vmem [resolvable:$true] %s4431
          %s4433 = sshll.u32 %s4429, 4
          %s4434 = int_to_ptr.hbm [resolvable:$true] %s4433
          %4436 = dma.vmem_to_hbm [thread:$0]  %s4432, 16, %s4434, %s4421
        $region43: #{escape_net_snn_forward.7} parent=31 // pred_fallthru
          _
      $region32: #{escape_net_snn_forward.7} parent=5 // pred_fallthru
        _
      %p4437 = scmp.le.s32.totalorder 2, %s12
      // Predicated region
      $region44: #{escape_net_snn_forward.7} parent=5 // pred_check
        %p4438 = pneg %p4437
      $region45: #{escape_net_snn_forward.7} parent=5 // pred_check_branch
        %4440 = sbr.rel (%p4438) target = $region47
      $region46: #{escape_net_snn_forward.7} parent=5 // pred_region
        %s4441 = ssub.s32 %s12, 2
        // Predicated region
        $region48: #{escape_net_snn_forward.7} parent=46 // pred_check
          %p4442 = pneg %p109
        $region49: #{escape_net_snn_forward.7} parent=46 // pred_check_branch
          %4444 = sbr.rel (%p4442) target = $region51
        $region50: #{escape_net_snn_forward.7} parent=46 // pred_region
          %s4445 = sand.u32 %s94, 1
          %s4446 = scalar_lea.sflag [#allocation4], %s4445
          %s4447 = sand.u32 %s94, 1
          %s4448 = scalar_lea.vmem [#allocation3], %s4447
          %4450 = dma.done %s4446, 16
        $region51: #{escape_net_snn_forward.7} parent=46 // pred_fallthru
          _
      $region47: #{escape_net_snn_forward.7} parent=5 // pred_fallthru
        _
    $region6: #{escape_net_snn_forward.7} parent=1 // loop_footer
      %s16 = sadd.s32 1, %s12
    $region7: #{escape_net_snn_forward.7} parent=1 // loop_footer_branch
      %11 = sbr.rel target = $region3
    $region8: #{escape_net_snn_forward.7} parent=1 // loop_exit
      _
    %4451 = vsyncpa [#allocation4], 1
    %s4452 = scalar_lea.sflag [#allocation4], 1
    %4453 = vsyncpa %s4452, 1

</llo_original>
